<compile_context>
chip_gen: v7x
topology: tpu7x:2x2x1
jax: 0.10.0
libtpu: 0.0.40
codegen_flags: <defaults>
</compile_context>

<pallas_src>
import math
import jax
import jax.numpy as jnp
from jax.experimental import pallas as pl
from jax.experimental.pallas import tpu as pltpu

# ---- config (matches the module) ----
HIDDEN = 32
NUM_HEADS = 4
HEAD_DIM = HIDDEN // NUM_HEADS
MLP_DIM = 64
NUM_LAYERS = 2
PATCH = 36                                   # Conv2d kernel_size == stride == 36
IN_CH = 2
EPS = 1e-6
_SQRT2 = math.sqrt(2.0)
K_IN = IN_CH * PATCH * PATCH                 # 2592 flattened patch length
K_PAD = ((K_IN + 127) // 128) * 128          # 2688: lane-aligned K for the big matmul


# ----------------- in-kernel helpers -----------------
def _layernorm(x, w, b):
    mu = jnp.mean(x, axis=-1, keepdims=True)
    var = jnp.mean((x - mu) ** 2, axis=-1, keepdims=True)
    return (x - mu) * jax.lax.rsqrt(var + EPS) * w + b


def _gelu_exact(x):
    # matches torch.nn.GELU() (erf form)
    return 0.5 * x * (1.0 + jax.lax.erf(x / _SQRT2))


# ----------------- fully fused Pallas kernel -----------------
def _make_fused_kernel(B, S, S_pad):
    """B batches, S real tokens (cls + patches), S_pad (multiple of 8) padded rows."""
    BS = B * S_pad

    def kernel(patches_ref, conv_w_ref, tok_add_ref, wa_ref, w2_ref, vec_ref,
               misc_ref, enc_out_ref, logits_ref):
        # ---- patch embedding (bf16 x bf16 -> f32 accumulate) + cls/bias slab ----
        # patches already contain zero rows at the cls/pad slots, so a single add of
        # the precomputed tok_add slab places cls_token and conv bias with no
        # per-row masked stores.
        x = (jnp.dot(patches_ref[...], conv_w_ref[...],
                     preferred_element_type=jnp.float32)
             + tok_add_ref[...])                                     # (BS, H) f32

        # additive key-padding mask: pad key slots (>= S within each batch block)
        # get -1e30 so they vanish in softmax.
        kpos = jax.lax.broadcasted_iota(jnp.int32, (1, 1, S_pad), 2)
        key_bias = jnp.where(kpos < S, 0.0, -1e30)                   # (1, 1, S_pad)

        for l in range(NUM_LAYERS):
            wa = wa_ref[l]          # (H, 192) = [wq*scale | wk | wv | wo | w1]
            w2 = w2_ref[l]          # (MLP_DIM, H)
            vec = vec_ref[l]        # (8, 128) packed per-layer vectors

            ln1w = vec[0:1, :HIDDEN]
            ln1b = vec[1:2, :HIDDEN]
            b_qkv = vec[2:3, :3 * HIDDEN]       # [bq*scale | bk | bv]
            bo = vec[3:4, :HIDDEN]
            ln2w = vec[4:5, :HIDDEN]
            ln2b = vec[5:6, :HIDDEN]
            b1 = vec[6:7, :MLP_DIM]
            b2 = vec[7:8, :HIDDEN]

            w_qkv = wa[:, :3 * HIDDEN]                          # (H, 96)
            wo = wa[:, 3 * HIDDEN:4 * HIDDEN]                   # (H, H)
            w1 = wa[:, 4 * HIDDEN:4 * HIDDEN + MLP_DIM]         # (H, MLP_DIM)

            # ---------------- multi-head self-attention ----------------
            res = x
            xn = _layernorm(x, ln1w, ln1b)
            qkv = jnp.dot(xn, w_qkv,
                          preferred_element_type=jnp.float32) + b_qkv   # (BS, 96)

            attn = None
            for h in range(NUM_HEADS):
                qs = h * HEAD_DIM
                # lane slices + leading-dim reshapes only (no stack / concat)
                q = qkv[:, qs:qs + HEAD_DIM].reshape(B, S_pad, HEAD_DIM)
                k = qkv[:, HIDDEN + qs:HIDDEN + qs + HEAD_DIM].reshape(
                    B, S_pad, HEAD_DIM)
                v = qkv[:, 2 * HIDDEN + qs:2 * HIDDEN + qs + HEAD_DIM].reshape(
                    B, S_pad, HEAD_DIM)

                s = jnp.einsum("bqd,bkd->bqk", q, k,
                               preferred_element_type=jnp.float32) + key_bias
                s = s - jnp.max(s, axis=-1, keepdims=True)       # softmax(dim=-1)
                e = jnp.exp(s)
                p = e * pl.reciprocal(jnp.sum(e, axis=-1, keepdims=True),
                                      approx=False)
                ctx = jnp.einsum("bqk,bkd->bqd", p, v,
                                 preferred_element_type=jnp.float32)
                # accumulate the output projection per head: no head reassembly.
                part = jnp.dot(ctx.reshape(BS, HEAD_DIM),
                               wo[qs:qs + HEAD_DIM, :],
                               preferred_element_type=jnp.float32)
                attn = part if attn is None else attn + part

            x = attn + bo + res                                  # residual 1

            # ---------------- MLP ----------------
            res = x
            xn = _layernorm(x, ln2w, ln2b)
            y = jnp.dot(xn, w1, preferred_element_type=jnp.float32) + b1
            y = _gelu_exact(y)
            y = jnp.dot(y, w2, preferred_element_type=jnp.float32) + b2
            x = y + res                                          # residual 2

        # ---- encoder LayerNorm + classification head (VPU mul + lane reduce) ----
        encoded = _layernorm(x, misc_ref[0:1, :HIDDEN], misc_ref[1:2, :HIDDEN])
        enc_out_ref[...] = encoded
        head_w = misc_ref[2:3, :HIDDEN]                          # (1, H)
        head_b = misc_ref[3:4, 0:1]                              # (1, 1)
        logits_ref[...] = (jnp.sum(encoded * head_w, axis=-1, keepdims=True)
                           + head_b)                             # (BS, 1)

    return kernel


# ----------------- wrappers -----------------
_VMEM = pl.BlockSpec(memory_space=pltpu.MemorySpace.VMEM)


def _fused_forward(input_ids, packed):
    # input_ids: (B, 2, Hs, Ws) -- NCHW like PyTorch
    B, C, Hs, Ws = input_ids.shape
    ph, pw = Hs // PATCH, Ws // PATCH
    P = ph * pw
    S = P + 1
    S_pad = ((S + 7) // 8) * 8          # sublane-aligned rows per batch

    # Conv2d(k=36, s=36) == non-overlapping patch extraction (layout only; matmul
    # happens in-kernel).  Zero rows are left at the cls/pad slots so the kernel
    # never does partial-row stores; K is lane-padded to 2688; bf16 halves the DMA.
    patches = input_ids.reshape(B, C, ph, PATCH, pw, PATCH)
    patches = patches.transpose(0, 2, 4, 1, 3, 5).reshape(B, P, K_IN)
    patches_pad = jnp.zeros((B, S_pad, K_PAD), jnp.bfloat16)
    patches_pad = patches_pad.at[:, 1:1 + P, :K_IN].set(patches.astype(jnp.bfloat16))
    patches_flat = patches_pad.reshape(B * S_pad, K_PAD)

    # additive slab: cls_token in row 0 of each batch block, conv bias in patch rows.
    tok_add = jnp.zeros((B, S_pad, HIDDEN), jnp.float32)
    tok_add = tok_add.at[:, 0, :].set(packed["cls_token"])
    tok_add = tok_add.at[:, 1:1 + P, :].set(packed["conv_b"])
    tok_add = tok_add.reshape(B * S_pad, HIDDEN)

    enc_flat, logits_flat = pl.pallas_call(
        _make_fused_kernel(B, S, S_pad),
        out_shape=(jax.ShapeDtypeStruct((B * S_pad, HIDDEN), jnp.float32),
                   jax.ShapeDtypeStruct((B * S_pad, 1), jnp.float32)),
        in_specs=[_VMEM] * 7,
        out_specs=(_VMEM, _VMEM),
    )(patches_flat, packed["conv_w"], tok_add,
      packed["w_a"], packed["w_2"], packed["vec"], packed["misc"])

    encoded = enc_flat.reshape(B, S_pad, HIDDEN)[:, :S, :]       # drop pad rows
    cls_logits = logits_flat.reshape(B, S_pad, 1)[:, 0, :]       # head(x[:, 0])
    return encoded, cls_logits


def transformer_forward(input_ids, packed):
    encoded, _ = _fused_forward(input_ids, packed)
    return encoded, []                                           # vis=False -> no maps


def avenger_forward(input_ids, packed):
    # TODO(synk): the labels / CrossEntropyLoss training branch is not implemented
    # (inference path only, labels=None).
    _, cls_logits = _fused_forward(input_ids, packed)
    return cls_logits[1:], []                                    # logits = head(x[:,0])[1:]


# ----------------- parameter init (PyTorch layout) + packing -----------------
def init_params(key):
    ks = iter(jax.random.split(key, 64))
    nrm = lambda shape, s=0.02: (s * jax.random.normal(next(ks), shape)).astype(jnp.float32)
    raw = {
        "conv_w": nrm((HIDDEN, IN_CH, PATCH, PATCH)),    # PyTorch Conv2d layout
        "conv_b": nrm((HIDDEN,)),
        "cls_token": jnp.zeros((HIDDEN,), jnp.float32),
        "enc_ln_w": jnp.ones((HIDDEN,), jnp.float32),
        "enc_ln_b": jnp.zeros((HIDDEN,), jnp.float32),
        "head_w": nrm((HIDDEN,)),                        # Linear(hidden, 1) weight row
        "head_b": nrm((1,)),
        "layers": [],
    }
    for _ in range(NUM_LAYERS):
        raw["layers"].append({
            "ln1_w": jnp.ones((HIDDEN,), jnp.float32),
            "ln1_b": jnp.zeros((HIDDEN,), jnp.float32),
            "wq": nrm((HIDDEN, HIDDEN)), "bq": nrm((HIDDEN,)),   # weights in (in,out)
            "wk": nrm((HIDDEN, HIDDEN)), "bk": nrm((HIDDEN,)),
            "wv": nrm((HIDDEN, HIDDEN)), "bv": nrm((HIDDEN,)),
            "wo": nrm((HIDDEN, HIDDEN)), "bo": nrm((HIDDEN,)),
            "ln2_w": jnp.ones((HIDDEN,), jnp.float32),
            "ln2_b": jnp.zeros((HIDDEN,), jnp.float32),
            "w1": nrm((HIDDEN, MLP_DIM)), "b1": nrm((MLP_DIM,), 1e-6),
            "w2": nrm((MLP_DIM, HIDDEN)), "b2": nrm((HIDDEN,), 1e-6),
        })
    return raw


def pack_params(raw):
    """Pack ~40 tiny parameters into 7 DMA-friendly slabs (done ONCE at init)."""
    scale = 1.0 / math.sqrt(HEAD_DIM)
    wa_list, w2_list, vec_list = [], [], []
    for lp in raw["layers"]:
        # [wq*scale | wk | wv | wo | w1] -> (H, 192); softmax scale folded into q.
        wqkv = jnp.concatenate([lp["wq"] * scale, lp["wk"], lp["wv"]], axis=1)
        wa_list.append(jnp.concatenate([wqkv, lp["wo"], lp["w1"]], axis=1))
        w2_list.append(lp["w2"])
        vec = jnp.zeros((8, 128), jnp.float32)
        vec = vec.at[0, :HIDDEN].set(lp["ln1_w"])
        vec = vec.at[1, :HIDDEN].set(lp["ln1_b"])
        vec = vec.at[2, :3 * HIDDEN].set(
            jnp.concatenate([lp["bq"] * scale, lp["bk"], lp["bv"]]))
        vec = vec.at[3, :HIDDEN].set(lp["bo"])
        vec = vec.at[4, :HIDDEN].set(lp["ln2_w"])
        vec = vec.at[5, :HIDDEN].set(lp["ln2_b"])
        vec = vec.at[6, :MLP_DIM].set(lp["b1"])
        vec = vec.at[7, :HIDDEN].set(lp["b2"])
        vec_list.append(vec)

    misc = jnp.zeros((8, 128), jnp.float32)
    misc = misc.at[0, :HIDDEN].set(raw["enc_ln_w"])
    misc = misc.at[1, :HIDDEN].set(raw["enc_ln_b"])
    misc = misc.at[2, :HIDDEN].set(raw["head_w"])
    misc = misc.at[3, 0].set(raw["head_b"][0])

    # conv weight: (H, C, kh, kw) -> (C*kh*kw, H), zero-pad K 2592->2688, bf16.
    conv_w = raw["conv_w"].reshape(HIDDEN, K_IN).T
    conv_w_p = jnp.zeros((K_PAD, HIDDEN), jnp.bfloat16)
    conv_w_p = conv_w_p.at[:K_IN, :].set(conv_w.astype(jnp.bfloat16))

    return {
        "conv_w": conv_w_p,                       # (K_PAD, H) bf16
        "conv_b": raw["conv_b"],                  # (H,)  f32 (goes into tok_add)
        "cls_token": raw["cls_token"],            # (H,)  f32 (goes into tok_add)
        "w_a": jnp.stack(wa_list),                # (L, H, 192) f32
        "w_2": jnp.stack(w2_list),                # (L, MLP_DIM, H) f32
        "vec": jnp.stack(vec_list),               # (L, 8, 128) f32
        "misc": misc,                             # (8, 128) f32
    }


if __name__ == "__main__":
    key = jax.random.PRNGKey(0)
    k_p, k_x = jax.random.split(key)
    packed = pack_params(init_params(k_p))
    # input: B=2, C=2 (event channels), 72x72 -> 2x2 = 4 patches -> seq len = 5
    x = jax.random.normal(k_x, (2, IN_CH, 72, 72), dtype=jnp.float32)

    encoded, attn_weights = transformer_forward(x, packed)
    logits, attn_weights2 = avenger_forward(x, packed)
    jax.block_until_ready((encoded, logits))

    assert encoded.shape == (2, 5, HIDDEN)
    assert logits.shape == (1, 1)              # head(x[:, 0])[1:] with B=2
    assert attn_weights == [] and attn_weights2 == []
    assert bool(jnp.all(jnp.isfinite(encoded))) and bool(jnp.all(jnp.isfinite(logits)))
    print("KERNEL_OK")
</pallas_src>

<mosaic_0001>
module attributes {stable_mosaic.version = 11 : i64} {
  func.func @kernel(%arg0: memref<16x2688xbf16, #tpu.memory_space<vmem>>, %arg1: memref<2688x32xbf16, #tpu.memory_space<vmem>>, %arg2: memref<16x32xf32, #tpu.memory_space<vmem>>, %arg3: memref<2x32x192xf32, #tpu.memory_space<vmem>>, %arg4: memref<2x64x32xf32, #tpu.memory_space<vmem>>, %arg5: memref<2x8x128xf32, #tpu.memory_space<vmem>>, %arg6: memref<8x128xf32, #tpu.memory_space<vmem>>, %arg7: memref<16x32xf32, #tpu.memory_space<vmem>>, %arg8: memref<16x1xf32, #tpu.memory_space<vmem>>) attributes {dimension_semantics = [], scalar_prefetch = 0 : i64, scratch_operands = 0 : i64, tpu.core_type = #tpu.core_type<tc>} {
    %c0 = arith.constant 0 : index
    %c0_0 = arith.constant 0 : index
    %0 = vector.load %arg0[%c0, %c0_0] : memref<16x2688xbf16, #tpu.memory_space<vmem>>, vector<16x2688xbf16>
    %c0_1 = arith.constant 0 : index
    %c0_2 = arith.constant 0 : index
    %1 = vector.load %arg1[%c0_1, %c0_2] : memref<2688x32xbf16, #tpu.memory_space<vmem>>, vector<2688x32xbf16>
    %cst = arith.constant dense<0.000000e+00> : vector<16x32xf32>
    %2 = tpu.matmul %0, %1, %cst {dimension_numbers = #tpu.dot_dimension_numbers<[1], [0], [0], [1], [0, 0, 1, 1], [], []>} : vector<16x2688xbf16>, vector<2688x32xbf16>, vector<16x32xf32> -> vector<16x32xf32>
    %c0_3 = arith.constant 0 : index
    %c0_4 = arith.constant 0 : index
    %3 = vector.load %arg2[%c0_3, %c0_4] : memref<16x32xf32, #tpu.memory_space<vmem>>, vector<16x32xf32>
    %4 = arith.addf %2, %3 : vector<16x32xf32>
    %5 = tpu.iota {dimensions = array<i32: 2>} : vector<1x1x8xi32>
    %c5_i32 = arith.constant 5 : i32
    %6 = vector.broadcast %c5_i32 : i32 to vector<1x1x8xi32>
    %7 = arith.cmpi slt, %5, %6 : vector<1x1x8xi32>
    %cst_5 = arith.constant 0.000000e+00 : f32
    %cst_6 = arith.constant -1.000000e+30 : f32
    %8 = vector.broadcast %cst_5 : f32 to vector<1x1x8xf32>
    %9 = vector.broadcast %cst_6 : f32 to vector<1x1x8xf32>
    %10 = arith.select %7, %8, %9 : vector<1x1x8xi1>, vector<1x1x8xf32>
    %c0_7 = arith.constant 0 : index
    %c0_8 = arith.constant 0 : index
    %c0_9 = arith.constant 0 : index
    %11 = vector.load %arg3[%c0_7, %c0_8, %c0_9] : memref<2x32x192xf32, #tpu.memory_space<vmem>>, vector<1x32x192xf32>
    %12 = vector.shape_cast %11 : vector<1x32x192xf32> to vector<32x192xf32>
    %c0_10 = arith.constant 0 : index
    %c0_11 = arith.constant 0 : index
    %c0_12 = arith.constant 0 : index
    %13 = vector.load %arg4[%c0_10, %c0_11, %c0_12] : memref<2x64x32xf32, #tpu.memory_space<vmem>>, vector<1x64x32xf32>
    %14 = vector.shape_cast %13 : vector<1x64x32xf32> to vector<64x32xf32>
    %c0_13 = arith.constant 0 : index
    %c0_14 = arith.constant 0 : index
    %c0_15 = arith.constant 0 : index
    %15 = vector.load %arg5[%c0_13, %c0_14, %c0_15] : memref<2x8x128xf32, #tpu.memory_space<vmem>>, vector<1x8x128xf32>
    %16 = vector.shape_cast %15 : vector<1x8x128xf32> to vector<8x128xf32>
    %17 = vector.extract_strided_slice %16 {offsets = [0, 0], sizes = [1, 32], strides = [1, 1]} : vector<8x128xf32> to vector<1x32xf32>
    %18 = vector.extract_strided_slice %16 {offsets = [1, 0], sizes = [1, 32], strides = [1, 1]} : vector<8x128xf32> to vector<1x32xf32>
    %19 = vector.extract_strided_slice %16 {offsets = [2, 0], sizes = [1, 96], strides = [1, 1]} : vector<8x128xf32> to vector<1x96xf32>
    %20 = vector.extract_strided_slice %16 {offsets = [3, 0], sizes = [1, 32], strides = [1, 1]} : vector<8x128xf32> to vector<1x32xf32>
    %21 = vector.extract_strided_slice %16 {offsets = [4, 0], sizes = [1, 32], strides = [1, 1]} : vector<8x128xf32> to vector<1x32xf32>
    %22 = vector.extract_strided_slice %16 {offsets = [5, 0], sizes = [1, 32], strides = [1, 1]} : vector<8x128xf32> to vector<1x32xf32>
    %23 = vector.extract_strided_slice %16 {offsets = [6, 0], sizes = [1, 64], strides = [1, 1]} : vector<8x128xf32> to vector<1x64xf32>
    %24 = vector.extract_strided_slice %16 {offsets = [7, 0], sizes = [1, 32], strides = [1, 1]} : vector<8x128xf32> to vector<1x32xf32>
    %25 = vector.extract_strided_slice %12 {offsets = [0, 0], sizes = [32, 96], strides = [1, 1]} : vector<32x192xf32> to vector<32x96xf32>
    %26 = vector.extract_strided_slice %12 {offsets = [0, 96], sizes = [32, 32], strides = [1, 1]} : vector<32x192xf32> to vector<32x32xf32>
    %27 = vector.extract_strided_slice %12 {offsets = [0, 128], sizes = [32, 64], strides = [1, 1]} : vector<32x192xf32> to vector<32x64xf32>
    %cst_16 = arith.constant dense<0.000000e+00> : vector<16xf32>
    %28 = vector.multi_reduction <add>, %4, %cst_16 [1] : vector<16x32xf32> to vector<16xf32>
    %29 = vector.shape_cast %28 : vector<16xf32> to vector<16x1xf32>
    %cst_17 = arith.constant 3.200000e+01 : f32
    %30 = vector.broadcast %cst_17 : f32 to vector<16x1xf32>
    %31 = arith.divf %29, %30 : vector<16x1xf32>
    %32 = vector.broadcast %31 : vector<16x1xf32> to vector<16x32xf32>
    %33 = arith.subf %4, %32 : vector<16x32xf32>
    %34 = arith.mulf %33, %33 : vector<16x32xf32>
    %cst_18 = arith.constant dense<0.000000e+00> : vector<16xf32>
    %35 = vector.multi_reduction <add>, %34, %cst_18 [1] : vector<16x32xf32> to vector<16xf32>
    %36 = vector.shape_cast %35 : vector<16xf32> to vector<16x1xf32>
    %cst_19 = arith.constant 3.200000e+01 : f32
    %37 = vector.broadcast %cst_19 : f32 to vector<16x1xf32>
    %38 = arith.divf %36, %37 : vector<16x1xf32>
    %39 = vector.broadcast %31 : vector<16x1xf32> to vector<16x32xf32>
    %40 = arith.subf %4, %39 : vector<16x32xf32>
    %cst_20 = arith.constant 9.99999997E-7 : f32
    %41 = vector.broadcast %cst_20 : f32 to vector<16x1xf32>
    %42 = arith.addf %38, %41 : vector<16x1xf32>
    %43 = math.rsqrt %42 : vector<16x1xf32>
    %44 = vector.broadcast %43 : vector<16x1xf32> to vector<16x32xf32>
    %45 = arith.mulf %40, %44 : vector<16x32xf32>
    %46 = vector.broadcast %17 : vector<1x32xf32> to vector<16x32xf32>
    %47 = arith.mulf %45, %46 : vector<16x32xf32>
    %48 = vector.broadcast %18 : vector<1x32xf32> to vector<16x32xf32>
    %49 = arith.addf %47, %48 : vector<16x32xf32>
    %cst_21 = arith.constant dense<0.000000e+00> : vector<16x96xf32>
    %50 = tpu.matmul %49, %25, %cst_21 {dimension_numbers = #tpu.dot_dimension_numbers<[1], [0], [0], [1], [0, 0, 1, 1], [], []>} : vector<16x32xf32>, vector<32x96xf32>, vector<16x96xf32> -> vector<16x96xf32>
    %51 = vector.broadcast %19 : vector<1x96xf32> to vector<16x96xf32>
    %52 = arith.addf %50, %51 : vector<16x96xf32>
    %53 = vector.extract_strided_slice %52 {offsets = [0, 0], sizes = [16, 8], strides = [1, 1]} : vector<16x96xf32> to vector<16x8xf32>
    %54 = vector.shape_cast %53 : vector<16x8xf32> to vector<2x8x8xf32>
    %55 = vector.extract_strided_slice %52 {offsets = [0, 32], sizes = [16, 8], strides = [1, 1]} : vector<16x96xf32> to vector<16x8xf32>
    %56 = vector.shape_cast %55 : vector<16x8xf32> to vector<2x8x8xf32>
    %57 = vector.extract_strided_slice %52 {offsets = [0, 64], sizes = [16, 8], strides = [1, 1]} : vector<16x96xf32> to vector<16x8xf32>
    %58 = vector.shape_cast %57 : vector<16x8xf32> to vector<2x8x8xf32>
    "tpu.trace_start"() <{level = 10 : i32, message = "bqd,bkd->bqk"}> : () -> ()
    %cst_22 = arith.constant dense<0.000000e+00> : vector<2x8x8xf32>
    %59 = tpu.matmul %54, %56, %cst_22 {dimension_numbers = #tpu.dot_dimension_numbers<[2], [2], [1], [1], [0, 0, 0, 1, 1, 1], [0], [0]>} : vector<2x8x8xf32>, vector<2x8x8xf32>, vector<2x8x8xf32> -> vector<2x8x8xf32>
    "tpu.trace_stop"() : () -> ()
    %60 = vector.broadcast %10 : vector<1x1x8xf32> to vector<2x8x8xf32>
    %61 = arith.addf %59, %60 : vector<2x8x8xf32>
    %cst_23 = arith.constant dense<0xFF800000> : vector<2x8xf32>
    %62 = vector.multi_reduction <maximumf>, %61, %cst_23 [2] : vector<2x8x8xf32> to vector<2x8xf32>
    %63 = vector.shape_cast %62 : vector<2x8xf32> to vector<2x8x1xf32>
    %64 = vector.broadcast %63 : vector<2x8x1xf32> to vector<2x8x8xf32>
    %65 = arith.subf %61, %64 : vector<2x8x8xf32>
    %66 = math.exp %65 : vector<2x8x8xf32>
    %cst_24 = arith.constant dense<0.000000e+00> : vector<2x8xf32>
    %67 = vector.multi_reduction <add>, %66, %cst_24 [2] : vector<2x8x8xf32> to vector<2x8xf32>
    %68 = vector.shape_cast %67 : vector<2x8xf32> to vector<2x8x1xf32>
    %69 = tpu.reciprocal %68 : vector<2x8x1xf32> -> vector<2x8x1xf32>
    %70 = vector.broadcast %69 : vector<2x8x1xf32> to vector<2x8x8xf32>
    %71 = arith.mulf %66, %70 : vector<2x8x8xf32>
    "tpu.trace_start"() <{level = 10 : i32, message = "bqk,bkd->bqd"}> : () -> ()
    %cst_25 = arith.constant dense<0.000000e+00> : vector<2x8x8xf32>
    %72 = tpu.matmul %71, %58, %cst_25 {dimension_numbers = #tpu.dot_dimension_numbers<[2], [1], [1], [2], [0, 0, 0, 1, 1, 2], [0], [0]>} : vector<2x8x8xf32>, vector<2x8x8xf32>, vector<2x8x8xf32> -> vector<2x8x8xf32>
    "tpu.trace_stop"() : () -> ()
    %73 = vector.shape_cast %72 : vector<2x8x8xf32> to vector<16x8xf32>
    %74 = vector.extract_strided_slice %26 {offsets = [0, 0], sizes = [8, 32], strides = [1, 1]} : vector<32x32xf32> to vector<8x32xf32>
    %cst_26 = arith.constant dense<0.000000e+00> : vector<16x32xf32>
    %75 = tpu.matmul %73, %74, %cst_26 {dimension_numbers = #tpu.dot_dimension_numbers<[1], [0], [0], [1], [0, 0, 1, 1], [], []>} : vector<16x8xf32>, vector<8x32xf32>, vector<16x32xf32> -> vector<16x32xf32>
    %76 = vector.extract_strided_slice %52 {offsets = [0, 8], sizes = [16, 8], strides = [1, 1]} : vector<16x96xf32> to vector<16x8xf32>
    %77 = vector.shape_cast %76 : vector<16x8xf32> to vector<2x8x8xf32>
    %78 = vector.extract_strided_slice %52 {offsets = [0, 40], sizes = [16, 8], strides = [1, 1]} : vector<16x96xf32> to vector<16x8xf32>
    %79 = vector.shape_cast %78 : vector<16x8xf32> to vector<2x8x8xf32>
    %80 = vector.extract_strided_slice %52 {offsets = [0, 72], sizes = [16, 8], strides = [1, 1]} : vector<16x96xf32> to vector<16x8xf32>
    %81 = vector.shape_cast %80 : vector<16x8xf32> to vector<2x8x8xf32>
    "tpu.trace_start"() <{level = 10 : i32, message = "bqd,bkd->bqk"}> : () -> ()
    %cst_27 = arith.constant dense<0.000000e+00> : vector<2x8x8xf32>
    %82 = tpu.matmul %77, %79, %cst_27 {dimension_numbers = #tpu.dot_dimension_numbers<[2], [2], [1], [1], [0, 0, 0, 1, 1, 1], [0], [0]>} : vector<2x8x8xf32>, vector<2x8x8xf32>, vector<2x8x8xf32> -> vector<2x8x8xf32>
    "tpu.trace_stop"() : () -> ()
    %83 = vector.broadcast %10 : vector<1x1x8xf32> to vector<2x8x8xf32>
    %84 = arith.addf %82, %83 : vector<2x8x8xf32>
    %cst_28 = arith.constant dense<0xFF800000> : vector<2x8xf32>
    %85 = vector.multi_reduction <maximumf>, %84, %cst_28 [2] : vector<2x8x8xf32> to vector<2x8xf32>
    %86 = vector.shape_cast %85 : vector<2x8xf32> to vector<2x8x1xf32>
    %87 = vector.broadcast %86 : vector<2x8x1xf32> to vector<2x8x8xf32>
    %88 = arith.subf %84, %87 : vector<2x8x8xf32>
    %89 = math.exp %88 : vector<2x8x8xf32>
    %cst_29 = arith.constant dense<0.000000e+00> : vector<2x8xf32>
    %90 = vector.multi_reduction <add>, %89, %cst_29 [2] : vector<2x8x8xf32> to vector<2x8xf32>
    %91 = vector.shape_cast %90 : vector<2x8xf32> to vector<2x8x1xf32>
    %92 = tpu.reciprocal %91 : vector<2x8x1xf32> -> vector<2x8x1xf32>
    %93 = vector.broadcast %92 : vector<2x8x1xf32> to vector<2x8x8xf32>
    %94 = arith.mulf %89, %93 : vector<2x8x8xf32>
    "tpu.trace_start"() <{level = 10 : i32, message = "bqk,bkd->bqd"}> : () -> ()
    %cst_30 = arith.constant dense<0.000000e+00> : vector<2x8x8xf32>
    %95 = tpu.matmul %94, %81, %cst_30 {dimension_numbers = #tpu.dot_dimension_numbers<[2], [1], [1], [2], [0, 0, 0, 1, 1, 2], [0], [0]>} : vector<2x8x8xf32>, vector<2x8x8xf32>, vector<2x8x8xf32> -> vector<2x8x8xf32>
    "tpu.trace_stop"() : () -> ()
    %96 = vector.shape_cast %95 : vector<2x8x8xf32> to vector<16x8xf32>
    %97 = vector.extract_strided_slice %26 {offsets = [8, 0], sizes = [8, 32], strides = [1, 1]} : vector<32x32xf32> to vector<8x32xf32>
    %cst_31 = arith.constant dense<0.000000e+00> : vector<16x32xf32>
    %98 = tpu.matmul %96, %97, %cst_31 {dimension_numbers = #tpu.dot_dimension_numbers<[1], [0], [0], [1], [0, 0, 1, 1], [], []>} : vector<16x8xf32>, vector<8x32xf32>, vector<16x32xf32> -> vector<16x32xf32>
    %99 = arith.addf %75, %98 : vector<16x32xf32>
    %100 = vector.extract_strided_slice %52 {offsets = [0, 16], sizes = [16, 8], strides = [1, 1]} : vector<16x96xf32> to vector<16x8xf32>
    %101 = vector.shape_cast %100 : vector<16x8xf32> to vector<2x8x8xf32>
    %102 = vector.extract_strided_slice %52 {offsets = [0, 48], sizes = [16, 8], strides = [1, 1]} : vector<16x96xf32> to vector<16x8xf32>
    %103 = vector.shape_cast %102 : vector<16x8xf32> to vector<2x8x8xf32>
    %104 = vector.extract_strided_slice %52 {offsets = [0, 80], sizes = [16, 8], strides = [1, 1]} : vector<16x96xf32> to vector<16x8xf32>
    %105 = vector.shape_cast %104 : vector<16x8xf32> to vector<2x8x8xf32>
    "tpu.trace_start"() <{level = 10 : i32, message = "bqd,bkd->bqk"}> : () -> ()
    %cst_32 = arith.constant dense<0.000000e+00> : vector<2x8x8xf32>
    %106 = tpu.matmul %101, %103, %cst_32 {dimension_numbers = #tpu.dot_dimension_numbers<[2], [2], [1], [1], [0, 0, 0, 1, 1, 1], [0], [0]>} : vector<2x8x8xf32>, vector<2x8x8xf32>, vector<2x8x8xf32> -> vector<2x8x8xf32>
    "tpu.trace_stop"() : () -> ()
    %107 = vector.broadcast %10 : vector<1x1x8xf32> to vector<2x8x8xf32>
    %108 = arith.addf %106, %107 : vector<2x8x8xf32>
    %cst_33 = arith.constant dense<0xFF800000> : vector<2x8xf32>
    %109 = vector.multi_reduction <maximumf>, %108, %cst_33 [2] : vector<2x8x8xf32> to vector<2x8xf32>
    %110 = vector.shape_cast %109 : vector<2x8xf32> to vector<2x8x1xf32>
    %111 = vector.broadcast %110 : vector<2x8x1xf32> to vector<2x8x8xf32>
    %112 = arith.subf %108, %111 : vector<2x8x8xf32>
    %113 = math.exp %112 : vector<2x8x8xf32>
    %cst_34 = arith.constant dense<0.000000e+00> : vector<2x8xf32>
    %114 = vector.multi_reduction <add>, %113, %cst_34 [2] : vector<2x8x8xf32> to vector<2x8xf32>
    %115 = vector.shape_cast %114 : vector<2x8xf32> to vector<2x8x1xf32>
    %116 = tpu.reciprocal %115 : vector<2x8x1xf32> -> vector<2x8x1xf32>
    %117 = vector.broadcast %116 : vector<2x8x1xf32> to vector<2x8x8xf32>
    %118 = arith.mulf %113, %117 : vector<2x8x8xf32>
    "tpu.trace_start"() <{level = 10 : i32, message = "bqk,bkd->bqd"}> : () -> ()
    %cst_35 = arith.constant dense<0.000000e+00> : vector<2x8x8xf32>
    %119 = tpu.matmul %118, %105, %cst_35 {dimension_numbers = #tpu.dot_dimension_numbers<[2], [1], [1], [2], [0, 0, 0, 1, 1, 2], [0], [0]>} : vector<2x8x8xf32>, vector<2x8x8xf32>, vector<2x8x8xf32> -> vector<2x8x8xf32>
    "tpu.trace_stop"() : () -> ()
    %120 = vector.shape_cast %119 : vector<2x8x8xf32> to vector<16x8xf32>
    %121 = vector.extract_strided_slice %26 {offsets = [16, 0], sizes = [8, 32], strides = [1, 1]} : vector<32x32xf32> to vector<8x32xf32>
    %cst_36 = arith.constant dense<0.000000e+00> : vector<16x32xf32>
    %122 = tpu.matmul %120, %121, %cst_36 {dimension_numbers = #tpu.dot_dimension_numbers<[1], [0], [0], [1], [0, 0, 1, 1], [], []>} : vector<16x8xf32>, vector<8x32xf32>, vector<16x32xf32> -> vector<16x32xf32>
    %123 = arith.addf %99, %122 : vector<16x32xf32>
    %124 = vector.extract_strided_slice %52 {offsets = [0, 24], sizes = [16, 8], strides = [1, 1]} : vector<16x96xf32> to vector<16x8xf32>
    %125 = vector.shape_cast %124 : vector<16x8xf32> to vector<2x8x8xf32>
    %126 = vector.extract_strided_slice %52 {offsets = [0, 56], sizes = [16, 8], strides = [1, 1]} : vector<16x96xf32> to vector<16x8xf32>
    %127 = vector.shape_cast %126 : vector<16x8xf32> to vector<2x8x8xf32>
    %128 = vector.extract_strided_slice %52 {offsets = [0, 88], sizes = [16, 8], strides = [1, 1]} : vector<16x96xf32> to vector<16x8xf32>
    %129 = vector.shape_cast %128 : vector<16x8xf32> to vector<2x8x8xf32>
    "tpu.trace_start"() <{level = 10 : i32, message = "bqd,bkd->bqk"}> : () -> ()
    %cst_37 = arith.constant dense<0.000000e+00> : vector<2x8x8xf32>
    %130 = tpu.matmul %125, %127, %cst_37 {dimension_numbers = #tpu.dot_dimension_numbers<[2], [2], [1], [1], [0, 0, 0, 1, 1, 1], [0], [0]>} : vector<2x8x8xf32>, vector<2x8x8xf32>, vector<2x8x8xf32> -> vector<2x8x8xf32>
    "tpu.trace_stop"() : () -> ()
    %131 = vector.broadcast %10 : vector<1x1x8xf32> to vector<2x8x8xf32>
    %132 = arith.addf %130, %131 : vector<2x8x8xf32>
    %cst_38 = arith.constant dense<0xFF800000> : vector<2x8xf32>
    %133 = vector.multi_reduction <maximumf>, %132, %cst_38 [2] : vector<2x8x8xf32> to vector<2x8xf32>
    %134 = vector.shape_cast %133 : vector<2x8xf32> to vector<2x8x1xf32>
    %135 = vector.broadcast %134 : vector<2x8x1xf32> to vector<2x8x8xf32>
    %136 = arith.subf %132, %135 : vector<2x8x8xf32>
    %137 = math.exp %136 : vector<2x8x8xf32>
    %cst_39 = arith.constant dense<0.000000e+00> : vector<2x8xf32>
    %138 = vector.multi_reduction <add>, %137, %cst_39 [2] : vector<2x8x8xf32> to vector<2x8xf32>
    %139 = vector.shape_cast %138 : vector<2x8xf32> to vector<2x8x1xf32>
    %140 = tpu.reciprocal %139 : vector<2x8x1xf32> -> vector<2x8x1xf32>
    %141 = vector.broadcast %140 : vector<2x8x1xf32> to vector<2x8x8xf32>
    %142 = arith.mulf %137, %141 : vector<2x8x8xf32>
    "tpu.trace_start"() <{level = 10 : i32, message = "bqk,bkd->bqd"}> : () -> ()
    %cst_40 = arith.constant dense<0.000000e+00> : vector<2x8x8xf32>
    %143 = tpu.matmul %142, %129, %cst_40 {dimension_numbers = #tpu.dot_dimension_numbers<[2], [1], [1], [2], [0, 0, 0, 1, 1, 2], [0], [0]>} : vector<2x8x8xf32>, vector<2x8x8xf32>, vector<2x8x8xf32> -> vector<2x8x8xf32>
    "tpu.trace_stop"() : () -> ()
    %144 = vector.shape_cast %143 : vector<2x8x8xf32> to vector<16x8xf32>
    %145 = vector.extract_strided_slice %26 {offsets = [24, 0], sizes = [8, 32], strides = [1, 1]} : vector<32x32xf32> to vector<8x32xf32>
    %cst_41 = arith.constant dense<0.000000e+00> : vector<16x32xf32>
    %146 = tpu.matmul %144, %145, %cst_41 {dimension_numbers = #tpu.dot_dimension_numbers<[1], [0], [0], [1], [0, 0, 1, 1], [], []>} : vector<16x8xf32>, vector<8x32xf32>, vector<16x32xf32> -> vector<16x32xf32>
    %147 = arith.addf %123, %146 : vector<16x32xf32>
    %148 = vector.broadcast %20 : vector<1x32xf32> to vector<16x32xf32>
    %149 = arith.addf %147, %148 : vector<16x32xf32>
    %150 = arith.addf %149, %4 : vector<16x32xf32>
    %cst_42 = arith.constant dense<0.000000e+00> : vector<16xf32>
    %151 = vector.multi_reduction <add>, %150, %cst_42 [1] : vector<16x32xf32> to vector<16xf32>
    %152 = vector.shape_cast %151 : vector<16xf32> to vector<16x1xf32>
    %cst_43 = arith.constant 3.200000e+01 : f32
    %153 = vector.broadcast %cst_43 : f32 to vector<16x1xf32>
    %154 = arith.divf %152, %153 : vector<16x1xf32>
    %155 = vector.broadcast %154 : vector<16x1xf32> to vector<16x32xf32>
    %156 = arith.subf %150, %155 : vector<16x32xf32>
    %157 = arith.mulf %156, %156 : vector<16x32xf32>
    %cst_44 = arith.constant dense<0.000000e+00> : vector<16xf32>
    %158 = vector.multi_reduction <add>, %157, %cst_44 [1] : vector<16x32xf32> to vector<16xf32>
    %159 = vector.shape_cast %158 : vector<16xf32> to vector<16x1xf32>
    %cst_45 = arith.constant 3.200000e+01 : f32
    %160 = vector.broadcast %cst_45 : f32 to vector<16x1xf32>
    %161 = arith.divf %159, %160 : vector<16x1xf32>
    %162 = vector.broadcast %154 : vector<16x1xf32> to vector<16x32xf32>
    %163 = arith.subf %150, %162 : vector<16x32xf32>
    %cst_46 = arith.constant 9.99999997E-7 : f32
    %164 = vector.broadcast %cst_46 : f32 to vector<16x1xf32>
    %165 = arith.addf %161, %164 : vector<16x1xf32>
    %166 = math.rsqrt %165 : vector<16x1xf32>
    %167 = vector.broadcast %166 : vector<16x1xf32> to vector<16x32xf32>
    %168 = arith.mulf %163, %167 : vector<16x32xf32>
    %169 = vector.broadcast %21 : vector<1x32xf32> to vector<16x32xf32>
    %170 = arith.mulf %168, %169 : vector<16x32xf32>
    %171 = vector.broadcast %22 : vector<1x32xf32> to vector<16x32xf32>
    %172 = arith.addf %170, %171 : vector<16x32xf32>
    %cst_47 = arith.constant dense<0.000000e+00> : vector<16x64xf32>
    %173 = tpu.matmul %172, %27, %cst_47 {dimension_numbers = #tpu.dot_dimension_numbers<[1], [0], [0], [1], [0, 0, 1, 1], [], []>} : vector<16x32xf32>, vector<32x64xf32>, vector<16x64xf32> -> vector<16x64xf32>
    %174 = vector.broadcast %23 : vector<1x64xf32> to vector<16x64xf32>
    %175 = arith.addf %173, %174 : vector<16x64xf32>
    %cst_48 = arith.constant 5.000000e-01 : f32
    %176 = vector.broadcast %cst_48 : f32 to vector<16x64xf32>
    %177 = arith.mulf %176, %175 : vector<16x64xf32>
    %cst_49 = arith.constant 1.41421354 : f32
    %178 = vector.broadcast %cst_49 : f32 to vector<16x64xf32>
    %179 = arith.divf %175, %178 : vector<16x64xf32>
    %180 = math.erf %179 : vector<16x64xf32>
    %cst_50 = arith.constant 1.000000e+00 : f32
    %181 = vector.broadcast %cst_50 : f32 to vector<16x64xf32>
    %182 = arith.addf %181, %180 : vector<16x64xf32>
    %183 = arith.mulf %177, %182 : vector<16x64xf32>
    %cst_51 = arith.constant dense<0.000000e+00> : vector<16x32xf32>
    %184 = tpu.matmul %183, %14, %cst_51 {dimension_numbers = #tpu.dot_dimension_numbers<[1], [0], [0], [1], [0, 0, 1, 1], [], []>} : vector<16x64xf32>, vector<64x32xf32>, vector<16x32xf32> -> vector<16x32xf32>
    %185 = vector.broadcast %24 : vector<1x32xf32> to vector<16x32xf32>
    %186 = arith.addf %184, %185 : vector<16x32xf32>
    %187 = arith.addf %186, %150 : vector<16x32xf32>
    %c1 = arith.constant 1 : index
    %c0_52 = arith.constant 0 : index
    %c0_53 = arith.constant 0 : index
    %188 = vector.load %arg3[%c1, %c0_52, %c0_53] : memref<2x32x192xf32, #tpu.memory_space<vmem>>, vector<1x32x192xf32>
    %189 = vector.shape_cast %188 : vector<1x32x192xf32> to vector<32x192xf32>
    %c1_54 = arith.constant 1 : index
    %c0_55 = arith.constant 0 : index
    %c0_56 = arith.constant 0 : index
    %190 = vector.load %arg4[%c1_54, %c0_55, %c0_56] : memref<2x64x32xf32, #tpu.memory_space<vmem>>, vector<1x64x32xf32>
    %191 = vector.shape_cast %190 : vector<1x64x32xf32> to vector<64x32xf32>
    %c1_57 = arith.constant 1 : index
    %c0_58 = arith.constant 0 : index
    %c0_59 = arith.constant 0 : index
    %192 = vector.load %arg5[%c1_57, %c0_58, %c0_59] : memref<2x8x128xf32, #tpu.memory_space<vmem>>, vector<1x8x128xf32>
    %193 = vector.shape_cast %192 : vector<1x8x128xf32> to vector<8x128xf32>
    %194 = vector.extract_strided_slice %193 {offsets = [0, 0], sizes = [1, 32], strides = [1, 1]} : vector<8x128xf32> to vector<1x32xf32>
    %195 = vector.extract_strided_slice %193 {offsets = [1, 0], sizes = [1, 32], strides = [1, 1]} : vector<8x128xf32> to vector<1x32xf32>
    %196 = vector.extract_strided_slice %193 {offsets = [2, 0], sizes = [1, 96], strides = [1, 1]} : vector<8x128xf32> to vector<1x96xf32>
    %197 = vector.extract_strided_slice %193 {offsets = [3, 0], sizes = [1, 32], strides = [1, 1]} : vector<8x128xf32> to vector<1x32xf32>
    %198 = vector.extract_strided_slice %193 {offsets = [4, 0], sizes = [1, 32], strides = [1, 1]} : vector<8x128xf32> to vector<1x32xf32>
    %199 = vector.extract_strided_slice %193 {offsets = [5, 0], sizes = [1, 32], strides = [1, 1]} : vector<8x128xf32> to vector<1x32xf32>
    %200 = vector.extract_strided_slice %193 {offsets = [6, 0], sizes = [1, 64], strides = [1, 1]} : vector<8x128xf32> to vector<1x64xf32>
    %201 = vector.extract_strided_slice %193 {offsets = [7, 0], sizes = [1, 32], strides = [1, 1]} : vector<8x128xf32> to vector<1x32xf32>
    %202 = vector.extract_strided_slice %189 {offsets = [0, 0], sizes = [32, 96], strides = [1, 1]} : vector<32x192xf32> to vector<32x96xf32>
    %203 = vector.extract_strided_slice %189 {offsets = [0, 96], sizes = [32, 32], strides = [1, 1]} : vector<32x192xf32> to vector<32x32xf32>
    %204 = vector.extract_strided_slice %189 {offsets = [0, 128], sizes = [32, 64], strides = [1, 1]} : vector<32x192xf32> to vector<32x64xf32>
    %cst_60 = arith.constant dense<0.000000e+00> : vector<16xf32>
    %205 = vector.multi_reduction <add>, %187, %cst_60 [1] : vector<16x32xf32> to vector<16xf32>
    %206 = vector.shape_cast %205 : vector<16xf32> to vector<16x1xf32>
    %cst_61 = arith.constant 3.200000e+01 : f32
    %207 = vector.broadcast %cst_61 : f32 to vector<16x1xf32>
    %208 = arith.divf %206, %207 : vector<16x1xf32>
    %209 = vector.broadcast %208 : vector<16x1xf32> to vector<16x32xf32>
    %210 = arith.subf %187, %209 : vector<16x32xf32>
    %211 = arith.mulf %210, %210 : vector<16x32xf32>
    %cst_62 = arith.constant dense<0.000000e+00> : vector<16xf32>
    %212 = vector.multi_reduction <add>, %211, %cst_62 [1] : vector<16x32xf32> to vector<16xf32>
    %213 = vector.shape_cast %212 : vector<16xf32> to vector<16x1xf32>
    %cst_63 = arith.constant 3.200000e+01 : f32
    %214 = vector.broadcast %cst_63 : f32 to vector<16x1xf32>
    %215 = arith.divf %213, %214 : vector<16x1xf32>
    %216 = vector.broadcast %208 : vector<16x1xf32> to vector<16x32xf32>
    %217 = arith.subf %187, %216 : vector<16x32xf32>
    %cst_64 = arith.constant 9.99999997E-7 : f32
    %218 = vector.broadcast %cst_64 : f32 to vector<16x1xf32>
    %219 = arith.addf %215, %218 : vector<16x1xf32>
    %220 = math.rsqrt %219 : vector<16x1xf32>
    %221 = vector.broadcast %220 : vector<16x1xf32> to vector<16x32xf32>
    %222 = arith.mulf %217, %221 : vector<16x32xf32>
    %223 = vector.broadcast %194 : vector<1x32xf32> to vector<16x32xf32>
    %224 = arith.mulf %222, %223 : vector<16x32xf32>
    %225 = vector.broadcast %195 : vector<1x32xf32> to vector<16x32xf32>
    %226 = arith.addf %224, %225 : vector<16x32xf32>
    %cst_65 = arith.constant dense<0.000000e+00> : vector<16x96xf32>
    %227 = tpu.matmul %226, %202, %cst_65 {dimension_numbers = #tpu.dot_dimension_numbers<[1], [0], [0], [1], [0, 0, 1, 1], [], []>} : vector<16x32xf32>, vector<32x96xf32>, vector<16x96xf32> -> vector<16x96xf32>
    %228 = vector.broadcast %196 : vector<1x96xf32> to vector<16x96xf32>
    %229 = arith.addf %227, %228 : vector<16x96xf32>
    %230 = vector.extract_strided_slice %229 {offsets = [0, 0], sizes = [16, 8], strides = [1, 1]} : vector<16x96xf32> to vector<16x8xf32>
    %231 = vector.shape_cast %230 : vector<16x8xf32> to vector<2x8x8xf32>
    %232 = vector.extract_strided_slice %229 {offsets = [0, 32], sizes = [16, 8], strides = [1, 1]} : vector<16x96xf32> to vector<16x8xf32>
    %233 = vector.shape_cast %232 : vector<16x8xf32> to vector<2x8x8xf32>
    %234 = vector.extract_strided_slice %229 {offsets = [0, 64], sizes = [16, 8], strides = [1, 1]} : vector<16x96xf32> to vector<16x8xf32>
    %235 = vector.shape_cast %234 : vector<16x8xf32> to vector<2x8x8xf32>
    "tpu.trace_start"() <{level = 10 : i32, message = "bqd,bkd->bqk"}> : () -> ()
    %cst_66 = arith.constant dense<0.000000e+00> : vector<2x8x8xf32>
    %236 = tpu.matmul %231, %233, %cst_66 {dimension_numbers = #tpu.dot_dimension_numbers<[2], [2], [1], [1], [0, 0, 0, 1, 1, 1], [0], [0]>} : vector<2x8x8xf32>, vector<2x8x8xf32>, vector<2x8x8xf32> -> vector<2x8x8xf32>
    "tpu.trace_stop"() : () -> ()
    %237 = vector.broadcast %10 : vector<1x1x8xf32> to vector<2x8x8xf32>
    %238 = arith.addf %236, %237 : vector<2x8x8xf32>
    %cst_67 = arith.constant dense<0xFF800000> : vector<2x8xf32>
    %239 = vector.multi_reduction <maximumf>, %238, %cst_67 [2] : vector<2x8x8xf32> to vector<2x8xf32>
    %240 = vector.shape_cast %239 : vector<2x8xf32> to vector<2x8x1xf32>
    %241 = vector.broadcast %240 : vector<2x8x1xf32> to vector<2x8x8xf32>
    %242 = arith.subf %238, %241 : vector<2x8x8xf32>
    %243 = math.exp %242 : vector<2x8x8xf32>
    %cst_68 = arith.constant dense<0.000000e+00> : vector<2x8xf32>
    %244 = vector.multi_reduction <add>, %243, %cst_68 [2] : vector<2x8x8xf32> to vector<2x8xf32>
    %245 = vector.shape_cast %244 : vector<2x8xf32> to vector<2x8x1xf32>
    %246 = tpu.reciprocal %245 : vector<2x8x1xf32> -> vector<2x8x1xf32>
    %247 = vector.broadcast %246 : vector<2x8x1xf32> to vector<2x8x8xf32>
    %248 = arith.mulf %243, %247 : vector<2x8x8xf32>
    "tpu.trace_start"() <{level = 10 : i32, message = "bqk,bkd->bqd"}> : () -> ()
    %cst_69 = arith.constant dense<0.000000e+00> : vector<2x8x8xf32>
    %249 = tpu.matmul %248, %235, %cst_69 {dimension_numbers = #tpu.dot_dimension_numbers<[2], [1], [1], [2], [0, 0, 0, 1, 1, 2], [0], [0]>} : vector<2x8x8xf32>, vector<2x8x8xf32>, vector<2x8x8xf32> -> vector<2x8x8xf32>
    "tpu.trace_stop"() : () -> ()
    %250 = vector.shape_cast %249 : vector<2x8x8xf32> to vector<16x8xf32>
    %251 = vector.extract_strided_slice %203 {offsets = [0, 0], sizes = [8, 32], strides = [1, 1]} : vector<32x32xf32> to vector<8x32xf32>
    %cst_70 = arith.constant dense<0.000000e+00> : vector<16x32xf32>
    %252 = tpu.matmul %250, %251, %cst_70 {dimension_numbers = #tpu.dot_dimension_numbers<[1], [0], [0], [1], [0, 0, 1, 1], [], []>} : vector<16x8xf32>, vector<8x32xf32>, vector<16x32xf32> -> vector<16x32xf32>
    %253 = vector.extract_strided_slice %229 {offsets = [0, 8], sizes = [16, 8], strides = [1, 1]} : vector<16x96xf32> to vector<16x8xf32>
    %254 = vector.shape_cast %253 : vector<16x8xf32> to vector<2x8x8xf32>
    %255 = vector.extract_strided_slice %229 {offsets = [0, 40], sizes = [16, 8], strides = [1, 1]} : vector<16x96xf32> to vector<16x8xf32>
    %256 = vector.shape_cast %255 : vector<16x8xf32> to vector<2x8x8xf32>
    %257 = vector.extract_strided_slice %229 {offsets = [0, 72], sizes = [16, 8], strides = [1, 1]} : vector<16x96xf32> to vector<16x8xf32>
    %258 = vector.shape_cast %257 : vector<16x8xf32> to vector<2x8x8xf32>
    "tpu.trace_start"() <{level = 10 : i32, message = "bqd,bkd->bqk"}> : () -> ()
    %cst_71 = arith.constant dense<0.000000e+00> : vector<2x8x8xf32>
    %259 = tpu.matmul %254, %256, %cst_71 {dimension_numbers = #tpu.dot_dimension_numbers<[2], [2], [1], [1], [0, 0, 0, 1, 1, 1], [0], [0]>} : vector<2x8x8xf32>, vector<2x8x8xf32>, vector<2x8x8xf32> -> vector<2x8x8xf32>
    "tpu.trace_stop"() : () -> ()
    %260 = vector.broadcast %10 : vector<1x1x8xf32> to vector<2x8x8xf32>
    %261 = arith.addf %259, %260 : vector<2x8x8xf32>
    %cst_72 = arith.constant dense<0xFF800000> : vector<2x8xf32>
    %262 = vector.multi_reduction <maximumf>, %261, %cst_72 [2] : vector<2x8x8xf32> to vector<2x8xf32>
    %263 = vector.shape_cast %262 : vector<2x8xf32> to vector<2x8x1xf32>
    %264 = vector.broadcast %263 : vector<2x8x1xf32> to vector<2x8x8xf32>
    %265 = arith.subf %261, %264 : vector<2x8x8xf32>
    %266 = math.exp %265 : vector<2x8x8xf32>
    %cst_73 = arith.constant dense<0.000000e+00> : vector<2x8xf32>
    %267 = vector.multi_reduction <add>, %266, %cst_73 [2] : vector<2x8x8xf32> to vector<2x8xf32>
    %268 = vector.shape_cast %267 : vector<2x8xf32> to vector<2x8x1xf32>
    %269 = tpu.reciprocal %268 : vector<2x8x1xf32> -> vector<2x8x1xf32>
    %270 = vector.broadcast %269 : vector<2x8x1xf32> to vector<2x8x8xf32>
    %271 = arith.mulf %266, %270 : vector<2x8x8xf32>
    "tpu.trace_start"() <{level = 10 : i32, message = "bqk,bkd->bqd"}> : () -> ()
    %cst_74 = arith.constant dense<0.000000e+00> : vector<2x8x8xf32>
    %272 = tpu.matmul %271, %258, %cst_74 {dimension_numbers = #tpu.dot_dimension_numbers<[2], [1], [1], [2], [0, 0, 0, 1, 1, 2], [0], [0]>} : vector<2x8x8xf32>, vector<2x8x8xf32>, vector<2x8x8xf32> -> vector<2x8x8xf32>
    "tpu.trace_stop"() : () -> ()
    %273 = vector.shape_cast %272 : vector<2x8x8xf32> to vector<16x8xf32>
    %274 = vector.extract_strided_slice %203 {offsets = [8, 0], sizes = [8, 32], strides = [1, 1]} : vector<32x32xf32> to vector<8x32xf32>
    %cst_75 = arith.constant dense<0.000000e+00> : vector<16x32xf32>
    %275 = tpu.matmul %273, %274, %cst_75 {dimension_numbers = #tpu.dot_dimension_numbers<[1], [0], [0], [1], [0, 0, 1, 1], [], []>} : vector<16x8xf32>, vector<8x32xf32>, vector<16x32xf32> -> vector<16x32xf32>
    %276 = arith.addf %252, %275 : vector<16x32xf32>
    %277 = vector.extract_strided_slice %229 {offsets = [0, 16], sizes = [16, 8], strides = [1, 1]} : vector<16x96xf32> to vector<16x8xf32>
    %278 = vector.shape_cast %277 : vector<16x8xf32> to vector<2x8x8xf32>
    %279 = vector.extract_strided_slice %229 {offsets = [0, 48], sizes = [16, 8], strides = [1, 1]} : vector<16x96xf32> to vector<16x8xf32>
    %280 = vector.shape_cast %279 : vector<16x8xf32> to vector<2x8x8xf32>
    %281 = vector.extract_strided_slice %229 {offsets = [0, 80], sizes = [16, 8], strides = [1, 1]} : vector<16x96xf32> to vector<16x8xf32>
    %282 = vector.shape_cast %281 : vector<16x8xf32> to vector<2x8x8xf32>
    "tpu.trace_start"() <{level = 10 : i32, message = "bqd,bkd->bqk"}> : () -> ()
    %cst_76 = arith.constant dense<0.000000e+00> : vector<2x8x8xf32>
    %283 = tpu.matmul %278, %280, %cst_76 {dimension_numbers = #tpu.dot_dimension_numbers<[2], [2], [1], [1], [0, 0, 0, 1, 1, 1], [0], [0]>} : vector<2x8x8xf32>, vector<2x8x8xf32>, vector<2x8x8xf32> -> vector<2x8x8xf32>
    "tpu.trace_stop"() : () -> ()
    %284 = vector.broadcast %10 : vector<1x1x8xf32> to vector<2x8x8xf32>
    %285 = arith.addf %283, %284 : vector<2x8x8xf32>
    %cst_77 = arith.constant dense<0xFF800000> : vector<2x8xf32>
    %286 = vector.multi_reduction <maximumf>, %285, %cst_77 [2] : vector<2x8x8xf32> to vector<2x8xf32>
    %287 = vector.shape_cast %286 : vector<2x8xf32> to vector<2x8x1xf32>
    %288 = vector.broadcast %287 : vector<2x8x1xf32> to vector<2x8x8xf32>
    %289 = arith.subf %285, %288 : vector<2x8x8xf32>
    %290 = math.exp %289 : vector<2x8x8xf32>
    %cst_78 = arith.constant dense<0.000000e+00> : vector<2x8xf32>
    %291 = vector.multi_reduction <add>, %290, %cst_78 [2] : vector<2x8x8xf32> to vector<2x8xf32>
    %292 = vector.shape_cast %291 : vector<2x8xf32> to vector<2x8x1xf32>
    %293 = tpu.reciprocal %292 : vector<2x8x1xf32> -> vector<2x8x1xf32>
    %294 = vector.broadcast %293 : vector<2x8x1xf32> to vector<2x8x8xf32>
    %295 = arith.mulf %290, %294 : vector<2x8x8xf32>
    "tpu.trace_start"() <{level = 10 : i32, message = "bqk,bkd->bqd"}> : () -> ()
    %cst_79 = arith.constant dense<0.000000e+00> : vector<2x8x8xf32>
    %296 = tpu.matmul %295, %282, %cst_79 {dimension_numbers = #tpu.dot_dimension_numbers<[2], [1], [1], [2], [0, 0, 0, 1, 1, 2], [0], [0]>} : vector<2x8x8xf32>, vector<2x8x8xf32>, vector<2x8x8xf32> -> vector<2x8x8xf32>
    "tpu.trace_stop"() : () -> ()
    %297 = vector.shape_cast %296 : vector<2x8x8xf32> to vector<16x8xf32>
    %298 = vector.extract_strided_slice %203 {offsets = [16, 0], sizes = [8, 32], strides = [1, 1]} : vector<32x32xf32> to vector<8x32xf32>
    %cst_80 = arith.constant dense<0.000000e+00> : vector<16x32xf32>
    %299 = tpu.matmul %297, %298, %cst_80 {dimension_numbers = #tpu.dot_dimension_numbers<[1], [0], [0], [1], [0, 0, 1, 1], [], []>} : vector<16x8xf32>, vector<8x32xf32>, vector<16x32xf32> -> vector<16x32xf32>
    %300 = arith.addf %276, %299 : vector<16x32xf32>
    %301 = vector.extract_strided_slice %229 {offsets = [0, 24], sizes = [16, 8], strides = [1, 1]} : vector<16x96xf32> to vector<16x8xf32>
    %302 = vector.shape_cast %301 : vector<16x8xf32> to vector<2x8x8xf32>
    %303 = vector.extract_strided_slice %229 {offsets = [0, 56], sizes = [16, 8], strides = [1, 1]} : vector<16x96xf32> to vector<16x8xf32>
    %304 = vector.shape_cast %303 : vector<16x8xf32> to vector<2x8x8xf32>
    %305 = vector.extract_strided_slice %229 {offsets = [0, 88], sizes = [16, 8], strides = [1, 1]} : vector<16x96xf32> to vector<16x8xf32>
    %306 = vector.shape_cast %305 : vector<16x8xf32> to vector<2x8x8xf32>
    "tpu.trace_start"() <{level = 10 : i32, message = "bqd,bkd->bqk"}> : () -> ()
    %cst_81 = arith.constant dense<0.000000e+00> : vector<2x8x8xf32>
    %307 = tpu.matmul %302, %304, %cst_81 {dimension_numbers = #tpu.dot_dimension_numbers<[2], [2], [1], [1], [0, 0, 0, 1, 1, 1], [0], [0]>} : vector<2x8x8xf32>, vector<2x8x8xf32>, vector<2x8x8xf32> -> vector<2x8x8xf32>
    "tpu.trace_stop"() : () -> ()
    %308 = vector.broadcast %10 : vector<1x1x8xf32> to vector<2x8x8xf32>
    %309 = arith.addf %307, %308 : vector<2x8x8xf32>
    %cst_82 = arith.constant dense<0xFF800000> : vector<2x8xf32>
    %310 = vector.multi_reduction <maximumf>, %309, %cst_82 [2] : vector<2x8x8xf32> to vector<2x8xf32>
    %311 = vector.shape_cast %310 : vector<2x8xf32> to vector<2x8x1xf32>
    %312 = vector.broadcast %311 : vector<2x8x1xf32> to vector<2x8x8xf32>
    %313 = arith.subf %309, %312 : vector<2x8x8xf32>
    %314 = math.exp %313 : vector<2x8x8xf32>
    %cst_83 = arith.constant dense<0.000000e+00> : vector<2x8xf32>
    %315 = vector.multi_reduction <add>, %314, %cst_83 [2] : vector<2x8x8xf32> to vector<2x8xf32>
    %316 = vector.shape_cast %315 : vector<2x8xf32> to vector<2x8x1xf32>
    %317 = tpu.reciprocal %316 : vector<2x8x1xf32> -> vector<2x8x1xf32>
    %318 = vector.broadcast %317 : vector<2x8x1xf32> to vector<2x8x8xf32>
    %319 = arith.mulf %314, %318 : vector<2x8x8xf32>
    "tpu.trace_start"() <{level = 10 : i32, message = "bqk,bkd->bqd"}> : () -> ()
    %cst_84 = arith.constant dense<0.000000e+00> : vector<2x8x8xf32>
    %320 = tpu.matmul %319, %306, %cst_84 {dimension_numbers = #tpu.dot_dimension_numbers<[2], [1], [1], [2], [0, 0, 0, 1, 1, 2], [0], [0]>} : vector<2x8x8xf32>, vector<2x8x8xf32>, vector<2x8x8xf32> -> vector<2x8x8xf32>
    "tpu.trace_stop"() : () -> ()
    %321 = vector.shape_cast %320 : vector<2x8x8xf32> to vector<16x8xf32>
    %322 = vector.extract_strided_slice %203 {offsets = [24, 0], sizes = [8, 32], strides = [1, 1]} : vector<32x32xf32> to vector<8x32xf32>
    %cst_85 = arith.constant dense<0.000000e+00> : vector<16x32xf32>
    %323 = tpu.matmul %321, %322, %cst_85 {dimension_numbers = #tpu.dot_dimension_numbers<[1], [0], [0], [1], [0, 0, 1, 1], [], []>} : vector<16x8xf32>, vector<8x32xf32>, vector<16x32xf32> -> vector<16x32xf32>
    %324 = arith.addf %300, %323 : vector<16x32xf32>
    %325 = vector.broadcast %197 : vector<1x32xf32> to vector<16x32xf32>
    %326 = arith.addf %324, %325 : vector<16x32xf32>
    %327 = arith.addf %326, %187 : vector<16x32xf32>
    %cst_86 = arith.constant dense<0.000000e+00> : vector<16xf32>
    %328 = vector.multi_reduction <add>, %327, %cst_86 [1] : vector<16x32xf32> to vector<16xf32>
    %329 = vector.shape_cast %328 : vector<16xf32> to vector<16x1xf32>
    %cst_87 = arith.constant 3.200000e+01 : f32
    %330 = vector.broadcast %cst_87 : f32 to vector<16x1xf32>
    %331 = arith.divf %329, %330 : vector<16x1xf32>
    %332 = vector.broadcast %331 : vector<16x1xf32> to vector<16x32xf32>
    %333 = arith.subf %327, %332 : vector<16x32xf32>
    %334 = arith.mulf %333, %333 : vector<16x32xf32>
    %cst_88 = arith.constant dense<0.000000e+00> : vector<16xf32>
    %335 = vector.multi_reduction <add>, %334, %cst_88 [1] : vector<16x32xf32> to vector<16xf32>
    %336 = vector.shape_cast %335 : vector<16xf32> to vector<16x1xf32>
    %cst_89 = arith.constant 3.200000e+01 : f32
    %337 = vector.broadcast %cst_89 : f32 to vector<16x1xf32>
    %338 = arith.divf %336, %337 : vector<16x1xf32>
    %339 = vector.broadcast %331 : vector<16x1xf32> to vector<16x32xf32>
    %340 = arith.subf %327, %339 : vector<16x32xf32>
    %cst_90 = arith.constant 9.99999997E-7 : f32
    %341 = vector.broadcast %cst_90 : f32 to vector<16x1xf32>
    %342 = arith.addf %338, %341 : vector<16x1xf32>
    %343 = math.rsqrt %342 : vector<16x1xf32>
    %344 = vector.broadcast %343 : vector<16x1xf32> to vector<16x32xf32>
    %345 = arith.mulf %340, %344 : vector<16x32xf32>
    %346 = vector.broadcast %198 : vector<1x32xf32> to vector<16x32xf32>
    %347 = arith.mulf %345, %346 : vector<16x32xf32>
    %348 = vector.broadcast %199 : vector<1x32xf32> to vector<16x32xf32>
    %349 = arith.addf %347, %348 : vector<16x32xf32>
    %cst_91 = arith.constant dense<0.000000e+00> : vector<16x64xf32>
    %350 = tpu.matmul %349, %204, %cst_91 {dimension_numbers = #tpu.dot_dimension_numbers<[1], [0], [0], [1], [0, 0, 1, 1], [], []>} : vector<16x32xf32>, vector<32x64xf32>, vector<16x64xf32> -> vector<16x64xf32>
    %351 = vector.broadcast %200 : vector<1x64xf32> to vector<16x64xf32>
    %352 = arith.addf %350, %351 : vector<16x64xf32>
    %cst_92 = arith.constant 5.000000e-01 : f32
    %353 = vector.broadcast %cst_92 : f32 to vector<16x64xf32>
    %354 = arith.mulf %353, %352 : vector<16x64xf32>
    %cst_93 = arith.constant 1.41421354 : f32
    %355 = vector.broadcast %cst_93 : f32 to vector<16x64xf32>
    %356 = arith.divf %352, %355 : vector<16x64xf32>
    %357 = math.erf %356 : vector<16x64xf32>
    %cst_94 = arith.constant 1.000000e+00 : f32
    %358 = vector.broadcast %cst_94 : f32 to vector<16x64xf32>
    %359 = arith.addf %358, %357 : vector<16x64xf32>
    %360 = arith.mulf %354, %359 : vector<16x64xf32>
    %cst_95 = arith.constant dense<0.000000e+00> : vector<16x32xf32>
    %361 = tpu.matmul %360, %191, %cst_95 {dimension_numbers = #tpu.dot_dimension_numbers<[1], [0], [0], [1], [0, 0, 1, 1], [], []>} : vector<16x64xf32>, vector<64x32xf32>, vector<16x32xf32> -> vector<16x32xf32>
    %362 = vector.broadcast %201 : vector<1x32xf32> to vector<16x32xf32>
    %363 = arith.addf %361, %362 : vector<16x32xf32>
    %364 = arith.addf %363, %327 : vector<16x32xf32>
    %c0_96 = arith.constant 0 : index
    %c0_97 = arith.constant 0 : index
    %365 = vector.load %arg6[%c0_96, %c0_97] : memref<8x128xf32, #tpu.memory_space<vmem>>, vector<1x32xf32>
    %c1_98 = arith.constant 1 : index
    %c0_99 = arith.constant 0 : index
    %366 = vector.load %arg6[%c1_98, %c0_99] : memref<8x128xf32, #tpu.memory_space<vmem>>, vector<1x32xf32>
    %cst_100 = arith.constant dense<0.000000e+00> : vector<16xf32>
    %367 = vector.multi_reduction <add>, %364, %cst_100 [1] : vector<16x32xf32> to vector<16xf32>
    %368 = vector.shape_cast %367 : vector<16xf32> to vector<16x1xf32>
    %cst_101 = arith.constant 3.200000e+01 : f32
    %369 = vector.broadcast %cst_101 : f32 to vector<16x1xf32>
    %370 = arith.divf %368, %369 : vector<16x1xf32>
    %371 = vector.broadcast %370 : vector<16x1xf32> to vector<16x32xf32>
    %372 = arith.subf %364, %371 : vector<16x32xf32>
    %373 = arith.mulf %372, %372 : vector<16x32xf32>
    %cst_102 = arith.constant dense<0.000000e+00> : vector<16xf32>
    %374 = vector.multi_reduction <add>, %373, %cst_102 [1] : vector<16x32xf32> to vector<16xf32>
    %375 = vector.shape_cast %374 : vector<16xf32> to vector<16x1xf32>
    %cst_103 = arith.constant 3.200000e+01 : f32
    %376 = vector.broadcast %cst_103 : f32 to vector<16x1xf32>
    %377 = arith.divf %375, %376 : vector<16x1xf32>
    %378 = vector.broadcast %370 : vector<16x1xf32> to vector<16x32xf32>
    %379 = arith.subf %364, %378 : vector<16x32xf32>
    %cst_104 = arith.constant 9.99999997E-7 : f32
    %380 = vector.broadcast %cst_104 : f32 to vector<16x1xf32>
    %381 = arith.addf %377, %380 : vector<16x1xf32>
    %382 = math.rsqrt %381 : vector<16x1xf32>
    %383 = vector.broadcast %382 : vector<16x1xf32> to vector<16x32xf32>
    %384 = arith.mulf %379, %383 : vector<16x32xf32>
    %385 = vector.broadcast %365 : vector<1x32xf32> to vector<16x32xf32>
    %386 = arith.mulf %384, %385 : vector<16x32xf32>
    %387 = vector.broadcast %366 : vector<1x32xf32> to vector<16x32xf32>
    %388 = arith.addf %386, %387 : vector<16x32xf32>
    %c0_105 = arith.constant 0 : index
    %c0_106 = arith.constant 0 : index
    %389 = vector.load %arg7[%c0_105, %c0_106] : memref<16x32xf32, #tpu.memory_space<vmem>>, vector<16x32xf32>
    tpu.vector_store %arg7[%c0_105, %c0_106], %388 {strides = array<i32>} : memref<16x32xf32, #tpu.memory_space<vmem>>, vector<16x32xf32>,
    %c2 = arith.constant 2 : index
    %c0_107 = arith.constant 0 : index
    %390 = vector.load %arg6[%c2, %c0_107] : memref<8x128xf32, #tpu.memory_space<vmem>>, vector<1x32xf32>
    %c3 = arith.constant 3 : index
    %c0_108 = arith.constant 0 : index
    %391 = vector.load %arg6[%c3, %c0_108] : memref<8x128xf32, #tpu.memory_space<vmem>>, vector<1x1xf32>
    %392 = vector.broadcast %390 : vector<1x32xf32> to vector<16x32xf32>
    %393 = arith.mulf %388, %392 : vector<16x32xf32>
    %cst_109 = arith.constant dense<0.000000e+00> : vector<16xf32>
    %394 = vector.multi_reduction <add>, %393, %cst_109 [1] : vector<16x32xf32> to vector<16xf32>
    %395 = vector.shape_cast %394 : vector<16xf32> to vector<16x1xf32>
    %396 = vector.broadcast %391 : vector<1x1xf32> to vector<16x1xf32>
    %397 = arith.addf %395, %396 : vector<16x1xf32>
    %c0_110 = arith.constant 0 : index
    %c0_111 = arith.constant 0 : index
    %398 = vector.load %arg8[%c0_110, %c0_111] : memref<16x1xf32, #tpu.memory_space<vmem>>, vector<16x1xf32>
    tpu.vector_store %arg8[%c0_110, %c0_111], %397 {strides = array<i32>} : memref<16x1xf32, #tpu.memory_space<vmem>>, vector<16x1xf32>,
    return
  }
}

</mosaic_0001>

<llo_original>
// kernel: tpu_custom_call.1
$region0: #{tpu_custom_call.1}
  #allocation0 [shape = 'u32[]', space=smem, size = 0x4, offset = 0x4, fixed_abs, tag = 'smem constant byte address 0x4 - core index']
  #allocation1 [shape = 'u32[144,128]{1,0:T(1,128)}', space=vmem, size = 0x12000, scoped, tag = 'internal scratch']
  %s0 = inlined_call_operand.vmem [shape: bf16[16,2688], index: 0, kind: input, shape index: {}]
  %s1 = inlined_call_operand.vmem [shape: bf16[2688,32], index: 1, kind: input, shape index: {}]
  %s2 = inlined_call_operand.vmem [shape: f32[16,32], index: 2, kind: input, shape index: {}]
  %s3 = inlined_call_operand.vmem [shape: f32[2,32,192], index: 3, kind: input, shape index: {}]
  %s4 = inlined_call_operand.vmem [shape: f32[2,64,32], index: 4, kind: input, shape index: {}]
  %s5 = inlined_call_operand.vmem [shape: f32[2,8,128], index: 5, kind: input, shape index: {}]
  %s6 = inlined_call_operand.vmem [shape: f32[8,128], index: 6, kind: input, shape index: {}]
  %s7 = inlined_call_operand.hbm [shape: f32[16,32], index: 7, kind: output, shape index: {0}]
  %s8 = inlined_call_operand.vmem [shape: f32[16,1], index: 8, kind: output, shape index: {1}]
  %9 = xla_tuple %s7, %s8
  %s10 = sld [smem:[#allocation0]]
  $region46: #{tpu_custom_call.1} parent=0
    _
  %s12 = ssub.s32 1, %s10
  %s13 = scalar_select 0, %s12, %s10
  $region1: #{tpu_custom_call.1} parent=0
    #allocation2 [shape = 'u8[8192]{0}', space=vmem, size = 0x2000, scoped, tag = 'output window, operand 0, single buffered']
    #allocation3 [shape = 's32[1]{0}', space=sflag, size = 0x4, scoped, tag = 'scoped memory for tpu_custom_call.1']
    %14 = vsyncpa [#allocation3], 0
    // Predicated region
    $region2: #{tpu_custom_call.1} parent=1 // pred_check
      _
    $region3: #{tpu_custom_call.1} parent=1 // pred_check_branch
      %16 = sbr.rel (0) target = $region5
    $region4: #{tpu_custom_call.1} parent=1 // pred_region
      _
    $region5: #{tpu_custom_call.1} parent=1 // pred_fallthru
      _
    // Predicated region
    $region6: #{tpu_custom_call.1} parent=1 // pred_check
      _
    $region7: #{tpu_custom_call.1} parent=1 // pred_check_branch
      %18 = sbr.rel (0) target = $region9
    $region8: #{tpu_custom_call.1} parent=1 // pred_region
      _
    $region9: #{tpu_custom_call.1} parent=1 // pred_fallthru
      _
    // Predicated region
    $region10: #{tpu_custom_call.1} parent=1 // pred_check
      _
    $region11: #{tpu_custom_call.1} parent=1 // pred_check_branch
      %20 = sbr.rel (0) target = $region13
    $region12: #{tpu_custom_call.1} parent=1 // pred_region
      _
    $region13: #{tpu_custom_call.1} parent=1 // pred_fallthru
      _
    // Predicated region
    $region14: #{tpu_custom_call.1} parent=1 // pred_check
      _
    $region15: #{tpu_custom_call.1} parent=1 // pred_check_branch
      %22 = sbr.rel (0) target = $region17
    $region16: #{tpu_custom_call.1} parent=1 // pred_region
      _
    $region17: #{tpu_custom_call.1} parent=1 // pred_fallthru
      _
    // Predicated region
    $region18: #{tpu_custom_call.1} parent=1 // pred_check
      _
    $region19: #{tpu_custom_call.1} parent=1 // pred_check_branch
      %24 = sbr.rel (0) target = $region21
    $region20: #{tpu_custom_call.1} parent=1 // pred_region
      _
    $region21: #{tpu_custom_call.1} parent=1 // pred_fallthru
      _
    // Predicated region
    $region22: #{tpu_custom_call.1} parent=1 // pred_check
      _
    $region23: #{tpu_custom_call.1} parent=1 // pred_check_branch
      %26 = sbr.rel (0) target = $region25
    $region24: #{tpu_custom_call.1} parent=1 // pred_region
      _
    $region25: #{tpu_custom_call.1} parent=1 // pred_fallthru
      _
    // Predicated region
    $region26: #{tpu_custom_call.1} parent=1 // pred_check
      _
    $region27: #{tpu_custom_call.1} parent=1 // pred_check_branch
      %28 = sbr.rel (0) target = $region29
    $region28: #{tpu_custom_call.1} parent=1 // pred_region
      _
    $region29: #{tpu_custom_call.1} parent=1 // pred_fallthru
      _
    %v30 = vld [vmem:[%s0] sm:$0xff]
    %v31 = vld [vmem:[%s0 + $0x8] sm:$0xff]
    %v32 = vld [vmem:[%s0 + $0x10] sm:$0xff]
    %v33 = vld [vmem:[%s0 + $0x18] sm:$0xff]
    %v34 = vld [vmem:[%s0 + $0x20] sm:$0xff]
    %v35 = vld [vmem:[%s0 + $0x28] sm:$0xff]
    %v36 = vld [vmem:[%s0 + $0x30] sm:$0xff]
    %v37 = vld [vmem:[%s0 + $0x38] sm:$0xff]
    %v38 = vld [vmem:[%s0 + $0x40] sm:$0xff]
    %v39 = vld [vmem:[%s0 + $0x48] sm:$0xff]
    %v40 = vld [vmem:[%s0 + $0x50] sm:$0xf]
    %v41 = vld [vmem:[%s0 + $0x54] sm:$0xff]
    %v42 = vld [vmem:[%s0 + $0x5c] sm:$0xff]
    %v43 = vld [vmem:[%s0 + $0x64] sm:$0xff]
    %v44 = vld [vmem:[%s0 + $0x6c] sm:$0xff]
    %v45 = vld [vmem:[%s0 + $0x74] sm:$0xff]
    %v46 = vld [vmem:[%s0 + $0x7c] sm:$0xff]
    %v47 = vld [vmem:[%s0 + $0x84] sm:$0xff]
    %v48 = vld [vmem:[%s0 + $0x8c] sm:$0xff]
    %v49 = vld [vmem:[%s0 + $0x94] sm:$0xff]
    %v50 = vld [vmem:[%s0 + $0x9c] sm:$0xff]
    %v51 = vld [vmem:[%s0 + $0xa4] sm:$0xf]
    %v52 = vld [vmem:[%s1] sm:$0xf]
    %v53 = vld [vmem:[%s1 + $0x4] sm:$0xf]
    %v54 = vld [vmem:[%s1 + $0x8] sm:$0xf]
    %v55 = vld [vmem:[%s1 + $0xc] sm:$0xf]
    %v56 = vld [vmem:[%s1 + $0x10] sm:$0xf]
    %v57 = vld [vmem:[%s1 + $0x14] sm:$0xf]
    %v58 = vld [vmem:[%s1 + $0x18] sm:$0xf]
    %v59 = vld [vmem:[%s1 + $0x1c] sm:$0xf]
    %v60 = vld [vmem:[%s1 + $0x20] sm:$0xf]
    %v61 = vld [vmem:[%s1 + $0x24] sm:$0xf]
    %v62 = vld [vmem:[%s1 + $0x28] sm:$0xf]
    %v63 = vld [vmem:[%s1 + $0x2c] sm:$0xf]
    %v64 = vld [vmem:[%s1 + $0x30] sm:$0xf]
    %v65 = vld [vmem:[%s1 + $0x34] sm:$0xf]
    %v66 = vld [vmem:[%s1 + $0x38] sm:$0xf]
    %v67 = vld [vmem:[%s1 + $0x3c] sm:$0xf]
    %v68 = vld [vmem:[%s1 + $0x40] sm:$0xf]
    %v69 = vld [vmem:[%s1 + $0x44] sm:$0xf]
    %v70 = vld [vmem:[%s1 + $0x48] sm:$0xf]
    %v71 = vld [vmem:[%s1 + $0x4c] sm:$0xf]
    %v72 = vld [vmem:[%s1 + $0x50] sm:$0xf]
    %v73 = vld [vmem:[%s1 + $0x54] sm:$0xf]
    %v74 = vld [vmem:[%s1 + $0x58] sm:$0xf]
    %v75 = vld [vmem:[%s1 + $0x5c] sm:$0xf]
    %v76 = vld [vmem:[%s1 + $0x60] sm:$0xf]
    %v77 = vld [vmem:[%s1 + $0x64] sm:$0xf]
    %v78 = vld [vmem:[%s1 + $0x68] sm:$0xf]
    %v79 = vld [vmem:[%s1 + $0x6c] sm:$0xf]
    %v80 = vld [vmem:[%s1 + $0x70] sm:$0xf]
    %v81 = vld [vmem:[%s1 + $0x74] sm:$0xf]
    %v82 = vld [vmem:[%s1 + $0x78] sm:$0xf]
    %v83 = vld [vmem:[%s1 + $0x7c] sm:$0xf]
    %v84 = vld [vmem:[%s1 + $0x80] sm:$0xf]
    %v85 = vld [vmem:[%s1 + $0x84] sm:$0xf]
    %v86 = vld [vmem:[%s1 + $0x88] sm:$0xf]
    %v87 = vld [vmem:[%s1 + $0x8c] sm:$0xf]
    %v88 = vld [vmem:[%s1 + $0x90] sm:$0xf]
    %v89 = vld [vmem:[%s1 + $0x94] sm:$0xf]
    %v90 = vld [vmem:[%s1 + $0x98] sm:$0xf]
    %v91 = vld [vmem:[%s1 + $0x9c] sm:$0xf]
    %v92 = vld [vmem:[%s1 + $0xa0] sm:$0xf]
    %v93 = vld [vmem:[%s1 + $0xa4] sm:$0xf]
    %v94 = vld [vmem:[%s1 + $0xa8] sm:$0xf]
    %v95 = vld [vmem:[%s1 + $0xac] sm:$0xf]
    %v96 = vld [vmem:[%s1 + $0xb0] sm:$0xf]
    %v97 = vld [vmem:[%s1 + $0xb4] sm:$0xf]
    %v98 = vld [vmem:[%s1 + $0xb8] sm:$0xf]
    %v99 = vld [vmem:[%s1 + $0xbc] sm:$0xf]
    %v100 = vld [vmem:[%s1 + $0xc0] sm:$0xf]
    %v101 = vld [vmem:[%s1 + $0xc4] sm:$0xf]
    %v102 = vld [vmem:[%s1 + $0xc8] sm:$0xf]
    %v103 = vld [vmem:[%s1 + $0xcc] sm:$0xf]
    %v104 = vld [vmem:[%s1 + $0xd0] sm:$0xf]
    %v105 = vld [vmem:[%s1 + $0xd4] sm:$0xf]
    %v106 = vld [vmem:[%s1 + $0xd8] sm:$0xf]
    %v107 = vld [vmem:[%s1 + $0xdc] sm:$0xf]
    %v108 = vld [vmem:[%s1 + $0xe0] sm:$0xf]
    %v109 = vld [vmem:[%s1 + $0xe4] sm:$0xf]
    %v110 = vld [vmem:[%s1 + $0xe8] sm:$0xf]
    %v111 = vld [vmem:[%s1 + $0xec] sm:$0xf]
    %v112 = vld [vmem:[%s1 + $0xf0] sm:$0xf]
    %v113 = vld [vmem:[%s1 + $0xf4] sm:$0xf]
    %v114 = vld [vmem:[%s1 + $0xf8] sm:$0xf]
    %v115 = vld [vmem:[%s1 + $0xfc] sm:$0xf]
    %v116 = vld [vmem:[%s1 + $0x100] sm:$0xf]
    %v117 = vld [vmem:[%s1 + $0x104] sm:$0xf]
    %v118 = vld [vmem:[%s1 + $0x108] sm:$0xf]
    %v119 = vld [vmem:[%s1 + $0x10c] sm:$0xf]
    %v120 = vld [vmem:[%s1 + $0x110] sm:$0xf]
    %v121 = vld [vmem:[%s1 + $0x114] sm:$0xf]
    %v122 = vld [vmem:[%s1 + $0x118] sm:$0xf]
    %v123 = vld [vmem:[%s1 + $0x11c] sm:$0xf]
    %v124 = vld [vmem:[%s1 + $0x120] sm:$0xf]
    %v125 = vld [vmem:[%s1 + $0x124] sm:$0xf]
    %v126 = vld [vmem:[%s1 + $0x128] sm:$0xf]
    %v127 = vld [vmem:[%s1 + $0x12c] sm:$0xf]
    %v128 = vld [vmem:[%s1 + $0x130] sm:$0xf]
    %v129 = vld [vmem:[%s1 + $0x134] sm:$0xf]
    %v130 = vld [vmem:[%s1 + $0x138] sm:$0xf]
    %v131 = vld [vmem:[%s1 + $0x13c] sm:$0xf]
    %v132 = vld [vmem:[%s1 + $0x140] sm:$0xf]
    %v133 = vld [vmem:[%s1 + $0x144] sm:$0xf]
    %v134 = vld [vmem:[%s1 + $0x148] sm:$0xf]
    %v135 = vld [vmem:[%s1 + $0x14c] sm:$0xf]
    %v136 = vld [vmem:[%s1 + $0x150] sm:$0xf]
    %v137 = vld [vmem:[%s1 + $0x154] sm:$0xf]
    %v138 = vld [vmem:[%s1 + $0x158] sm:$0xf]
    %v139 = vld [vmem:[%s1 + $0x15c] sm:$0xf]
    %v140 = vld [vmem:[%s1 + $0x160] sm:$0xf]
    %v141 = vld [vmem:[%s1 + $0x164] sm:$0xf]
    %v142 = vld [vmem:[%s1 + $0x168] sm:$0xf]
    %v143 = vld [vmem:[%s1 + $0x16c] sm:$0xf]
    %v144 = vld [vmem:[%s1 + $0x170] sm:$0xf]
    %v145 = vld [vmem:[%s1 + $0x174] sm:$0xf]
    %v146 = vld [vmem:[%s1 + $0x178] sm:$0xf]
    %v147 = vld [vmem:[%s1 + $0x17c] sm:$0xf]
    %v148 = vld [vmem:[%s1 + $0x180] sm:$0xf]
    %v149 = vld [vmem:[%s1 + $0x184] sm:$0xf]
    %v150 = vld [vmem:[%s1 + $0x188] sm:$0xf]
    %v151 = vld [vmem:[%s1 + $0x18c] sm:$0xf]
    %v152 = vld [vmem:[%s1 + $0x190] sm:$0xf]
    %v153 = vld [vmem:[%s1 + $0x194] sm:$0xf]
    %v154 = vld [vmem:[%s1 + $0x198] sm:$0xf]
    %v155 = vld [vmem:[%s1 + $0x19c] sm:$0xf]
    %v156 = vld [vmem:[%s1 + $0x1a0] sm:$0xf]
    %v157 = vld [vmem:[%s1 + $0x1a4] sm:$0xf]
    %v158 = vld [vmem:[%s1 + $0x1a8] sm:$0xf]
    %v159 = vld [vmem:[%s1 + $0x1ac] sm:$0xf]
    %v160 = vld [vmem:[%s1 + $0x1b0] sm:$0xf]
    %v161 = vld [vmem:[%s1 + $0x1b4] sm:$0xf]
    %v162 = vld [vmem:[%s1 + $0x1b8] sm:$0xf]
    %v163 = vld [vmem:[%s1 + $0x1bc] sm:$0xf]
    %v164 = vld [vmem:[%s1 + $0x1c0] sm:$0xf]
    %v165 = vld [vmem:[%s1 + $0x1c4] sm:$0xf]
    %v166 = vld [vmem:[%s1 + $0x1c8] sm:$0xf]
    %v167 = vld [vmem:[%s1 + $0x1cc] sm:$0xf]
    %v168 = vld [vmem:[%s1 + $0x1d0] sm:$0xf]
    %v169 = vld [vmem:[%s1 + $0x1d4] sm:$0xf]
    %v170 = vld [vmem:[%s1 + $0x1d8] sm:$0xf]
    %v171 = vld [vmem:[%s1 + $0x1dc] sm:$0xf]
    %v172 = vld [vmem:[%s1 + $0x1e0] sm:$0xf]
    %v173 = vld [vmem:[%s1 + $0x1e4] sm:$0xf]
    %v174 = vld [vmem:[%s1 + $0x1e8] sm:$0xf]
    %v175 = vld [vmem:[%s1 + $0x1ec] sm:$0xf]
    %v176 = vld [vmem:[%s1 + $0x1f0] sm:$0xf]
    %v177 = vld [vmem:[%s1 + $0x1f4] sm:$0xf]
    %v178 = vld [vmem:[%s1 + $0x1f8] sm:$0xf]
    %v179 = vld [vmem:[%s1 + $0x1fc] sm:$0xf]
    %v180 = vld [vmem:[%s1 + $0x200] sm:$0xf]
    %v181 = vld [vmem:[%s1 + $0x204] sm:$0xf]
    %v182 = vld [vmem:[%s1 + $0x208] sm:$0xf]
    %v183 = vld [vmem:[%s1 + $0x20c] sm:$0xf]
    %v184 = vld [vmem:[%s1 + $0x210] sm:$0xf]
    %v185 = vld [vmem:[%s1 + $0x214] sm:$0xf]
    %v186 = vld [vmem:[%s1 + $0x218] sm:$0xf]
    %v187 = vld [vmem:[%s1 + $0x21c] sm:$0xf]
    %v188 = vld [vmem:[%s1 + $0x220] sm:$0xf]
    %v189 = vld [vmem:[%s1 + $0x224] sm:$0xf]
    %v190 = vld [vmem:[%s1 + $0x228] sm:$0xf]
    %v191 = vld [vmem:[%s1 + $0x22c] sm:$0xf]
    %v192 = vld [vmem:[%s1 + $0x230] sm:$0xf]
    %v193 = vld [vmem:[%s1 + $0x234] sm:$0xf]
    %v194 = vld [vmem:[%s1 + $0x238] sm:$0xf]
    %v195 = vld [vmem:[%s1 + $0x23c] sm:$0xf]
    %v196 = vld [vmem:[%s1 + $0x240] sm:$0xf]
    %v197 = vld [vmem:[%s1 + $0x244] sm:$0xf]
    %v198 = vld [vmem:[%s1 + $0x248] sm:$0xf]
    %v199 = vld [vmem:[%s1 + $0x24c] sm:$0xf]
    %v200 = vld [vmem:[%s1 + $0x250] sm:$0xf]
    %v201 = vld [vmem:[%s1 + $0x254] sm:$0xf]
    %v202 = vld [vmem:[%s1 + $0x258] sm:$0xf]
    %v203 = vld [vmem:[%s1 + $0x25c] sm:$0xf]
    %v204 = vld [vmem:[%s1 + $0x260] sm:$0xf]
    %v205 = vld [vmem:[%s1 + $0x264] sm:$0xf]
    %v206 = vld [vmem:[%s1 + $0x268] sm:$0xf]
    %v207 = vld [vmem:[%s1 + $0x26c] sm:$0xf]
    %v208 = vld [vmem:[%s1 + $0x270] sm:$0xf]
    %v209 = vld [vmem:[%s1 + $0x274] sm:$0xf]
    %v210 = vld [vmem:[%s1 + $0x278] sm:$0xf]
    %v211 = vld [vmem:[%s1 + $0x27c] sm:$0xf]
    %v212 = vld [vmem:[%s1 + $0x280] sm:$0xf]
    %v213 = vld [vmem:[%s1 + $0x284] sm:$0xf]
    %v214 = vld [vmem:[%s1 + $0x288] sm:$0xf]
    %v215 = vld [vmem:[%s1 + $0x28c] sm:$0xf]
    %v216 = vld [vmem:[%s1 + $0x290] sm:$0xf]
    %v217 = vld [vmem:[%s1 + $0x294] sm:$0xf]
    %v218 = vld [vmem:[%s1 + $0x298] sm:$0xf]
    %v219 = vld [vmem:[%s1 + $0x29c] sm:$0xf]
    %v220 = vld [vmem:[%s1 + $0x2a0] sm:$0xf]
    %v221 = vld [vmem:[%s1 + $0x2a4] sm:$0xf]
    %v222 = vld [vmem:[%s1 + $0x2a8] sm:$0xf]
    %v223 = vld [vmem:[%s1 + $0x2ac] sm:$0xf]
    %v224 = vld [vmem:[%s1 + $0x2b0] sm:$0xf]
    %v225 = vld [vmem:[%s1 + $0x2b4] sm:$0xf]
    %v226 = vld [vmem:[%s1 + $0x2b8] sm:$0xf]
    %v227 = vld [vmem:[%s1 + $0x2bc] sm:$0xf]
    %v228 = vld [vmem:[%s1 + $0x2c0] sm:$0xf]
    %v229 = vld [vmem:[%s1 + $0x2c4] sm:$0xf]
    %v230 = vld [vmem:[%s1 + $0x2c8] sm:$0xf]
    %v231 = vld [vmem:[%s1 + $0x2cc] sm:$0xf]
    %v232 = vld [vmem:[%s1 + $0x2d0] sm:$0xf]
    %v233 = vld [vmem:[%s1 + $0x2d4] sm:$0xf]
    %v234 = vld [vmem:[%s1 + $0x2d8] sm:$0xf]
    %v235 = vld [vmem:[%s1 + $0x2dc] sm:$0xf]
    %v236 = vld [vmem:[%s1 + $0x2e0] sm:$0xf]
    %v237 = vld [vmem:[%s1 + $0x2e4] sm:$0xf]
    %v238 = vld [vmem:[%s1 + $0x2e8] sm:$0xf]
    %v239 = vld [vmem:[%s1 + $0x2ec] sm:$0xf]
    %v240 = vld [vmem:[%s1 + $0x2f0] sm:$0xf]
    %v241 = vld [vmem:[%s1 + $0x2f4] sm:$0xf]
    %v242 = vld [vmem:[%s1 + $0x2f8] sm:$0xf]
    %v243 = vld [vmem:[%s1 + $0x2fc] sm:$0xf]
    %v244 = vld [vmem:[%s1 + $0x300] sm:$0xf]
    %v245 = vld [vmem:[%s1 + $0x304] sm:$0xf]
    %v246 = vld [vmem:[%s1 + $0x308] sm:$0xf]
    %v247 = vld [vmem:[%s1 + $0x30c] sm:$0xf]
    %v248 = vld [vmem:[%s1 + $0x310] sm:$0xf]
    %v249 = vld [vmem:[%s1 + $0x314] sm:$0xf]
    %v250 = vld [vmem:[%s1 + $0x318] sm:$0xf]
    %v251 = vld [vmem:[%s1 + $0x31c] sm:$0xf]
    %v252 = vld [vmem:[%s1 + $0x320] sm:$0xf]
    %v253 = vld [vmem:[%s1 + $0x324] sm:$0xf]
    %v254 = vld [vmem:[%s1 + $0x328] sm:$0xf]
    %v255 = vld [vmem:[%s1 + $0x32c] sm:$0xf]
    %v256 = vld [vmem:[%s1 + $0x330] sm:$0xf]
    %v257 = vld [vmem:[%s1 + $0x334] sm:$0xf]
    %v258 = vld [vmem:[%s1 + $0x338] sm:$0xf]
    %v259 = vld [vmem:[%s1 + $0x33c] sm:$0xf]
    %v260 = vld [vmem:[%s1 + $0x340] sm:$0xf]
    %v261 = vld [vmem:[%s1 + $0x344] sm:$0xf]
    %v262 = vld [vmem:[%s1 + $0x348] sm:$0xf]
    %v263 = vld [vmem:[%s1 + $0x34c] sm:$0xf]
    %v264 = vld [vmem:[%s1 + $0x350] sm:$0xf]
    %v265 = vld [vmem:[%s1 + $0x354] sm:$0xf]
    %v266 = vld [vmem:[%s1 + $0x358] sm:$0xf]
    %v267 = vld [vmem:[%s1 + $0x35c] sm:$0xf]
    %v268 = vld [vmem:[%s1 + $0x360] sm:$0xf]
    %v269 = vld [vmem:[%s1 + $0x364] sm:$0xf]
    %v270 = vld [vmem:[%s1 + $0x368] sm:$0xf]
    %v271 = vld [vmem:[%s1 + $0x36c] sm:$0xf]
    %v272 = vld [vmem:[%s1 + $0x370] sm:$0xf]
    %v273 = vld [vmem:[%s1 + $0x374] sm:$0xf]
    %v274 = vld [vmem:[%s1 + $0x378] sm:$0xf]
    %v275 = vld [vmem:[%s1 + $0x37c] sm:$0xf]
    %v276 = vld [vmem:[%s1 + $0x380] sm:$0xf]
    %v277 = vld [vmem:[%s1 + $0x384] sm:$0xf]
    %v278 = vld [vmem:[%s1 + $0x388] sm:$0xf]
    %v279 = vld [vmem:[%s1 + $0x38c] sm:$0xf]
    %v280 = vld [vmem:[%s1 + $0x390] sm:$0xf]
    %v281 = vld [vmem:[%s1 + $0x394] sm:$0xf]
    %v282 = vld [vmem:[%s1 + $0x398] sm:$0xf]
    %v283 = vld [vmem:[%s1 + $0x39c] sm:$0xf]
    %v284 = vld [vmem:[%s1 + $0x3a0] sm:$0xf]
    %v285 = vld [vmem:[%s1 + $0x3a4] sm:$0xf]
    %v286 = vld [vmem:[%s1 + $0x3a8] sm:$0xf]
    %v287 = vld [vmem:[%s1 + $0x3ac] sm:$0xf]
    %v288 = vld [vmem:[%s1 + $0x3b0] sm:$0xf]
    %v289 = vld [vmem:[%s1 + $0x3b4] sm:$0xf]
    %v290 = vld [vmem:[%s1 + $0x3b8] sm:$0xf]
    %v291 = vld [vmem:[%s1 + $0x3bc] sm:$0xf]
    %v292 = vld [vmem:[%s1 + $0x3c0] sm:$0xf]
    %v293 = vld [vmem:[%s1 + $0x3c4] sm:$0xf]
    %v294 = vld [vmem:[%s1 + $0x3c8] sm:$0xf]
    %v295 = vld [vmem:[%s1 + $0x3cc] sm:$0xf]
    %v296 = vld [vmem:[%s1 + $0x3d0] sm:$0xf]
    %v297 = vld [vmem:[%s1 + $0x3d4] sm:$0xf]
    %v298 = vld [vmem:[%s1 + $0x3d8] sm:$0xf]
    %v299 = vld [vmem:[%s1 + $0x3dc] sm:$0xf]
    %v300 = vld [vmem:[%s1 + $0x3e0] sm:$0xf]
    %v301 = vld [vmem:[%s1 + $0x3e4] sm:$0xf]
    %v302 = vld [vmem:[%s1 + $0x3e8] sm:$0xf]
    %v303 = vld [vmem:[%s1 + $0x3ec] sm:$0xf]
    %v304 = vld [vmem:[%s1 + $0x3f0] sm:$0xf]
    %v305 = vld [vmem:[%s1 + $0x3f4] sm:$0xf]
    %v306 = vld [vmem:[%s1 + $0x3f8] sm:$0xf]
    %v307 = vld [vmem:[%s1 + $0x3fc] sm:$0xf]
    %v308 = vld [vmem:[%s1 + $0x400] sm:$0xf]
    %v309 = vld [vmem:[%s1 + $0x404] sm:$0xf]
    %v310 = vld [vmem:[%s1 + $0x408] sm:$0xf]
    %v311 = vld [vmem:[%s1 + $0x40c] sm:$0xf]
    %v312 = vld [vmem:[%s1 + $0x410] sm:$0xf]
    %v313 = vld [vmem:[%s1 + $0x414] sm:$0xf]
    %v314 = vld [vmem:[%s1 + $0x418] sm:$0xf]
    %v315 = vld [vmem:[%s1 + $0x41c] sm:$0xf]
    %v316 = vld [vmem:[%s1 + $0x420] sm:$0xf]
    %v317 = vld [vmem:[%s1 + $0x424] sm:$0xf]
    %v318 = vld [vmem:[%s1 + $0x428] sm:$0xf]
    %v319 = vld [vmem:[%s1 + $0x42c] sm:$0xf]
    %v320 = vld [vmem:[%s1 + $0x430] sm:$0xf]
    %v321 = vld [vmem:[%s1 + $0x434] sm:$0xf]
    %v322 = vld [vmem:[%s1 + $0x438] sm:$0xf]
    %v323 = vld [vmem:[%s1 + $0x43c] sm:$0xf]
    %v324 = vld [vmem:[%s1 + $0x440] sm:$0xf]
    %v325 = vld [vmem:[%s1 + $0x444] sm:$0xf]
    %v326 = vld [vmem:[%s1 + $0x448] sm:$0xf]
    %v327 = vld [vmem:[%s1 + $0x44c] sm:$0xf]
    %v328 = vld [vmem:[%s1 + $0x450] sm:$0xf]
    %v329 = vld [vmem:[%s1 + $0x454] sm:$0xf]
    %v330 = vld [vmem:[%s1 + $0x458] sm:$0xf]
    %v331 = vld [vmem:[%s1 + $0x45c] sm:$0xf]
    %v332 = vld [vmem:[%s1 + $0x460] sm:$0xf]
    %v333 = vld [vmem:[%s1 + $0x464] sm:$0xf]
    %v334 = vld [vmem:[%s1 + $0x468] sm:$0xf]
    %v335 = vld [vmem:[%s1 + $0x46c] sm:$0xf]
    %v336 = vld [vmem:[%s1 + $0x470] sm:$0xf]
    %v337 = vld [vmem:[%s1 + $0x474] sm:$0xf]
    %v338 = vld [vmem:[%s1 + $0x478] sm:$0xf]
    %v339 = vld [vmem:[%s1 + $0x47c] sm:$0xf]
    %v340 = vld [vmem:[%s1 + $0x480] sm:$0xf]
    %v341 = vld [vmem:[%s1 + $0x484] sm:$0xf]
    %v342 = vld [vmem:[%s1 + $0x488] sm:$0xf]
    %v343 = vld [vmem:[%s1 + $0x48c] sm:$0xf]
    %v344 = vld [vmem:[%s1 + $0x490] sm:$0xf]
    %v345 = vld [vmem:[%s1 + $0x494] sm:$0xf]
    %v346 = vld [vmem:[%s1 + $0x498] sm:$0xf]
    %v347 = vld [vmem:[%s1 + $0x49c] sm:$0xf]
    %v348 = vld [vmem:[%s1 + $0x4a0] sm:$0xf]
    %v349 = vld [vmem:[%s1 + $0x4a4] sm:$0xf]
    %v350 = vld [vmem:[%s1 + $0x4a8] sm:$0xf]
    %v351 = vld [vmem:[%s1 + $0x4ac] sm:$0xf]
    %v352 = vld [vmem:[%s1 + $0x4b0] sm:$0xf]
    %v353 = vld [vmem:[%s1 + $0x4b4] sm:$0xf]
    %v354 = vld [vmem:[%s1 + $0x4b8] sm:$0xf]
    %v355 = vld [vmem:[%s1 + $0x4bc] sm:$0xf]
    %v356 = vld [vmem:[%s1 + $0x4c0] sm:$0xf]
    %v357 = vld [vmem:[%s1 + $0x4c4] sm:$0xf]
    %v358 = vld [vmem:[%s1 + $0x4c8] sm:$0xf]
    %v359 = vld [vmem:[%s1 + $0x4cc] sm:$0xf]
    %v360 = vld [vmem:[%s1 + $0x4d0] sm:$0xf]
    %v361 = vld [vmem:[%s1 + $0x4d4] sm:$0xf]
    %v362 = vld [vmem:[%s1 + $0x4d8] sm:$0xf]
    %v363 = vld [vmem:[%s1 + $0x4dc] sm:$0xf]
    %v364 = vld [vmem:[%s1 + $0x4e0] sm:$0xf]
    %v365 = vld [vmem:[%s1 + $0x4e4] sm:$0xf]
    %v366 = vld [vmem:[%s1 + $0x4e8] sm:$0xf]
    %v367 = vld [vmem:[%s1 + $0x4ec] sm:$0xf]
    %v368 = vld [vmem:[%s1 + $0x4f0] sm:$0xf]
    %v369 = vld [vmem:[%s1 + $0x4f4] sm:$0xf]
    %v370 = vld [vmem:[%s1 + $0x4f8] sm:$0xf]
    %v371 = vld [vmem:[%s1 + $0x4fc] sm:$0xf]
    %v372 = vld [vmem:[%s1 + $0x500] sm:$0xf]
    %v373 = vld [vmem:[%s1 + $0x504] sm:$0xf]
    %v374 = vld [vmem:[%s1 + $0x508] sm:$0xf]
    %v375 = vld [vmem:[%s1 + $0x50c] sm:$0xf]
    %v376 = vld [vmem:[%s1 + $0x510] sm:$0xf]
    %v377 = vld [vmem:[%s1 + $0x514] sm:$0xf]
    %v378 = vld [vmem:[%s1 + $0x518] sm:$0xf]
    %v379 = vld [vmem:[%s1 + $0x51c] sm:$0xf]
    %v380 = vld [vmem:[%s1 + $0x520] sm:$0xf]
    %v381 = vld [vmem:[%s1 + $0x524] sm:$0xf]
    %v382 = vld [vmem:[%s1 + $0x528] sm:$0xf]
    %v383 = vld [vmem:[%s1 + $0x52c] sm:$0xf]
    %v384 = vld [vmem:[%s1 + $0x530] sm:$0xf]
    %v385 = vld [vmem:[%s1 + $0x534] sm:$0xf]
    %v386 = vld [vmem:[%s1 + $0x538] sm:$0xf]
    %v387 = vld [vmem:[%s1 + $0x53c] sm:$0xf]
    %v388 = vld [vmem:[%s2] sm:$0xff]
    %v389 = vld [vmem:[%s2 + $0x8] sm:$0xff]
    %v412 = vunpack.c.l.b16 %v30
    %v413 = vunpack.c.h.b16 %v30
    %v414 = vunpack.c.l.b16 %v31
    %v415 = vunpack.c.h.b16 %v31
    %v416 = vunpack.c.l.b16 %v32
    %v417 = vunpack.c.h.b16 %v32
    %v418 = vunpack.c.l.b16 %v33
    %v419 = vunpack.c.h.b16 %v33
    %v420 = vunpack.c.l.b16 %v34
    %v421 = vunpack.c.h.b16 %v34
    %v422 = vunpack.c.l.b16 %v35
    %v423 = vunpack.c.h.b16 %v35
    %v424 = vunpack.c.l.b16 %v36
    %v425 = vunpack.c.h.b16 %v36
    %v426 = vunpack.c.l.b16 %v37
    %v427 = vunpack.c.h.b16 %v37
    %v428 = vunpack.c.l.b16 %v38
    %v429 = vunpack.c.h.b16 %v38
    %v430 = vunpack.c.l.b16 %v39
    %v431 = vunpack.c.h.b16 %v39
    %v432 = vunpack.c.l.b16 %v40
    %v433 = vunpack.c.l.b16 %v41
    %v434 = vunpack.c.h.b16 %v41
    %v435 = vunpack.c.l.b16 %v42
    %v436 = vunpack.c.h.b16 %v42
    %v437 = vunpack.c.l.b16 %v43
    %v438 = vunpack.c.h.b16 %v43
    %v439 = vunpack.c.l.b16 %v44
    %v440 = vunpack.c.h.b16 %v44
    %v441 = vunpack.c.l.b16 %v45
    %v442 = vunpack.c.h.b16 %v45
    %v443 = vunpack.c.l.b16 %v46
    %v444 = vunpack.c.h.b16 %v46
    %v445 = vunpack.c.l.b16 %v47
    %v446 = vunpack.c.h.b16 %v47
    %v447 = vunpack.c.l.b16 %v48
    %v448 = vunpack.c.h.b16 %v48
    %v449 = vunpack.c.l.b16 %v49
    %v450 = vunpack.c.h.b16 %v49
    %v451 = vunpack.c.l.b16 %v50
    %v452 = vunpack.c.h.b16 %v50
    %v453 = vunpack.c.l.b16 %v51
    %v454 = vpack.c.b16 %v433, %v412
    %v455 = vpack.c.b16 %v434, %v413
    %v456 = vpack.c.b16 %v435, %v414
    %v457 = vpack.c.b16 %v436, %v415
    %v458 = vpack.c.b16 %v437, %v416
    %v459 = vpack.c.b16 %v438, %v417
    %v460 = vpack.c.b16 %v439, %v418
    %v461 = vpack.c.b16 %v440, %v419
    %v462 = vpack.c.b16 %v441, %v420
    %v463 = vpack.c.b16 %v442, %v421
    %v464 = vpack.c.b16 %v443, %v422
    %v465 = vpack.c.b16 %v444, %v423
    %v466 = vpack.c.b16 %v445, %v424
    %v467 = vpack.c.b16 %v446, %v425
    %v468 = vpack.c.b16 %v447, %v426
    %v469 = vpack.c.b16 %v448, %v427
    %v470 = vpack.c.b16 %v449, %v428
    %v471 = vpack.c.b16 %v450, %v429
    %v472 = vpack.c.b16 %v451, %v430
    %v473 = vpack.c.b16 %v452, %v431
    %v474 = vpack.c.b16 %v453, %v432
    %v832 = vunpack.c.l.b16 %v52
    %v833 = vunpack.c.l.b16 %v53
    %v834 = vunpack.c.l.b16 %v54
    %v835 = vunpack.c.l.b16 %v55
    %v836 = vunpack.c.l.b16 %v56
    %v837 = vunpack.c.l.b16 %v57
    %v838 = vunpack.c.l.b16 %v58
    %v839 = vunpack.c.l.b16 %v59
    %v840 = vunpack.c.l.b16 %v60
    %v841 = vunpack.c.l.b16 %v61
    %v842 = vunpack.c.l.b16 %v62
    %v843 = vunpack.c.l.b16 %v63
    %v844 = vunpack.c.l.b16 %v64
    %v845 = vunpack.c.l.b16 %v65
    %v846 = vunpack.c.l.b16 %v66
    %v847 = vunpack.c.l.b16 %v67
    %v848 = vunpack.c.l.b16 %v68
    %v849 = vunpack.c.l.b16 %v69
    %v850 = vunpack.c.l.b16 %v70
    %v851 = vunpack.c.l.b16 %v71
    %v852 = vunpack.c.l.b16 %v72
    %v853 = vunpack.c.l.b16 %v73
    %v854 = vunpack.c.l.b16 %v74
    %v855 = vunpack.c.l.b16 %v75
    %v856 = vunpack.c.l.b16 %v76
    %v857 = vunpack.c.l.b16 %v77
    %v858 = vunpack.c.l.b16 %v78
    %v859 = vunpack.c.l.b16 %v79
    %v860 = vunpack.c.l.b16 %v80
    %v861 = vunpack.c.l.b16 %v81
    %v862 = vunpack.c.l.b16 %v82
    %v863 = vunpack.c.l.b16 %v83
    %v864 = vunpack.c.l.b16 %v84
    %v865 = vunpack.c.l.b16 %v85
    %v866 = vunpack.c.l.b16 %v86
    %v867 = vunpack.c.l.b16 %v87
    %v868 = vunpack.c.l.b16 %v88
    %v869 = vunpack.c.l.b16 %v89
    %v870 = vunpack.c.l.b16 %v90
    %v871 = vunpack.c.l.b16 %v91
    %v872 = vunpack.c.l.b16 %v92
    %v873 = vunpack.c.l.b16 %v93
    %v874 = vunpack.c.l.b16 %v94
    %v875 = vunpack.c.l.b16 %v95
    %v876 = vunpack.c.l.b16 %v96
    %v877 = vunpack.c.l.b16 %v97
    %v878 = vunpack.c.l.b16 %v98
    %v879 = vunpack.c.l.b16 %v99
    %v880 = vunpack.c.l.b16 %v100
    %v881 = vunpack.c.l.b16 %v101
    %v882 = vunpack.c.l.b16 %v102
    %v883 = vunpack.c.l.b16 %v103
    %v884 = vunpack.c.l.b16 %v104
    %v885 = vunpack.c.l.b16 %v105
    %v886 = vunpack.c.l.b16 %v106
    %v887 = vunpack.c.l.b16 %v107
    %v888 = vunpack.c.l.b16 %v108
    %v889 = vunpack.c.l.b16 %v109
    %v890 = vunpack.c.l.b16 %v110
    %v891 = vunpack.c.l.b16 %v111
    %v892 = vunpack.c.l.b16 %v112
    %v893 = vunpack.c.l.b16 %v113
    %v894 = vunpack.c.l.b16 %v114
    %v895 = vunpack.c.l.b16 %v115
    %v896 = vunpack.c.l.b16 %v116
    %v897 = vunpack.c.l.b16 %v117
    %v898 = vunpack.c.l.b16 %v118
    %v899 = vunpack.c.l.b16 %v119
    %v900 = vunpack.c.l.b16 %v120
    %v901 = vunpack.c.l.b16 %v121
    %v902 = vunpack.c.l.b16 %v122
    %v903 = vunpack.c.l.b16 %v123
    %v904 = vunpack.c.l.b16 %v124
    %v905 = vunpack.c.l.b16 %v125
    %v906 = vunpack.c.l.b16 %v126
    %v907 = vunpack.c.l.b16 %v127
    %v908 = vunpack.c.l.b16 %v128
    %v909 = vunpack.c.l.b16 %v129
    %v910 = vunpack.c.l.b16 %v130
    %v911 = vunpack.c.l.b16 %v131
    %v912 = vunpack.c.l.b16 %v132
    %v913 = vunpack.c.l.b16 %v133
    %v914 = vunpack.c.l.b16 %v134
    %v915 = vunpack.c.l.b16 %v135
    %v916 = vunpack.c.l.b16 %v136
    %v917 = vunpack.c.l.b16 %v137
    %v918 = vunpack.c.l.b16 %v138
    %v919 = vunpack.c.l.b16 %v139
    %v920 = vunpack.c.l.b16 %v140
    %v921 = vunpack.c.l.b16 %v141
    %v922 = vunpack.c.l.b16 %v142
    %v923 = vunpack.c.l.b16 %v143
    %v924 = vunpack.c.l.b16 %v144
    %v925 = vunpack.c.l.b16 %v145
    %v926 = vunpack.c.l.b16 %v146
    %v927 = vunpack.c.l.b16 %v147
    %v928 = vunpack.c.l.b16 %v148
    %v929 = vunpack.c.l.b16 %v149
    %v930 = vunpack.c.l.b16 %v150
    %v931 = vunpack.c.l.b16 %v151
    %v932 = vunpack.c.l.b16 %v152
    %v933 = vunpack.c.l.b16 %v153
    %v934 = vunpack.c.l.b16 %v154
    %v935 = vunpack.c.l.b16 %v155
    %v936 = vunpack.c.l.b16 %v156
    %v937 = vunpack.c.l.b16 %v157
    %v938 = vunpack.c.l.b16 %v158
    %v939 = vunpack.c.l.b16 %v159
    %v940 = vunpack.c.l.b16 %v160
    %v941 = vunpack.c.l.b16 %v161
    %v942 = vunpack.c.l.b16 %v162
    %v943 = vunpack.c.l.b16 %v163
    %v944 = vunpack.c.l.b16 %v164
    %v945 = vunpack.c.l.b16 %v165
    %v946 = vunpack.c.l.b16 %v166
    %v947 = vunpack.c.l.b16 %v167
    %v948 = vunpack.c.l.b16 %v168
    %v949 = vunpack.c.l.b16 %v169
    %v950 = vunpack.c.l.b16 %v170
    %v951 = vunpack.c.l.b16 %v171
    %v952 = vunpack.c.l.b16 %v172
    %v953 = vunpack.c.l.b16 %v173
    %v954 = vunpack.c.l.b16 %v174
    %v955 = vunpack.c.l.b16 %v175
    %v956 = vunpack.c.l.b16 %v176
    %v957 = vunpack.c.l.b16 %v177
    %v958 = vunpack.c.l.b16 %v178
    %v959 = vunpack.c.l.b16 %v179
    %v960 = vunpack.c.l.b16 %v180
    %v961 = vunpack.c.l.b16 %v181
    %v962 = vunpack.c.l.b16 %v182
    %v963 = vunpack.c.l.b16 %v183
    %v964 = vunpack.c.l.b16 %v184
    %v965 = vunpack.c.l.b16 %v185
    %v966 = vunpack.c.l.b16 %v186
    %v967 = vunpack.c.l.b16 %v187
    %v968 = vunpack.c.l.b16 %v188
    %v969 = vunpack.c.l.b16 %v189
    %v970 = vunpack.c.l.b16 %v190
    %v971 = vunpack.c.l.b16 %v191
    %v972 = vunpack.c.l.b16 %v192
    %v973 = vunpack.c.l.b16 %v193
    %v974 = vunpack.c.l.b16 %v194
    %v975 = vunpack.c.l.b16 %v195
    %v976 = vunpack.c.l.b16 %v196
    %v977 = vunpack.c.l.b16 %v197
    %v978 = vunpack.c.l.b16 %v198
    %v979 = vunpack.c.l.b16 %v199
    %v980 = vunpack.c.l.b16 %v200
    %v981 = vunpack.c.l.b16 %v201
    %v982 = vunpack.c.l.b16 %v202
    %v983 = vunpack.c.l.b16 %v203
    %v984 = vunpack.c.l.b16 %v204
    %v985 = vunpack.c.l.b16 %v205
    %v986 = vunpack.c.l.b16 %v206
    %v987 = vunpack.c.l.b16 %v207
    %v988 = vunpack.c.l.b16 %v208
    %v989 = vunpack.c.l.b16 %v209
    %v990 = vunpack.c.l.b16 %v210
    %v991 = vunpack.c.l.b16 %v211
    %v992 = vunpack.c.l.b16 %v212
    %v993 = vunpack.c.l.b16 %v213
    %v994 = vunpack.c.l.b16 %v214
    %v995 = vunpack.c.l.b16 %v215
    %v996 = vunpack.c.l.b16 %v216
    %v997 = vunpack.c.l.b16 %v217
    %v998 = vunpack.c.l.b16 %v218
    %v999 = vunpack.c.l.b16 %v219
    %v1000 = vunpack.c.l.b16 %v220
    %v1001 = vunpack.c.l.b16 %v221
    %v1002 = vunpack.c.l.b16 %v222
    %v1003 = vunpack.c.l.b16 %v223
    %v1004 = vunpack.c.l.b16 %v224
    %v1005 = vunpack.c.l.b16 %v225
    %v1006 = vunpack.c.l.b16 %v226
    %v1007 = vunpack.c.l.b16 %v227
    %v1008 = vunpack.c.l.b16 %v228
    %v1009 = vunpack.c.l.b16 %v229
    %v1010 = vunpack.c.l.b16 %v230
    %v1011 = vunpack.c.l.b16 %v231
    %v1012 = vunpack.c.l.b16 %v232
    %v1013 = vunpack.c.l.b16 %v233
    %v1014 = vunpack.c.l.b16 %v234
    %v1015 = vunpack.c.l.b16 %v235
    %v1016 = vunpack.c.l.b16 %v236
    %v1017 = vunpack.c.l.b16 %v237
    %v1018 = vunpack.c.l.b16 %v238
    %v1019 = vunpack.c.l.b16 %v239
    %v1020 = vunpack.c.l.b16 %v240
    %v1021 = vunpack.c.l.b16 %v241
    %v1022 = vunpack.c.l.b16 %v242
    %v1023 = vunpack.c.l.b16 %v243
    %v1024 = vunpack.c.l.b16 %v244
    %v1025 = vunpack.c.l.b16 %v245
    %v1026 = vunpack.c.l.b16 %v246
    %v1027 = vunpack.c.l.b16 %v247
    %v1028 = vunpack.c.l.b16 %v248
    %v1029 = vunpack.c.l.b16 %v249
    %v1030 = vunpack.c.l.b16 %v250
    %v1031 = vunpack.c.l.b16 %v251
    %v1032 = vunpack.c.l.b16 %v252
    %v1033 = vunpack.c.l.b16 %v253
    %v1034 = vunpack.c.l.b16 %v254
    %v1035 = vunpack.c.l.b16 %v255
    %v1036 = vunpack.c.l.b16 %v256
    %v1037 = vunpack.c.l.b16 %v257
    %v1038 = vunpack.c.l.b16 %v258
    %v1039 = vunpack.c.l.b16 %v259
    %v1040 = vunpack.c.l.b16 %v260
    %v1041 = vunpack.c.l.b16 %v261
    %v1042 = vunpack.c.l.b16 %v262
    %v1043 = vunpack.c.l.b16 %v263
    %v1044 = vunpack.c.l.b16 %v264
    %v1045 = vunpack.c.l.b16 %v265
    %v1046 = vunpack.c.l.b16 %v266
    %v1047 = vunpack.c.l.b16 %v267
    %v1048 = vunpack.c.l.b16 %v268
    %v1049 = vunpack.c.l.b16 %v269
    %v1050 = vunpack.c.l.b16 %v270
    %v1051 = vunpack.c.l.b16 %v271
    %v1052 = vunpack.c.l.b16 %v272
    %v1053 = vunpack.c.l.b16 %v273
    %v1054 = vunpack.c.l.b16 %v274
    %v1055 = vunpack.c.l.b16 %v275
    %v1056 = vunpack.c.l.b16 %v276
    %v1057 = vunpack.c.l.b16 %v277
    %v1058 = vunpack.c.l.b16 %v278
    %v1059 = vunpack.c.l.b16 %v279
    %v1060 = vunpack.c.l.b16 %v280
    %v1061 = vunpack.c.l.b16 %v281
    %v1062 = vunpack.c.l.b16 %v282
    %v1063 = vunpack.c.l.b16 %v283
    %v1064 = vunpack.c.l.b16 %v284
    %v1065 = vunpack.c.l.b16 %v285
    %v1066 = vunpack.c.l.b16 %v286
    %v1067 = vunpack.c.l.b16 %v287
    %v1068 = vunpack.c.l.b16 %v288
    %v1069 = vunpack.c.l.b16 %v289
    %v1070 = vunpack.c.l.b16 %v290
    %v1071 = vunpack.c.l.b16 %v291
    %v1072 = vunpack.c.l.b16 %v292
    %v1073 = vunpack.c.l.b16 %v293
    %v1074 = vunpack.c.l.b16 %v294
    %v1075 = vunpack.c.l.b16 %v295
    %v1076 = vunpack.c.l.b16 %v296
    %v1077 = vunpack.c.l.b16 %v297
    %v1078 = vunpack.c.l.b16 %v298
    %v1079 = vunpack.c.l.b16 %v299
    %v1080 = vunpack.c.l.b16 %v300
    %v1081 = vunpack.c.l.b16 %v301
    %v1082 = vunpack.c.l.b16 %v302
    %v1083 = vunpack.c.l.b16 %v303
    %v1084 = vunpack.c.l.b16 %v304
    %v1085 = vunpack.c.l.b16 %v305
    %v1086 = vunpack.c.l.b16 %v306
    %v1087 = vunpack.c.l.b16 %v307
    %v1088 = vunpack.c.l.b16 %v308
    %v1089 = vunpack.c.l.b16 %v309
    %v1090 = vunpack.c.l.b16 %v310
    %v1091 = vunpack.c.l.b16 %v311
    %v1092 = vunpack.c.l.b16 %v312
    %v1093 = vunpack.c.l.b16 %v313
    %v1094 = vunpack.c.l.b16 %v314
    %v1095 = vunpack.c.l.b16 %v315
    %v1096 = vunpack.c.l.b16 %v316
    %v1097 = vunpack.c.l.b16 %v317
    %v1098 = vunpack.c.l.b16 %v318
    %v1099 = vunpack.c.l.b16 %v319
    %v1100 = vunpack.c.l.b16 %v320
    %v1101 = vunpack.c.l.b16 %v321
    %v1102 = vunpack.c.l.b16 %v322
    %v1103 = vunpack.c.l.b16 %v323
    %v1104 = vunpack.c.l.b16 %v324
    %v1105 = vunpack.c.l.b16 %v325
    %v1106 = vunpack.c.l.b16 %v326
    %v1107 = vunpack.c.l.b16 %v327
    %v1108 = vunpack.c.l.b16 %v328
    %v1109 = vunpack.c.l.b16 %v329
    %v1110 = vunpack.c.l.b16 %v330
    %v1111 = vunpack.c.l.b16 %v331
    %v1112 = vunpack.c.l.b16 %v332
    %v1113 = vunpack.c.l.b16 %v333
    %v1114 = vunpack.c.l.b16 %v334
    %v1115 = vunpack.c.l.b16 %v335
    %v1116 = vunpack.c.l.b16 %v336
    %v1117 = vunpack.c.l.b16 %v337
    %v1118 = vunpack.c.l.b16 %v338
    %v1119 = vunpack.c.l.b16 %v339
    %v1120 = vunpack.c.l.b16 %v340
    %v1121 = vunpack.c.l.b16 %v341
    %v1122 = vunpack.c.l.b16 %v342
    %v1123 = vunpack.c.l.b16 %v343
    %v1124 = vunpack.c.l.b16 %v344
    %v1125 = vunpack.c.l.b16 %v345
    %v1126 = vunpack.c.l.b16 %v346
    %v1127 = vunpack.c.l.b16 %v347
    %v1128 = vunpack.c.l.b16 %v348
    %v1129 = vunpack.c.l.b16 %v349
    %v1130 = vunpack.c.l.b16 %v350
    %v1131 = vunpack.c.l.b16 %v351
    %v1132 = vunpack.c.l.b16 %v352
    %v1133 = vunpack.c.l.b16 %v353
    %v1134 = vunpack.c.l.b16 %v354
    %v1135 = vunpack.c.l.b16 %v355
    %v1136 = vunpack.c.l.b16 %v356
    %v1137 = vunpack.c.l.b16 %v357
    %v1138 = vunpack.c.l.b16 %v358
    %v1139 = vunpack.c.l.b16 %v359
    %v1140 = vunpack.c.l.b16 %v360
    %v1141 = vunpack.c.l.b16 %v361
    %v1142 = vunpack.c.l.b16 %v362
    %v1143 = vunpack.c.l.b16 %v363
    %v1144 = vunpack.c.l.b16 %v364
    %v1145 = vunpack.c.l.b16 %v365
    %v1146 = vunpack.c.l.b16 %v366
    %v1147 = vunpack.c.l.b16 %v367
    %v1148 = vunpack.c.l.b16 %v368
    %v1149 = vunpack.c.l.b16 %v369
    %v1150 = vunpack.c.l.b16 %v370
    %v1151 = vunpack.c.l.b16 %v371
    %v1152 = vunpack.c.l.b16 %v372
    %v1153 = vunpack.c.l.b16 %v373
    %v1154 = vunpack.c.l.b16 %v374
    %v1155 = vunpack.c.l.b16 %v375
    %v1156 = vunpack.c.l.b16 %v376
    %v1157 = vunpack.c.l.b16 %v377
    %v1158 = vunpack.c.l.b16 %v378
    %v1159 = vunpack.c.l.b16 %v379
    %v1160 = vunpack.c.l.b16 %v380
    %v1161 = vunpack.c.l.b16 %v381
    %v1162 = vunpack.c.l.b16 %v382
    %v1163 = vunpack.c.l.b16 %v383
    %v1164 = vunpack.c.l.b16 %v384
    %v1165 = vunpack.c.l.b16 %v385
    %v1166 = vunpack.c.l.b16 %v386
    %v1167 = vunpack.c.l.b16 %v387
    %v1168 = vpack.c.b16 %v833, %v832
    %v1169 = vpack.c.b16 %v835, %v834
    %v1170 = vpack.c.b16 %v837, %v836
    %v1171 = vpack.c.b16 %v839, %v838
    %v1172 = vpack.c.b16 %v841, %v840
    %v1173 = vpack.c.b16 %v843, %v842
    %v1174 = vpack.c.b16 %v845, %v844
    %v1175 = vpack.c.b16 %v847, %v846
    %v1176 = vpack.c.b16 %v849, %v848
    %v1177 = vpack.c.b16 %v851, %v850
    %v1178 = vpack.c.b16 %v853, %v852
    %v1179 = vpack.c.b16 %v855, %v854
    %v1180 = vpack.c.b16 %v857, %v856
    %v1181 = vpack.c.b16 %v859, %v858
    %v1182 = vpack.c.b16 %v861, %v860
    %v1183 = vpack.c.b16 %v863, %v862
    %v1184 = vpack.c.b16 %v865, %v864
    %v1185 = vpack.c.b16 %v867, %v866
    %v1186 = vpack.c.b16 %v869, %v868
    %v1187 = vpack.c.b16 %v871, %v870
    %v1188 = vpack.c.b16 %v873, %v872
    %v1189 = vpack.c.b16 %v875, %v874
    %v1190 = vpack.c.b16 %v877, %v876
    %v1191 = vpack.c.b16 %v879, %v878
    %v1192 = vpack.c.b16 %v881, %v880
    %v1193 = vpack.c.b16 %v883, %v882
    %v1194 = vpack.c.b16 %v885, %v884
    %v1195 = vpack.c.b16 %v887, %v886
    %v1196 = vpack.c.b16 %v889, %v888
    %v1197 = vpack.c.b16 %v891, %v890
    %v1198 = vpack.c.b16 %v893, %v892
    %v1199 = vpack.c.b16 %v895, %v894
    %v1200 = vpack.c.b16 %v897, %v896
    %v1201 = vpack.c.b16 %v899, %v898
    %v1202 = vpack.c.b16 %v901, %v900
    %v1203 = vpack.c.b16 %v903, %v902
    %v1204 = vpack.c.b16 %v905, %v904
    %v1205 = vpack.c.b16 %v907, %v906
    %v1206 = vpack.c.b16 %v909, %v908
    %v1207 = vpack.c.b16 %v911, %v910
    %v1208 = vpack.c.b16 %v913, %v912
    %v1209 = vpack.c.b16 %v915, %v914
    %v1210 = vpack.c.b16 %v917, %v916
    %v1211 = vpack.c.b16 %v919, %v918
    %v1212 = vpack.c.b16 %v921, %v920
    %v1213 = vpack.c.b16 %v923, %v922
    %v1214 = vpack.c.b16 %v925, %v924
    %v1215 = vpack.c.b16 %v927, %v926
    %v1216 = vpack.c.b16 %v929, %v928
    %v1217 = vpack.c.b16 %v931, %v930
    %v1218 = vpack.c.b16 %v933, %v932
    %v1219 = vpack.c.b16 %v935, %v934
    %v1220 = vpack.c.b16 %v937, %v936
    %v1221 = vpack.c.b16 %v939, %v938
    %v1222 = vpack.c.b16 %v941, %v940
    %v1223 = vpack.c.b16 %v943, %v942
    %v1224 = vpack.c.b16 %v945, %v944
    %v1225 = vpack.c.b16 %v947, %v946
    %v1226 = vpack.c.b16 %v949, %v948
    %v1227 = vpack.c.b16 %v951, %v950
    %v1228 = vpack.c.b16 %v953, %v952
    %v1229 = vpack.c.b16 %v955, %v954
    %v1230 = vpack.c.b16 %v957, %v956
    %v1231 = vpack.c.b16 %v959, %v958
    %v1232 = vpack.c.b16 %v961, %v960
    %v1233 = vpack.c.b16 %v963, %v962
    %v1234 = vpack.c.b16 %v965, %v964
    %v1235 = vpack.c.b16 %v967, %v966
    %v1236 = vpack.c.b16 %v969, %v968
    %v1237 = vpack.c.b16 %v971, %v970
    %v1238 = vpack.c.b16 %v973, %v972
    %v1239 = vpack.c.b16 %v975, %v974
    %v1240 = vpack.c.b16 %v977, %v976
    %v1241 = vpack.c.b16 %v979, %v978
    %v1242 = vpack.c.b16 %v981, %v980
    %v1243 = vpack.c.b16 %v983, %v982
    %v1244 = vpack.c.b16 %v985, %v984
    %v1245 = vpack.c.b16 %v987, %v986
    %v1246 = vpack.c.b16 %v989, %v988
    %v1247 = vpack.c.b16 %v991, %v990
    %v1248 = vpack.c.b16 %v993, %v992
    %v1249 = vpack.c.b16 %v995, %v994
    %v1250 = vpack.c.b16 %v997, %v996
    %v1251 = vpack.c.b16 %v999, %v998
    %v1252 = vpack.c.b16 %v1001, %v1000
    %v1253 = vpack.c.b16 %v1003, %v1002
    %v1254 = vpack.c.b16 %v1005, %v1004
    %v1255 = vpack.c.b16 %v1007, %v1006
    %v1256 = vpack.c.b16 %v1009, %v1008
    %v1257 = vpack.c.b16 %v1011, %v1010
    %v1258 = vpack.c.b16 %v1013, %v1012
    %v1259 = vpack.c.b16 %v1015, %v1014
    %v1260 = vpack.c.b16 %v1017, %v1016
    %v1261 = vpack.c.b16 %v1019, %v1018
    %v1262 = vpack.c.b16 %v1021, %v1020
    %v1263 = vpack.c.b16 %v1023, %v1022
    %v1264 = vpack.c.b16 %v1025, %v1024
    %v1265 = vpack.c.b16 %v1027, %v1026
    %v1266 = vpack.c.b16 %v1029, %v1028
    %v1267 = vpack.c.b16 %v1031, %v1030
    %v1268 = vpack.c.b16 %v1033, %v1032
    %v1269 = vpack.c.b16 %v1035, %v1034
    %v1270 = vpack.c.b16 %v1037, %v1036
    %v1271 = vpack.c.b16 %v1039, %v1038
    %v1272 = vpack.c.b16 %v1041, %v1040
    %v1273 = vpack.c.b16 %v1043, %v1042
    %v1274 = vpack.c.b16 %v1045, %v1044
    %v1275 = vpack.c.b16 %v1047, %v1046
    %v1276 = vpack.c.b16 %v1049, %v1048
    %v1277 = vpack.c.b16 %v1051, %v1050
    %v1278 = vpack.c.b16 %v1053, %v1052
    %v1279 = vpack.c.b16 %v1055, %v1054
    %v1280 = vpack.c.b16 %v1057, %v1056
    %v1281 = vpack.c.b16 %v1059, %v1058
    %v1282 = vpack.c.b16 %v1061, %v1060
    %v1283 = vpack.c.b16 %v1063, %v1062
    %v1284 = vpack.c.b16 %v1065, %v1064
    %v1285 = vpack.c.b16 %v1067, %v1066
    %v1286 = vpack.c.b16 %v1069, %v1068
    %v1287 = vpack.c.b16 %v1071, %v1070
    %v1288 = vpack.c.b16 %v1073, %v1072
    %v1289 = vpack.c.b16 %v1075, %v1074
    %v1290 = vpack.c.b16 %v1077, %v1076
    %v1291 = vpack.c.b16 %v1079, %v1078
    %v1292 = vpack.c.b16 %v1081, %v1080
    %v1293 = vpack.c.b16 %v1083, %v1082
    %v1294 = vpack.c.b16 %v1085, %v1084
    %v1295 = vpack.c.b16 %v1087, %v1086
    %v1296 = vpack.c.b16 %v1089, %v1088
    %v1297 = vpack.c.b16 %v1091, %v1090
    %v1298 = vpack.c.b16 %v1093, %v1092
    %v1299 = vpack.c.b16 %v1095, %v1094
    %v1300 = vpack.c.b16 %v1097, %v1096
    %v1301 = vpack.c.b16 %v1099, %v1098
    %v1302 = vpack.c.b16 %v1101, %v1100
    %v1303 = vpack.c.b16 %v1103, %v1102
    %v1304 = vpack.c.b16 %v1105, %v1104
    %v1305 = vpack.c.b16 %v1107, %v1106
    %v1306 = vpack.c.b16 %v1109, %v1108
    %v1307 = vpack.c.b16 %v1111, %v1110
    %v1308 = vpack.c.b16 %v1113, %v1112
    %v1309 = vpack.c.b16 %v1115, %v1114
    %v1310 = vpack.c.b16 %v1117, %v1116
    %v1311 = vpack.c.b16 %v1119, %v1118
    %v1312 = vpack.c.b16 %v1121, %v1120
    %v1313 = vpack.c.b16 %v1123, %v1122
    %v1314 = vpack.c.b16 %v1125, %v1124
    %v1315 = vpack.c.b16 %v1127, %v1126
    %v1316 = vpack.c.b16 %v1129, %v1128
    %v1317 = vpack.c.b16 %v1131, %v1130
    %v1318 = vpack.c.b16 %v1133, %v1132
    %v1319 = vpack.c.b16 %v1135, %v1134
    %v1320 = vpack.c.b16 %v1137, %v1136
    %v1321 = vpack.c.b16 %v1139, %v1138
    %v1322 = vpack.c.b16 %v1141, %v1140
    %v1323 = vpack.c.b16 %v1143, %v1142
    %v1324 = vpack.c.b16 %v1145, %v1144
    %v1325 = vpack.c.b16 %v1147, %v1146
    %v1326 = vpack.c.b16 %v1149, %v1148
    %v1327 = vpack.c.b16 %v1151, %v1150
    %v1328 = vpack.c.b16 %v1153, %v1152
    %v1329 = vpack.c.b16 %v1155, %v1154
    %v1330 = vpack.c.b16 %v1157, %v1156
    %v1331 = vpack.c.b16 %v1159, %v1158
    %v1332 = vpack.c.b16 %v1161, %v1160
    %v1333 = vpack.c.b16 %v1163, %v1162
    %v1334 = vpack.c.b16 %v1165, %v1164
    %v1335 = vpack.c.b16 %v1167, %v1166
    %1504 = vmatprep.subr.bf16.mxu0 0
    %1505 = vmatpush1.bf16.msra.mxu0 %v1168
    %1506 = vmatprep.subr.bf16.mxu0 0
    %1507 = vmatpush1.bf16.msra.mxu0 %v1169
    %1508 = vmatprep.subr.bf16.mxu0 0
    %1509 = vmatpush1.bf16.msra.mxu0 %v1170
    %1510 = vmatprep.subr.bf16.mxu0 0
    %1511 = vmatpush1.bf16.msra.mxu0 %v1171
    %1512 = vmatprep.subr.bf16.mxu0 0
    %1513 = vmatpush1.bf16.msra.mxu0 %v1172
    %1514 = vmatprep.subr.bf16.mxu0 0
    %1515 = vmatpush1.bf16.msra.mxu0 %v1173
    %1516 = vmatprep.subr.bf16.mxu0 0
    %1517 = vmatpush1.bf16.msra.mxu0 %v1174
    %1518 = vmatprep.subr.bf16.mxu0 0
    %1519 = vmatpush1.bf16.msra.mxu0 %v1175
    %1520 = vmatprep.subr.bf16.mxu0 0
    %1521 = vmatpush1.bf16.msra.mxu0 %v1176
    %1522 = vmatprep.subr.bf16.mxu0 0
    %1523 = vmatpush1.bf16.msra.mxu0 %v1177
    %1524 = vmatprep.subr.bf16.mxu0 0
    %1525 = vmatpush1.bf16.msra.mxu0 %v1178
    %1526 = vmatprep.subr.bf16.mxu0 0
    %1527 = vmatpush1.bf16.msra.mxu0 %v1179
    %1528 = vmatprep.subr.bf16.mxu0 0
    %1529 = vmatpush1.bf16.msra.mxu0 %v1180
    %1530 = vmatprep.subr.bf16.mxu0 0
    %1531 = vmatpush1.bf16.msra.mxu0 %v1181
    %1532 = vmatprep.subr.bf16.mxu0 0
    %1533 = vmatpush1.bf16.msra.mxu0 %v1182
    %1534 = vmatprep.subr.bf16.mxu0 0
    %1535 = vmatpush1.bf16.msra.mxu0 %v1183
    %1536 = vmatprep.mubr.bf16.mxu0 %v455
    %1537 = vmatmul.mubr.bf16.gmra.mrb[0].mxu0 %v454
    %v1538 = vpop.f32.mrb[0].mxu0
    %v1539 = vadd.f32 %v388, %v1538
    %v1540 = vpop.f32.mrb[0].mxu0
    %v1541 = vpop.f32.mrb[0].mxu0
    %v1542 = vadd.f32 %v389, %v1541
    %v1543 = vpop.f32.mrb[0].mxu0
    %1544 = vdwg.mxu0
    %1545 = vmatprep.subr.bf16.mxu0 0
    %1546 = vmatpush1.bf16.msra.mxu0 %v1184
    %1547 = vmatprep.subr.bf16.mxu0 0
    %1548 = vmatpush1.bf16.msra.mxu0 %v1185
    %1549 = vmatprep.subr.bf16.mxu0 0
    %1550 = vmatpush1.bf16.msra.mxu0 %v1186
    %1551 = vmatprep.subr.bf16.mxu0 0
    %1552 = vmatpush1.bf16.msra.mxu0 %v1187
    %1553 = vmatprep.subr.bf16.mxu0 0
    %1554 = vmatpush1.bf16.msra.mxu0 %v1188
    %1555 = vmatprep.subr.bf16.mxu0 0
    %1556 = vmatpush1.bf16.msra.mxu0 %v1189
    %1557 = vmatprep.subr.bf16.mxu0 0
    %1558 = vmatpush1.bf16.msra.mxu0 %v1190
    %1559 = vmatprep.subr.bf16.mxu0 0
    %1560 = vmatpush1.bf16.msra.mxu0 %v1191
    %1561 = vmatprep.subr.bf16.mxu0 0
    %1562 = vmatpush1.bf16.msra.mxu0 %v1192
    %1563 = vmatprep.subr.bf16.mxu0 0
    %1564 = vmatpush1.bf16.msra.mxu0 %v1193
    %1565 = vmatprep.subr.bf16.mxu0 0
    %1566 = vmatpush1.bf16.msra.mxu0 %v1194
    %1567 = vmatprep.subr.bf16.mxu0 0
    %1568 = vmatpush1.bf16.msra.mxu0 %v1195
    %1569 = vmatprep.subr.bf16.mxu0 0
    %1570 = vmatpush1.bf16.msra.mxu0 %v1196
    %1571 = vmatprep.subr.bf16.mxu0 0
    %1572 = vmatpush1.bf16.msra.mxu0 %v1197
    %1573 = vmatprep.subr.bf16.mxu0 0
    %1574 = vmatpush1.bf16.msra.mxu0 %v1198
    %1575 = vmatprep.subr.bf16.mxu0 0
    %1576 = vmatpush1.bf16.msra.mxu0 %v1199
    %1577 = vmatprep.mubr.bf16.mxu0 %v457
    %1578 = vmatmul.mubr.bf16.gmra.mrb[0].mxu0 %v456
    %v1579 = vpop.f32.mrb[0].mxu0
    %v1580 = vadd.f32 %v1539, %v1579
    %v1581 = vpop.f32.mrb[0].mxu0
    %v1582 = vpop.f32.mrb[0].mxu0
    %v1583 = vadd.f32 %v1542, %v1582
    %v1584 = vpop.f32.mrb[0].mxu0
    %1585 = vdwg.mxu0
    %1586 = vmatprep.subr.bf16.mxu0 0
    %1587 = vmatpush1.bf16.msra.mxu0 %v1200
    %1588 = vmatprep.subr.bf16.mxu0 0
    %1589 = vmatpush1.bf16.msra.mxu0 %v1201
    %1590 = vmatprep.subr.bf16.mxu0 0
    %1591 = vmatpush1.bf16.msra.mxu0 %v1202
    %1592 = vmatprep.subr.bf16.mxu0 0
    %1593 = vmatpush1.bf16.msra.mxu0 %v1203
    %1594 = vmatprep.subr.bf16.mxu0 0
    %1595 = vmatpush1.bf16.msra.mxu0 %v1204
    %1596 = vmatprep.subr.bf16.mxu0 0
    %1597 = vmatpush1.bf16.msra.mxu0 %v1205
    %1598 = vmatprep.subr.bf16.mxu0 0
    %1599 = vmatpush1.bf16.msra.mxu0 %v1206
    %1600 = vmatprep.subr.bf16.mxu0 0
    %1601 = vmatpush1.bf16.msra.mxu0 %v1207
    %1602 = vmatprep.subr.bf16.mxu0 0
    %1603 = vmatpush1.bf16.msra.mxu0 %v1208
    %1604 = vmatprep.subr.bf16.mxu0 0
    %1605 = vmatpush1.bf16.msra.mxu0 %v1209
    %1606 = vmatprep.subr.bf16.mxu0 0
    %1607 = vmatpush1.bf16.msra.mxu0 %v1210
    %1608 = vmatprep.subr.bf16.mxu0 0
    %1609 = vmatpush1.bf16.msra.mxu0 %v1211
    %1610 = vmatprep.subr.bf16.mxu0 0
    %1611 = vmatpush1.bf16.msra.mxu0 %v1212
    %1612 = vmatprep.subr.bf16.mxu0 0
    %1613 = vmatpush1.bf16.msra.mxu0 %v1213
    %1614 = vmatprep.subr.bf16.mxu0 0
    %1615 = vmatpush1.bf16.msra.mxu0 %v1214
    %1616 = vmatprep.subr.bf16.mxu0 0
    %1617 = vmatpush1.bf16.msra.mxu0 %v1215
    %1618 = vmatprep.mubr.bf16.mxu0 %v459
    %1619 = vmatmul.mubr.bf16.gmra.mrb[0].mxu0 %v458
    %v1620 = vpop.f32.mrb[0].mxu0
    %v1621 = vadd.f32 %v1580, %v1620
    %v1622 = vpop.f32.mrb[0].mxu0
    %v1623 = vpop.f32.mrb[0].mxu0
    %v1624 = vadd.f32 %v1583, %v1623
    %v1625 = vpop.f32.mrb[0].mxu0
    %1626 = vdwg.mxu0
    %1627 = vmatprep.subr.bf16.mxu0 0
    %1628 = vmatpush1.bf16.msra.mxu0 %v1216
    %1629 = vmatprep.subr.bf16.mxu0 0
    %1630 = vmatpush1.bf16.msra.mxu0 %v1217
    %1631 = vmatprep.subr.bf16.mxu0 0
    %1632 = vmatpush1.bf16.msra.mxu0 %v1218
    %1633 = vmatprep.subr.bf16.mxu0 0
    %1634 = vmatpush1.bf16.msra.mxu0 %v1219
    %1635 = vmatprep.subr.bf16.mxu0 0
    %1636 = vmatpush1.bf16.msra.mxu0 %v1220
    %1637 = vmatprep.subr.bf16.mxu0 0
    %1638 = vmatpush1.bf16.msra.mxu0 %v1221
    %1639 = vmatprep.subr.bf16.mxu0 0
    %1640 = vmatpush1.bf16.msra.mxu0 %v1222
    %1641 = vmatprep.subr.bf16.mxu0 0
    %1642 = vmatpush1.bf16.msra.mxu0 %v1223
    %1643 = vmatprep.subr.bf16.mxu0 0
    %1644 = vmatpush1.bf16.msra.mxu0 %v1224
    %1645 = vmatprep.subr.bf16.mxu0 0
    %1646 = vmatpush1.bf16.msra.mxu0 %v1225
    %1647 = vmatprep.subr.bf16.mxu0 0
    %1648 = vmatpush1.bf16.msra.mxu0 %v1226
    %1649 = vmatprep.subr.bf16.mxu0 0
    %1650 = vmatpush1.bf16.msra.mxu0 %v1227
    %1651 = vmatprep.subr.bf16.mxu0 0
    %1652 = vmatpush1.bf16.msra.mxu0 %v1228
    %1653 = vmatprep.subr.bf16.mxu0 0
    %1654 = vmatpush1.bf16.msra.mxu0 %v1229
    %1655 = vmatprep.subr.bf16.mxu0 0
    %1656 = vmatpush1.bf16.msra.mxu0 %v1230
    %1657 = vmatprep.subr.bf16.mxu0 0
    %1658 = vmatpush1.bf16.msra.mxu0 %v1231
    %1659 = vmatprep.mubr.bf16.mxu0 %v461
    %1660 = vmatmul.mubr.bf16.gmra.mrb[0].mxu0 %v460
    %v1661 = vpop.f32.mrb[0].mxu0
    %v1662 = vadd.f32 %v1621, %v1661
    %v1663 = vpop.f32.mrb[0].mxu0
    %v1664 = vpop.f32.mrb[0].mxu0
    %v1665 = vadd.f32 %v1624, %v1664
    %v1666 = vpop.f32.mrb[0].mxu0
    %1667 = vdwg.mxu0
    %1668 = vmatprep.subr.bf16.mxu0 0
    %1669 = vmatpush1.bf16.msra.mxu0 %v1232
    %1670 = vmatprep.subr.bf16.mxu0 0
    %1671 = vmatpush1.bf16.msra.mxu0 %v1233
    %1672 = vmatprep.subr.bf16.mxu0 0
    %1673 = vmatpush1.bf16.msra.mxu0 %v1234
    %1674 = vmatprep.subr.bf16.mxu0 0
    %1675 = vmatpush1.bf16.msra.mxu0 %v1235
    %1676 = vmatprep.subr.bf16.mxu0 0
    %1677 = vmatpush1.bf16.msra.mxu0 %v1236
    %1678 = vmatprep.subr.bf16.mxu0 0
    %1679 = vmatpush1.bf16.msra.mxu0 %v1237
    %1680 = vmatprep.subr.bf16.mxu0 0
    %1681 = vmatpush1.bf16.msra.mxu0 %v1238
    %1682 = vmatprep.subr.bf16.mxu0 0
    %1683 = vmatpush1.bf16.msra.mxu0 %v1239
    %1684 = vmatprep.subr.bf16.mxu0 0
    %1685 = vmatpush1.bf16.msra.mxu0 %v1240
    %1686 = vmatprep.subr.bf16.mxu0 0
    %1687 = vmatpush1.bf16.msra.mxu0 %v1241
    %1688 = vmatprep.subr.bf16.mxu0 0
    %1689 = vmatpush1.bf16.msra.mxu0 %v1242
    %1690 = vmatprep.subr.bf16.mxu0 0
    %1691 = vmatpush1.bf16.msra.mxu0 %v1243
    %1692 = vmatprep.subr.bf16.mxu0 0
    %1693 = vmatpush1.bf16.msra.mxu0 %v1244
    %1694 = vmatprep.subr.bf16.mxu0 0
    %1695 = vmatpush1.bf16.msra.mxu0 %v1245
    %1696 = vmatprep.subr.bf16.mxu0 0
    %1697 = vmatpush1.bf16.msra.mxu0 %v1246
    %1698 = vmatprep.subr.bf16.mxu0 0
    %1699 = vmatpush1.bf16.msra.mxu0 %v1247
    %1700 = vmatprep.mubr.bf16.mxu0 %v463
    %1701 = vmatmul.mubr.bf16.gmra.mrb[0].mxu0 %v462
    %v1702 = vpop.f32.mrb[0].mxu0
    %v1703 = vadd.f32 %v1662, %v1702
    %v1704 = vpop.f32.mrb[0].mxu0
    %v1705 = vpop.f32.mrb[0].mxu0
    %v1706 = vadd.f32 %v1665, %v1705
    %v1707 = vpop.f32.mrb[0].mxu0
    %1708 = vdwg.mxu0
    %1709 = vmatprep.subr.bf16.mxu0 0
    %1710 = vmatpush1.bf16.msra.mxu0 %v1248
    %1711 = vmatprep.subr.bf16.mxu0 0
    %1712 = vmatpush1.bf16.msra.mxu0 %v1249
    %1713 = vmatprep.subr.bf16.mxu0 0
    %1714 = vmatpush1.bf16.msra.mxu0 %v1250
    %1715 = vmatprep.subr.bf16.mxu0 0
    %1716 = vmatpush1.bf16.msra.mxu0 %v1251
    %1717 = vmatprep.subr.bf16.mxu0 0
    %1718 = vmatpush1.bf16.msra.mxu0 %v1252
    %1719 = vmatprep.subr.bf16.mxu0 0
    %1720 = vmatpush1.bf16.msra.mxu0 %v1253
    %1721 = vmatprep.subr.bf16.mxu0 0
    %1722 = vmatpush1.bf16.msra.mxu0 %v1254
    %1723 = vmatprep.subr.bf16.mxu0 0
    %1724 = vmatpush1.bf16.msra.mxu0 %v1255
    %1725 = vmatprep.subr.bf16.mxu0 0
    %1726 = vmatpush1.bf16.msra.mxu0 %v1256
    %1727 = vmatprep.subr.bf16.mxu0 0
    %1728 = vmatpush1.bf16.msra.mxu0 %v1257
    %1729 = vmatprep.subr.bf16.mxu0 0
    %1730 = vmatpush1.bf16.msra.mxu0 %v1258
    %1731 = vmatprep.subr.bf16.mxu0 0
    %1732 = vmatpush1.bf16.msra.mxu0 %v1259
    %1733 = vmatprep.subr.bf16.mxu0 0
    %1734 = vmatpush1.bf16.msra.mxu0 %v1260
    %1735 = vmatprep.subr.bf16.mxu0 0
    %1736 = vmatpush1.bf16.msra.mxu0 %v1261
    %1737 = vmatprep.subr.bf16.mxu0 0
    %1738 = vmatpush1.bf16.msra.mxu0 %v1262
    %1739 = vmatprep.subr.bf16.mxu0 0
    %1740 = vmatpush1.bf16.msra.mxu0 %v1263
    %1741 = vmatprep.mubr.bf16.mxu0 %v465
    %1742 = vmatmul.mubr.bf16.gmra.mrb[0].mxu0 %v464
    %v1743 = vpop.f32.mrb[0].mxu0
    %v1744 = vadd.f32 %v1703, %v1743
    %v1745 = vpop.f32.mrb[0].mxu0
    %v1746 = vpop.f32.mrb[0].mxu0
    %v1747 = vadd.f32 %v1706, %v1746
    %v1748 = vpop.f32.mrb[0].mxu0
    %1749 = vdwg.mxu0
    %1750 = vmatprep.subr.bf16.mxu0 0
    %1751 = vmatpush1.bf16.msra.mxu0 %v1264
    %1752 = vmatprep.subr.bf16.mxu0 0
    %1753 = vmatpush1.bf16.msra.mxu0 %v1265
    %1754 = vmatprep.subr.bf16.mxu0 0
    %1755 = vmatpush1.bf16.msra.mxu0 %v1266
    %1756 = vmatprep.subr.bf16.mxu0 0
    %1757 = vmatpush1.bf16.msra.mxu0 %v1267
    %1758 = vmatprep.subr.bf16.mxu0 0
    %1759 = vmatpush1.bf16.msra.mxu0 %v1268
    %1760 = vmatprep.subr.bf16.mxu0 0
    %1761 = vmatpush1.bf16.msra.mxu0 %v1269
    %1762 = vmatprep.subr.bf16.mxu0 0
    %1763 = vmatpush1.bf16.msra.mxu0 %v1270
    %1764 = vmatprep.subr.bf16.mxu0 0
    %1765 = vmatpush1.bf16.msra.mxu0 %v1271
    %1766 = vmatprep.subr.bf16.mxu0 0
    %1767 = vmatpush1.bf16.msra.mxu0 %v1272
    %1768 = vmatprep.subr.bf16.mxu0 0
    %1769 = vmatpush1.bf16.msra.mxu0 %v1273
    %1770 = vmatprep.subr.bf16.mxu0 0
    %1771 = vmatpush1.bf16.msra.mxu0 %v1274
    %1772 = vmatprep.subr.bf16.mxu0 0
    %1773 = vmatpush1.bf16.msra.mxu0 %v1275
    %1774 = vmatprep.subr.bf16.mxu0 0
    %1775 = vmatpush1.bf16.msra.mxu0 %v1276
    %1776 = vmatprep.subr.bf16.mxu0 0
    %1777 = vmatpush1.bf16.msra.mxu0 %v1277
    %1778 = vmatprep.subr.bf16.mxu0 0
    %1779 = vmatpush1.bf16.msra.mxu0 %v1278
    %1780 = vmatprep.subr.bf16.mxu0 0
    %1781 = vmatpush1.bf16.msra.mxu0 %v1279
    %1782 = vmatprep.mubr.bf16.mxu0 %v467
    %1783 = vmatmul.mubr.bf16.gmra.mrb[0].mxu0 %v466
    %v1784 = vpop.f32.mrb[0].mxu0
    %v1785 = vadd.f32 %v1744, %v1784
    %v1786 = vpop.f32.mrb[0].mxu0
    %v1787 = vpop.f32.mrb[0].mxu0
    %v1788 = vadd.f32 %v1747, %v1787
    %v1789 = vpop.f32.mrb[0].mxu0
    %1790 = vdwg.mxu0
    %1791 = vmatprep.subr.bf16.mxu0 0
    %1792 = vmatpush1.bf16.msra.mxu0 %v1280
    %1793 = vmatprep.subr.bf16.mxu0 0
    %1794 = vmatpush1.bf16.msra.mxu0 %v1281
    %1795 = vmatprep.subr.bf16.mxu0 0
    %1796 = vmatpush1.bf16.msra.mxu0 %v1282
    %1797 = vmatprep.subr.bf16.mxu0 0
    %1798 = vmatpush1.bf16.msra.mxu0 %v1283
    %1799 = vmatprep.subr.bf16.mxu0 0
    %1800 = vmatpush1.bf16.msra.mxu0 %v1284
    %1801 = vmatprep.subr.bf16.mxu0 0
    %1802 = vmatpush1.bf16.msra.mxu0 %v1285
    %1803 = vmatprep.subr.bf16.mxu0 0
    %1804 = vmatpush1.bf16.msra.mxu0 %v1286
    %1805 = vmatprep.subr.bf16.mxu0 0
    %1806 = vmatpush1.bf16.msra.mxu0 %v1287
    %1807 = vmatprep.subr.bf16.mxu0 0
    %1808 = vmatpush1.bf16.msra.mxu0 %v1288
    %1809 = vmatprep.subr.bf16.mxu0 0
    %1810 = vmatpush1.bf16.msra.mxu0 %v1289
    %1811 = vmatprep.subr.bf16.mxu0 0
    %1812 = vmatpush1.bf16.msra.mxu0 %v1290
    %1813 = vmatprep.subr.bf16.mxu0 0
    %1814 = vmatpush1.bf16.msra.mxu0 %v1291
    %1815 = vmatprep.subr.bf16.mxu0 0
    %1816 = vmatpush1.bf16.msra.mxu0 %v1292
    %1817 = vmatprep.subr.bf16.mxu0 0
    %1818 = vmatpush1.bf16.msra.mxu0 %v1293
    %1819 = vmatprep.subr.bf16.mxu0 0
    %1820 = vmatpush1.bf16.msra.mxu0 %v1294
    %1821 = vmatprep.subr.bf16.mxu0 0
    %1822 = vmatpush1.bf16.msra.mxu0 %v1295
    %1823 = vmatprep.mubr.bf16.mxu0 %v469
    %1824 = vmatmul.mubr.bf16.gmra.mrb[0].mxu0 %v468
    %v1825 = vpop.f32.mrb[0].mxu0
    %v1826 = vadd.f32 %v1785, %v1825
    %v1827 = vpop.f32.mrb[0].mxu0
    %v1828 = vpop.f32.mrb[0].mxu0
    %v1829 = vadd.f32 %v1788, %v1828
    %v1830 = vpop.f32.mrb[0].mxu0
    %1831 = vdwg.mxu0
    %1832 = vmatprep.subr.bf16.mxu0 0
    %1833 = vmatpush1.bf16.msra.mxu0 %v1296
    %1834 = vmatprep.subr.bf16.mxu0 0
    %1835 = vmatpush1.bf16.msra.mxu0 %v1297
    %1836 = vmatprep.subr.bf16.mxu0 0
    %1837 = vmatpush1.bf16.msra.mxu0 %v1298
    %1838 = vmatprep.subr.bf16.mxu0 0
    %1839 = vmatpush1.bf16.msra.mxu0 %v1299
    %1840 = vmatprep.subr.bf16.mxu0 0
    %1841 = vmatpush1.bf16.msra.mxu0 %v1300
    %1842 = vmatprep.subr.bf16.mxu0 0
    %1843 = vmatpush1.bf16.msra.mxu0 %v1301
    %1844 = vmatprep.subr.bf16.mxu0 0
    %1845 = vmatpush1.bf16.msra.mxu0 %v1302
    %1846 = vmatprep.subr.bf16.mxu0 0
    %1847 = vmatpush1.bf16.msra.mxu0 %v1303
    %1848 = vmatprep.subr.bf16.mxu0 0
    %1849 = vmatpush1.bf16.msra.mxu0 %v1304
    %1850 = vmatprep.subr.bf16.mxu0 0
    %1851 = vmatpush1.bf16.msra.mxu0 %v1305
    %1852 = vmatprep.subr.bf16.mxu0 0
    %1853 = vmatpush1.bf16.msra.mxu0 %v1306
    %1854 = vmatprep.subr.bf16.mxu0 0
    %1855 = vmatpush1.bf16.msra.mxu0 %v1307
    %1856 = vmatprep.subr.bf16.mxu0 0
    %1857 = vmatpush1.bf16.msra.mxu0 %v1308
    %1858 = vmatprep.subr.bf16.mxu0 0
    %1859 = vmatpush1.bf16.msra.mxu0 %v1309
    %1860 = vmatprep.subr.bf16.mxu0 0
    %1861 = vmatpush1.bf16.msra.mxu0 %v1310
    %1862 = vmatprep.subr.bf16.mxu0 0
    %1863 = vmatpush1.bf16.msra.mxu0 %v1311
    %1864 = vmatprep.mubr.bf16.mxu0 %v471
    %1865 = vmatmul.mubr.bf16.gmra.mrb[0].mxu0 %v470
    %v1866 = vpop.f32.mrb[0].mxu0
    %v1867 = vadd.f32 %v1826, %v1866
    %v1868 = vpop.f32.mrb[0].mxu0
    %v1869 = vpop.f32.mrb[0].mxu0
    %v1870 = vadd.f32 %v1829, %v1869
    %v1871 = vpop.f32.mrb[0].mxu0
    %1872 = vdwg.mxu0
    %1873 = vmatprep.subr.bf16.mxu0 0
    %1874 = vmatpush1.bf16.msra.mxu0 %v1312
    %1875 = vmatprep.subr.bf16.mxu0 0
    %1876 = vmatpush1.bf16.msra.mxu0 %v1313
    %1877 = vmatprep.subr.bf16.mxu0 0
    %1878 = vmatpush1.bf16.msra.mxu0 %v1314
    %1879 = vmatprep.subr.bf16.mxu0 0
    %1880 = vmatpush1.bf16.msra.mxu0 %v1315
    %1881 = vmatprep.subr.bf16.mxu0 0
    %1882 = vmatpush1.bf16.msra.mxu0 %v1316
    %1883 = vmatprep.subr.bf16.mxu0 0
    %1884 = vmatpush1.bf16.msra.mxu0 %v1317
    %1885 = vmatprep.subr.bf16.mxu0 0
    %1886 = vmatpush1.bf16.msra.mxu0 %v1318
    %1887 = vmatprep.subr.bf16.mxu0 0
    %1888 = vmatpush1.bf16.msra.mxu0 %v1319
    %1889 = vmatprep.subr.bf16.mxu0 0
    %1890 = vmatpush1.bf16.msra.mxu0 %v1320
    %1891 = vmatprep.subr.bf16.mxu0 0
    %1892 = vmatpush1.bf16.msra.mxu0 %v1321
    %1893 = vmatprep.subr.bf16.mxu0 0
    %1894 = vmatpush1.bf16.msra.mxu0 %v1322
    %1895 = vmatprep.subr.bf16.mxu0 0
    %1896 = vmatpush1.bf16.msra.mxu0 %v1323
    %1897 = vmatprep.subr.bf16.mxu0 0
    %1898 = vmatpush1.bf16.msra.mxu0 %v1324
    %1899 = vmatprep.subr.bf16.mxu0 0
    %1900 = vmatpush1.bf16.msra.mxu0 %v1325
    %1901 = vmatprep.subr.bf16.mxu0 0
    %1902 = vmatpush1.bf16.msra.mxu0 %v1326
    %1903 = vmatprep.subr.bf16.mxu0 0
    %1904 = vmatpush1.bf16.msra.mxu0 %v1327
    %1905 = vmatprep.mubr.bf16.mxu0 %v473
    %1906 = vmatmul.mubr.bf16.gmra.mrb[0].mxu0 %v472
    %v1907 = vpop.f32.mrb[0].mxu0
    %v1908 = vadd.f32 %v1867, %v1907
    %v1909 = vpop.f32.mrb[0].mxu0
    %v1910 = vpop.f32.mrb[0].mxu0
    %v1911 = vadd.f32 %v1870, %v1910
    %v1912 = vpop.f32.mrb[0].mxu0
    %1913 = vdwg.mxu0
    %1914 = vmatprep.subr.bf16.mxu0 0
    %1915 = vmatpush1.bf16.msra.mxu0 %v1328
    %1916 = vmatprep.subr.bf16.mxu0 0
    %1917 = vmatpush1.bf16.msra.mxu0 %v1329
    %1918 = vmatprep.subr.bf16.mxu0 0
    %1919 = vmatpush1.bf16.msra.mxu0 %v1330
    %1920 = vmatprep.subr.bf16.mxu0 0
    %1921 = vmatpush1.bf16.msra.mxu0 %v1331
    %1922 = vmatprep.subr.bf16.mxu0 0
    %1923 = vmatpush1.bf16.msra.mxu0 %v1332
    %1924 = vmatprep.subr.bf16.mxu0 0
    %1925 = vmatpush1.bf16.msra.mxu0 %v1333
    %1926 = vmatprep.subr.bf16.mxu0 0
    %1927 = vmatpush1.bf16.msra.mxu0 %v1334
    %1928 = vmatprep.subr.bf16.mxu0 0
    %1929 = vmatpush1.bf16.msra.mxu0 %v1335
    %1930 = vmatprep.subr.bf16.mxu0 0
    %1931 = vmatpush1.bf16.msra.mxu0 0
    %1932 = vmatprep.subr.bf16.mxu0 0
    %1933 = vmatpush1.bf16.msra.mxu0 0
    %1934 = vmatprep.subr.bf16.mxu0 0
    %1935 = vmatpush1.bf16.msra.mxu0 0
    %1936 = vmatprep.subr.bf16.mxu0 0
    %1937 = vmatpush1.bf16.msra.mxu0 0
    %1938 = vmatprep.subr.bf16.mxu0 0
    %1939 = vmatpush1.bf16.msra.mxu0 0
    %1940 = vmatprep.subr.bf16.mxu0 0
    %1941 = vmatpush1.bf16.msra.mxu0 0
    %1942 = vmatprep.subr.bf16.mxu0 0
    %1943 = vmatpush1.bf16.msra.mxu0 0
    %1944 = vmatprep.subr.bf16.mxu0 0
    %1945 = vmatpush1.bf16.msra.mxu0 0
    %1946 = vmatprep.mubr.bf16.mxu0 0
    %1947 = vmatmul.mubr.bf16.gmra.mrb[0].mxu0 %v474
    %v1948 = vpop.f32.mrb[0].mxu0
    %v1949 = vadd.f32 %v1908, %v1948
    %v1950 = vpop.f32.mrb[0].mxu0
    %v1951 = vpop.f32.mrb[0].mxu0
    %v1952 = vadd.f32 %v1911, %v1951
    %v1953 = vpop.f32.mrb[0].mxu0
    %1954 = vdwg.mxu0
    %v1955 = vlaneseq
    %v1956 = vand.u32 %v1955, 127
    %vm1957 = vcmp.lt.s32.totalorder %v1956, 5
    %v1958 = vsel %vm1957, 0.0, -1e+30
    %v1959 = vld [vmem:[%s3] sm:$0xff]
    %v1960 = vld [vmem:[%s3 + $0x8] sm:$0xff]
    %v1961 = vld [vmem:[%s3 + $0x10] sm:$0xff]
    %v1962 = vld [vmem:[%s3 + $0x18] sm:$0xff]
    %v1963 = vld [vmem:[%s3 + $0x20] sm:$0xff]
    %v1964 = vld [vmem:[%s3 + $0x28] sm:$0xff]
    %v1965 = vld [vmem:[%s3 + $0x30] sm:$0xff]
    %v1966 = vld [vmem:[%s3 + $0x38] sm:$0xff]
    %v1967 = vld [vmem:[%s4] sm:$0xff]
    %v1968 = vld [vmem:[%s4 + $0x8] sm:$0xff]
    %v1969 = vld [vmem:[%s4 + $0x10] sm:$0xff]
    %v1970 = vld [vmem:[%s4 + $0x18] sm:$0xff]
    %v1971 = vld [vmem:[%s4 + $0x20] sm:$0xff]
    %v1972 = vld [vmem:[%s4 + $0x28] sm:$0xff]
    %v1973 = vld [vmem:[%s4 + $0x30] sm:$0xff]
    %v1974 = vld [vmem:[%s4 + $0x38] sm:$0xff]
    %v1975 = vld [vmem:[%s5] sm:$0xff]
    %vm1976 = vcmask 261120
    %v1977 = vsel %vm1976, %v1949, 0.0
    %1978 = vadd.xlane.f32.xlu0 %v1977
    %v1979 = vpop.xlane.xlu0 %1978
    %v1980 = vsel %vm1976, %v1952, 0.0
    %1981 = vadd.xlane.f32.xlu0 %v1980
    %v1982 = vpop.xlane.xlu0 %1981
    %v1983 = vrcp.pop 32.0
    %v1984 = vmul.f32 %v1979, %v1983
    %v1985 = vmul.f32 %v1982, %v1983
    %v1986 = vsub.f32 %v1949, %v1984
    %v1987 = vsub.f32 %v1952, %v1985
    %v1988 = vmul.f32 %v1986, %v1986
    %v1989 = vmul.f32 %v1987, %v1987
    %v1990 = vsel %vm1976, %v1988, 0.0
    %1991 = vadd.xlane.f32.xlu0 %v1990
    %v1992 = vpop.xlane.xlu0 %1991
    %v1993 = vsel %vm1976, %v1989, 0.0
    %1994 = vadd.xlane.f32.xlu0 %v1993
    %v1995 = vpop.xlane.xlu0 %1994
    %v1996 = vmul.f32 %v1992, %v1983
    %v1997 = vmul.f32 %v1995, %v1983
    %v1998 = vadd.f32 %v1996, 1e-06
    %v1999 = vadd.f32 %v1997, 1e-06
    %v2000 = vrsqrt.pop %v1998
    %v2001 = vrsqrt.pop %v1999
    %v2002 = vmul.f32 %v1986, %v2000
    %v2003 = vmul.f32 %v1987, %v2001
    %v2004 = vlaneseq
    %v2005 = vshrl.u32 %v2004, 7
    %v2006 = vsub.s32 0, %v2005
    %v2007 = vrot.slane %v1975, %v2006
    %v2008 = vmul.f32 %v2002, %v2007
    %v2009 = vmul.f32 %v2003, %v2007
    %v2010 = vlaneseq
    %v2011 = vshrl.u32 %v2010, 7
    %v2012 = vsub.s32 1, %v2011
    %v2013 = vrot.slane %v1975, %v2012
    %v2014 = vadd.f32 %v2008, %v2013
    %v2015 = vadd.f32 %v2009, %v2013
    %v2016 = vlaneseq
    %v2017 = vshrl.u32 %v2016, 7
    %v2018 = vsub.s32 2, %v2017
    %v2019 = vrot.slane %v1975, %v2018
    %v2021 = vsel %vm1976, %v2014, 0
    %v2024 = vsel %vm1976, %v2015, 0
    %2026 = vmatprep.subr.mxu0 0.0
    %2027 = vmatpush1.msra.mxu0 %v1959
    %2028 = vmatprep.subr.mxu0 0.0
    %2029 = vmatpush1.msra.mxu0 %v1961
    %2030 = vmatprep.subr.mxu0 0.0
    %2031 = vmatpush1.msra.mxu0 %v1963
    %2032 = vmatprep.subr.mxu0 0.0
    %2033 = vmatpush1.msra.mxu0 %v1965
    %2034 = vmatprep.subr.mxu0 0.0
    %2035 = vmatpush1.msra.mxu0 0.0
    %2036 = vmatprep.subr.mxu0 0.0
    %2037 = vmatpush1.msra.mxu0 0.0
    %2038 = vmatprep.subr.mxu0 0.0
    %2039 = vmatpush1.msra.mxu0 0.0
    %2040 = vmatprep.subr.mxu0 0.0
    %2041 = vmatpush1.msra.mxu0 0.0
    %2042 = vmatprep.subr.mxu0 0.0
    %2043 = vmatpush1.msra.mxu0 0.0
    %2044 = vmatprep.subr.mxu0 0.0
    %2045 = vmatpush1.msra.mxu0 0.0
    %2046 = vmatprep.subr.mxu0 0.0
    %2047 = vmatpush1.msra.mxu0 0.0
    %2048 = vmatprep.subr.mxu0 0.0
    %2049 = vmatpush1.msra.mxu0 0.0
    %2050 = vmatprep.subr.mxu0 0.0
    %2051 = vmatpush1.msra.mxu0 0.0
    %2052 = vmatprep.subr.mxu0 0.0
    %2053 = vmatpush1.msra.mxu0 0.0
    %2054 = vmatprep.subr.mxu0 0.0
    %2055 = vmatpush1.msra.mxu0 0.0
    %2056 = vmatprep.subr.mxu0 0.0
    %2057 = vmatpush1.msra.mxu0 0.0
    %2058 = vmatprep.subr.mxu0 0.0
    %2059 = vmatpush1.msra.mxu0 0.0
    %2060 = vmatprep.subr.mxu0 0.0
    %2061 = vmatpush1.msra.mxu0 0.0
    %2062 = vmatprep.subr.mxu0 0.0
    %2063 = vmatpush1.msra.mxu0 0.0
    %2064 = vmatprep.subr.mxu0 0.0
    %2065 = vmatpush1.msra.mxu0 0.0
    %2066 = vmatprep.subr.mxu0 0.0
    %2067 = vmatpush1.msra.mxu0 0.0
    %2068 = vmatprep.subr.mxu0 0.0
    %2069 = vmatpush1.msra.mxu0 0.0
    %2070 = vmatprep.subr.mxu0 0.0
    %2071 = vmatpush1.msra.mxu0 0.0
    %2072 = vmatprep.subr.mxu0 0.0
    %2073 = vmatpush1.msra.mxu0 0.0
    %2074 = vmatprep.subr.mxu0 0.0
    %2075 = vmatpush1.msra.mxu0 0.0
    %2076 = vmatprep.subr.mxu0 0.0
    %2077 = vmatpush1.msra.mxu0 0.0
    %2078 = vmatprep.subr.mxu0 0.0
    %2079 = vmatpush1.msra.mxu0 0.0
    %2080 = vmatprep.subr.mxu0 0.0
    %2081 = vmatpush1.msra.mxu0 0.0
    %2082 = vmatprep.subr.mxu0 0.0
    %2083 = vmatpush1.msra.mxu0 0.0
    %2084 = vmatprep.subr.mxu0 0.0
    %2085 = vmatpush1.msra.mxu0 0.0
    %2086 = vmatprep.subr.mxu0 0.0
    %2087 = vmatpush1.msra.mxu0 0.0
    %2088 = vmatprep.subr.mxu0 0.0
    %2089 = vmatpush1.msra.mxu0 0.0
    %2090 = vmatprep.mubr.f32.mxu0 0.0
    %2091 = vmatmul.mubr.f32.gmra.mrb[0].mxu0 %v2021
    %v2092 = vpop.f32.mrb[0].mxu0
    %v2093 = vadd.f32 %v2019, %v2092
    %v2094 = vpop.f32.mrb[0].mxu0
    %2095 = vmatprep.mubr.f32.mxu0 0.0
    %2096 = vmatmul.mubr.f32.gmra.mrb[0].mxu0 %v2024
    %v2097 = vpop.f32.mrb[0].mxu0
    %v2098 = vadd.f32 %v2019, %v2097
    %v2099 = vpop.f32.mrb[0].mxu0
    %2100 = vdwg.mxu0
    %2102 = vrot.lane.b32.xlu0 %v2093, 96
    %v2103 = vpop.permute.xlu0 %2102
    %vm2104 = vcmask 64512
    %v2105 = vsel %vm2104, %v2093, 0
    %v2107 = vsel %vm2104, %v2103, 0
    %2109 = vmatprep.subr.mxu0 0.0
    %2110 = vmatpush1.xpose.msra.mxu0 %v2107
    %2111 = vmatprep.subr.mxu0 0.0
    %2112 = vmatpush1.xpose.msra.mxu0 0.0
    %2113 = vmatprep.subr.mxu0 0.0
    %2114 = vmatpush1.xpose.msra.mxu0 0.0
    %2115 = vmatprep.subr.mxu0 0.0
    %2116 = vmatpush1.xpose.msra.mxu0 0.0
    %2117 = vmatprep.subr.mxu0 0.0
    %2118 = vmatpush1.xpose.msra.mxu0 0.0
    %2119 = vmatprep.subr.mxu0 0.0
    %2120 = vmatpush1.xpose.msra.mxu0 0.0
    %2121 = vmatprep.subr.mxu0 0.0
    %2122 = vmatpush1.xpose.msra.mxu0 0.0
    %2123 = vmatprep.subr.mxu0 0.0
    %2124 = vmatpush1.xpose.msra.mxu0 0.0
    %2125 = vmatprep.subr.mxu0 0.0
    %2126 = vmatpush1.xpose.msra.mxu0 0.0
    %2127 = vmatprep.subr.mxu0 0.0
    %2128 = vmatpush1.xpose.msra.mxu0 0.0
    %2129 = vmatprep.subr.mxu0 0.0
    %2130 = vmatpush1.xpose.msra.mxu0 0.0
    %2131 = vmatprep.subr.mxu0 0.0
    %2132 = vmatpush1.xpose.msra.mxu0 0.0
    %2133 = vmatprep.subr.mxu0 0.0
    %2134 = vmatpush1.xpose.msra.mxu0 0.0
    %2135 = vmatprep.subr.mxu0 0.0
    %2136 = vmatpush1.xpose.msra.mxu0 0.0
    %2137 = vmatprep.subr.mxu0 0.0
    %2138 = vmatpush1.xpose.msra.mxu0 0.0
    %2139 = vmatprep.subr.mxu0 0.0
    %2140 = vmatpush1.xpose.msra.mxu0 0.0
    %2141 = vmatprep.subr.mxu0 0.0
    %2142 = vmatpush1.xpose.msra.mxu0 0.0
    %2143 = vmatprep.subr.mxu0 0.0
    %2144 = vmatpush1.xpose.msra.mxu0 0.0
    %2145 = vmatprep.subr.mxu0 0.0
    %2146 = vmatpush1.xpose.msra.mxu0 0.0
    %2147 = vmatprep.subr.mxu0 0.0
    %2148 = vmatpush1.xpose.msra.mxu0 0.0
    %2149 = vmatprep.subr.mxu0 0.0
    %2150 = vmatpush1.xpose.msra.mxu0 0.0
    %2151 = vmatprep.subr.mxu0 0.0
    %2152 = vmatpush1.xpose.msra.mxu0 0.0
    %2153 = vmatprep.subr.mxu0 0.0
    %2154 = vmatpush1.xpose.msra.mxu0 0.0
    %2155 = vmatprep.subr.mxu0 0.0
    %2156 = vmatpush1.xpose.msra.mxu0 0.0
    %2157 = vmatprep.subr.mxu0 0.0
    %2158 = vmatpush1.xpose.msra.mxu0 0.0
    %2159 = vmatprep.subr.mxu0 0.0
    %2160 = vmatpush1.xpose.msra.mxu0 0.0
    %2161 = vmatprep.subr.mxu0 0.0
    %2162 = vmatpush1.xpose.msra.mxu0 0.0
    %2163 = vmatprep.subr.mxu0 0.0
    %2164 = vmatpush1.xpose.msra.mxu0 0.0
    %2165 = vmatprep.subr.mxu0 0.0
    %2166 = vmatpush1.xpose.msra.mxu0 0.0
    %2167 = vmatprep.subr.mxu0 0.0
    %2168 = vmatpush1.xpose.msra.mxu0 0.0
    %2169 = vmatprep.subr.mxu0 0.0
    %2170 = vmatpush1.xpose.msra.mxu0 0.0
    %2171 = vmatprep.subr.mxu0 0.0
    %2172 = vmatpush1.xpose.msra.mxu0 0.0
    %2173 = vmatprep.mubr.f32.mxu0 0.0
    %2174 = vmatmul.mubr.f32.gmra.mrb[0].mxu0 %v2105
    %v2175 = vpop.f32.mrb[0].mxu0
    %v2176 = vadd.f32 %v1958, %v2175
    %v2177 = vpop.f32.mrb[0].mxu0
    %2178 = vdwg.mxu0
    %2180 = vrot.lane.b32.xlu0 %v2098, 96
    %v2181 = vpop.permute.xlu0 %2180
    %v2182 = vsel %vm2104, %v2098, 0
    %v2184 = vsel %vm2104, %v2181, 0
    %2186 = vmatprep.subr.mxu0 0.0
    %2187 = vmatpush1.xpose.msra.mxu0 %v2184
    %2188 = vmatprep.subr.mxu0 0.0
    %2189 = vmatpush1.xpose.msra.mxu0 0.0
    %2190 = vmatprep.subr.mxu0 0.0
    %2191 = vmatpush1.xpose.msra.mxu0 0.0
    %2192 = vmatprep.subr.mxu0 0.0
    %2193 = vmatpush1.xpose.msra.mxu0 0.0
    %2194 = vmatprep.subr.mxu0 0.0
    %2195 = vmatpush1.xpose.msra.mxu0 0.0
    %2196 = vmatprep.subr.mxu0 0.0
    %2197 = vmatpush1.xpose.msra.mxu0 0.0
    %2198 = vmatprep.subr.mxu0 0.0
    %2199 = vmatpush1.xpose.msra.mxu0 0.0
    %2200 = vmatprep.subr.mxu0 0.0
    %2201 = vmatpush1.xpose.msra.mxu0 0.0
    %2202 = vmatprep.subr.mxu0 0.0
    %2203 = vmatpush1.xpose.msra.mxu0 0.0
    %2204 = vmatprep.subr.mxu0 0.0
    %2205 = vmatpush1.xpose.msra.mxu0 0.0
    %2206 = vmatprep.subr.mxu0 0.0
    %2207 = vmatpush1.xpose.msra.mxu0 0.0
    %2208 = vmatprep.subr.mxu0 0.0
    %2209 = vmatpush1.xpose.msra.mxu0 0.0
    %2210 = vmatprep.subr.mxu0 0.0
    %2211 = vmatpush1.xpose.msra.mxu0 0.0
    %2212 = vmatprep.subr.mxu0 0.0
    %2213 = vmatpush1.xpose.msra.mxu0 0.0
    %2214 = vmatprep.subr.mxu0 0.0
    %2215 = vmatpush1.xpose.msra.mxu0 0.0
    %2216 = vmatprep.subr.mxu0 0.0
    %2217 = vmatpush1.xpose.msra.mxu0 0.0
    %2218 = vmatprep.subr.mxu0 0.0
    %2219 = vmatpush1.xpose.msra.mxu0 0.0
    %2220 = vmatprep.subr.mxu0 0.0
    %2221 = vmatpush1.xpose.msra.mxu0 0.0
    %2222 = vmatprep.subr.mxu0 0.0
    %2223 = vmatpush1.xpose.msra.mxu0 0.0
    %2224 = vmatprep.subr.mxu0 0.0
    %2225 = vmatpush1.xpose.msra.mxu0 0.0
    %2226 = vmatprep.subr.mxu0 0.0
    %2227 = vmatpush1.xpose.msra.mxu0 0.0
    %2228 = vmatprep.subr.mxu0 0.0
    %2229 = vmatpush1.xpose.msra.mxu0 0.0
    %2230 = vmatprep.subr.mxu0 0.0
    %2231 = vmatpush1.xpose.msra.mxu0 0.0
    %2232 = vmatprep.subr.mxu0 0.0
    %2233 = vmatpush1.xpose.msra.mxu0 0.0
    %2234 = vmatprep.subr.mxu0 0.0
    %2235 = vmatpush1.xpose.msra.mxu0 0.0
    %2236 = vmatprep.subr.mxu0 0.0
    %2237 = vmatpush1.xpose.msra.mxu0 0.0
    %2238 = vmatprep.subr.mxu0 0.0
    %2239 = vmatpush1.xpose.msra.mxu0 0.0
    %2240 = vmatprep.subr.mxu0 0.0
    %2241 = vmatpush1.xpose.msra.mxu0 0.0
    %2242 = vmatprep.subr.mxu0 0.0
    %2243 = vmatpush1.xpose.msra.mxu0 0.0
    %2244 = vmatprep.subr.mxu0 0.0
    %2245 = vmatpush1.xpose.msra.mxu0 0.0
    %2246 = vmatprep.subr.mxu0 0.0
    %2247 = vmatpush1.xpose.msra.mxu0 0.0
    %2248 = vmatprep.subr.mxu0 0.0
    %2249 = vmatpush1.xpose.msra.mxu0 0.0
    %2250 = vmatprep.mubr.f32.mxu0 0.0
    %2251 = vmatmul.mubr.f32.gmra.mrb[0].mxu0 %v2182
    %v2252 = vpop.f32.mrb[0].mxu0
    %v2253 = vadd.f32 %v1958, %v2252
    %v2254 = vpop.f32.mrb[0].mxu0
    %2255 = vdwg.mxu0
    %v2256 = vsel %vm2104, %v2176, -inf
    %2257 = vmax.xlane.f32.xlu0 %v2256
    %v2258 = vpop.xlane.xlu0 %2257
    %v2259 = vsel %vm2104, %v2253, -inf
    %2260 = vmax.xlane.f32.xlu0 %v2259
    %v2261 = vpop.xlane.xlu0 %2260
    %v2262 = vsub.f32 %v2176, %v2258
    %v2263 = vsub.f32 %v2253, %v2261
    %v2264 = vmul.f32 %v2262, 1.442695
    %v2265 = vpow.pop %v2264
    %v2266 = vmul.f32 %v2263, 1.442695
    %v2267 = vpow.pop %v2266
    %v2268 = vsel %vm2104, %v2265, 0.0
    %2269 = vadd.xlane.f32.xlu0 %v2268
    %v2270 = vpop.xlane.xlu0 %2269
    %v2271 = vsel %vm2104, %v2267, 0.0
    %2272 = vadd.xlane.f32.xlu0 %v2271
    %v2273 = vpop.xlane.xlu0 %2272
    %v2274 = vrcp.pop %v2270
    %v2275 = vrcp.pop %v2273
    %v2276 = vmul.f32 %v2265, %v2274
    %v2277 = vmul.f32 %v2267, %v2275
    %2278 = vrot.lane.b32.xlu0 %v2093, 64
    %v2279 = vpop.permute.xlu0 %2278
    %v2282 = vsel %vm2104, %v2276, 0
    %2284 = vmatprep.subr.mxu0 0.0
    %2285 = vmatpush1.msra.mxu0 %v2279
    %2286 = vmatprep.subr.mxu0 0.0
    %2287 = vmatpush1.msra.mxu0 0.0
    %2288 = vmatprep.subr.mxu0 0.0
    %2289 = vmatpush1.msra.mxu0 0.0
    %2290 = vmatprep.subr.mxu0 0.0
    %2291 = vmatpush1.msra.mxu0 0.0
    %2292 = vmatprep.subr.mxu0 0.0
    %2293 = vmatpush1.msra.mxu0 0.0
    %2294 = vmatprep.subr.mxu0 0.0
    %2295 = vmatpush1.msra.mxu0 0.0
    %2296 = vmatprep.subr.mxu0 0.0
    %2297 = vmatpush1.msra.mxu0 0.0
    %2298 = vmatprep.subr.mxu0 0.0
    %2299 = vmatpush1.msra.mxu0 0.0
    %2300 = vmatprep.subr.mxu0 0.0
    %2301 = vmatpush1.msra.mxu0 0.0
    %2302 = vmatprep.subr.mxu0 0.0
    %2303 = vmatpush1.msra.mxu0 0.0
    %2304 = vmatprep.subr.mxu0 0.0
    %2305 = vmatpush1.msra.mxu0 0.0
    %2306 = vmatprep.subr.mxu0 0.0
    %2307 = vmatpush1.msra.mxu0 0.0
    %2308 = vmatprep.subr.mxu0 0.0
    %2309 = vmatpush1.msra.mxu0 0.0
    %2310 = vmatprep.subr.mxu0 0.0
    %2311 = vmatpush1.msra.mxu0 0.0
    %2312 = vmatprep.subr.mxu0 0.0
    %2313 = vmatpush1.msra.mxu0 0.0
    %2314 = vmatprep.subr.mxu0 0.0
    %2315 = vmatpush1.msra.mxu0 0.0
    %2316 = vmatprep.subr.mxu0 0.0
    %2317 = vmatpush1.msra.mxu0 0.0
    %2318 = vmatprep.subr.mxu0 0.0
    %2319 = vmatpush1.msra.mxu0 0.0
    %2320 = vmatprep.subr.mxu0 0.0
    %2321 = vmatpush1.msra.mxu0 0.0
    %2322 = vmatprep.subr.mxu0 0.0
    %2323 = vmatpush1.msra.mxu0 0.0
    %2324 = vmatprep.subr.mxu0 0.0
    %2325 = vmatpush1.msra.mxu0 0.0
    %2326 = vmatprep.subr.mxu0 0.0
    %2327 = vmatpush1.msra.mxu0 0.0
    %2328 = vmatprep.subr.mxu0 0.0
    %2329 = vmatpush1.msra.mxu0 0.0
    %2330 = vmatprep.subr.mxu0 0.0
    %2331 = vmatpush1.msra.mxu0 0.0
    %2332 = vmatprep.subr.mxu0 0.0
    %2333 = vmatpush1.msra.mxu0 0.0
    %2334 = vmatprep.subr.mxu0 0.0
    %2335 = vmatpush1.msra.mxu0 0.0
    %2336 = vmatprep.subr.mxu0 0.0
    %2337 = vmatpush1.msra.mxu0 0.0
    %2338 = vmatprep.subr.mxu0 0.0
    %2339 = vmatpush1.msra.mxu0 0.0
    %2340 = vmatprep.subr.mxu0 0.0
    %2341 = vmatpush1.msra.mxu0 0.0
    %2342 = vmatprep.subr.mxu0 0.0
    %2343 = vmatpush1.msra.mxu0 0.0
    %2344 = vmatprep.subr.mxu0 0.0
    %2345 = vmatpush1.msra.mxu0 0.0
    %2346 = vmatprep.subr.mxu0 0.0
    %2347 = vmatpush1.msra.mxu0 0.0
    %2348 = vmatprep.mubr.f32.mxu0 0.0
    %2349 = vmatmul.mubr.f32.gmra.mrb[0].mxu0 %v2282
    %v2350 = vpop.f32.mrb[0].mxu0
    %v2351 = vadd.f32 0.0, %v2350
    %v2352 = vpop.f32.mrb[0].mxu0
    %2353 = vdwg.mxu0
    %2354 = vrot.lane.b32.xlu0 %v2098, 64
    %v2355 = vpop.permute.xlu0 %2354
    %v2358 = vsel %vm2104, %v2277, 0
    %2360 = vmatprep.subr.mxu0 0.0
    %2361 = vmatpush1.msra.mxu0 %v2355
    %2362 = vmatprep.subr.mxu0 0.0
    %2363 = vmatpush1.msra.mxu0 0.0
    %2364 = vmatprep.subr.mxu0 0.0
    %2365 = vmatpush1.msra.mxu0 0.0
    %2366 = vmatprep.subr.mxu0 0.0
    %2367 = vmatpush1.msra.mxu0 0.0
    %2368 = vmatprep.subr.mxu0 0.0
    %2369 = vmatpush1.msra.mxu0 0.0
    %2370 = vmatprep.subr.mxu0 0.0
    %2371 = vmatpush1.msra.mxu0 0.0
    %2372 = vmatprep.subr.mxu0 0.0
    %2373 = vmatpush1.msra.mxu0 0.0
    %2374 = vmatprep.subr.mxu0 0.0
    %2375 = vmatpush1.msra.mxu0 0.0
    %2376 = vmatprep.subr.mxu0 0.0
    %2377 = vmatpush1.msra.mxu0 0.0
    %2378 = vmatprep.subr.mxu0 0.0
    %2379 = vmatpush1.msra.mxu0 0.0
    %2380 = vmatprep.subr.mxu0 0.0
    %2381 = vmatpush1.msra.mxu0 0.0
    %2382 = vmatprep.subr.mxu0 0.0
    %2383 = vmatpush1.msra.mxu0 0.0
    %2384 = vmatprep.subr.mxu0 0.0
    %2385 = vmatpush1.msra.mxu0 0.0
    %2386 = vmatprep.subr.mxu0 0.0
    %2387 = vmatpush1.msra.mxu0 0.0
    %2388 = vmatprep.subr.mxu0 0.0
    %2389 = vmatpush1.msra.mxu0 0.0
    %2390 = vmatprep.subr.mxu0 0.0
    %2391 = vmatpush1.msra.mxu0 0.0
    %2392 = vmatprep.subr.mxu0 0.0
    %2393 = vmatpush1.msra.mxu0 0.0
    %2394 = vmatprep.subr.mxu0 0.0
    %2395 = vmatpush1.msra.mxu0 0.0
    %2396 = vmatprep.subr.mxu0 0.0
    %2397 = vmatpush1.msra.mxu0 0.0
    %2398 = vmatprep.subr.mxu0 0.0
    %2399 = vmatpush1.msra.mxu0 0.0
    %2400 = vmatprep.subr.mxu0 0.0
    %2401 = vmatpush1.msra.mxu0 0.0
    %2402 = vmatprep.subr.mxu0 0.0
    %2403 = vmatpush1.msra.mxu0 0.0
    %2404 = vmatprep.subr.mxu0 0.0
    %2405 = vmatpush1.msra.mxu0 0.0
    %2406 = vmatprep.subr.mxu0 0.0
    %2407 = vmatpush1.msra.mxu0 0.0
    %2408 = vmatprep.subr.mxu0 0.0
    %2409 = vmatpush1.msra.mxu0 0.0
    %2410 = vmatprep.subr.mxu0 0.0
    %2411 = vmatpush1.msra.mxu0 0.0
    %2412 = vmatprep.subr.mxu0 0.0
    %2413 = vmatpush1.msra.mxu0 0.0
    %2414 = vmatprep.subr.mxu0 0.0
    %2415 = vmatpush1.msra.mxu0 0.0
    %2416 = vmatprep.subr.mxu0 0.0
    %2417 = vmatpush1.msra.mxu0 0.0
    %2418 = vmatprep.subr.mxu0 0.0
    %2419 = vmatpush1.msra.mxu0 0.0
    %2420 = vmatprep.subr.mxu0 0.0
    %2421 = vmatpush1.msra.mxu0 0.0
    %2422 = vmatprep.subr.mxu0 0.0
    %2423 = vmatpush1.msra.mxu0 0.0
    %2424 = vmatprep.mubr.f32.mxu0 0.0
    %2425 = vmatmul.mubr.f32.gmra.mrb[0].mxu0 %v2358
    %v2426 = vpop.f32.mrb[0].mxu0
    %v2427 = vadd.f32 0.0, %v2426
    %v2428 = vpop.f32.mrb[0].mxu0
    %2429 = vdwg.mxu0
    %2430 = vrot.lane.b32.xlu0 %v2093, 120
    %v2431 = vpop.permute.xlu0 %2430
    %2432 = vrot.lane.b32.xlu0 %v2093, 88
    %v2433 = vpop.permute.xlu0 %2432
    %v2434 = vsel %vm2104, %v2431, 0
    %v2436 = vsel %vm2104, %v2433, 0
    %2438 = vmatprep.subr.mxu0 0.0
    %2439 = vmatpush1.xpose.msra.mxu0 %v2436
    %2440 = vmatprep.subr.mxu0 0.0
    %2441 = vmatpush1.xpose.msra.mxu0 0.0
    %2442 = vmatprep.subr.mxu0 0.0
    %2443 = vmatpush1.xpose.msra.mxu0 0.0
    %2444 = vmatprep.subr.mxu0 0.0
    %2445 = vmatpush1.xpose.msra.mxu0 0.0
    %2446 = vmatprep.subr.mxu0 0.0
    %2447 = vmatpush1.xpose.msra.mxu0 0.0
    %2448 = vmatprep.subr.mxu0 0.0
    %2449 = vmatpush1.xpose.msra.mxu0 0.0
    %2450 = vmatprep.subr.mxu0 0.0
    %2451 = vmatpush1.xpose.msra.mxu0 0.0
    %2452 = vmatprep.subr.mxu0 0.0
    %2453 = vmatpush1.xpose.msra.mxu0 0.0
    %2454 = vmatprep.subr.mxu0 0.0
    %2455 = vmatpush1.xpose.msra.mxu0 0.0
    %2456 = vmatprep.subr.mxu0 0.0
    %2457 = vmatpush1.xpose.msra.mxu0 0.0
    %2458 = vmatprep.subr.mxu0 0.0
    %2459 = vmatpush1.xpose.msra.mxu0 0.0
    %2460 = vmatprep.subr.mxu0 0.0
    %2461 = vmatpush1.xpose.msra.mxu0 0.0
    %2462 = vmatprep.subr.mxu0 0.0
    %2463 = vmatpush1.xpose.msra.mxu0 0.0
    %2464 = vmatprep.subr.mxu0 0.0
    %2465 = vmatpush1.xpose.msra.mxu0 0.0
    %2466 = vmatprep.subr.mxu0 0.0
    %2467 = vmatpush1.xpose.msra.mxu0 0.0
    %2468 = vmatprep.subr.mxu0 0.0
    %2469 = vmatpush1.xpose.msra.mxu0 0.0
    %2470 = vmatprep.subr.mxu0 0.0
    %2471 = vmatpush1.xpose.msra.mxu0 0.0
    %2472 = vmatprep.subr.mxu0 0.0
    %2473 = vmatpush1.xpose.msra.mxu0 0.0
    %2474 = vmatprep.subr.mxu0 0.0
    %2475 = vmatpush1.xpose.msra.mxu0 0.0
    %2476 = vmatprep.subr.mxu0 0.0
    %2477 = vmatpush1.xpose.msra.mxu0 0.0
    %2478 = vmatprep.subr.mxu0 0.0
    %2479 = vmatpush1.xpose.msra.mxu0 0.0
    %2480 = vmatprep.subr.mxu0 0.0
    %2481 = vmatpush1.xpose.msra.mxu0 0.0
    %2482 = vmatprep.subr.mxu0 0.0
    %2483 = vmatpush1.xpose.msra.mxu0 0.0
    %2484 = vmatprep.subr.mxu0 0.0
    %2485 = vmatpush1.xpose.msra.mxu0 0.0
    %2486 = vmatprep.subr.mxu0 0.0
    %2487 = vmatpush1.xpose.msra.mxu0 0.0
    %2488 = vmatprep.subr.mxu0 0.0
    %2489 = vmatpush1.xpose.msra.mxu0 0.0
    %2490 = vmatprep.subr.mxu0 0.0
    %2491 = vmatpush1.xpose.msra.mxu0 0.0
    %2492 = vmatprep.subr.mxu0 0.0
    %2493 = vmatpush1.xpose.msra.mxu0 0.0
    %2494 = vmatprep.subr.mxu0 0.0
    %2495 = vmatpush1.xpose.msra.mxu0 0.0
    %2496 = vmatprep.subr.mxu0 0.0
    %2497 = vmatpush1.xpose.msra.mxu0 0.0
    %2498 = vmatprep.subr.mxu0 0.0
    %2499 = vmatpush1.xpose.msra.mxu0 0.0
    %2500 = vmatprep.subr.mxu0 0.0
    %2501 = vmatpush1.xpose.msra.mxu0 0.0
    %2502 = vmatprep.mubr.f32.mxu0 0.0
    %2503 = vmatmul.mubr.f32.gmra.mrb[0].mxu0 %v2434
    %v2504 = vpop.f32.mrb[0].mxu0
    %v2505 = vadd.f32 %v1958, %v2504
    %v2506 = vpop.f32.mrb[0].mxu0
    %2507 = vdwg.mxu0
    %2508 = vrot.lane.b32.xlu0 %v2098, 120
    %v2509 = vpop.permute.xlu0 %2508
    %2510 = vrot.lane.b32.xlu0 %v2098, 88
    %v2511 = vpop.permute.xlu0 %2510
    %v2512 = vsel %vm2104, %v2509, 0
    %v2514 = vsel %vm2104, %v2511, 0
    %2516 = vmatprep.subr.mxu0 0.0
    %2517 = vmatpush1.xpose.msra.mxu0 %v2514
    %2518 = vmatprep.subr.mxu0 0.0
    %2519 = vmatpush1.xpose.msra.mxu0 0.0
    %2520 = vmatprep.subr.mxu0 0.0
    %2521 = vmatpush1.xpose.msra.mxu0 0.0
    %2522 = vmatprep.subr.mxu0 0.0
    %2523 = vmatpush1.xpose.msra.mxu0 0.0
    %2524 = vmatprep.subr.mxu0 0.0
    %2525 = vmatpush1.xpose.msra.mxu0 0.0
    %2526 = vmatprep.subr.mxu0 0.0
    %2527 = vmatpush1.xpose.msra.mxu0 0.0
    %2528 = vmatprep.subr.mxu0 0.0
    %2529 = vmatpush1.xpose.msra.mxu0 0.0
    %2530 = vmatprep.subr.mxu0 0.0
    %2531 = vmatpush1.xpose.msra.mxu0 0.0
    %2532 = vmatprep.subr.mxu0 0.0
    %2533 = vmatpush1.xpose.msra.mxu0 0.0
    %2534 = vmatprep.subr.mxu0 0.0
    %2535 = vmatpush1.xpose.msra.mxu0 0.0
    %2536 = vmatprep.subr.mxu0 0.0
    %2537 = vmatpush1.xpose.msra.mxu0 0.0
    %2538 = vmatprep.subr.mxu0 0.0
    %2539 = vmatpush1.xpose.msra.mxu0 0.0
    %2540 = vmatprep.subr.mxu0 0.0
    %2541 = vmatpush1.xpose.msra.mxu0 0.0
    %2542 = vmatprep.subr.mxu0 0.0
    %2543 = vmatpush1.xpose.msra.mxu0 0.0
    %2544 = vmatprep.subr.mxu0 0.0
    %2545 = vmatpush1.xpose.msra.mxu0 0.0
    %2546 = vmatprep.subr.mxu0 0.0
    %2547 = vmatpush1.xpose.msra.mxu0 0.0
    %2548 = vmatprep.subr.mxu0 0.0
    %2549 = vmatpush1.xpose.msra.mxu0 0.0
    %2550 = vmatprep.subr.mxu0 0.0
    %2551 = vmatpush1.xpose.msra.mxu0 0.0
    %2552 = vmatprep.subr.mxu0 0.0
    %2553 = vmatpush1.xpose.msra.mxu0 0.0
    %2554 = vmatprep.subr.mxu0 0.0
    %2555 = vmatpush1.xpose.msra.mxu0 0.0
    %2556 = vmatprep.subr.mxu0 0.0
    %2557 = vmatpush1.xpose.msra.mxu0 0.0
    %2558 = vmatprep.subr.mxu0 0.0
    %2559 = vmatpush1.xpose.msra.mxu0 0.0
    %2560 = vmatprep.subr.mxu0 0.0
    %2561 = vmatpush1.xpose.msra.mxu0 0.0
    %2562 = vmatprep.subr.mxu0 0.0
    %2563 = vmatpush1.xpose.msra.mxu0 0.0
    %2564 = vmatprep.subr.mxu0 0.0
    %2565 = vmatpush1.xpose.msra.mxu0 0.0
    %2566 = vmatprep.subr.mxu0 0.0
    %2567 = vmatpush1.xpose.msra.mxu0 0.0
    %2568 = vmatprep.subr.mxu0 0.0
    %2569 = vmatpush1.xpose.msra.mxu0 0.0
    %2570 = vmatprep.subr.mxu0 0.0
    %2571 = vmatpush1.xpose.msra.mxu0 0.0
    %2572 = vmatprep.subr.mxu0 0.0
    %2573 = vmatpush1.xpose.msra.mxu0 0.0
    %2574 = vmatprep.subr.mxu0 0.0
    %2575 = vmatpush1.xpose.msra.mxu0 0.0
    %2576 = vmatprep.subr.mxu0 0.0
    %2577 = vmatpush1.xpose.msra.mxu0 0.0
    %2578 = vmatprep.subr.mxu0 0.0
    %2579 = vmatpush1.xpose.msra.mxu0 0.0
    %2580 = vmatprep.mubr.f32.mxu0 0.0
    %2581 = vmatmul.mubr.f32.gmra.mrb[0].mxu0 %v2512
    %v2582 = vpop.f32.mrb[0].mxu0
    %v2583 = vadd.f32 %v1958, %v2582
    %v2584 = vpop.f32.mrb[0].mxu0
    %2585 = vdwg.mxu0
    %v2586 = vsel %vm2104, %v2505, -inf
    %2587 = vmax.xlane.f32.xlu0 %v2586
    %v2588 = vpop.xlane.xlu0 %2587
    %v2589 = vsel %vm2104, %v2583, -inf
    %2590 = vmax.xlane.f32.xlu0 %v2589
    %v2591 = vpop.xlane.xlu0 %2590
    %v2592 = vsub.f32 %v2505, %v2588
    %v2593 = vsub.f32 %v2583, %v2591
    %v2594 = vmul.f32 %v2592, 1.442695
    %v2595 = vpow.pop %v2594
    %v2596 = vmul.f32 %v2593, 1.442695
    %v2597 = vpow.pop %v2596
    %v2598 = vsel %vm2104, %v2595, 0.0
    %2599 = vadd.xlane.f32.xlu0 %v2598
    %v2600 = vpop.xlane.xlu0 %2599
    %v2601 = vsel %vm2104, %v2597, 0.0
    %2602 = vadd.xlane.f32.xlu0 %v2601
    %v2603 = vpop.xlane.xlu0 %2602
    %v2604 = vrcp.pop %v2600
    %v2605 = vrcp.pop %v2603
    %v2606 = vmul.f32 %v2595, %v2604
    %v2607 = vmul.f32 %v2597, %v2605
    %2608 = vrot.lane.b32.xlu0 %v2093, 56
    %v2609 = vpop.permute.xlu0 %2608
    %v2612 = vsel %vm2104, %v2606, 0
    %2614 = vmatprep.subr.mxu0 0.0
    %2615 = vmatpush1.msra.mxu0 %v2609
    %2616 = vmatprep.subr.mxu0 0.0
    %2617 = vmatpush1.msra.mxu0 0.0
    %2618 = vmatprep.subr.mxu0 0.0
    %2619 = vmatpush1.msra.mxu0 0.0
    %2620 = vmatprep.subr.mxu0 0.0
    %2621 = vmatpush1.msra.mxu0 0.0
    %2622 = vmatprep.subr.mxu0 0.0
    %2623 = vmatpush1.msra.mxu0 0.0
    %2624 = vmatprep.subr.mxu0 0.0
    %2625 = vmatpush1.msra.mxu0 0.0
    %2626 = vmatprep.subr.mxu0 0.0
    %2627 = vmatpush1.msra.mxu0 0.0
    %2628 = vmatprep.subr.mxu0 0.0
    %2629 = vmatpush1.msra.mxu0 0.0
    %2630 = vmatprep.subr.mxu0 0.0
    %2631 = vmatpush1.msra.mxu0 0.0
    %2632 = vmatprep.subr.mxu0 0.0
    %2633 = vmatpush1.msra.mxu0 0.0
    %2634 = vmatprep.subr.mxu0 0.0
    %2635 = vmatpush1.msra.mxu0 0.0
    %2636 = vmatprep.subr.mxu0 0.0
    %2637 = vmatpush1.msra.mxu0 0.0
    %2638 = vmatprep.subr.mxu0 0.0
    %2639 = vmatpush1.msra.mxu0 0.0
    %2640 = vmatprep.subr.mxu0 0.0
    %2641 = vmatpush1.msra.mxu0 0.0
    %2642 = vmatprep.subr.mxu0 0.0
    %2643 = vmatpush1.msra.mxu0 0.0
    %2644 = vmatprep.subr.mxu0 0.0
    %2645 = vmatpush1.msra.mxu0 0.0
    %2646 = vmatprep.subr.mxu0 0.0
    %2647 = vmatpush1.msra.mxu0 0.0
    %2648 = vmatprep.subr.mxu0 0.0
    %2649 = vmatpush1.msra.mxu0 0.0
    %2650 = vmatprep.subr.mxu0 0.0
    %2651 = vmatpush1.msra.mxu0 0.0
    %2652 = vmatprep.subr.mxu0 0.0
    %2653 = vmatpush1.msra.mxu0 0.0
    %2654 = vmatprep.subr.mxu0 0.0
    %2655 = vmatpush1.msra.mxu0 0.0
    %2656 = vmatprep.subr.mxu0 0.0
    %2657 = vmatpush1.msra.mxu0 0.0
    %2658 = vmatprep.subr.mxu0 0.0
    %2659 = vmatpush1.msra.mxu0 0.0
    %2660 = vmatprep.subr.mxu0 0.0
    %2661 = vmatpush1.msra.mxu0 0.0
    %2662 = vmatprep.subr.mxu0 0.0
    %2663 = vmatpush1.msra.mxu0 0.0
    %2664 = vmatprep.subr.mxu0 0.0
    %2665 = vmatpush1.msra.mxu0 0.0
    %2666 = vmatprep.subr.mxu0 0.0
    %2667 = vmatpush1.msra.mxu0 0.0
    %2668 = vmatprep.subr.mxu0 0.0
    %2669 = vmatpush1.msra.mxu0 0.0
    %2670 = vmatprep.subr.mxu0 0.0
    %2671 = vmatpush1.msra.mxu0 0.0
    %2672 = vmatprep.subr.mxu0 0.0
    %2673 = vmatpush1.msra.mxu0 0.0
    %2674 = vmatprep.subr.mxu0 0.0
    %2675 = vmatpush1.msra.mxu0 0.0
    %2676 = vmatprep.subr.mxu0 0.0
    %2677 = vmatpush1.msra.mxu0 0.0
    %2678 = vmatprep.mubr.f32.mxu0 0.0
    %2679 = vmatmul.mubr.f32.gmra.mrb[0].mxu0 %v2612
    %v2680 = vpop.f32.mrb[0].mxu0
    %v2681 = vadd.f32 0.0, %v2680
    %v2682 = vpop.f32.mrb[0].mxu0
    %2683 = vdwg.mxu0
    %2684 = vrot.lane.b32.xlu0 %v2098, 56
    %v2685 = vpop.permute.xlu0 %2684
    %v2688 = vsel %vm2104, %v2607, 0
    %2690 = vmatprep.subr.mxu0 0.0
    %2691 = vmatpush1.msra.mxu0 %v2685
    %2692 = vmatprep.subr.mxu0 0.0
    %2693 = vmatpush1.msra.mxu0 0.0
    %2694 = vmatprep.subr.mxu0 0.0
    %2695 = vmatpush1.msra.mxu0 0.0
    %2696 = vmatprep.subr.mxu0 0.0
    %2697 = vmatpush1.msra.mxu0 0.0
    %2698 = vmatprep.subr.mxu0 0.0
    %2699 = vmatpush1.msra.mxu0 0.0
    %2700 = vmatprep.subr.mxu0 0.0
    %2701 = vmatpush1.msra.mxu0 0.0
    %2702 = vmatprep.subr.mxu0 0.0
    %2703 = vmatpush1.msra.mxu0 0.0
    %2704 = vmatprep.subr.mxu0 0.0
    %2705 = vmatpush1.msra.mxu0 0.0
    %2706 = vmatprep.subr.mxu0 0.0
    %2707 = vmatpush1.msra.mxu0 0.0
    %2708 = vmatprep.subr.mxu0 0.0
    %2709 = vmatpush1.msra.mxu0 0.0
    %2710 = vmatprep.subr.mxu0 0.0
    %2711 = vmatpush1.msra.mxu0 0.0
    %2712 = vmatprep.subr.mxu0 0.0
    %2713 = vmatpush1.msra.mxu0 0.0
    %2714 = vmatprep.subr.mxu0 0.0
    %2715 = vmatpush1.msra.mxu0 0.0
    %2716 = vmatprep.subr.mxu0 0.0
    %2717 = vmatpush1.msra.mxu0 0.0
    %2718 = vmatprep.subr.mxu0 0.0
    %2719 = vmatpush1.msra.mxu0 0.0
    %2720 = vmatprep.subr.mxu0 0.0
    %2721 = vmatpush1.msra.mxu0 0.0
    %2722 = vmatprep.subr.mxu0 0.0
    %2723 = vmatpush1.msra.mxu0 0.0
    %2724 = vmatprep.subr.mxu0 0.0
    %2725 = vmatpush1.msra.mxu0 0.0
    %2726 = vmatprep.subr.mxu0 0.0
    %2727 = vmatpush1.msra.mxu0 0.0
    %2728 = vmatprep.subr.mxu0 0.0
    %2729 = vmatpush1.msra.mxu0 0.0
    %2730 = vmatprep.subr.mxu0 0.0
    %2731 = vmatpush1.msra.mxu0 0.0
    %2732 = vmatprep.subr.mxu0 0.0
    %2733 = vmatpush1.msra.mxu0 0.0
    %2734 = vmatprep.subr.mxu0 0.0
    %2735 = vmatpush1.msra.mxu0 0.0
    %2736 = vmatprep.subr.mxu0 0.0
    %2737 = vmatpush1.msra.mxu0 0.0
    %2738 = vmatprep.subr.mxu0 0.0
    %2739 = vmatpush1.msra.mxu0 0.0
    %2740 = vmatprep.subr.mxu0 0.0
    %2741 = vmatpush1.msra.mxu0 0.0
    %2742 = vmatprep.subr.mxu0 0.0
    %2743 = vmatpush1.msra.mxu0 0.0
    %2744 = vmatprep.subr.mxu0 0.0
    %2745 = vmatpush1.msra.mxu0 0.0
    %2746 = vmatprep.subr.mxu0 0.0
    %2747 = vmatpush1.msra.mxu0 0.0
    %2748 = vmatprep.subr.mxu0 0.0
    %2749 = vmatpush1.msra.mxu0 0.0
    %2750 = vmatprep.subr.mxu0 0.0
    %2751 = vmatpush1.msra.mxu0 0.0
    %2752 = vmatprep.subr.mxu0 0.0
    %2753 = vmatpush1.msra.mxu0 0.0
    %2754 = vmatprep.mubr.f32.mxu0 0.0
    %2755 = vmatmul.mubr.f32.gmra.mrb[0].mxu0 %v2688
    %v2756 = vpop.f32.mrb[0].mxu0
    %v2757 = vadd.f32 0.0, %v2756
    %v2758 = vpop.f32.mrb[0].mxu0
    %2759 = vdwg.mxu0
    %2761 = vrot.lane.b32.xlu0 %v1961, 32
    %v2762 = vpop.permute.xlu0 %2761
    %v2765 = vsel %vm2104, %v2681, 0
    %v2768 = vsel %vm2104, %v2757, 0
    %2770 = vmatprep.subr.mxu0 0.0
    %2771 = vmatpush1.msra.mxu0 %v2762
    %2772 = vmatprep.subr.mxu0 0.0
    %2773 = vmatpush1.msra.mxu0 0.0
    %2774 = vmatprep.subr.mxu0 0.0
    %2775 = vmatpush1.msra.mxu0 0.0
    %2776 = vmatprep.subr.mxu0 0.0
    %2777 = vmatpush1.msra.mxu0 0.0
    %2778 = vmatprep.subr.mxu0 0.0
    %2779 = vmatpush1.msra.mxu0 0.0
    %2780 = vmatprep.subr.mxu0 0.0
    %2781 = vmatpush1.msra.mxu0 0.0
    %2782 = vmatprep.subr.mxu0 0.0
    %2783 = vmatpush1.msra.mxu0 0.0
    %2784 = vmatprep.subr.mxu0 0.0
    %2785 = vmatpush1.msra.mxu0 0.0
    %2786 = vmatprep.subr.mxu0 0.0
    %2787 = vmatpush1.msra.mxu0 0.0
    %2788 = vmatprep.subr.mxu0 0.0
    %2789 = vmatpush1.msra.mxu0 0.0
    %2790 = vmatprep.subr.mxu0 0.0
    %2791 = vmatpush1.msra.mxu0 0.0
    %2792 = vmatprep.subr.mxu0 0.0
    %2793 = vmatpush1.msra.mxu0 0.0
    %2794 = vmatprep.subr.mxu0 0.0
    %2795 = vmatpush1.msra.mxu0 0.0
    %2796 = vmatprep.subr.mxu0 0.0
    %2797 = vmatpush1.msra.mxu0 0.0
    %2798 = vmatprep.subr.mxu0 0.0
    %2799 = vmatpush1.msra.mxu0 0.0
    %2800 = vmatprep.subr.mxu0 0.0
    %2801 = vmatpush1.msra.mxu0 0.0
    %2802 = vmatprep.subr.mxu0 0.0
    %2803 = vmatpush1.msra.mxu0 0.0
    %2804 = vmatprep.subr.mxu0 0.0
    %2805 = vmatpush1.msra.mxu0 0.0
    %2806 = vmatprep.subr.mxu0 0.0
    %2807 = vmatpush1.msra.mxu0 0.0
    %2808 = vmatprep.subr.mxu0 0.0
    %2809 = vmatpush1.msra.mxu0 0.0
    %2810 = vmatprep.subr.mxu0 0.0
    %2811 = vmatpush1.msra.mxu0 0.0
    %2812 = vmatprep.subr.mxu0 0.0
    %2813 = vmatpush1.msra.mxu0 0.0
    %2814 = vmatprep.subr.mxu0 0.0
    %2815 = vmatpush1.msra.mxu0 0.0
    %2816 = vmatprep.subr.mxu0 0.0
    %2817 = vmatpush1.msra.mxu0 0.0
    %2818 = vmatprep.subr.mxu0 0.0
    %2819 = vmatpush1.msra.mxu0 0.0
    %2820 = vmatprep.subr.mxu0 0.0
    %2821 = vmatpush1.msra.mxu0 0.0
    %2822 = vmatprep.subr.mxu0 0.0
    %2823 = vmatpush1.msra.mxu0 0.0
    %2824 = vmatprep.subr.mxu0 0.0
    %2825 = vmatpush1.msra.mxu0 0.0
    %2826 = vmatprep.subr.mxu0 0.0
    %2827 = vmatpush1.msra.mxu0 0.0
    %2828 = vmatprep.subr.mxu0 0.0
    %2829 = vmatpush1.msra.mxu0 0.0
    %2830 = vmatprep.subr.mxu0 0.0
    %2831 = vmatpush1.msra.mxu0 0.0
    %2832 = vmatprep.subr.mxu0 0.0
    %2833 = vmatpush1.msra.mxu0 0.0
    %2834 = vmatprep.mubr.f32.mxu0 0.0
    %2835 = vmatmul.mubr.f32.gmra.mrb[0].mxu0 %v2765
    %v2836 = vpop.f32.mrb[0].mxu0
    %v2837 = vadd.f32 0.0, %v2836
    %v2838 = vpop.f32.mrb[0].mxu0
    %2839 = vmatprep.mubr.f32.mxu0 0.0
    %2840 = vmatmul.mubr.f32.gmra.mrb[0].mxu0 %v2768
    %v2841 = vpop.f32.mrb[0].mxu0
    %v2842 = vadd.f32 0.0, %v2841
    %v2843 = vpop.f32.mrb[0].mxu0
    %2844 = vdwg.mxu0
    %2846 = vrot.lane.b32.xlu0 %v1959, 32
    %v2847 = vpop.permute.xlu0 %2846
    %v2850 = vsel %vm2104, %v2351, 0
    %v2853 = vsel %vm2104, %v2427, 0
    %2855 = vmatprep.subr.mxu0 0.0
    %2856 = vmatpush1.msra.mxu0 %v2847
    %2857 = vmatprep.subr.mxu0 0.0
    %2858 = vmatpush1.msra.mxu0 0.0
    %2859 = vmatprep.subr.mxu0 0.0
    %2860 = vmatpush1.msra.mxu0 0.0
    %2861 = vmatprep.subr.mxu0 0.0
    %2862 = vmatpush1.msra.mxu0 0.0
    %2863 = vmatprep.subr.mxu0 0.0
    %2864 = vmatpush1.msra.mxu0 0.0
    %2865 = vmatprep.subr.mxu0 0.0
    %2866 = vmatpush1.msra.mxu0 0.0
    %2867 = vmatprep.subr.mxu0 0.0
    %2868 = vmatpush1.msra.mxu0 0.0
    %2869 = vmatprep.subr.mxu0 0.0
    %2870 = vmatpush1.msra.mxu0 0.0
    %2871 = vmatprep.subr.mxu0 0.0
    %2872 = vmatpush1.msra.mxu0 0.0
    %2873 = vmatprep.subr.mxu0 0.0
    %2874 = vmatpush1.msra.mxu0 0.0
    %2875 = vmatprep.subr.mxu0 0.0
    %2876 = vmatpush1.msra.mxu0 0.0
    %2877 = vmatprep.subr.mxu0 0.0
    %2878 = vmatpush1.msra.mxu0 0.0
    %2879 = vmatprep.subr.mxu0 0.0
    %2880 = vmatpush1.msra.mxu0 0.0
    %2881 = vmatprep.subr.mxu0 0.0
    %2882 = vmatpush1.msra.mxu0 0.0
    %2883 = vmatprep.subr.mxu0 0.0
    %2884 = vmatpush1.msra.mxu0 0.0
    %2885 = vmatprep.subr.mxu0 0.0
    %2886 = vmatpush1.msra.mxu0 0.0
    %2887 = vmatprep.subr.mxu0 0.0
    %2888 = vmatpush1.msra.mxu0 0.0
    %2889 = vmatprep.subr.mxu0 0.0
    %2890 = vmatpush1.msra.mxu0 0.0
    %2891 = vmatprep.subr.mxu0 0.0
    %2892 = vmatpush1.msra.mxu0 0.0
    %2893 = vmatprep.subr.mxu0 0.0
    %2894 = vmatpush1.msra.mxu0 0.0
    %2895 = vmatprep.subr.mxu0 0.0
    %2896 = vmatpush1.msra.mxu0 0.0
    %2897 = vmatprep.subr.mxu0 0.0
    %2898 = vmatpush1.msra.mxu0 0.0
    %2899 = vmatprep.subr.mxu0 0.0
    %2900 = vmatpush1.msra.mxu0 0.0
    %2901 = vmatprep.subr.mxu0 0.0
    %2902 = vmatpush1.msra.mxu0 0.0
    %2903 = vmatprep.subr.mxu0 0.0
    %2904 = vmatpush1.msra.mxu0 0.0
    %2905 = vmatprep.subr.mxu0 0.0
    %2906 = vmatpush1.msra.mxu0 0.0
    %2907 = vmatprep.subr.mxu0 0.0
    %2908 = vmatpush1.msra.mxu0 0.0
    %2909 = vmatprep.subr.mxu0 0.0
    %2910 = vmatpush1.msra.mxu0 0.0
    %2911 = vmatprep.subr.mxu0 0.0
    %2912 = vmatpush1.msra.mxu0 0.0
    %2913 = vmatprep.subr.mxu0 0.0
    %2914 = vmatpush1.msra.mxu0 0.0
    %2915 = vmatprep.subr.mxu0 0.0
    %2916 = vmatpush1.msra.mxu0 0.0
    %2917 = vmatprep.subr.mxu0 0.0
    %2918 = vmatpush1.msra.mxu0 0.0
    %2919 = vmatprep.mubr.f32.mxu0 0.0
    %2920 = vmatmul.mubr.f32.gmra.mrb[0].mxu0 %v2850
    %v2921 = vpop.f32.mrb[0].mxu0
    %v2922 = vadd.f32 %v2837, %v2921
    %v2923 = vpop.f32.mrb[0].mxu0
    %2924 = vmatprep.mubr.f32.mxu0 0.0
    %2925 = vmatmul.mubr.f32.gmra.mrb[0].mxu0 %v2853
    %v2926 = vpop.f32.mrb[0].mxu0
    %v2927 = vadd.f32 %v2842, %v2926
    %v2928 = vpop.f32.mrb[0].mxu0
    %2929 = vdwg.mxu0
    %2930 = vrot.lane.b32.xlu0 %v2093, 112
    %v2931 = vpop.permute.xlu0 %2930
    %2932 = vrot.lane.b32.xlu0 %v2093, 80
    %v2933 = vpop.permute.xlu0 %2932
    %v2934 = vsel %vm2104, %v2931, 0
    %v2936 = vsel %vm2104, %v2933, 0
    %2938 = vmatprep.subr.mxu0 0.0
    %2939 = vmatpush1.xpose.msra.mxu0 %v2936
    %2940 = vmatprep.subr.mxu0 0.0
    %2941 = vmatpush1.xpose.msra.mxu0 0.0
    %2942 = vmatprep.subr.mxu0 0.0
    %2943 = vmatpush1.xpose.msra.mxu0 0.0
    %2944 = vmatprep.subr.mxu0 0.0
    %2945 = vmatpush1.xpose.msra.mxu0 0.0
    %2946 = vmatprep.subr.mxu0 0.0
    %2947 = vmatpush1.xpose.msra.mxu0 0.0
    %2948 = vmatprep.subr.mxu0 0.0
    %2949 = vmatpush1.xpose.msra.mxu0 0.0
    %2950 = vmatprep.subr.mxu0 0.0
    %2951 = vmatpush1.xpose.msra.mxu0 0.0
    %2952 = vmatprep.subr.mxu0 0.0
    %2953 = vmatpush1.xpose.msra.mxu0 0.0
    %2954 = vmatprep.subr.mxu0 0.0
    %2955 = vmatpush1.xpose.msra.mxu0 0.0
    %2956 = vmatprep.subr.mxu0 0.0
    %2957 = vmatpush1.xpose.msra.mxu0 0.0
    %2958 = vmatprep.subr.mxu0 0.0
    %2959 = vmatpush1.xpose.msra.mxu0 0.0
    %2960 = vmatprep.subr.mxu0 0.0
    %2961 = vmatpush1.xpose.msra.mxu0 0.0
    %2962 = vmatprep.subr.mxu0 0.0
    %2963 = vmatpush1.xpose.msra.mxu0 0.0
    %2964 = vmatprep.subr.mxu0 0.0
    %2965 = vmatpush1.xpose.msra.mxu0 0.0
    %2966 = vmatprep.subr.mxu0 0.0
    %2967 = vmatpush1.xpose.msra.mxu0 0.0
    %2968 = vmatprep.subr.mxu0 0.0
    %2969 = vmatpush1.xpose.msra.mxu0 0.0
    %2970 = vmatprep.subr.mxu0 0.0
    %2971 = vmatpush1.xpose.msra.mxu0 0.0
    %2972 = vmatprep.subr.mxu0 0.0
    %2973 = vmatpush1.xpose.msra.mxu0 0.0
    %2974 = vmatprep.subr.mxu0 0.0
    %2975 = vmatpush1.xpose.msra.mxu0 0.0
    %2976 = vmatprep.subr.mxu0 0.0
    %2977 = vmatpush1.xpose.msra.mxu0 0.0
    %2978 = vmatprep.subr.mxu0 0.0
    %2979 = vmatpush1.xpose.msra.mxu0 0.0
    %2980 = vmatprep.subr.mxu0 0.0
    %2981 = vmatpush1.xpose.msra.mxu0 0.0
    %2982 = vmatprep.subr.mxu0 0.0
    %2983 = vmatpush1.xpose.msra.mxu0 0.0
    %2984 = vmatprep.subr.mxu0 0.0
    %2985 = vmatpush1.xpose.msra.mxu0 0.0
    %2986 = vmatprep.subr.mxu0 0.0
    %2987 = vmatpush1.xpose.msra.mxu0 0.0
    %2988 = vmatprep.subr.mxu0 0.0
    %2989 = vmatpush1.xpose.msra.mxu0 0.0
    %2990 = vmatprep.subr.mxu0 0.0
    %2991 = vmatpush1.xpose.msra.mxu0 0.0
    %2992 = vmatprep.subr.mxu0 0.0
    %2993 = vmatpush1.xpose.msra.mxu0 0.0
    %2994 = vmatprep.subr.mxu0 0.0
    %2995 = vmatpush1.xpose.msra.mxu0 0.0
    %2996 = vmatprep.subr.mxu0 0.0
    %2997 = vmatpush1.xpose.msra.mxu0 0.0
    %2998 = vmatprep.subr.mxu0 0.0
    %2999 = vmatpush1.xpose.msra.mxu0 0.0
    %3000 = vmatprep.subr.mxu0 0.0
    %3001 = vmatpush1.xpose.msra.mxu0 0.0
    %3002 = vmatprep.mubr.f32.mxu0 0.0
    %3003 = vmatmul.mubr.f32.gmra.mrb[0].mxu0 %v2934
    %v3004 = vpop.f32.mrb[0].mxu0
    %v3005 = vadd.f32 %v1958, %v3004
    %v3006 = vpop.f32.mrb[0].mxu0
    %3007 = vdwg.mxu0
    %3008 = vrot.lane.b32.xlu0 %v2098, 112
    %v3009 = vpop.permute.xlu0 %3008
    %3010 = vrot.lane.b32.xlu0 %v2098, 80
    %v3011 = vpop.permute.xlu0 %3010
    %v3012 = vsel %vm2104, %v3009, 0
    %v3014 = vsel %vm2104, %v3011, 0
    %3016 = vmatprep.subr.mxu0 0.0
    %3017 = vmatpush1.xpose.msra.mxu0 %v3014
    %3018 = vmatprep.subr.mxu0 0.0
    %3019 = vmatpush1.xpose.msra.mxu0 0.0
    %3020 = vmatprep.subr.mxu0 0.0
    %3021 = vmatpush1.xpose.msra.mxu0 0.0
    %3022 = vmatprep.subr.mxu0 0.0
    %3023 = vmatpush1.xpose.msra.mxu0 0.0
    %3024 = vmatprep.subr.mxu0 0.0
    %3025 = vmatpush1.xpose.msra.mxu0 0.0
    %3026 = vmatprep.subr.mxu0 0.0
    %3027 = vmatpush1.xpose.msra.mxu0 0.0
    %3028 = vmatprep.subr.mxu0 0.0
    %3029 = vmatpush1.xpose.msra.mxu0 0.0
    %3030 = vmatprep.subr.mxu0 0.0
    %3031 = vmatpush1.xpose.msra.mxu0 0.0
    %3032 = vmatprep.subr.mxu0 0.0
    %3033 = vmatpush1.xpose.msra.mxu0 0.0
    %3034 = vmatprep.subr.mxu0 0.0
    %3035 = vmatpush1.xpose.msra.mxu0 0.0
    %3036 = vmatprep.subr.mxu0 0.0
    %3037 = vmatpush1.xpose.msra.mxu0 0.0
    %3038 = vmatprep.subr.mxu0 0.0
    %3039 = vmatpush1.xpose.msra.mxu0 0.0
    %3040 = vmatprep.subr.mxu0 0.0
    %3041 = vmatpush1.xpose.msra.mxu0 0.0
    %3042 = vmatprep.subr.mxu0 0.0
    %3043 = vmatpush1.xpose.msra.mxu0 0.0
    %3044 = vmatprep.subr.mxu0 0.0
    %3045 = vmatpush1.xpose.msra.mxu0 0.0
    %3046 = vmatprep.subr.mxu0 0.0
    %3047 = vmatpush1.xpose.msra.mxu0 0.0
    %3048 = vmatprep.subr.mxu0 0.0
    %3049 = vmatpush1.xpose.msra.mxu0 0.0
    %3050 = vmatprep.subr.mxu0 0.0
    %3051 = vmatpush1.xpose.msra.mxu0 0.0
    %3052 = vmatprep.subr.mxu0 0.0
    %3053 = vmatpush1.xpose.msra.mxu0 0.0
    %3054 = vmatprep.subr.mxu0 0.0
    %3055 = vmatpush1.xpose.msra.mxu0 0.0
    %3056 = vmatprep.subr.mxu0 0.0
    %3057 = vmatpush1.xpose.msra.mxu0 0.0
    %3058 = vmatprep.subr.mxu0 0.0
    %3059 = vmatpush1.xpose.msra.mxu0 0.0
    %3060 = vmatprep.subr.mxu0 0.0
    %3061 = vmatpush1.xpose.msra.mxu0 0.0
    %3062 = vmatprep.subr.mxu0 0.0
    %3063 = vmatpush1.xpose.msra.mxu0 0.0
    %3064 = vmatprep.subr.mxu0 0.0
    %3065 = vmatpush1.xpose.msra.mxu0 0.0
    %3066 = vmatprep.subr.mxu0 0.0
    %3067 = vmatpush1.xpose.msra.mxu0 0.0
    %3068 = vmatprep.subr.mxu0 0.0
    %3069 = vmatpush1.xpose.msra.mxu0 0.0
    %3070 = vmatprep.subr.mxu0 0.0
    %3071 = vmatpush1.xpose.msra.mxu0 0.0
    %3072 = vmatprep.subr.mxu0 0.0
    %3073 = vmatpush1.xpose.msra.mxu0 0.0
    %3074 = vmatprep.subr.mxu0 0.0
    %3075 = vmatpush1.xpose.msra.mxu0 0.0
    %3076 = vmatprep.subr.mxu0 0.0
    %3077 = vmatpush1.xpose.msra.mxu0 0.0
    %3078 = vmatprep.subr.mxu0 0.0
    %3079 = vmatpush1.xpose.msra.mxu0 0.0
    %3080 = vmatprep.mubr.f32.mxu0 0.0
    %3081 = vmatmul.mubr.f32.gmra.mrb[0].mxu0 %v3012
    %v3082 = vpop.f32.mrb[0].mxu0
    %v3083 = vadd.f32 %v1958, %v3082
    %v3084 = vpop.f32.mrb[0].mxu0
    %3085 = vdwg.mxu0
    %v3086 = vsel %vm2104, %v3005, -inf
    %3087 = vmax.xlane.f32.xlu0 %v3086
    %v3088 = vpop.xlane.xlu0 %3087
    %v3089 = vsel %vm2104, %v3083, -inf
    %3090 = vmax.xlane.f32.xlu0 %v3089
    %v3091 = vpop.xlane.xlu0 %3090
    %v3092 = vsub.f32 %v3005, %v3088
    %v3093 = vsub.f32 %v3083, %v3091
    %v3094 = vmul.f32 %v3092, 1.442695
    %v3095 = vpow.pop %v3094
    %v3096 = vmul.f32 %v3093, 1.442695
    %v3097 = vpow.pop %v3096
    %v3098 = vsel %vm2104, %v3095, 0.0
    %3099 = vadd.xlane.f32.xlu0 %v3098
    %v3100 = vpop.xlane.xlu0 %3099
    %v3101 = vsel %vm2104, %v3097, 0.0
    %3102 = vadd.xlane.f32.xlu0 %v3101
    %v3103 = vpop.xlane.xlu0 %3102
    %v3104 = vrcp.pop %v3100
    %v3105 = vrcp.pop %v3103
    %v3106 = vmul.f32 %v3095, %v3104
    %v3107 = vmul.f32 %v3097, %v3105
    %3108 = vrot.lane.b32.xlu0 %v2093, 48
    %v3109 = vpop.permute.xlu0 %3108
    %v3112 = vsel %vm2104, %v3106, 0
    %3114 = vmatprep.subr.mxu0 0.0
    %3115 = vmatpush1.msra.mxu0 %v3109
    %3116 = vmatprep.subr.mxu0 0.0
    %3117 = vmatpush1.msra.mxu0 0.0
    %3118 = vmatprep.subr.mxu0 0.0
    %3119 = vmatpush1.msra.mxu0 0.0
    %3120 = vmatprep.subr.mxu0 0.0
    %3121 = vmatpush1.msra.mxu0 0.0
    %3122 = vmatprep.subr.mxu0 0.0
    %3123 = vmatpush1.msra.mxu0 0.0
    %3124 = vmatprep.subr.mxu0 0.0
    %3125 = vmatpush1.msra.mxu0 0.0
    %3126 = vmatprep.subr.mxu0 0.0
    %3127 = vmatpush1.msra.mxu0 0.0
    %3128 = vmatprep.subr.mxu0 0.0
    %3129 = vmatpush1.msra.mxu0 0.0
    %3130 = vmatprep.subr.mxu0 0.0
    %3131 = vmatpush1.msra.mxu0 0.0
    %3132 = vmatprep.subr.mxu0 0.0
    %3133 = vmatpush1.msra.mxu0 0.0
    %3134 = vmatprep.subr.mxu0 0.0
    %3135 = vmatpush1.msra.mxu0 0.0
    %3136 = vmatprep.subr.mxu0 0.0
    %3137 = vmatpush1.msra.mxu0 0.0
    %3138 = vmatprep.subr.mxu0 0.0
    %3139 = vmatpush1.msra.mxu0 0.0
    %3140 = vmatprep.subr.mxu0 0.0
    %3141 = vmatpush1.msra.mxu0 0.0
    %3142 = vmatprep.subr.mxu0 0.0
    %3143 = vmatpush1.msra.mxu0 0.0
    %3144 = vmatprep.subr.mxu0 0.0
    %3145 = vmatpush1.msra.mxu0 0.0
    %3146 = vmatprep.subr.mxu0 0.0
    %3147 = vmatpush1.msra.mxu0 0.0
    %3148 = vmatprep.subr.mxu0 0.0
    %3149 = vmatpush1.msra.mxu0 0.0
    %3150 = vmatprep.subr.mxu0 0.0
    %3151 = vmatpush1.msra.mxu0 0.0
    %3152 = vmatprep.subr.mxu0 0.0
    %3153 = vmatpush1.msra.mxu0 0.0
    %3154 = vmatprep.subr.mxu0 0.0
    %3155 = vmatpush1.msra.mxu0 0.0
    %3156 = vmatprep.subr.mxu0 0.0
    %3157 = vmatpush1.msra.mxu0 0.0
    %3158 = vmatprep.subr.mxu0 0.0
    %3159 = vmatpush1.msra.mxu0 0.0
    %3160 = vmatprep.subr.mxu0 0.0
    %3161 = vmatpush1.msra.mxu0 0.0
    %3162 = vmatprep.subr.mxu0 0.0
    %3163 = vmatpush1.msra.mxu0 0.0
    %3164 = vmatprep.subr.mxu0 0.0
    %3165 = vmatpush1.msra.mxu0 0.0
    %3166 = vmatprep.subr.mxu0 0.0
    %3167 = vmatpush1.msra.mxu0 0.0
    %3168 = vmatprep.subr.mxu0 0.0
    %3169 = vmatpush1.msra.mxu0 0.0
    %3170 = vmatprep.subr.mxu0 0.0
    %3171 = vmatpush1.msra.mxu0 0.0
    %3172 = vmatprep.subr.mxu0 0.0
    %3173 = vmatpush1.msra.mxu0 0.0
    %3174 = vmatprep.subr.mxu0 0.0
    %3175 = vmatpush1.msra.mxu0 0.0
    %3176 = vmatprep.subr.mxu0 0.0
    %3177 = vmatpush1.msra.mxu0 0.0
    %3178 = vmatprep.mubr.f32.mxu0 0.0
    %3179 = vmatmul.mubr.f32.gmra.mrb[0].mxu0 %v3112
    %v3180 = vpop.f32.mrb[0].mxu0
    %v3181 = vadd.f32 0.0, %v3180
    %v3182 = vpop.f32.mrb[0].mxu0
    %3183 = vdwg.mxu0
    %3184 = vrot.lane.b32.xlu0 %v2098, 48
    %v3185 = vpop.permute.xlu0 %3184
    %v3188 = vsel %vm2104, %v3107, 0
    %3190 = vmatprep.subr.mxu0 0.0
    %3191 = vmatpush1.msra.mxu0 %v3185
    %3192 = vmatprep.subr.mxu0 0.0
    %3193 = vmatpush1.msra.mxu0 0.0
    %3194 = vmatprep.subr.mxu0 0.0
    %3195 = vmatpush1.msra.mxu0 0.0
    %3196 = vmatprep.subr.mxu0 0.0
    %3197 = vmatpush1.msra.mxu0 0.0
    %3198 = vmatprep.subr.mxu0 0.0
    %3199 = vmatpush1.msra.mxu0 0.0
    %3200 = vmatprep.subr.mxu0 0.0
    %3201 = vmatpush1.msra.mxu0 0.0
    %3202 = vmatprep.subr.mxu0 0.0
    %3203 = vmatpush1.msra.mxu0 0.0
    %3204 = vmatprep.subr.mxu0 0.0
    %3205 = vmatpush1.msra.mxu0 0.0
    %3206 = vmatprep.subr.mxu0 0.0
    %3207 = vmatpush1.msra.mxu0 0.0
    %3208 = vmatprep.subr.mxu0 0.0
    %3209 = vmatpush1.msra.mxu0 0.0
    %3210 = vmatprep.subr.mxu0 0.0
    %3211 = vmatpush1.msra.mxu0 0.0
    %3212 = vmatprep.subr.mxu0 0.0
    %3213 = vmatpush1.msra.mxu0 0.0
    %3214 = vmatprep.subr.mxu0 0.0
    %3215 = vmatpush1.msra.mxu0 0.0
    %3216 = vmatprep.subr.mxu0 0.0
    %3217 = vmatpush1.msra.mxu0 0.0
    %3218 = vmatprep.subr.mxu0 0.0
    %3219 = vmatpush1.msra.mxu0 0.0
    %3220 = vmatprep.subr.mxu0 0.0
    %3221 = vmatpush1.msra.mxu0 0.0
    %3222 = vmatprep.subr.mxu0 0.0
    %3223 = vmatpush1.msra.mxu0 0.0
    %3224 = vmatprep.subr.mxu0 0.0
    %3225 = vmatpush1.msra.mxu0 0.0
    %3226 = vmatprep.subr.mxu0 0.0
    %3227 = vmatpush1.msra.mxu0 0.0
    %3228 = vmatprep.subr.mxu0 0.0
    %3229 = vmatpush1.msra.mxu0 0.0
    %3230 = vmatprep.subr.mxu0 0.0
    %3231 = vmatpush1.msra.mxu0 0.0
    %3232 = vmatprep.subr.mxu0 0.0
    %3233 = vmatpush1.msra.mxu0 0.0
    %3234 = vmatprep.subr.mxu0 0.0
    %3235 = vmatpush1.msra.mxu0 0.0
    %3236 = vmatprep.subr.mxu0 0.0
    %3237 = vmatpush1.msra.mxu0 0.0
    %3238 = vmatprep.subr.mxu0 0.0
    %3239 = vmatpush1.msra.mxu0 0.0
    %3240 = vmatprep.subr.mxu0 0.0
    %3241 = vmatpush1.msra.mxu0 0.0
    %3242 = vmatprep.subr.mxu0 0.0
    %3243 = vmatpush1.msra.mxu0 0.0
    %3244 = vmatprep.subr.mxu0 0.0
    %3245 = vmatpush1.msra.mxu0 0.0
    %3246 = vmatprep.subr.mxu0 0.0
    %3247 = vmatpush1.msra.mxu0 0.0
    %3248 = vmatprep.subr.mxu0 0.0
    %3249 = vmatpush1.msra.mxu0 0.0
    %3250 = vmatprep.subr.mxu0 0.0
    %3251 = vmatpush1.msra.mxu0 0.0
    %3252 = vmatprep.subr.mxu0 0.0
    %3253 = vmatpush1.msra.mxu0 0.0
    %3254 = vmatprep.mubr.f32.mxu0 0.0
    %3255 = vmatmul.mubr.f32.gmra.mrb[0].mxu0 %v3188
    %v3256 = vpop.f32.mrb[0].mxu0
    %v3257 = vadd.f32 0.0, %v3256
    %v3258 = vpop.f32.mrb[0].mxu0
    %3259 = vdwg.mxu0
    %3261 = vrot.lane.b32.xlu0 %v1963, 32
    %v3262 = vpop.permute.xlu0 %3261
    %v3265 = vsel %vm2104, %v3181, 0
    %v3268 = vsel %vm2104, %v3257, 0
    %3270 = vmatprep.subr.mxu0 0.0
    %3271 = vmatpush1.msra.mxu0 %v3262
    %3272 = vmatprep.subr.mxu0 0.0
    %3273 = vmatpush1.msra.mxu0 0.0
    %3274 = vmatprep.subr.mxu0 0.0
    %3275 = vmatpush1.msra.mxu0 0.0
    %3276 = vmatprep.subr.mxu0 0.0
    %3277 = vmatpush1.msra.mxu0 0.0
    %3278 = vmatprep.subr.mxu0 0.0
    %3279 = vmatpush1.msra.mxu0 0.0
    %3280 = vmatprep.subr.mxu0 0.0
    %3281 = vmatpush1.msra.mxu0 0.0
    %3282 = vmatprep.subr.mxu0 0.0
    %3283 = vmatpush1.msra.mxu0 0.0
    %3284 = vmatprep.subr.mxu0 0.0
    %3285 = vmatpush1.msra.mxu0 0.0
    %3286 = vmatprep.subr.mxu0 0.0
    %3287 = vmatpush1.msra.mxu0 0.0
    %3288 = vmatprep.subr.mxu0 0.0
    %3289 = vmatpush1.msra.mxu0 0.0
    %3290 = vmatprep.subr.mxu0 0.0
    %3291 = vmatpush1.msra.mxu0 0.0
    %3292 = vmatprep.subr.mxu0 0.0
    %3293 = vmatpush1.msra.mxu0 0.0
    %3294 = vmatprep.subr.mxu0 0.0
    %3295 = vmatpush1.msra.mxu0 0.0
    %3296 = vmatprep.subr.mxu0 0.0
    %3297 = vmatpush1.msra.mxu0 0.0
    %3298 = vmatprep.subr.mxu0 0.0
    %3299 = vmatpush1.msra.mxu0 0.0
    %3300 = vmatprep.subr.mxu0 0.0
    %3301 = vmatpush1.msra.mxu0 0.0
    %3302 = vmatprep.subr.mxu0 0.0
    %3303 = vmatpush1.msra.mxu0 0.0
    %3304 = vmatprep.subr.mxu0 0.0
    %3305 = vmatpush1.msra.mxu0 0.0
    %3306 = vmatprep.subr.mxu0 0.0
    %3307 = vmatpush1.msra.mxu0 0.0
    %3308 = vmatprep.subr.mxu0 0.0
    %3309 = vmatpush1.msra.mxu0 0.0
    %3310 = vmatprep.subr.mxu0 0.0
    %3311 = vmatpush1.msra.mxu0 0.0
    %3312 = vmatprep.subr.mxu0 0.0
    %3313 = vmatpush1.msra.mxu0 0.0
    %3314 = vmatprep.subr.mxu0 0.0
    %3315 = vmatpush1.msra.mxu0 0.0
    %3316 = vmatprep.subr.mxu0 0.0
    %3317 = vmatpush1.msra.mxu0 0.0
    %3318 = vmatprep.subr.mxu0 0.0
    %3319 = vmatpush1.msra.mxu0 0.0
    %3320 = vmatprep.subr.mxu0 0.0
    %3321 = vmatpush1.msra.mxu0 0.0
    %3322 = vmatprep.subr.mxu0 0.0
    %3323 = vmatpush1.msra.mxu0 0.0
    %3324 = vmatprep.subr.mxu0 0.0
    %3325 = vmatpush1.msra.mxu0 0.0
    %3326 = vmatprep.subr.mxu0 0.0
    %3327 = vmatpush1.msra.mxu0 0.0
    %3328 = vmatprep.subr.mxu0 0.0
    %3329 = vmatpush1.msra.mxu0 0.0
    %3330 = vmatprep.subr.mxu0 0.0
    %3331 = vmatpush1.msra.mxu0 0.0
    %3332 = vmatprep.subr.mxu0 0.0
    %3333 = vmatpush1.msra.mxu0 0.0
    %3334 = vmatprep.mubr.f32.mxu0 0.0
    %3335 = vmatmul.mubr.f32.gmra.mrb[0].mxu0 %v3265
    %v3336 = vpop.f32.mrb[0].mxu0
    %v3337 = vadd.f32 0.0, %v3336
    %v3338 = vpop.f32.mrb[0].mxu0
    %3339 = vmatprep.mubr.f32.mxu0 0.0
    %3340 = vmatmul.mubr.f32.gmra.mrb[0].mxu0 %v3268
    %v3341 = vpop.f32.mrb[0].mxu0
    %v3342 = vadd.f32 0.0, %v3341
    %v3343 = vpop.f32.mrb[0].mxu0
    %3344 = vdwg.mxu0
    %v3345 = vadd.f32 %v2922, %v3337
    %v3346 = vadd.f32 %v2927, %v3342
    %3347 = vrot.lane.b32.xlu0 %v2093, 104
    %v3348 = vpop.permute.xlu0 %3347
    %3349 = vrot.lane.b32.xlu0 %v2093, 72
    %v3350 = vpop.permute.xlu0 %3349
    %v3351 = vsel %vm2104, %v3348, 0
    %v3353 = vsel %vm2104, %v3350, 0
    %3355 = vmatprep.subr.mxu0 0.0
    %3356 = vmatpush1.xpose.msra.mxu0 %v3353
    %3357 = vmatprep.subr.mxu0 0.0
    %3358 = vmatpush1.xpose.msra.mxu0 0.0
    %3359 = vmatprep.subr.mxu0 0.0
    %3360 = vmatpush1.xpose.msra.mxu0 0.0
    %3361 = vmatprep.subr.mxu0 0.0
    %3362 = vmatpush1.xpose.msra.mxu0 0.0
    %3363 = vmatprep.subr.mxu0 0.0
    %3364 = vmatpush1.xpose.msra.mxu0 0.0
    %3365 = vmatprep.subr.mxu0 0.0
    %3366 = vmatpush1.xpose.msra.mxu0 0.0
    %3367 = vmatprep.subr.mxu0 0.0
    %3368 = vmatpush1.xpose.msra.mxu0 0.0
    %3369 = vmatprep.subr.mxu0 0.0
    %3370 = vmatpush1.xpose.msra.mxu0 0.0
    %3371 = vmatprep.subr.mxu0 0.0
    %3372 = vmatpush1.xpose.msra.mxu0 0.0
    %3373 = vmatprep.subr.mxu0 0.0
    %3374 = vmatpush1.xpose.msra.mxu0 0.0
    %3375 = vmatprep.subr.mxu0 0.0
    %3376 = vmatpush1.xpose.msra.mxu0 0.0
    %3377 = vmatprep.subr.mxu0 0.0
    %3378 = vmatpush1.xpose.msra.mxu0 0.0
    %3379 = vmatprep.subr.mxu0 0.0
    %3380 = vmatpush1.xpose.msra.mxu0 0.0
    %3381 = vmatprep.subr.mxu0 0.0
    %3382 = vmatpush1.xpose.msra.mxu0 0.0
    %3383 = vmatprep.subr.mxu0 0.0
    %3384 = vmatpush1.xpose.msra.mxu0 0.0
    %3385 = vmatprep.subr.mxu0 0.0
    %3386 = vmatpush1.xpose.msra.mxu0 0.0
    %3387 = vmatprep.subr.mxu0 0.0
    %3388 = vmatpush1.xpose.msra.mxu0 0.0
    %3389 = vmatprep.subr.mxu0 0.0
    %3390 = vmatpush1.xpose.msra.mxu0 0.0
    %3391 = vmatprep.subr.mxu0 0.0
    %3392 = vmatpush1.xpose.msra.mxu0 0.0
    %3393 = vmatprep.subr.mxu0 0.0
    %3394 = vmatpush1.xpose.msra.mxu0 0.0
    %3395 = vmatprep.subr.mxu0 0.0
    %3396 = vmatpush1.xpose.msra.mxu0 0.0
    %3397 = vmatprep.subr.mxu0 0.0
    %3398 = vmatpush1.xpose.msra.mxu0 0.0
    %3399 = vmatprep.subr.mxu0 0.0
    %3400 = vmatpush1.xpose.msra.mxu0 0.0
    %3401 = vmatprep.subr.mxu0 0.0
    %3402 = vmatpush1.xpose.msra.mxu0 0.0
    %3403 = vmatprep.subr.mxu0 0.0
    %3404 = vmatpush1.xpose.msra.mxu0 0.0
    %3405 = vmatprep.subr.mxu0 0.0
    %3406 = vmatpush1.xpose.msra.mxu0 0.0
    %3407 = vmatprep.subr.mxu0 0.0
    %3408 = vmatpush1.xpose.msra.mxu0 0.0
    %3409 = vmatprep.subr.mxu0 0.0
    %3410 = vmatpush1.xpose.msra.mxu0 0.0
    %3411 = vmatprep.subr.mxu0 0.0
    %3412 = vmatpush1.xpose.msra.mxu0 0.0
    %3413 = vmatprep.subr.mxu0 0.0
    %3414 = vmatpush1.xpose.msra.mxu0 0.0
    %3415 = vmatprep.subr.mxu0 0.0
    %3416 = vmatpush1.xpose.msra.mxu0 0.0
    %3417 = vmatprep.subr.mxu0 0.0
    %3418 = vmatpush1.xpose.msra.mxu0 0.0
    %3419 = vmatprep.mubr.f32.mxu0 0.0
    %3420 = vmatmul.mubr.f32.gmra.mrb[0].mxu0 %v3351
    %v3421 = vpop.f32.mrb[0].mxu0
    %v3422 = vadd.f32 %v1958, %v3421
    %v3423 = vpop.f32.mrb[0].mxu0
    %3424 = vdwg.mxu0
    %3425 = vrot.lane.b32.xlu0 %v2098, 104
    %v3426 = vpop.permute.xlu0 %3425
    %3427 = vrot.lane.b32.xlu0 %v2098, 72
    %v3428 = vpop.permute.xlu0 %3427
    %v3429 = vsel %vm2104, %v3426, 0
    %v3431 = vsel %vm2104, %v3428, 0
    %3433 = vmatprep.subr.mxu0 0.0
    %3434 = vmatpush1.xpose.msra.mxu0 %v3431
    %3435 = vmatprep.subr.mxu0 0.0
    %3436 = vmatpush1.xpose.msra.mxu0 0.0
    %3437 = vmatprep.subr.mxu0 0.0
    %3438 = vmatpush1.xpose.msra.mxu0 0.0
    %3439 = vmatprep.subr.mxu0 0.0
    %3440 = vmatpush1.xpose.msra.mxu0 0.0
    %3441 = vmatprep.subr.mxu0 0.0
    %3442 = vmatpush1.xpose.msra.mxu0 0.0
    %3443 = vmatprep.subr.mxu0 0.0
    %3444 = vmatpush1.xpose.msra.mxu0 0.0
    %3445 = vmatprep.subr.mxu0 0.0
    %3446 = vmatpush1.xpose.msra.mxu0 0.0
    %3447 = vmatprep.subr.mxu0 0.0
    %3448 = vmatpush1.xpose.msra.mxu0 0.0
    %3449 = vmatprep.subr.mxu0 0.0
    %3450 = vmatpush1.xpose.msra.mxu0 0.0
    %3451 = vmatprep.subr.mxu0 0.0
    %3452 = vmatpush1.xpose.msra.mxu0 0.0
    %3453 = vmatprep.subr.mxu0 0.0
    %3454 = vmatpush1.xpose.msra.mxu0 0.0
    %3455 = vmatprep.subr.mxu0 0.0
    %3456 = vmatpush1.xpose.msra.mxu0 0.0
    %3457 = vmatprep.subr.mxu0 0.0
    %3458 = vmatpush1.xpose.msra.mxu0 0.0
    %3459 = vmatprep.subr.mxu0 0.0
    %3460 = vmatpush1.xpose.msra.mxu0 0.0
    %3461 = vmatprep.subr.mxu0 0.0
    %3462 = vmatpush1.xpose.msra.mxu0 0.0
    %3463 = vmatprep.subr.mxu0 0.0
    %3464 = vmatpush1.xpose.msra.mxu0 0.0
    %3465 = vmatprep.subr.mxu0 0.0
    %3466 = vmatpush1.xpose.msra.mxu0 0.0
    %3467 = vmatprep.subr.mxu0 0.0
    %3468 = vmatpush1.xpose.msra.mxu0 0.0
    %3469 = vmatprep.subr.mxu0 0.0
    %3470 = vmatpush1.xpose.msra.mxu0 0.0
    %3471 = vmatprep.subr.mxu0 0.0
    %3472 = vmatpush1.xpose.msra.mxu0 0.0
    %3473 = vmatprep.subr.mxu0 0.0
    %3474 = vmatpush1.xpose.msra.mxu0 0.0
    %3475 = vmatprep.subr.mxu0 0.0
    %3476 = vmatpush1.xpose.msra.mxu0 0.0
    %3477 = vmatprep.subr.mxu0 0.0
    %3478 = vmatpush1.xpose.msra.mxu0 0.0
    %3479 = vmatprep.subr.mxu0 0.0
    %3480 = vmatpush1.xpose.msra.mxu0 0.0
    %3481 = vmatprep.subr.mxu0 0.0
    %3482 = vmatpush1.xpose.msra.mxu0 0.0
    %3483 = vmatprep.subr.mxu0 0.0
    %3484 = vmatpush1.xpose.msra.mxu0 0.0
    %3485 = vmatprep.subr.mxu0 0.0
    %3486 = vmatpush1.xpose.msra.mxu0 0.0
    %3487 = vmatprep.subr.mxu0 0.0
    %3488 = vmatpush1.xpose.msra.mxu0 0.0
    %3489 = vmatprep.subr.mxu0 0.0
    %3490 = vmatpush1.xpose.msra.mxu0 0.0
    %3491 = vmatprep.subr.mxu0 0.0
    %3492 = vmatpush1.xpose.msra.mxu0 0.0
    %3493 = vmatprep.subr.mxu0 0.0
    %3494 = vmatpush1.xpose.msra.mxu0 0.0
    %3495 = vmatprep.subr.mxu0 0.0
    %3496 = vmatpush1.xpose.msra.mxu0 0.0
    %3497 = vmatprep.mubr.f32.mxu0 0.0
    %3498 = vmatmul.mubr.f32.gmra.mrb[0].mxu0 %v3429
    %v3499 = vpop.f32.mrb[0].mxu0
    %v3500 = vadd.f32 %v1958, %v3499
    %v3501 = vpop.f32.mrb[0].mxu0
    %3502 = vdwg.mxu0
    %v3503 = vsel %vm2104, %v3422, -inf
    %3504 = vmax.xlane.f32.xlu0 %v3503
    %v3505 = vpop.xlane.xlu0 %3504
    %v3506 = vsel %vm2104, %v3500, -inf
    %3507 = vmax.xlane.f32.xlu0 %v3506
    %v3508 = vpop.xlane.xlu0 %3507
    %v3509 = vsub.f32 %v3422, %v3505
    %v3510 = vsub.f32 %v3500, %v3508
    %v3511 = vmul.f32 %v3509, 1.442695
    %v3512 = vpow.pop %v3511
    %v3513 = vmul.f32 %v3510, 1.442695
    %v3514 = vpow.pop %v3513
    %v3515 = vsel %vm2104, %v3512, 0.0
    %3516 = vadd.xlane.f32.xlu0 %v3515
    %v3517 = vpop.xlane.xlu0 %3516
    %v3518 = vsel %vm2104, %v3514, 0.0
    %3519 = vadd.xlane.f32.xlu0 %v3518
    %v3520 = vpop.xlane.xlu0 %3519
    %v3521 = vrcp.pop %v3517
    %v3522 = vrcp.pop %v3520
    %v3523 = vmul.f32 %v3512, %v3521
    %v3524 = vmul.f32 %v3514, %v3522
    %3525 = vrot.lane.b32.xlu0 %v2093, 40
    %v3526 = vpop.permute.xlu0 %3525
    %v3529 = vsel %vm2104, %v3523, 0
    %3531 = vmatprep.subr.mxu0 0.0
    %3532 = vmatpush1.msra.mxu0 %v3526
    %3533 = vmatprep.subr.mxu0 0.0
    %3534 = vmatpush1.msra.mxu0 0.0
    %3535 = vmatprep.subr.mxu0 0.0
    %3536 = vmatpush1.msra.mxu0 0.0
    %3537 = vmatprep.subr.mxu0 0.0
    %3538 = vmatpush1.msra.mxu0 0.0
    %3539 = vmatprep.subr.mxu0 0.0
    %3540 = vmatpush1.msra.mxu0 0.0
    %3541 = vmatprep.subr.mxu0 0.0
    %3542 = vmatpush1.msra.mxu0 0.0
    %3543 = vmatprep.subr.mxu0 0.0
    %3544 = vmatpush1.msra.mxu0 0.0
    %3545 = vmatprep.subr.mxu0 0.0
    %3546 = vmatpush1.msra.mxu0 0.0
    %3547 = vmatprep.subr.mxu0 0.0
    %3548 = vmatpush1.msra.mxu0 0.0
    %3549 = vmatprep.subr.mxu0 0.0
    %3550 = vmatpush1.msra.mxu0 0.0
    %3551 = vmatprep.subr.mxu0 0.0
    %3552 = vmatpush1.msra.mxu0 0.0
    %3553 = vmatprep.subr.mxu0 0.0
    %3554 = vmatpush1.msra.mxu0 0.0
    %3555 = vmatprep.subr.mxu0 0.0
    %3556 = vmatpush1.msra.mxu0 0.0
    %3557 = vmatprep.subr.mxu0 0.0
    %3558 = vmatpush1.msra.mxu0 0.0
    %3559 = vmatprep.subr.mxu0 0.0
    %3560 = vmatpush1.msra.mxu0 0.0
    %3561 = vmatprep.subr.mxu0 0.0
    %3562 = vmatpush1.msra.mxu0 0.0
    %3563 = vmatprep.subr.mxu0 0.0
    %3564 = vmatpush1.msra.mxu0 0.0
    %3565 = vmatprep.subr.mxu0 0.0
    %3566 = vmatpush1.msra.mxu0 0.0
    %3567 = vmatprep.subr.mxu0 0.0
    %3568 = vmatpush1.msra.mxu0 0.0
    %3569 = vmatprep.subr.mxu0 0.0
    %3570 = vmatpush1.msra.mxu0 0.0
    %3571 = vmatprep.subr.mxu0 0.0
    %3572 = vmatpush1.msra.mxu0 0.0
    %3573 = vmatprep.subr.mxu0 0.0
    %3574 = vmatpush1.msra.mxu0 0.0
    %3575 = vmatprep.subr.mxu0 0.0
    %3576 = vmatpush1.msra.mxu0 0.0
    %3577 = vmatprep.subr.mxu0 0.0
    %3578 = vmatpush1.msra.mxu0 0.0
    %3579 = vmatprep.subr.mxu0 0.0
    %3580 = vmatpush1.msra.mxu0 0.0
    %3581 = vmatprep.subr.mxu0 0.0
    %3582 = vmatpush1.msra.mxu0 0.0
    %3583 = vmatprep.subr.mxu0 0.0
    %3584 = vmatpush1.msra.mxu0 0.0
    %3585 = vmatprep.subr.mxu0 0.0
    %3586 = vmatpush1.msra.mxu0 0.0
    %3587 = vmatprep.subr.mxu0 0.0
    %3588 = vmatpush1.msra.mxu0 0.0
    %3589 = vmatprep.subr.mxu0 0.0
    %3590 = vmatpush1.msra.mxu0 0.0
    %3591 = vmatprep.subr.mxu0 0.0
    %3592 = vmatpush1.msra.mxu0 0.0
    %3593 = vmatprep.subr.mxu0 0.0
    %3594 = vmatpush1.msra.mxu0 0.0
    %3595 = vmatprep.mubr.f32.mxu0 0.0
    %3596 = vmatmul.mubr.f32.gmra.mrb[0].mxu0 %v3529
    %v3597 = vpop.f32.mrb[0].mxu0
    %v3598 = vadd.f32 0.0, %v3597
    %v3599 = vpop.f32.mrb[0].mxu0
    %3600 = vdwg.mxu0
    %3601 = vrot.lane.b32.xlu0 %v2098, 40
    %v3602 = vpop.permute.xlu0 %3601
    %v3605 = vsel %vm2104, %v3524, 0
    %3607 = vmatprep.subr.mxu0 0.0
    %3608 = vmatpush1.msra.mxu0 %v3602
    %3609 = vmatprep.subr.mxu0 0.0
    %3610 = vmatpush1.msra.mxu0 0.0
    %3611 = vmatprep.subr.mxu0 0.0
    %3612 = vmatpush1.msra.mxu0 0.0
    %3613 = vmatprep.subr.mxu0 0.0
    %3614 = vmatpush1.msra.mxu0 0.0
    %3615 = vmatprep.subr.mxu0 0.0
    %3616 = vmatpush1.msra.mxu0 0.0
    %3617 = vmatprep.subr.mxu0 0.0
    %3618 = vmatpush1.msra.mxu0 0.0
    %3619 = vmatprep.subr.mxu0 0.0
    %3620 = vmatpush1.msra.mxu0 0.0
    %3621 = vmatprep.subr.mxu0 0.0
    %3622 = vmatpush1.msra.mxu0 0.0
    %3623 = vmatprep.subr.mxu0 0.0
    %3624 = vmatpush1.msra.mxu0 0.0
    %3625 = vmatprep.subr.mxu0 0.0
    %3626 = vmatpush1.msra.mxu0 0.0
    %3627 = vmatprep.subr.mxu0 0.0
    %3628 = vmatpush1.msra.mxu0 0.0
    %3629 = vmatprep.subr.mxu0 0.0
    %3630 = vmatpush1.msra.mxu0 0.0
    %3631 = vmatprep.subr.mxu0 0.0
    %3632 = vmatpush1.msra.mxu0 0.0
    %3633 = vmatprep.subr.mxu0 0.0
    %3634 = vmatpush1.msra.mxu0 0.0
    %3635 = vmatprep.subr.mxu0 0.0
    %3636 = vmatpush1.msra.mxu0 0.0
    %3637 = vmatprep.subr.mxu0 0.0
    %3638 = vmatpush1.msra.mxu0 0.0
    %3639 = vmatprep.subr.mxu0 0.0
    %3640 = vmatpush1.msra.mxu0 0.0
    %3641 = vmatprep.subr.mxu0 0.0
    %3642 = vmatpush1.msra.mxu0 0.0
    %3643 = vmatprep.subr.mxu0 0.0
    %3644 = vmatpush1.msra.mxu0 0.0
    %3645 = vmatprep.subr.mxu0 0.0
    %3646 = vmatpush1.msra.mxu0 0.0
    %3647 = vmatprep.subr.mxu0 0.0
    %3648 = vmatpush1.msra.mxu0 0.0
    %3649 = vmatprep.subr.mxu0 0.0
    %3650 = vmatpush1.msra.mxu0 0.0
    %3651 = vmatprep.subr.mxu0 0.0
    %3652 = vmatpush1.msra.mxu0 0.0
    %3653 = vmatprep.subr.mxu0 0.0
    %3654 = vmatpush1.msra.mxu0 0.0
    %3655 = vmatprep.subr.mxu0 0.0
    %3656 = vmatpush1.msra.mxu0 0.0
    %3657 = vmatprep.subr.mxu0 0.0
    %3658 = vmatpush1.msra.mxu0 0.0
    %3659 = vmatprep.subr.mxu0 0.0
    %3660 = vmatpush1.msra.mxu0 0.0
    %3661 = vmatprep.subr.mxu0 0.0
    %3662 = vmatpush1.msra.mxu0 0.0
    %3663 = vmatprep.subr.mxu0 0.0
    %3664 = vmatpush1.msra.mxu0 0.0
    %3665 = vmatprep.subr.mxu0 0.0
    %3666 = vmatpush1.msra.mxu0 0.0
    %3667 = vmatprep.subr.mxu0 0.0
    %3668 = vmatpush1.msra.mxu0 0.0
    %3669 = vmatprep.subr.mxu0 0.0
    %3670 = vmatpush1.msra.mxu0 0.0
    %3671 = vmatprep.mubr.f32.mxu0 0.0
    %3672 = vmatmul.mubr.f32.gmra.mrb[0].mxu0 %v3605
    %v3673 = vpop.f32.mrb[0].mxu0
    %v3674 = vadd.f32 0.0, %v3673
    %v3675 = vpop.f32.mrb[0].mxu0
    %3676 = vdwg.mxu0
    %3678 = vrot.lane.b32.xlu0 %v1965, 32
    %v3679 = vpop.permute.xlu0 %3678
    %v3682 = vsel %vm2104, %v3598, 0
    %v3685 = vsel %vm2104, %v3674, 0
    %3687 = vmatprep.subr.mxu0 0.0
    %3688 = vmatpush1.msra.mxu0 %v3679
    %3689 = vmatprep.subr.mxu0 0.0
    %3690 = vmatpush1.msra.mxu0 0.0
    %3691 = vmatprep.subr.mxu0 0.0
    %3692 = vmatpush1.msra.mxu0 0.0
    %3693 = vmatprep.subr.mxu0 0.0
    %3694 = vmatpush1.msra.mxu0 0.0
    %3695 = vmatprep.subr.mxu0 0.0
    %3696 = vmatpush1.msra.mxu0 0.0
    %3697 = vmatprep.subr.mxu0 0.0
    %3698 = vmatpush1.msra.mxu0 0.0
    %3699 = vmatprep.subr.mxu0 0.0
    %3700 = vmatpush1.msra.mxu0 0.0
    %3701 = vmatprep.subr.mxu0 0.0
    %3702 = vmatpush1.msra.mxu0 0.0
    %3703 = vmatprep.subr.mxu0 0.0
    %3704 = vmatpush1.msra.mxu0 0.0
    %3705 = vmatprep.subr.mxu0 0.0
    %3706 = vmatpush1.msra.mxu0 0.0
    %3707 = vmatprep.subr.mxu0 0.0
    %3708 = vmatpush1.msra.mxu0 0.0
    %3709 = vmatprep.subr.mxu0 0.0
    %3710 = vmatpush1.msra.mxu0 0.0
    %3711 = vmatprep.subr.mxu0 0.0
    %3712 = vmatpush1.msra.mxu0 0.0
    %3713 = vmatprep.subr.mxu0 0.0
    %3714 = vmatpush1.msra.mxu0 0.0
    %3715 = vmatprep.subr.mxu0 0.0
    %3716 = vmatpush1.msra.mxu0 0.0
    %3717 = vmatprep.subr.mxu0 0.0
    %3718 = vmatpush1.msra.mxu0 0.0
    %3719 = vmatprep.subr.mxu0 0.0
    %3720 = vmatpush1.msra.mxu0 0.0
    %3721 = vmatprep.subr.mxu0 0.0
    %3722 = vmatpush1.msra.mxu0 0.0
    %3723 = vmatprep.subr.mxu0 0.0
    %3724 = vmatpush1.msra.mxu0 0.0
    %3725 = vmatprep.subr.mxu0 0.0
    %3726 = vmatpush1.msra.mxu0 0.0
    %3727 = vmatprep.subr.mxu0 0.0
    %3728 = vmatpush1.msra.mxu0 0.0
    %3729 = vmatprep.subr.mxu0 0.0
    %3730 = vmatpush1.msra.mxu0 0.0
    %3731 = vmatprep.subr.mxu0 0.0
    %3732 = vmatpush1.msra.mxu0 0.0
    %3733 = vmatprep.subr.mxu0 0.0
    %3734 = vmatpush1.msra.mxu0 0.0
    %3735 = vmatprep.subr.mxu0 0.0
    %3736 = vmatpush1.msra.mxu0 0.0
    %3737 = vmatprep.subr.mxu0 0.0
    %3738 = vmatpush1.msra.mxu0 0.0
    %3739 = vmatprep.subr.mxu0 0.0
    %3740 = vmatpush1.msra.mxu0 0.0
    %3741 = vmatprep.subr.mxu0 0.0
    %3742 = vmatpush1.msra.mxu0 0.0
    %3743 = vmatprep.subr.mxu0 0.0
    %3744 = vmatpush1.msra.mxu0 0.0
    %3745 = vmatprep.subr.mxu0 0.0
    %3746 = vmatpush1.msra.mxu0 0.0
    %3747 = vmatprep.subr.mxu0 0.0
    %3748 = vmatpush1.msra.mxu0 0.0
    %3749 = vmatprep.subr.mxu0 0.0
    %3750 = vmatpush1.msra.mxu0 0.0
    %3751 = vmatprep.mubr.f32.mxu0 0.0
    %3752 = vmatmul.mubr.f32.gmra.mrb[0].mxu0 %v3682
    %v3753 = vpop.f32.mrb[0].mxu0
    %v3754 = vadd.f32 0.0, %v3753
    %v3755 = vpop.f32.mrb[0].mxu0
    %3756 = vmatprep.mubr.f32.mxu0 0.0
    %3757 = vmatmul.mubr.f32.gmra.mrb[0].mxu0 %v3685
    %v3758 = vpop.f32.mrb[0].mxu0
    %v3759 = vadd.f32 0.0, %v3758
    %v3760 = vpop.f32.mrb[0].mxu0
    %3761 = vdwg.mxu0
    %v3762 = vadd.f32 %v3345, %v3754
    %v3763 = vadd.f32 %v3346, %v3759
    %v3764 = vlaneseq
    %v3765 = vshrl.u32 %v3764, 7
    %v3766 = vsub.s32 3, %v3765
    %v3767 = vrot.slane %v1975, %v3766
    %v3768 = vadd.f32 %v3762, %v3767
    %v3769 = vadd.f32 %v3763, %v3767
    %v3770 = vadd.f32 %v3768, %v1949
    %v3771 = vadd.f32 %v3769, %v1952
    %v3772 = vsel %vm1976, %v3770, 0.0
    %3773 = vadd.xlane.f32.xlu0 %v3772
    %v3774 = vpop.xlane.xlu0 %3773
    %v3775 = vsel %vm1976, %v3771, 0.0
    %3776 = vadd.xlane.f32.xlu0 %v3775
    %v3777 = vpop.xlane.xlu0 %3776
    %v3778 = vmul.f32 %v3774, %v1983
    %v3779 = vmul.f32 %v3777, %v1983
    %v3780 = vsub.f32 %v3770, %v3778
    %v3781 = vsub.f32 %v3771, %v3779
    %v3782 = vmul.f32 %v3780, %v3780
    %v3783 = vmul.f32 %v3781, %v3781
    %v3784 = vsel %vm1976, %v3782, 0.0
    %3785 = vadd.xlane.f32.xlu0 %v3784
    %v3786 = vpop.xlane.xlu0 %3785
    %v3787 = vsel %vm1976, %v3783, 0.0
    %3788 = vadd.xlane.f32.xlu0 %v3787
    %v3789 = vpop.xlane.xlu0 %3788
    %v3790 = vmul.f32 %v3786, %v1983
    %v3791 = vmul.f32 %v3789, %v1983
    %v3792 = vadd.f32 %v3790, 1e-06
    %v3793 = vadd.f32 %v3791, 1e-06
    %v3794 = vrsqrt.pop %v3792
    %v3795 = vrsqrt.pop %v3793
    %v3796 = vmul.f32 %v3780, %v3794
    %v3797 = vmul.f32 %v3781, %v3795
    %v3798 = vlaneseq
    %v3799 = vshrl.u32 %v3798, 7
    %v3800 = vsub.s32 4, %v3799
    %v3801 = vrot.slane %v1975, %v3800
    %v3802 = vmul.f32 %v3796, %v3801
    %v3803 = vmul.f32 %v3797, %v3801
    %v3804 = vlaneseq
    %v3805 = vshrl.u32 %v3804, 7
    %v3806 = vsub.s32 5, %v3805
    %v3807 = vrot.slane %v1975, %v3806
    %v3808 = vadd.f32 %v3802, %v3807
    %v3809 = vadd.f32 %v3803, %v3807
    %v3810 = vlaneseq
    %v3811 = vshrl.u32 %v3810, 7
    %v3812 = vsub.s32 6, %v3811
    %v3813 = vrot.slane %v1975, %v3812
    %v3815 = vsel %vm1976, %v3808, 0
    %v3818 = vsel %vm1976, %v3809, 0
    %3820 = vmatprep.subr.mxu0 0.0
    %3821 = vmatpush1.msra.mxu0 %v1960
    %3822 = vmatprep.subr.mxu0 0.0
    %3823 = vmatpush1.msra.mxu0 %v1962
    %3824 = vmatprep.subr.mxu0 0.0
    %3825 = vmatpush1.msra.mxu0 %v1964
    %3826 = vmatprep.subr.mxu0 0.0
    %3827 = vmatpush1.msra.mxu0 %v1966
    %3828 = vmatprep.subr.mxu0 0.0
    %3829 = vmatpush1.msra.mxu0 0.0
    %3830 = vmatprep.subr.mxu0 0.0
    %3831 = vmatpush1.msra.mxu0 0.0
    %3832 = vmatprep.subr.mxu0 0.0
    %3833 = vmatpush1.msra.mxu0 0.0
    %3834 = vmatprep.subr.mxu0 0.0
    %3835 = vmatpush1.msra.mxu0 0.0
    %3836 = vmatprep.subr.mxu0 0.0
    %3837 = vmatpush1.msra.mxu0 0.0
    %3838 = vmatprep.subr.mxu0 0.0
    %3839 = vmatpush1.msra.mxu0 0.0
    %3840 = vmatprep.subr.mxu0 0.0
    %3841 = vmatpush1.msra.mxu0 0.0
    %3842 = vmatprep.subr.mxu0 0.0
    %3843 = vmatpush1.msra.mxu0 0.0
    %3844 = vmatprep.subr.mxu0 0.0
    %3845 = vmatpush1.msra.mxu0 0.0
    %3846 = vmatprep.subr.mxu0 0.0
    %3847 = vmatpush1.msra.mxu0 0.0
    %3848 = vmatprep.subr.mxu0 0.0
    %3849 = vmatpush1.msra.mxu0 0.0
    %3850 = vmatprep.subr.mxu0 0.0
    %3851 = vmatpush1.msra.mxu0 0.0
    %3852 = vmatprep.subr.mxu0 0.0
    %3853 = vmatpush1.msra.mxu0 0.0
    %3854 = vmatprep.subr.mxu0 0.0
    %3855 = vmatpush1.msra.mxu0 0.0
    %3856 = vmatprep.subr.mxu0 0.0
    %3857 = vmatpush1.msra.mxu0 0.0
    %3858 = vmatprep.subr.mxu0 0.0
    %3859 = vmatpush1.msra.mxu0 0.0
    %3860 = vmatprep.subr.mxu0 0.0
    %3861 = vmatpush1.msra.mxu0 0.0
    %3862 = vmatprep.subr.mxu0 0.0
    %3863 = vmatpush1.msra.mxu0 0.0
    %3864 = vmatprep.subr.mxu0 0.0
    %3865 = vmatpush1.msra.mxu0 0.0
    %3866 = vmatprep.subr.mxu0 0.0
    %3867 = vmatpush1.msra.mxu0 0.0
    %3868 = vmatprep.subr.mxu0 0.0
    %3869 = vmatpush1.msra.mxu0 0.0
    %3870 = vmatprep.subr.mxu0 0.0
    %3871 = vmatpush1.msra.mxu0 0.0
    %3872 = vmatprep.subr.mxu0 0.0
    %3873 = vmatpush1.msra.mxu0 0.0
    %3874 = vmatprep.subr.mxu0 0.0
    %3875 = vmatpush1.msra.mxu0 0.0
    %3876 = vmatprep.subr.mxu0 0.0
    %3877 = vmatpush1.msra.mxu0 0.0
    %3878 = vmatprep.subr.mxu0 0.0
    %3879 = vmatpush1.msra.mxu0 0.0
    %3880 = vmatprep.subr.mxu0 0.0
    %3881 = vmatpush1.msra.mxu0 0.0
    %3882 = vmatprep.subr.mxu0 0.0
    %3883 = vmatpush1.msra.mxu0 0.0
    %3884 = vmatprep.mubr.f32.mxu0 0.0
    %3885 = vmatmul.mubr.f32.gmra.mrb[0].mxu0 %v3815
    %v3886 = vpop.f32.mrb[0].mxu0
    %v3887 = vadd.f32 %v3813, %v3886
    %v3888 = vpop.f32.mrb[0].mxu0
    %3889 = vmatprep.mubr.f32.mxu0 0.0
    %3890 = vmatmul.mubr.f32.gmra.mrb[0].mxu0 %v3818
    %v3891 = vpop.f32.mrb[0].mxu0
    %v3892 = vadd.f32 %v3813, %v3891
    %v3893 = vpop.f32.mrb[0].mxu0
    %3894 = vdwg.mxu0
    %v3895 = vmul.f32 %v3887, 0.5
    %v3896 = vmul.f32 %v3892, 0.5
    %v3897 = vrcp.pop 1.4142135
    %v3898 = vmul.f32 %v3887, %v3897
    %v3899 = vmul.f32 %v3892, %v3897
    %v3900 = verf.f32.pop %v3898
    %v3901 = verf.f32.pop %v3899
    %v3902 = vadd.f32 %v3900, 1.0
    %v3903 = vadd.f32 %v3901, 1.0
    %v3904 = vmul.f32 %v3895, %v3902
    %v3905 = vmul.f32 %v3896, %v3903
    %v3906 = vlaneseq
    %v3907 = vshrl.u32 %v3906, 7
    %v3908 = vsub.s32 7, %v3907
    %v3909 = vrot.slane %v1975, %v3908
    %vm3910 = vcmask 523264
    %v3912 = vsel %vm3910, %v3904, 0
    %v3915 = vsel %vm3910, %v3905, 0
    %3917 = vmatprep.subr.mxu0 0.0
    %3918 = vmatpush1.msra.mxu0 %v1967
    %3919 = vmatprep.subr.mxu0 0.0
    %3920 = vmatpush1.msra.mxu0 %v1968
    %3921 = vmatprep.subr.mxu0 0.0
    %3922 = vmatpush1.msra.mxu0 %v1969
    %3923 = vmatprep.subr.mxu0 0.0
    %3924 = vmatpush1.msra.mxu0 %v1970
    %3925 = vmatprep.subr.mxu0 0.0
    %3926 = vmatpush1.msra.mxu0 %v1971
    %3927 = vmatprep.subr.mxu0 0.0
    %3928 = vmatpush1.msra.mxu0 %v1972
    %3929 = vmatprep.subr.mxu0 0.0
    %3930 = vmatpush1.msra.mxu0 %v1973
    %3931 = vmatprep.subr.mxu0 0.0
    %3932 = vmatpush1.msra.mxu0 %v1974
    %3933 = vmatprep.subr.mxu0 0.0
    %3934 = vmatpush1.msra.mxu0 0.0
    %3935 = vmatprep.subr.mxu0 0.0
    %3936 = vmatpush1.msra.mxu0 0.0
    %3937 = vmatprep.subr.mxu0 0.0
    %3938 = vmatpush1.msra.mxu0 0.0
    %3939 = vmatprep.subr.mxu0 0.0
    %3940 = vmatpush1.msra.mxu0 0.0
    %3941 = vmatprep.subr.mxu0 0.0
    %3942 = vmatpush1.msra.mxu0 0.0
    %3943 = vmatprep.subr.mxu0 0.0
    %3944 = vmatpush1.msra.mxu0 0.0
    %3945 = vmatprep.subr.mxu0 0.0
    %3946 = vmatpush1.msra.mxu0 0.0
    %3947 = vmatprep.subr.mxu0 0.0
    %3948 = vmatpush1.msra.mxu0 0.0
    %3949 = vmatprep.subr.mxu0 0.0
    %3950 = vmatpush1.msra.mxu0 0.0
    %3951 = vmatprep.subr.mxu0 0.0
    %3952 = vmatpush1.msra.mxu0 0.0
    %3953 = vmatprep.subr.mxu0 0.0
    %3954 = vmatpush1.msra.mxu0 0.0
    %3955 = vmatprep.subr.mxu0 0.0
    %3956 = vmatpush1.msra.mxu0 0.0
    %3957 = vmatprep.subr.mxu0 0.0
    %3958 = vmatpush1.msra.mxu0 0.0
    %3959 = vmatprep.subr.mxu0 0.0
    %3960 = vmatpush1.msra.mxu0 0.0
    %3961 = vmatprep.subr.mxu0 0.0
    %3962 = vmatpush1.msra.mxu0 0.0
    %3963 = vmatprep.subr.mxu0 0.0
    %3964 = vmatpush1.msra.mxu0 0.0
    %3965 = vmatprep.subr.mxu0 0.0
    %3966 = vmatpush1.msra.mxu0 0.0
    %3967 = vmatprep.subr.mxu0 0.0
    %3968 = vmatpush1.msra.mxu0 0.0
    %3969 = vmatprep.subr.mxu0 0.0
    %3970 = vmatpush1.msra.mxu0 0.0
    %3971 = vmatprep.subr.mxu0 0.0
    %3972 = vmatpush1.msra.mxu0 0.0
    %3973 = vmatprep.subr.mxu0 0.0
    %3974 = vmatpush1.msra.mxu0 0.0
    %3975 = vmatprep.subr.mxu0 0.0
    %3976 = vmatpush1.msra.mxu0 0.0
    %3977 = vmatprep.subr.mxu0 0.0
    %3978 = vmatpush1.msra.mxu0 0.0
    %3979 = vmatprep.subr.mxu0 0.0
    %3980 = vmatpush1.msra.mxu0 0.0
    %3981 = vmatprep.mubr.f32.mxu0 0.0
    %3982 = vmatmul.mubr.f32.gmra.mrb[0].mxu0 %v3912
    %v3983 = vpop.f32.mrb[0].mxu0
    %v3984 = vadd.f32 %v3909, %v3983
    %v3985 = vpop.f32.mrb[0].mxu0
    %3986 = vmatprep.mubr.f32.mxu0 0.0
    %3987 = vmatmul.mubr.f32.gmra.mrb[0].mxu0 %v3915
    %v3988 = vpop.f32.mrb[0].mxu0
    %v3989 = vadd.f32 %v3909, %v3988
    %v3990 = vpop.f32.mrb[0].mxu0
    %3991 = vdwg.mxu0
    %v3992 = vadd.f32 %v3984, %v3770
    %v3993 = vadd.f32 %v3989, %v3771
    %s3994 = scalar_lea.vmem %s3, 64
    %v3995 = vld [vmem:[%s3994] sm:$0xff]
    %v3996 = vld [vmem:[%s3994 + $0x8] sm:$0xff]
    %v3997 = vld [vmem:[%s3994 + $0x10] sm:$0xff]
    %v3998 = vld [vmem:[%s3994 + $0x18] sm:$0xff]
    %v3999 = vld [vmem:[%s3994 + $0x20] sm:$0xff]
    %v4000 = vld [vmem:[%s3994 + $0x28] sm:$0xff]
    %v4001 = vld [vmem:[%s3994 + $0x30] sm:$0xff]
    %v4002 = vld [vmem:[%s3994 + $0x38] sm:$0xff]
    %s4003 = scalar_lea.vmem %s4, 64
    %v4004 = vld [vmem:[%s4003] sm:$0xff]
    %v4005 = vld [vmem:[%s4003 + $0x8] sm:$0xff]
    %v4006 = vld [vmem:[%s4003 + $0x10] sm:$0xff]
    %v4007 = vld [vmem:[%s4003 + $0x18] sm:$0xff]
    %v4008 = vld [vmem:[%s4003 + $0x20] sm:$0xff]
    %v4009 = vld [vmem:[%s4003 + $0x28] sm:$0xff]
    %v4010 = vld [vmem:[%s4003 + $0x30] sm:$0xff]
    %v4011 = vld [vmem:[%s4003 + $0x38] sm:$0xff]
    %s4012 = scalar_lea.vmem %s5, 8
    %v4013 = vld [vmem:[%s4012] sm:$0xff]
    %v4014 = vsel %vm1976, %v3992, 0.0
    %4015 = vadd.xlane.f32.xlu0 %v4014
    %v4016 = vpop.xlane.xlu0 %4015
    %v4017 = vsel %vm1976, %v3993, 0.0
    %4018 = vadd.xlane.f32.xlu0 %v4017
    %v4019 = vpop.xlane.xlu0 %4018
    %v4020 = vmul.f32 %v4016, %v1983
    %v4021 = vmul.f32 %v4019, %v1983
    %v4022 = vsub.f32 %v3992, %v4020
    %v4023 = vsub.f32 %v3993, %v4021
    %v4024 = vmul.f32 %v4022, %v4022
    %v4025 = vmul.f32 %v4023, %v4023
    %v4026 = vsel %vm1976, %v4024, 0.0
    %4027 = vadd.xlane.f32.xlu0 %v4026
    %v4028 = vpop.xlane.xlu0 %4027
    %v4029 = vsel %vm1976, %v4025, 0.0
    %4030 = vadd.xlane.f32.xlu0 %v4029
    %v4031 = vpop.xlane.xlu0 %4030
    %v4032 = vmul.f32 %v4028, %v1983
    %v4033 = vmul.f32 %v4031, %v1983
    %v4034 = vadd.f32 %v4032, 1e-06
    %v4035 = vadd.f32 %v4033, 1e-06
    %v4036 = vrsqrt.pop %v4034
    %v4037 = vrsqrt.pop %v4035
    %v4038 = vmul.f32 %v4022, %v4036
    %v4039 = vmul.f32 %v4023, %v4037
    %v4040 = vlaneseq
    %v4041 = vshrl.u32 %v4040, 7
    %v4042 = vsub.s32 0, %v4041
    %v4043 = vrot.slane %v4013, %v4042
    %v4044 = vmul.f32 %v4038, %v4043
    %v4045 = vmul.f32 %v4039, %v4043
    %v4046 = vlaneseq
    %v4047 = vshrl.u32 %v4046, 7
    %v4048 = vsub.s32 1, %v4047
    %v4049 = vrot.slane %v4013, %v4048
    %v4050 = vadd.f32 %v4044, %v4049
    %v4051 = vadd.f32 %v4045, %v4049
    %v4052 = vlaneseq
    %v4053 = vshrl.u32 %v4052, 7
    %v4054 = vsub.s32 2, %v4053
    %v4055 = vrot.slane %v4013, %v4054
    %v4057 = vsel %vm1976, %v4050, 0
    %v4060 = vsel %vm1976, %v4051, 0
    %4062 = vmatprep.subr.mxu0 0.0
    %4063 = vmatpush1.msra.mxu0 %v3995
    %4064 = vmatprep.subr.mxu0 0.0
    %4065 = vmatpush1.msra.mxu0 %v3997
    %4066 = vmatprep.subr.mxu0 0.0
    %4067 = vmatpush1.msra.mxu0 %v3999
    %4068 = vmatprep.subr.mxu0 0.0
    %4069 = vmatpush1.msra.mxu0 %v4001
    %4070 = vmatprep.subr.mxu0 0.0
    %4071 = vmatpush1.msra.mxu0 0.0
    %4072 = vmatprep.subr.mxu0 0.0
    %4073 = vmatpush1.msra.mxu0 0.0
    %4074 = vmatprep.subr.mxu0 0.0
    %4075 = vmatpush1.msra.mxu0 0.0
    %4076 = vmatprep.subr.mxu0 0.0
    %4077 = vmatpush1.msra.mxu0 0.0
    %4078 = vmatprep.subr.mxu0 0.0
    %4079 = vmatpush1.msra.mxu0 0.0
    %4080 = vmatprep.subr.mxu0 0.0
    %4081 = vmatpush1.msra.mxu0 0.0
    %4082 = vmatprep.subr.mxu0 0.0
    %4083 = vmatpush1.msra.mxu0 0.0
    %4084 = vmatprep.subr.mxu0 0.0
    %4085 = vmatpush1.msra.mxu0 0.0
    %4086 = vmatprep.subr.mxu0 0.0
    %4087 = vmatpush1.msra.mxu0 0.0
    %4088 = vmatprep.subr.mxu0 0.0
    %4089 = vmatpush1.msra.mxu0 0.0
    %4090 = vmatprep.subr.mxu0 0.0
    %4091 = vmatpush1.msra.mxu0 0.0
    %4092 = vmatprep.subr.mxu0 0.0
    %4093 = vmatpush1.msra.mxu0 0.0
    %4094 = vmatprep.subr.mxu0 0.0
    %4095 = vmatpush1.msra.mxu0 0.0
    %4096 = vmatprep.subr.mxu0 0.0
    %4097 = vmatpush1.msra.mxu0 0.0
    %4098 = vmatprep.subr.mxu0 0.0
    %4099 = vmatpush1.msra.mxu0 0.0
    %4100 = vmatprep.subr.mxu0 0.0
    %4101 = vmatpush1.msra.mxu0 0.0
    %4102 = vmatprep.subr.mxu0 0.0
    %4103 = vmatpush1.msra.mxu0 0.0
    %4104 = vmatprep.subr.mxu0 0.0
    %4105 = vmatpush1.msra.mxu0 0.0
    %4106 = vmatprep.subr.mxu0 0.0
    %4107 = vmatpush1.msra.mxu0 0.0
    %4108 = vmatprep.subr.mxu0 0.0
    %4109 = vmatpush1.msra.mxu0 0.0
    %4110 = vmatprep.subr.mxu0 0.0
    %4111 = vmatpush1.msra.mxu0 0.0
    %4112 = vmatprep.subr.mxu0 0.0
    %4113 = vmatpush1.msra.mxu0 0.0
    %4114 = vmatprep.subr.mxu0 0.0
    %4115 = vmatpush1.msra.mxu0 0.0
    %4116 = vmatprep.subr.mxu0 0.0
    %4117 = vmatpush1.msra.mxu0 0.0
    %4118 = vmatprep.subr.mxu0 0.0
    %4119 = vmatpush1.msra.mxu0 0.0
    %4120 = vmatprep.subr.mxu0 0.0
    %4121 = vmatpush1.msra.mxu0 0.0
    %4122 = vmatprep.subr.mxu0 0.0
    %4123 = vmatpush1.msra.mxu0 0.0
    %4124 = vmatprep.subr.mxu0 0.0
    %4125 = vmatpush1.msra.mxu0 0.0
    %4126 = vmatprep.mubr.f32.mxu0 0.0
    %4127 = vmatmul.mubr.f32.gmra.mrb[0].mxu0 %v4057
    %v4128 = vpop.f32.mrb[0].mxu0
    %v4129 = vadd.f32 %v4055, %v4128
    %v4130 = vpop.f32.mrb[0].mxu0
    %4131 = vmatprep.mubr.f32.mxu0 0.0
    %4132 = vmatmul.mubr.f32.gmra.mrb[0].mxu0 %v4060
    %v4133 = vpop.f32.mrb[0].mxu0
    %v4134 = vadd.f32 %v4055, %v4133
    %v4135 = vpop.f32.mrb[0].mxu0
    %4136 = vdwg.mxu0
    %4138 = vrot.lane.b32.xlu0 %v4129, 96
    %v4139 = vpop.permute.xlu0 %4138
    %v4140 = vsel %vm2104, %v4129, 0
    %v4142 = vsel %vm2104, %v4139, 0
    %4144 = vmatprep.subr.mxu0 0.0
    %4145 = vmatpush1.xpose.msra.mxu0 %v4142
    %4146 = vmatprep.subr.mxu0 0.0
    %4147 = vmatpush1.xpose.msra.mxu0 0.0
    %4148 = vmatprep.subr.mxu0 0.0
    %4149 = vmatpush1.xpose.msra.mxu0 0.0
    %4150 = vmatprep.subr.mxu0 0.0
    %4151 = vmatpush1.xpose.msra.mxu0 0.0
    %4152 = vmatprep.subr.mxu0 0.0
    %4153 = vmatpush1.xpose.msra.mxu0 0.0
    %4154 = vmatprep.subr.mxu0 0.0
    %4155 = vmatpush1.xpose.msra.mxu0 0.0
    %4156 = vmatprep.subr.mxu0 0.0
    %4157 = vmatpush1.xpose.msra.mxu0 0.0
    %4158 = vmatprep.subr.mxu0 0.0
    %4159 = vmatpush1.xpose.msra.mxu0 0.0
    %4160 = vmatprep.subr.mxu0 0.0
    %4161 = vmatpush1.xpose.msra.mxu0 0.0
    %4162 = vmatprep.subr.mxu0 0.0
    %4163 = vmatpush1.xpose.msra.mxu0 0.0
    %4164 = vmatprep.subr.mxu0 0.0
    %4165 = vmatpush1.xpose.msra.mxu0 0.0
    %4166 = vmatprep.subr.mxu0 0.0
    %4167 = vmatpush1.xpose.msra.mxu0 0.0
    %4168 = vmatprep.subr.mxu0 0.0
    %4169 = vmatpush1.xpose.msra.mxu0 0.0
    %4170 = vmatprep.subr.mxu0 0.0
    %4171 = vmatpush1.xpose.msra.mxu0 0.0
    %4172 = vmatprep.subr.mxu0 0.0
    %4173 = vmatpush1.xpose.msra.mxu0 0.0
    %4174 = vmatprep.subr.mxu0 0.0
    %4175 = vmatpush1.xpose.msra.mxu0 0.0
    %4176 = vmatprep.subr.mxu0 0.0
    %4177 = vmatpush1.xpose.msra.mxu0 0.0
    %4178 = vmatprep.subr.mxu0 0.0
    %4179 = vmatpush1.xpose.msra.mxu0 0.0
    %4180 = vmatprep.subr.mxu0 0.0
    %4181 = vmatpush1.xpose.msra.mxu0 0.0
    %4182 = vmatprep.subr.mxu0 0.0
    %4183 = vmatpush1.xpose.msra.mxu0 0.0
    %4184 = vmatprep.subr.mxu0 0.0
    %4185 = vmatpush1.xpose.msra.mxu0 0.0
    %4186 = vmatprep.subr.mxu0 0.0
    %4187 = vmatpush1.xpose.msra.mxu0 0.0
    %4188 = vmatprep.subr.mxu0 0.0
    %4189 = vmatpush1.xpose.msra.mxu0 0.0
    %4190 = vmatprep.subr.mxu0 0.0
    %4191 = vmatpush1.xpose.msra.mxu0 0.0
    %4192 = vmatprep.subr.mxu0 0.0
    %4193 = vmatpush1.xpose.msra.mxu0 0.0
    %4194 = vmatprep.subr.mxu0 0.0
    %4195 = vmatpush1.xpose.msra.mxu0 0.0
    %4196 = vmatprep.subr.mxu0 0.0
    %4197 = vmatpush1.xpose.msra.mxu0 0.0
    %4198 = vmatprep.subr.mxu0 0.0
    %4199 = vmatpush1.xpose.msra.mxu0 0.0
    %4200 = vmatprep.subr.mxu0 0.0
    %4201 = vmatpush1.xpose.msra.mxu0 0.0
    %4202 = vmatprep.subr.mxu0 0.0
    %4203 = vmatpush1.xpose.msra.mxu0 0.0
    %4204 = vmatprep.subr.mxu0 0.0
    %4205 = vmatpush1.xpose.msra.mxu0 0.0
    %4206 = vmatprep.subr.mxu0 0.0
    %4207 = vmatpush1.xpose.msra.mxu0 0.0
    %4208 = vmatprep.mubr.f32.mxu0 0.0
    %4209 = vmatmul.mubr.f32.gmra.mrb[0].mxu0 %v4140
    %v4210 = vpop.f32.mrb[0].mxu0
    %v4211 = vadd.f32 %v1958, %v4210
    %v4212 = vpop.f32.mrb[0].mxu0
    %4213 = vdwg.mxu0
    %4215 = vrot.lane.b32.xlu0 %v4134, 96
    %v4216 = vpop.permute.xlu0 %4215
    %v4217 = vsel %vm2104, %v4134, 0
    %v4219 = vsel %vm2104, %v4216, 0
    %4221 = vmatprep.subr.mxu0 0.0
    %4222 = vmatpush1.xpose.msra.mxu0 %v4219
    %4223 = vmatprep.subr.mxu0 0.0
    %4224 = vmatpush1.xpose.msra.mxu0 0.0
    %4225 = vmatprep.subr.mxu0 0.0
    %4226 = vmatpush1.xpose.msra.mxu0 0.0
    %4227 = vmatprep.subr.mxu0 0.0
    %4228 = vmatpush1.xpose.msra.mxu0 0.0
    %4229 = vmatprep.subr.mxu0 0.0
    %4230 = vmatpush1.xpose.msra.mxu0 0.0
    %4231 = vmatprep.subr.mxu0 0.0
    %4232 = vmatpush1.xpose.msra.mxu0 0.0
    %4233 = vmatprep.subr.mxu0 0.0
    %4234 = vmatpush1.xpose.msra.mxu0 0.0
    %4235 = vmatprep.subr.mxu0 0.0
    %4236 = vmatpush1.xpose.msra.mxu0 0.0
    %4237 = vmatprep.subr.mxu0 0.0
    %4238 = vmatpush1.xpose.msra.mxu0 0.0
    %4239 = vmatprep.subr.mxu0 0.0
    %4240 = vmatpush1.xpose.msra.mxu0 0.0
    %4241 = vmatprep.subr.mxu0 0.0
    %4242 = vmatpush1.xpose.msra.mxu0 0.0
    %4243 = vmatprep.subr.mxu0 0.0
    %4244 = vmatpush1.xpose.msra.mxu0 0.0
    %4245 = vmatprep.subr.mxu0 0.0
    %4246 = vmatpush1.xpose.msra.mxu0 0.0
    %4247 = vmatprep.subr.mxu0 0.0
    %4248 = vmatpush1.xpose.msra.mxu0 0.0
    %4249 = vmatprep.subr.mxu0 0.0
    %4250 = vmatpush1.xpose.msra.mxu0 0.0
    %4251 = vmatprep.subr.mxu0 0.0
    %4252 = vmatpush1.xpose.msra.mxu0 0.0
    %4253 = vmatprep.subr.mxu0 0.0
    %4254 = vmatpush1.xpose.msra.mxu0 0.0
    %4255 = vmatprep.subr.mxu0 0.0
    %4256 = vmatpush1.xpose.msra.mxu0 0.0
    %4257 = vmatprep.subr.mxu0 0.0
    %4258 = vmatpush1.xpose.msra.mxu0 0.0
    %4259 = vmatprep.subr.mxu0 0.0
    %4260 = vmatpush1.xpose.msra.mxu0 0.0
    %4261 = vmatprep.subr.mxu0 0.0
    %4262 = vmatpush1.xpose.msra.mxu0 0.0
    %4263 = vmatprep.subr.mxu0 0.0
    %4264 = vmatpush1.xpose.msra.mxu0 0.0
    %4265 = vmatprep.subr.mxu0 0.0
    %4266 = vmatpush1.xpose.msra.mxu0 0.0
    %4267 = vmatprep.subr.mxu0 0.0
    %4268 = vmatpush1.xpose.msra.mxu0 0.0
    %4269 = vmatprep.subr.mxu0 0.0
    %4270 = vmatpush1.xpose.msra.mxu0 0.0
    %4271 = vmatprep.subr.mxu0 0.0
    %4272 = vmatpush1.xpose.msra.mxu0 0.0
    %4273 = vmatprep.subr.mxu0 0.0
    %4274 = vmatpush1.xpose.msra.mxu0 0.0
    %4275 = vmatprep.subr.mxu0 0.0
    %4276 = vmatpush1.xpose.msra.mxu0 0.0
    %4277 = vmatprep.subr.mxu0 0.0
    %4278 = vmatpush1.xpose.msra.mxu0 0.0
    %4279 = vmatprep.subr.mxu0 0.0
    %4280 = vmatpush1.xpose.msra.mxu0 0.0
    %4281 = vmatprep.subr.mxu0 0.0
    %4282 = vmatpush1.xpose.msra.mxu0 0.0
    %4283 = vmatprep.subr.mxu0 0.0
    %4284 = vmatpush1.xpose.msra.mxu0 0.0
    %4285 = vmatprep.mubr.f32.mxu0 0.0
    %4286 = vmatmul.mubr.f32.gmra.mrb[0].mxu0 %v4217
    %v4287 = vpop.f32.mrb[0].mxu0
    %v4288 = vadd.f32 %v1958, %v4287
    %v4289 = vpop.f32.mrb[0].mxu0
    %4290 = vdwg.mxu0
    %v4291 = vsel %vm2104, %v4211, -inf
    %4292 = vmax.xlane.f32.xlu0 %v4291
    %v4293 = vpop.xlane.xlu0 %4292
    %v4294 = vsel %vm2104, %v4288, -inf
    %4295 = vmax.xlane.f32.xlu0 %v4294
    %v4296 = vpop.xlane.xlu0 %4295
    %v4297 = vsub.f32 %v4211, %v4293
    %v4298 = vsub.f32 %v4288, %v4296
    %v4299 = vmul.f32 %v4297, 1.442695
    %v4300 = vpow.pop %v4299
    %v4301 = vmul.f32 %v4298, 1.442695
    %v4302 = vpow.pop %v4301
    %v4303 = vsel %vm2104, %v4300, 0.0
    %4304 = vadd.xlane.f32.xlu0 %v4303
    %v4305 = vpop.xlane.xlu0 %4304
    %v4306 = vsel %vm2104, %v4302, 0.0
    %4307 = vadd.xlane.f32.xlu0 %v4306
    %v4308 = vpop.xlane.xlu0 %4307
    %v4309 = vrcp.pop %v4305
    %v4310 = vrcp.pop %v4308
    %v4311 = vmul.f32 %v4300, %v4309
    %v4312 = vmul.f32 %v4302, %v4310
    %4313 = vrot.lane.b32.xlu0 %v4129, 64
    %v4314 = vpop.permute.xlu0 %4313
    %v4317 = vsel %vm2104, %v4311, 0
    %4319 = vmatprep.subr.mxu0 0.0
    %4320 = vmatpush1.msra.mxu0 %v4314
    %4321 = vmatprep.subr.mxu0 0.0
    %4322 = vmatpush1.msra.mxu0 0.0
    %4323 = vmatprep.subr.mxu0 0.0
    %4324 = vmatpush1.msra.mxu0 0.0
    %4325 = vmatprep.subr.mxu0 0.0
    %4326 = vmatpush1.msra.mxu0 0.0
    %4327 = vmatprep.subr.mxu0 0.0
    %4328 = vmatpush1.msra.mxu0 0.0
    %4329 = vmatprep.subr.mxu0 0.0
    %4330 = vmatpush1.msra.mxu0 0.0
    %4331 = vmatprep.subr.mxu0 0.0
    %4332 = vmatpush1.msra.mxu0 0.0
    %4333 = vmatprep.subr.mxu0 0.0
    %4334 = vmatpush1.msra.mxu0 0.0
    %4335 = vmatprep.subr.mxu0 0.0
    %4336 = vmatpush1.msra.mxu0 0.0
    %4337 = vmatprep.subr.mxu0 0.0
    %4338 = vmatpush1.msra.mxu0 0.0
    %4339 = vmatprep.subr.mxu0 0.0
    %4340 = vmatpush1.msra.mxu0 0.0
    %4341 = vmatprep.subr.mxu0 0.0
    %4342 = vmatpush1.msra.mxu0 0.0
    %4343 = vmatprep.subr.mxu0 0.0
    %4344 = vmatpush1.msra.mxu0 0.0
    %4345 = vmatprep.subr.mxu0 0.0
    %4346 = vmatpush1.msra.mxu0 0.0
    %4347 = vmatprep.subr.mxu0 0.0
    %4348 = vmatpush1.msra.mxu0 0.0
    %4349 = vmatprep.subr.mxu0 0.0
    %4350 = vmatpush1.msra.mxu0 0.0
    %4351 = vmatprep.subr.mxu0 0.0
    %4352 = vmatpush1.msra.mxu0 0.0
    %4353 = vmatprep.subr.mxu0 0.0
    %4354 = vmatpush1.msra.mxu0 0.0
    %4355 = vmatprep.subr.mxu0 0.0
    %4356 = vmatpush1.msra.mxu0 0.0
    %4357 = vmatprep.subr.mxu0 0.0
    %4358 = vmatpush1.msra.mxu0 0.0
    %4359 = vmatprep.subr.mxu0 0.0
    %4360 = vmatpush1.msra.mxu0 0.0
    %4361 = vmatprep.subr.mxu0 0.0
    %4362 = vmatpush1.msra.mxu0 0.0
    %4363 = vmatprep.subr.mxu0 0.0
    %4364 = vmatpush1.msra.mxu0 0.0
    %4365 = vmatprep.subr.mxu0 0.0
    %4366 = vmatpush1.msra.mxu0 0.0
    %4367 = vmatprep.subr.mxu0 0.0
    %4368 = vmatpush1.msra.mxu0 0.0
    %4369 = vmatprep.subr.mxu0 0.0
    %4370 = vmatpush1.msra.mxu0 0.0
    %4371 = vmatprep.subr.mxu0 0.0
    %4372 = vmatpush1.msra.mxu0 0.0
    %4373 = vmatprep.subr.mxu0 0.0
    %4374 = vmatpush1.msra.mxu0 0.0
    %4375 = vmatprep.subr.mxu0 0.0
    %4376 = vmatpush1.msra.mxu0 0.0
    %4377 = vmatprep.subr.mxu0 0.0
    %4378 = vmatpush1.msra.mxu0 0.0
    %4379 = vmatprep.subr.mxu0 0.0
    %4380 = vmatpush1.msra.mxu0 0.0
    %4381 = vmatprep.subr.mxu0 0.0
    %4382 = vmatpush1.msra.mxu0 0.0
    %4383 = vmatprep.mubr.f32.mxu0 0.0
    %4384 = vmatmul.mubr.f32.gmra.mrb[0].mxu0 %v4317
    %v4385 = vpop.f32.mrb[0].mxu0
    %v4386 = vadd.f32 0.0, %v4385
    %v4387 = vpop.f32.mrb[0].mxu0
    %4388 = vdwg.mxu0
    %4389 = vrot.lane.b32.xlu0 %v4134, 64
    %v4390 = vpop.permute.xlu0 %4389
    %v4393 = vsel %vm2104, %v4312, 0
    %4395 = vmatprep.subr.mxu0 0.0
    %4396 = vmatpush1.msra.mxu0 %v4390
    %4397 = vmatprep.subr.mxu0 0.0
    %4398 = vmatpush1.msra.mxu0 0.0
    %4399 = vmatprep.subr.mxu0 0.0
    %4400 = vmatpush1.msra.mxu0 0.0
    %4401 = vmatprep.subr.mxu0 0.0
    %4402 = vmatpush1.msra.mxu0 0.0
    %4403 = vmatprep.subr.mxu0 0.0
    %4404 = vmatpush1.msra.mxu0 0.0
    %4405 = vmatprep.subr.mxu0 0.0
    %4406 = vmatpush1.msra.mxu0 0.0
    %4407 = vmatprep.subr.mxu0 0.0
    %4408 = vmatpush1.msra.mxu0 0.0
    %4409 = vmatprep.subr.mxu0 0.0
    %4410 = vmatpush1.msra.mxu0 0.0
    %4411 = vmatprep.subr.mxu0 0.0
    %4412 = vmatpush1.msra.mxu0 0.0
    %4413 = vmatprep.subr.mxu0 0.0
    %4414 = vmatpush1.msra.mxu0 0.0
    %4415 = vmatprep.subr.mxu0 0.0
    %4416 = vmatpush1.msra.mxu0 0.0
    %4417 = vmatprep.subr.mxu0 0.0
    %4418 = vmatpush1.msra.mxu0 0.0
    %4419 = vmatprep.subr.mxu0 0.0
    %4420 = vmatpush1.msra.mxu0 0.0
    %4421 = vmatprep.subr.mxu0 0.0
    %4422 = vmatpush1.msra.mxu0 0.0
    %4423 = vmatprep.subr.mxu0 0.0
    %4424 = vmatpush1.msra.mxu0 0.0
    %4425 = vmatprep.subr.mxu0 0.0
    %4426 = vmatpush1.msra.mxu0 0.0
    %4427 = vmatprep.subr.mxu0 0.0
    %4428 = vmatpush1.msra.mxu0 0.0
    %4429 = vmatprep.subr.mxu0 0.0
    %4430 = vmatpush1.msra.mxu0 0.0
    %4431 = vmatprep.subr.mxu0 0.0
    %4432 = vmatpush1.msra.mxu0 0.0
    %4433 = vmatprep.subr.mxu0 0.0
    %4434 = vmatpush1.msra.mxu0 0.0
    %4435 = vmatprep.subr.mxu0 0.0
    %4436 = vmatpush1.msra.mxu0 0.0
    %4437 = vmatprep.subr.mxu0 0.0
    %4438 = vmatpush1.msra.mxu0 0.0
    %4439 = vmatprep.subr.mxu0 0.0
    %4440 = vmatpush1.msra.mxu0 0.0
    %4441 = vmatprep.subr.mxu0 0.0
    %4442 = vmatpush1.msra.mxu0 0.0
    %4443 = vmatprep.subr.mxu0 0.0
    %4444 = vmatpush1.msra.mxu0 0.0
    %4445 = vmatprep.subr.mxu0 0.0
    %4446 = vmatpush1.msra.mxu0 0.0
    %4447 = vmatprep.subr.mxu0 0.0
    %4448 = vmatpush1.msra.mxu0 0.0
    %4449 = vmatprep.subr.mxu0 0.0
    %4450 = vmatpush1.msra.mxu0 0.0
    %4451 = vmatprep.subr.mxu0 0.0
    %4452 = vmatpush1.msra.mxu0 0.0
    %4453 = vmatprep.subr.mxu0 0.0
    %4454 = vmatpush1.msra.mxu0 0.0
    %4455 = vmatprep.subr.mxu0 0.0
    %4456 = vmatpush1.msra.mxu0 0.0
    %4457 = vmatprep.subr.mxu0 0.0
    %4458 = vmatpush1.msra.mxu0 0.0
    %4459 = vmatprep.mubr.f32.mxu0 0.0
    %4460 = vmatmul.mubr.f32.gmra.mrb[0].mxu0 %v4393
    %v4461 = vpop.f32.mrb[0].mxu0
    %v4462 = vadd.f32 0.0, %v4461
    %v4463 = vpop.f32.mrb[0].mxu0
    %4464 = vdwg.mxu0
    %4465 = vrot.lane.b32.xlu0 %v4129, 120
    %v4466 = vpop.permute.xlu0 %4465
    %4467 = vrot.lane.b32.xlu0 %v4129, 88
    %v4468 = vpop.permute.xlu0 %4467
    %v4469 = vsel %vm2104, %v4466, 0
    %v4471 = vsel %vm2104, %v4468, 0
    %4473 = vmatprep.subr.mxu0 0.0
    %4474 = vmatpush1.xpose.msra.mxu0 %v4471
    %4475 = vmatprep.subr.mxu0 0.0
    %4476 = vmatpush1.xpose.msra.mxu0 0.0
    %4477 = vmatprep.subr.mxu0 0.0
    %4478 = vmatpush1.xpose.msra.mxu0 0.0
    %4479 = vmatprep.subr.mxu0 0.0
    %4480 = vmatpush1.xpose.msra.mxu0 0.0
    %4481 = vmatprep.subr.mxu0 0.0
    %4482 = vmatpush1.xpose.msra.mxu0 0.0
    %4483 = vmatprep.subr.mxu0 0.0
    %4484 = vmatpush1.xpose.msra.mxu0 0.0
    %4485 = vmatprep.subr.mxu0 0.0
    %4486 = vmatpush1.xpose.msra.mxu0 0.0
    %4487 = vmatprep.subr.mxu0 0.0
    %4488 = vmatpush1.xpose.msra.mxu0 0.0
    %4489 = vmatprep.subr.mxu0 0.0
    %4490 = vmatpush1.xpose.msra.mxu0 0.0
    %4491 = vmatprep.subr.mxu0 0.0
    %4492 = vmatpush1.xpose.msra.mxu0 0.0
    %4493 = vmatprep.subr.mxu0 0.0
    %4494 = vmatpush1.xpose.msra.mxu0 0.0
    %4495 = vmatprep.subr.mxu0 0.0
    %4496 = vmatpush1.xpose.msra.mxu0 0.0
    %4497 = vmatprep.subr.mxu0 0.0
    %4498 = vmatpush1.xpose.msra.mxu0 0.0
    %4499 = vmatprep.subr.mxu0 0.0
    %4500 = vmatpush1.xpose.msra.mxu0 0.0
    %4501 = vmatprep.subr.mxu0 0.0
    %4502 = vmatpush1.xpose.msra.mxu0 0.0
    %4503 = vmatprep.subr.mxu0 0.0
    %4504 = vmatpush1.xpose.msra.mxu0 0.0
    %4505 = vmatprep.subr.mxu0 0.0
    %4506 = vmatpush1.xpose.msra.mxu0 0.0
    %4507 = vmatprep.subr.mxu0 0.0
    %4508 = vmatpush1.xpose.msra.mxu0 0.0
    %4509 = vmatprep.subr.mxu0 0.0
    %4510 = vmatpush1.xpose.msra.mxu0 0.0
    %4511 = vmatprep.subr.mxu0 0.0
    %4512 = vmatpush1.xpose.msra.mxu0 0.0
    %4513 = vmatprep.subr.mxu0 0.0
    %4514 = vmatpush1.xpose.msra.mxu0 0.0
    %4515 = vmatprep.subr.mxu0 0.0
    %4516 = vmatpush1.xpose.msra.mxu0 0.0
    %4517 = vmatprep.subr.mxu0 0.0
    %4518 = vmatpush1.xpose.msra.mxu0 0.0
    %4519 = vmatprep.subr.mxu0 0.0
    %4520 = vmatpush1.xpose.msra.mxu0 0.0
    %4521 = vmatprep.subr.mxu0 0.0
    %4522 = vmatpush1.xpose.msra.mxu0 0.0
    %4523 = vmatprep.subr.mxu0 0.0
    %4524 = vmatpush1.xpose.msra.mxu0 0.0
    %4525 = vmatprep.subr.mxu0 0.0
    %4526 = vmatpush1.xpose.msra.mxu0 0.0
    %4527 = vmatprep.subr.mxu0 0.0
    %4528 = vmatpush1.xpose.msra.mxu0 0.0
    %4529 = vmatprep.subr.mxu0 0.0
    %4530 = vmatpush1.xpose.msra.mxu0 0.0
    %4531 = vmatprep.subr.mxu0 0.0
    %4532 = vmatpush1.xpose.msra.mxu0 0.0
    %4533 = vmatprep.subr.mxu0 0.0
    %4534 = vmatpush1.xpose.msra.mxu0 0.0
    %4535 = vmatprep.subr.mxu0 0.0
    %4536 = vmatpush1.xpose.msra.mxu0 0.0
    %4537 = vmatprep.mubr.f32.mxu0 0.0
    %4538 = vmatmul.mubr.f32.gmra.mrb[0].mxu0 %v4469
    %v4539 = vpop.f32.mrb[0].mxu0
    %v4540 = vadd.f32 %v1958, %v4539
    %v4541 = vpop.f32.mrb[0].mxu0
    %4542 = vdwg.mxu0
    %4543 = vrot.lane.b32.xlu0 %v4134, 120
    %v4544 = vpop.permute.xlu0 %4543
    %4545 = vrot.lane.b32.xlu0 %v4134, 88
    %v4546 = vpop.permute.xlu0 %4545
    %v4547 = vsel %vm2104, %v4544, 0
    %v4549 = vsel %vm2104, %v4546, 0
    %4551 = vmatprep.subr.mxu0 0.0
    %4552 = vmatpush1.xpose.msra.mxu0 %v4549
    %4553 = vmatprep.subr.mxu0 0.0
    %4554 = vmatpush1.xpose.msra.mxu0 0.0
    %4555 = vmatprep.subr.mxu0 0.0
    %4556 = vmatpush1.xpose.msra.mxu0 0.0
    %4557 = vmatprep.subr.mxu0 0.0
    %4558 = vmatpush1.xpose.msra.mxu0 0.0
    %4559 = vmatprep.subr.mxu0 0.0
    %4560 = vmatpush1.xpose.msra.mxu0 0.0
    %4561 = vmatprep.subr.mxu0 0.0
    %4562 = vmatpush1.xpose.msra.mxu0 0.0
    %4563 = vmatprep.subr.mxu0 0.0
    %4564 = vmatpush1.xpose.msra.mxu0 0.0
    %4565 = vmatprep.subr.mxu0 0.0
    %4566 = vmatpush1.xpose.msra.mxu0 0.0
    %4567 = vmatprep.subr.mxu0 0.0
    %4568 = vmatpush1.xpose.msra.mxu0 0.0
    %4569 = vmatprep.subr.mxu0 0.0
    %4570 = vmatpush1.xpose.msra.mxu0 0.0
    %4571 = vmatprep.subr.mxu0 0.0
    %4572 = vmatpush1.xpose.msra.mxu0 0.0
    %4573 = vmatprep.subr.mxu0 0.0
    %4574 = vmatpush1.xpose.msra.mxu0 0.0
    %4575 = vmatprep.subr.mxu0 0.0
    %4576 = vmatpush1.xpose.msra.mxu0 0.0
    %4577 = vmatprep.subr.mxu0 0.0
    %4578 = vmatpush1.xpose.msra.mxu0 0.0
    %4579 = vmatprep.subr.mxu0 0.0
    %4580 = vmatpush1.xpose.msra.mxu0 0.0
    %4581 = vmatprep.subr.mxu0 0.0
    %4582 = vmatpush1.xpose.msra.mxu0 0.0
    %4583 = vmatprep.subr.mxu0 0.0
    %4584 = vmatpush1.xpose.msra.mxu0 0.0
    %4585 = vmatprep.subr.mxu0 0.0
    %4586 = vmatpush1.xpose.msra.mxu0 0.0
    %4587 = vmatprep.subr.mxu0 0.0
    %4588 = vmatpush1.xpose.msra.mxu0 0.0
    %4589 = vmatprep.subr.mxu0 0.0
    %4590 = vmatpush1.xpose.msra.mxu0 0.0
    %4591 = vmatprep.subr.mxu0 0.0
    %4592 = vmatpush1.xpose.msra.mxu0 0.0
    %4593 = vmatprep.subr.mxu0 0.0
    %4594 = vmatpush1.xpose.msra.mxu0 0.0
    %4595 = vmatprep.subr.mxu0 0.0
    %4596 = vmatpush1.xpose.msra.mxu0 0.0
    %4597 = vmatprep.subr.mxu0 0.0
    %4598 = vmatpush1.xpose.msra.mxu0 0.0
    %4599 = vmatprep.subr.mxu0 0.0
    %4600 = vmatpush1.xpose.msra.mxu0 0.0
    %4601 = vmatprep.subr.mxu0 0.0
    %4602 = vmatpush1.xpose.msra.mxu0 0.0
    %4603 = vmatprep.subr.mxu0 0.0
    %4604 = vmatpush1.xpose.msra.mxu0 0.0
    %4605 = vmatprep.subr.mxu0 0.0
    %4606 = vmatpush1.xpose.msra.mxu0 0.0
    %4607 = vmatprep.subr.mxu0 0.0
    %4608 = vmatpush1.xpose.msra.mxu0 0.0
    %4609 = vmatprep.subr.mxu0 0.0
    %4610 = vmatpush1.xpose.msra.mxu0 0.0
    %4611 = vmatprep.subr.mxu0 0.0
    %4612 = vmatpush1.xpose.msra.mxu0 0.0
    %4613 = vmatprep.subr.mxu0 0.0
    %4614 = vmatpush1.xpose.msra.mxu0 0.0
    %4615 = vmatprep.mubr.f32.mxu0 0.0
    %4616 = vmatmul.mubr.f32.gmra.mrb[0].mxu0 %v4547
    %v4617 = vpop.f32.mrb[0].mxu0
    %v4618 = vadd.f32 %v1958, %v4617
    %v4619 = vpop.f32.mrb[0].mxu0
    %4620 = vdwg.mxu0
    %v4621 = vsel %vm2104, %v4540, -inf
    %4622 = vmax.xlane.f32.xlu0 %v4621
    %v4623 = vpop.xlane.xlu0 %4622
    %v4624 = vsel %vm2104, %v4618, -inf
    %4625 = vmax.xlane.f32.xlu0 %v4624
    %v4626 = vpop.xlane.xlu0 %4625
    %v4627 = vsub.f32 %v4540, %v4623
    %v4628 = vsub.f32 %v4618, %v4626
    %v4629 = vmul.f32 %v4627, 1.442695
    %v4630 = vpow.pop %v4629
    %v4631 = vmul.f32 %v4628, 1.442695
    %v4632 = vpow.pop %v4631
    %v4633 = vsel %vm2104, %v4630, 0.0
    %4634 = vadd.xlane.f32.xlu0 %v4633
    %v4635 = vpop.xlane.xlu0 %4634
    %v4636 = vsel %vm2104, %v4632, 0.0
    %4637 = vadd.xlane.f32.xlu0 %v4636
    %v4638 = vpop.xlane.xlu0 %4637
    %v4639 = vrcp.pop %v4635
    %v4640 = vrcp.pop %v4638
    %v4641 = vmul.f32 %v4630, %v4639
    %v4642 = vmul.f32 %v4632, %v4640
    %4643 = vrot.lane.b32.xlu0 %v4129, 56
    %v4644 = vpop.permute.xlu0 %4643
    %v4647 = vsel %vm2104, %v4641, 0
    %4649 = vmatprep.subr.mxu0 0.0
    %4650 = vmatpush1.msra.mxu0 %v4644
    %4651 = vmatprep.subr.mxu0 0.0
    %4652 = vmatpush1.msra.mxu0 0.0
    %4653 = vmatprep.subr.mxu0 0.0
    %4654 = vmatpush1.msra.mxu0 0.0
    %4655 = vmatprep.subr.mxu0 0.0
    %4656 = vmatpush1.msra.mxu0 0.0
    %4657 = vmatprep.subr.mxu0 0.0
    %4658 = vmatpush1.msra.mxu0 0.0
    %4659 = vmatprep.subr.mxu0 0.0
    %4660 = vmatpush1.msra.mxu0 0.0
    %4661 = vmatprep.subr.mxu0 0.0
    %4662 = vmatpush1.msra.mxu0 0.0
    %4663 = vmatprep.subr.mxu0 0.0
    %4664 = vmatpush1.msra.mxu0 0.0
    %4665 = vmatprep.subr.mxu0 0.0
    %4666 = vmatpush1.msra.mxu0 0.0
    %4667 = vmatprep.subr.mxu0 0.0
    %4668 = vmatpush1.msra.mxu0 0.0
    %4669 = vmatprep.subr.mxu0 0.0
    %4670 = vmatpush1.msra.mxu0 0.0
    %4671 = vmatprep.subr.mxu0 0.0
    %4672 = vmatpush1.msra.mxu0 0.0
    %4673 = vmatprep.subr.mxu0 0.0
    %4674 = vmatpush1.msra.mxu0 0.0
    %4675 = vmatprep.subr.mxu0 0.0
    %4676 = vmatpush1.msra.mxu0 0.0
    %4677 = vmatprep.subr.mxu0 0.0
    %4678 = vmatpush1.msra.mxu0 0.0
    %4679 = vmatprep.subr.mxu0 0.0
    %4680 = vmatpush1.msra.mxu0 0.0
    %4681 = vmatprep.subr.mxu0 0.0
    %4682 = vmatpush1.msra.mxu0 0.0
    %4683 = vmatprep.subr.mxu0 0.0
    %4684 = vmatpush1.msra.mxu0 0.0
    %4685 = vmatprep.subr.mxu0 0.0
    %4686 = vmatpush1.msra.mxu0 0.0
    %4687 = vmatprep.subr.mxu0 0.0
    %4688 = vmatpush1.msra.mxu0 0.0
    %4689 = vmatprep.subr.mxu0 0.0
    %4690 = vmatpush1.msra.mxu0 0.0
    %4691 = vmatprep.subr.mxu0 0.0
    %4692 = vmatpush1.msra.mxu0 0.0
    %4693 = vmatprep.subr.mxu0 0.0
    %4694 = vmatpush1.msra.mxu0 0.0
    %4695 = vmatprep.subr.mxu0 0.0
    %4696 = vmatpush1.msra.mxu0 0.0
    %4697 = vmatprep.subr.mxu0 0.0
    %4698 = vmatpush1.msra.mxu0 0.0
    %4699 = vmatprep.subr.mxu0 0.0
    %4700 = vmatpush1.msra.mxu0 0.0
    %4701 = vmatprep.subr.mxu0 0.0
    %4702 = vmatpush1.msra.mxu0 0.0
    %4703 = vmatprep.subr.mxu0 0.0
    %4704 = vmatpush1.msra.mxu0 0.0
    %4705 = vmatprep.subr.mxu0 0.0
    %4706 = vmatpush1.msra.mxu0 0.0
    %4707 = vmatprep.subr.mxu0 0.0
    %4708 = vmatpush1.msra.mxu0 0.0
    %4709 = vmatprep.subr.mxu0 0.0
    %4710 = vmatpush1.msra.mxu0 0.0
    %4711 = vmatprep.subr.mxu0 0.0
    %4712 = vmatpush1.msra.mxu0 0.0
    %4713 = vmatprep.mubr.f32.mxu0 0.0
    %4714 = vmatmul.mubr.f32.gmra.mrb[0].mxu0 %v4647
    %v4715 = vpop.f32.mrb[0].mxu0
    %v4716 = vadd.f32 0.0, %v4715
    %v4717 = vpop.f32.mrb[0].mxu0
    %4718 = vdwg.mxu0
    %4719 = vrot.lane.b32.xlu0 %v4134, 56
    %v4720 = vpop.permute.xlu0 %4719
    %v4723 = vsel %vm2104, %v4642, 0
    %4725 = vmatprep.subr.mxu0 0.0
    %4726 = vmatpush1.msra.mxu0 %v4720
    %4727 = vmatprep.subr.mxu0 0.0
    %4728 = vmatpush1.msra.mxu0 0.0
    %4729 = vmatprep.subr.mxu0 0.0
    %4730 = vmatpush1.msra.mxu0 0.0
    %4731 = vmatprep.subr.mxu0 0.0
    %4732 = vmatpush1.msra.mxu0 0.0
    %4733 = vmatprep.subr.mxu0 0.0
    %4734 = vmatpush1.msra.mxu0 0.0
    %4735 = vmatprep.subr.mxu0 0.0
    %4736 = vmatpush1.msra.mxu0 0.0
    %4737 = vmatprep.subr.mxu0 0.0
    %4738 = vmatpush1.msra.mxu0 0.0
    %4739 = vmatprep.subr.mxu0 0.0
    %4740 = vmatpush1.msra.mxu0 0.0
    %4741 = vmatprep.subr.mxu0 0.0
    %4742 = vmatpush1.msra.mxu0 0.0
    %4743 = vmatprep.subr.mxu0 0.0
    %4744 = vmatpush1.msra.mxu0 0.0
    %4745 = vmatprep.subr.mxu0 0.0
    %4746 = vmatpush1.msra.mxu0 0.0
    %4747 = vmatprep.subr.mxu0 0.0
    %4748 = vmatpush1.msra.mxu0 0.0
    %4749 = vmatprep.subr.mxu0 0.0
    %4750 = vmatpush1.msra.mxu0 0.0
    %4751 = vmatprep.subr.mxu0 0.0
    %4752 = vmatpush1.msra.mxu0 0.0
    %4753 = vmatprep.subr.mxu0 0.0
    %4754 = vmatpush1.msra.mxu0 0.0
    %4755 = vmatprep.subr.mxu0 0.0
    %4756 = vmatpush1.msra.mxu0 0.0
    %4757 = vmatprep.subr.mxu0 0.0
    %4758 = vmatpush1.msra.mxu0 0.0
    %4759 = vmatprep.subr.mxu0 0.0
    %4760 = vmatpush1.msra.mxu0 0.0
    %4761 = vmatprep.subr.mxu0 0.0
    %4762 = vmatpush1.msra.mxu0 0.0
    %4763 = vmatprep.subr.mxu0 0.0
    %4764 = vmatpush1.msra.mxu0 0.0
    %4765 = vmatprep.subr.mxu0 0.0
    %4766 = vmatpush1.msra.mxu0 0.0
    %4767 = vmatprep.subr.mxu0 0.0
    %4768 = vmatpush1.msra.mxu0 0.0
    %4769 = vmatprep.subr.mxu0 0.0
    %4770 = vmatpush1.msra.mxu0 0.0
    %4771 = vmatprep.subr.mxu0 0.0
    %4772 = vmatpush1.msra.mxu0 0.0
    %4773 = vmatprep.subr.mxu0 0.0
    %4774 = vmatpush1.msra.mxu0 0.0
    %4775 = vmatprep.subr.mxu0 0.0
    %4776 = vmatpush1.msra.mxu0 0.0
    %4777 = vmatprep.subr.mxu0 0.0
    %4778 = vmatpush1.msra.mxu0 0.0
    %4779 = vmatprep.subr.mxu0 0.0
    %4780 = vmatpush1.msra.mxu0 0.0
    %4781 = vmatprep.subr.mxu0 0.0
    %4782 = vmatpush1.msra.mxu0 0.0
    %4783 = vmatprep.subr.mxu0 0.0
    %4784 = vmatpush1.msra.mxu0 0.0
    %4785 = vmatprep.subr.mxu0 0.0
    %4786 = vmatpush1.msra.mxu0 0.0
    %4787 = vmatprep.subr.mxu0 0.0
    %4788 = vmatpush1.msra.mxu0 0.0
    %4789 = vmatprep.mubr.f32.mxu0 0.0
    %4790 = vmatmul.mubr.f32.gmra.mrb[0].mxu0 %v4723
    %v4791 = vpop.f32.mrb[0].mxu0
    %v4792 = vadd.f32 0.0, %v4791
    %v4793 = vpop.f32.mrb[0].mxu0
    %4794 = vdwg.mxu0
    %4796 = vrot.lane.b32.xlu0 %v3997, 32
    %v4797 = vpop.permute.xlu0 %4796
    %v4800 = vsel %vm2104, %v4716, 0
    %v4803 = vsel %vm2104, %v4792, 0
    %4805 = vmatprep.subr.mxu0 0.0
    %4806 = vmatpush1.msra.mxu0 %v4797
    %4807 = vmatprep.subr.mxu0 0.0
    %4808 = vmatpush1.msra.mxu0 0.0
    %4809 = vmatprep.subr.mxu0 0.0
    %4810 = vmatpush1.msra.mxu0 0.0
    %4811 = vmatprep.subr.mxu0 0.0
    %4812 = vmatpush1.msra.mxu0 0.0
    %4813 = vmatprep.subr.mxu0 0.0
    %4814 = vmatpush1.msra.mxu0 0.0
    %4815 = vmatprep.subr.mxu0 0.0
    %4816 = vmatpush1.msra.mxu0 0.0
    %4817 = vmatprep.subr.mxu0 0.0
    %4818 = vmatpush1.msra.mxu0 0.0
    %4819 = vmatprep.subr.mxu0 0.0
    %4820 = vmatpush1.msra.mxu0 0.0
    %4821 = vmatprep.subr.mxu0 0.0
    %4822 = vmatpush1.msra.mxu0 0.0
    %4823 = vmatprep.subr.mxu0 0.0
    %4824 = vmatpush1.msra.mxu0 0.0
    %4825 = vmatprep.subr.mxu0 0.0
    %4826 = vmatpush1.msra.mxu0 0.0
    %4827 = vmatprep.subr.mxu0 0.0
    %4828 = vmatpush1.msra.mxu0 0.0
    %4829 = vmatprep.subr.mxu0 0.0
    %4830 = vmatpush1.msra.mxu0 0.0
    %4831 = vmatprep.subr.mxu0 0.0
    %4832 = vmatpush1.msra.mxu0 0.0
    %4833 = vmatprep.subr.mxu0 0.0
    %4834 = vmatpush1.msra.mxu0 0.0
    %4835 = vmatprep.subr.mxu0 0.0
    %4836 = vmatpush1.msra.mxu0 0.0
    %4837 = vmatprep.subr.mxu0 0.0
    %4838 = vmatpush1.msra.mxu0 0.0
    %4839 = vmatprep.subr.mxu0 0.0
    %4840 = vmatpush1.msra.mxu0 0.0
    %4841 = vmatprep.subr.mxu0 0.0
    %4842 = vmatpush1.msra.mxu0 0.0
    %4843 = vmatprep.subr.mxu0 0.0
    %4844 = vmatpush1.msra.mxu0 0.0
    %4845 = vmatprep.subr.mxu0 0.0
    %4846 = vmatpush1.msra.mxu0 0.0
    %4847 = vmatprep.subr.mxu0 0.0
    %4848 = vmatpush1.msra.mxu0 0.0
    %4849 = vmatprep.subr.mxu0 0.0
    %4850 = vmatpush1.msra.mxu0 0.0
    %4851 = vmatprep.subr.mxu0 0.0
    %4852 = vmatpush1.msra.mxu0 0.0
    %4853 = vmatprep.subr.mxu0 0.0
    %4854 = vmatpush1.msra.mxu0 0.0
    %4855 = vmatprep.subr.mxu0 0.0
    %4856 = vmatpush1.msra.mxu0 0.0
    %4857 = vmatprep.subr.mxu0 0.0
    %4858 = vmatpush1.msra.mxu0 0.0
    %4859 = vmatprep.subr.mxu0 0.0
    %4860 = vmatpush1.msra.mxu0 0.0
    %4861 = vmatprep.subr.mxu0 0.0
    %4862 = vmatpush1.msra.mxu0 0.0
    %4863 = vmatprep.subr.mxu0 0.0
    %4864 = vmatpush1.msra.mxu0 0.0
    %4865 = vmatprep.subr.mxu0 0.0
    %4866 = vmatpush1.msra.mxu0 0.0
    %4867 = vmatprep.subr.mxu0 0.0
    %4868 = vmatpush1.msra.mxu0 0.0
    %4869 = vmatprep.mubr.f32.mxu0 0.0
    %4870 = vmatmul.mubr.f32.gmra.mrb[0].mxu0 %v4800
    %v4871 = vpop.f32.mrb[0].mxu0
    %v4872 = vadd.f32 0.0, %v4871
    %v4873 = vpop.f32.mrb[0].mxu0
    %4874 = vmatprep.mubr.f32.mxu0 0.0
    %4875 = vmatmul.mubr.f32.gmra.mrb[0].mxu0 %v4803
    %v4876 = vpop.f32.mrb[0].mxu0
    %v4877 = vadd.f32 0.0, %v4876
    %v4878 = vpop.f32.mrb[0].mxu0
    %4879 = vdwg.mxu0
    %4881 = vrot.lane.b32.xlu0 %v3995, 32
    %v4882 = vpop.permute.xlu0 %4881
    %v4885 = vsel %vm2104, %v4386, 0
    %v4888 = vsel %vm2104, %v4462, 0
    %4890 = vmatprep.subr.mxu0 0.0
    %4891 = vmatpush1.msra.mxu0 %v4882
    %4892 = vmatprep.subr.mxu0 0.0
    %4893 = vmatpush1.msra.mxu0 0.0
    %4894 = vmatprep.subr.mxu0 0.0
    %4895 = vmatpush1.msra.mxu0 0.0
    %4896 = vmatprep.subr.mxu0 0.0
    %4897 = vmatpush1.msra.mxu0 0.0
    %4898 = vmatprep.subr.mxu0 0.0
    %4899 = vmatpush1.msra.mxu0 0.0
    %4900 = vmatprep.subr.mxu0 0.0
    %4901 = vmatpush1.msra.mxu0 0.0
    %4902 = vmatprep.subr.mxu0 0.0
    %4903 = vmatpush1.msra.mxu0 0.0
    %4904 = vmatprep.subr.mxu0 0.0
    %4905 = vmatpush1.msra.mxu0 0.0
    %4906 = vmatprep.subr.mxu0 0.0
    %4907 = vmatpush1.msra.mxu0 0.0
    %4908 = vmatprep.subr.mxu0 0.0
    %4909 = vmatpush1.msra.mxu0 0.0
    %4910 = vmatprep.subr.mxu0 0.0
    %4911 = vmatpush1.msra.mxu0 0.0
    %4912 = vmatprep.subr.mxu0 0.0
    %4913 = vmatpush1.msra.mxu0 0.0
    %4914 = vmatprep.subr.mxu0 0.0
    %4915 = vmatpush1.msra.mxu0 0.0
    %4916 = vmatprep.subr.mxu0 0.0
    %4917 = vmatpush1.msra.mxu0 0.0
    %4918 = vmatprep.subr.mxu0 0.0
    %4919 = vmatpush1.msra.mxu0 0.0
    %4920 = vmatprep.subr.mxu0 0.0
    %4921 = vmatpush1.msra.mxu0 0.0
    %4922 = vmatprep.subr.mxu0 0.0
    %4923 = vmatpush1.msra.mxu0 0.0
    %4924 = vmatprep.subr.mxu0 0.0
    %4925 = vmatpush1.msra.mxu0 0.0
    %4926 = vmatprep.subr.mxu0 0.0
    %4927 = vmatpush1.msra.mxu0 0.0
    %4928 = vmatprep.subr.mxu0 0.0
    %4929 = vmatpush1.msra.mxu0 0.0
    %4930 = vmatprep.subr.mxu0 0.0
    %4931 = vmatpush1.msra.mxu0 0.0
    %4932 = vmatprep.subr.mxu0 0.0
    %4933 = vmatpush1.msra.mxu0 0.0
    %4934 = vmatprep.subr.mxu0 0.0
    %4935 = vmatpush1.msra.mxu0 0.0
    %4936 = vmatprep.subr.mxu0 0.0
    %4937 = vmatpush1.msra.mxu0 0.0
    %4938 = vmatprep.subr.mxu0 0.0
    %4939 = vmatpush1.msra.mxu0 0.0
    %4940 = vmatprep.subr.mxu0 0.0
    %4941 = vmatpush1.msra.mxu0 0.0
    %4942 = vmatprep.subr.mxu0 0.0
    %4943 = vmatpush1.msra.mxu0 0.0
    %4944 = vmatprep.subr.mxu0 0.0
    %4945 = vmatpush1.msra.mxu0 0.0
    %4946 = vmatprep.subr.mxu0 0.0
    %4947 = vmatpush1.msra.mxu0 0.0
    %4948 = vmatprep.subr.mxu0 0.0
    %4949 = vmatpush1.msra.mxu0 0.0
    %4950 = vmatprep.subr.mxu0 0.0
    %4951 = vmatpush1.msra.mxu0 0.0
    %4952 = vmatprep.subr.mxu0 0.0
    %4953 = vmatpush1.msra.mxu0 0.0
    %4954 = vmatprep.mubr.f32.mxu0 0.0
    %4955 = vmatmul.mubr.f32.gmra.mrb[0].mxu0 %v4885
    %v4956 = vpop.f32.mrb[0].mxu0
    %v4957 = vadd.f32 %v4872, %v4956
    %v4958 = vpop.f32.mrb[0].mxu0
    %4959 = vmatprep.mubr.f32.mxu0 0.0
    %4960 = vmatmul.mubr.f32.gmra.mrb[0].mxu0 %v4888
    %v4961 = vpop.f32.mrb[0].mxu0
    %v4962 = vadd.f32 %v4877, %v4961
    %v4963 = vpop.f32.mrb[0].mxu0
    %4964 = vdwg.mxu0
    %4965 = vrot.lane.b32.xlu0 %v4129, 112
    %v4966 = vpop.permute.xlu0 %4965
    %4967 = vrot.lane.b32.xlu0 %v4129, 80
    %v4968 = vpop.permute.xlu0 %4967
    %v4969 = vsel %vm2104, %v4966, 0
    %v4971 = vsel %vm2104, %v4968, 0
    %4973 = vmatprep.subr.mxu0 0.0
    %4974 = vmatpush1.xpose.msra.mxu0 %v4971
    %4975 = vmatprep.subr.mxu0 0.0
    %4976 = vmatpush1.xpose.msra.mxu0 0.0
    %4977 = vmatprep.subr.mxu0 0.0
    %4978 = vmatpush1.xpose.msra.mxu0 0.0
    %4979 = vmatprep.subr.mxu0 0.0
    %4980 = vmatpush1.xpose.msra.mxu0 0.0
    %4981 = vmatprep.subr.mxu0 0.0
    %4982 = vmatpush1.xpose.msra.mxu0 0.0
    %4983 = vmatprep.subr.mxu0 0.0
    %4984 = vmatpush1.xpose.msra.mxu0 0.0
    %4985 = vmatprep.subr.mxu0 0.0
    %4986 = vmatpush1.xpose.msra.mxu0 0.0
    %4987 = vmatprep.subr.mxu0 0.0
    %4988 = vmatpush1.xpose.msra.mxu0 0.0
    %4989 = vmatprep.subr.mxu0 0.0
    %4990 = vmatpush1.xpose.msra.mxu0 0.0
    %4991 = vmatprep.subr.mxu0 0.0
    %4992 = vmatpush1.xpose.msra.mxu0 0.0
    %4993 = vmatprep.subr.mxu0 0.0
    %4994 = vmatpush1.xpose.msra.mxu0 0.0
    %4995 = vmatprep.subr.mxu0 0.0
    %4996 = vmatpush1.xpose.msra.mxu0 0.0
    %4997 = vmatprep.subr.mxu0 0.0
    %4998 = vmatpush1.xpose.msra.mxu0 0.0
    %4999 = vmatprep.subr.mxu0 0.0
    %5000 = vmatpush1.xpose.msra.mxu0 0.0
    %5001 = vmatprep.subr.mxu0 0.0
    %5002 = vmatpush1.xpose.msra.mxu0 0.0
    %5003 = vmatprep.subr.mxu0 0.0
    %5004 = vmatpush1.xpose.msra.mxu0 0.0
    %5005 = vmatprep.subr.mxu0 0.0
    %5006 = vmatpush1.xpose.msra.mxu0 0.0
    %5007 = vmatprep.subr.mxu0 0.0
    %5008 = vmatpush1.xpose.msra.mxu0 0.0
    %5009 = vmatprep.subr.mxu0 0.0
    %5010 = vmatpush1.xpose.msra.mxu0 0.0
    %5011 = vmatprep.subr.mxu0 0.0
    %5012 = vmatpush1.xpose.msra.mxu0 0.0
    %5013 = vmatprep.subr.mxu0 0.0
    %5014 = vmatpush1.xpose.msra.mxu0 0.0
    %5015 = vmatprep.subr.mxu0 0.0
    %5016 = vmatpush1.xpose.msra.mxu0 0.0
    %5017 = vmatprep.subr.mxu0 0.0
    %5018 = vmatpush1.xpose.msra.mxu0 0.0
    %5019 = vmatprep.subr.mxu0 0.0
    %5020 = vmatpush1.xpose.msra.mxu0 0.0
    %5021 = vmatprep.subr.mxu0 0.0
    %5022 = vmatpush1.xpose.msra.mxu0 0.0
    %5023 = vmatprep.subr.mxu0 0.0
    %5024 = vmatpush1.xpose.msra.mxu0 0.0
    %5025 = vmatprep.subr.mxu0 0.0
    %5026 = vmatpush1.xpose.msra.mxu0 0.0
    %5027 = vmatprep.subr.mxu0 0.0
    %5028 = vmatpush1.xpose.msra.mxu0 0.0
    %5029 = vmatprep.subr.mxu0 0.0
    %5030 = vmatpush1.xpose.msra.mxu0 0.0
    %5031 = vmatprep.subr.mxu0 0.0
    %5032 = vmatpush1.xpose.msra.mxu0 0.0
    %5033 = vmatprep.subr.mxu0 0.0
    %5034 = vmatpush1.xpose.msra.mxu0 0.0
    %5035 = vmatprep.subr.mxu0 0.0
    %5036 = vmatpush1.xpose.msra.mxu0 0.0
    %5037 = vmatprep.mubr.f32.mxu0 0.0
    %5038 = vmatmul.mubr.f32.gmra.mrb[0].mxu0 %v4969
    %v5039 = vpop.f32.mrb[0].mxu0
    %v5040 = vadd.f32 %v1958, %v5039
    %v5041 = vpop.f32.mrb[0].mxu0
    %5042 = vdwg.mxu0
    %5043 = vrot.lane.b32.xlu0 %v4134, 112
    %v5044 = vpop.permute.xlu0 %5043
    %5045 = vrot.lane.b32.xlu0 %v4134, 80
    %v5046 = vpop.permute.xlu0 %5045
    %v5047 = vsel %vm2104, %v5044, 0
    %v5049 = vsel %vm2104, %v5046, 0
    %5051 = vmatprep.subr.mxu0 0.0
    %5052 = vmatpush1.xpose.msra.mxu0 %v5049
    %5053 = vmatprep.subr.mxu0 0.0
    %5054 = vmatpush1.xpose.msra.mxu0 0.0
    %5055 = vmatprep.subr.mxu0 0.0
    %5056 = vmatpush1.xpose.msra.mxu0 0.0
    %5057 = vmatprep.subr.mxu0 0.0
    %5058 = vmatpush1.xpose.msra.mxu0 0.0
    %5059 = vmatprep.subr.mxu0 0.0
    %5060 = vmatpush1.xpose.msra.mxu0 0.0
    %5061 = vmatprep.subr.mxu0 0.0
    %5062 = vmatpush1.xpose.msra.mxu0 0.0
    %5063 = vmatprep.subr.mxu0 0.0
    %5064 = vmatpush1.xpose.msra.mxu0 0.0
    %5065 = vmatprep.subr.mxu0 0.0
    %5066 = vmatpush1.xpose.msra.mxu0 0.0
    %5067 = vmatprep.subr.mxu0 0.0
    %5068 = vmatpush1.xpose.msra.mxu0 0.0
    %5069 = vmatprep.subr.mxu0 0.0
    %5070 = vmatpush1.xpose.msra.mxu0 0.0
    %5071 = vmatprep.subr.mxu0 0.0
    %5072 = vmatpush1.xpose.msra.mxu0 0.0
    %5073 = vmatprep.subr.mxu0 0.0
    %5074 = vmatpush1.xpose.msra.mxu0 0.0
    %5075 = vmatprep.subr.mxu0 0.0
    %5076 = vmatpush1.xpose.msra.mxu0 0.0
    %5077 = vmatprep.subr.mxu0 0.0
    %5078 = vmatpush1.xpose.msra.mxu0 0.0
    %5079 = vmatprep.subr.mxu0 0.0
    %5080 = vmatpush1.xpose.msra.mxu0 0.0
    %5081 = vmatprep.subr.mxu0 0.0
    %5082 = vmatpush1.xpose.msra.mxu0 0.0
    %5083 = vmatprep.subr.mxu0 0.0
    %5084 = vmatpush1.xpose.msra.mxu0 0.0
    %5085 = vmatprep.subr.mxu0 0.0
    %5086 = vmatpush1.xpose.msra.mxu0 0.0
    %5087 = vmatprep.subr.mxu0 0.0
    %5088 = vmatpush1.xpose.msra.mxu0 0.0
    %5089 = vmatprep.subr.mxu0 0.0
    %5090 = vmatpush1.xpose.msra.mxu0 0.0
    %5091 = vmatprep.subr.mxu0 0.0
    %5092 = vmatpush1.xpose.msra.mxu0 0.0
    %5093 = vmatprep.subr.mxu0 0.0
    %5094 = vmatpush1.xpose.msra.mxu0 0.0
    %5095 = vmatprep.subr.mxu0 0.0
    %5096 = vmatpush1.xpose.msra.mxu0 0.0
    %5097 = vmatprep.subr.mxu0 0.0
    %5098 = vmatpush1.xpose.msra.mxu0 0.0
    %5099 = vmatprep.subr.mxu0 0.0
    %5100 = vmatpush1.xpose.msra.mxu0 0.0
    %5101 = vmatprep.subr.mxu0 0.0
    %5102 = vmatpush1.xpose.msra.mxu0 0.0
    %5103 = vmatprep.subr.mxu0 0.0
    %5104 = vmatpush1.xpose.msra.mxu0 0.0
    %5105 = vmatprep.subr.mxu0 0.0
    %5106 = vmatpush1.xpose.msra.mxu0 0.0
    %5107 = vmatprep.subr.mxu0 0.0
    %5108 = vmatpush1.xpose.msra.mxu0 0.0
    %5109 = vmatprep.subr.mxu0 0.0
    %5110 = vmatpush1.xpose.msra.mxu0 0.0
    %5111 = vmatprep.subr.mxu0 0.0
    %5112 = vmatpush1.xpose.msra.mxu0 0.0
    %5113 = vmatprep.subr.mxu0 0.0
    %5114 = vmatpush1.xpose.msra.mxu0 0.0
    %5115 = vmatprep.mubr.f32.mxu0 0.0
    %5116 = vmatmul.mubr.f32.gmra.mrb[0].mxu0 %v5047
    %v5117 = vpop.f32.mrb[0].mxu0
    %v5118 = vadd.f32 %v1958, %v5117
    %v5119 = vpop.f32.mrb[0].mxu0
    %5120 = vdwg.mxu0
    %v5121 = vsel %vm2104, %v5040, -inf
    %5122 = vmax.xlane.f32.xlu0 %v5121
    %v5123 = vpop.xlane.xlu0 %5122
    %v5124 = vsel %vm2104, %v5118, -inf
    %5125 = vmax.xlane.f32.xlu0 %v5124
    %v5126 = vpop.xlane.xlu0 %5125
    %v5127 = vsub.f32 %v5040, %v5123
    %v5128 = vsub.f32 %v5118, %v5126
    %v5129 = vmul.f32 %v5127, 1.442695
    %v5130 = vpow.pop %v5129
    %v5131 = vmul.f32 %v5128, 1.442695
    %v5132 = vpow.pop %v5131
    %v5133 = vsel %vm2104, %v5130, 0.0
    %5134 = vadd.xlane.f32.xlu0 %v5133
    %v5135 = vpop.xlane.xlu0 %5134
    %v5136 = vsel %vm2104, %v5132, 0.0
    %5137 = vadd.xlane.f32.xlu0 %v5136
    %v5138 = vpop.xlane.xlu0 %5137
    %v5139 = vrcp.pop %v5135
    %v5140 = vrcp.pop %v5138
    %v5141 = vmul.f32 %v5130, %v5139
    %v5142 = vmul.f32 %v5132, %v5140
    %5143 = vrot.lane.b32.xlu0 %v4129, 48
    %v5144 = vpop.permute.xlu0 %5143
    %v5147 = vsel %vm2104, %v5141, 0
    %5149 = vmatprep.subr.mxu0 0.0
    %5150 = vmatpush1.msra.mxu0 %v5144
    %5151 = vmatprep.subr.mxu0 0.0
    %5152 = vmatpush1.msra.mxu0 0.0
    %5153 = vmatprep.subr.mxu0 0.0
    %5154 = vmatpush1.msra.mxu0 0.0
    %5155 = vmatprep.subr.mxu0 0.0
    %5156 = vmatpush1.msra.mxu0 0.0
    %5157 = vmatprep.subr.mxu0 0.0
    %5158 = vmatpush1.msra.mxu0 0.0
    %5159 = vmatprep.subr.mxu0 0.0
    %5160 = vmatpush1.msra.mxu0 0.0
    %5161 = vmatprep.subr.mxu0 0.0
    %5162 = vmatpush1.msra.mxu0 0.0
    %5163 = vmatprep.subr.mxu0 0.0
    %5164 = vmatpush1.msra.mxu0 0.0
    %5165 = vmatprep.subr.mxu0 0.0
    %5166 = vmatpush1.msra.mxu0 0.0
    %5167 = vmatprep.subr.mxu0 0.0
    %5168 = vmatpush1.msra.mxu0 0.0
    %5169 = vmatprep.subr.mxu0 0.0
    %5170 = vmatpush1.msra.mxu0 0.0
    %5171 = vmatprep.subr.mxu0 0.0
    %5172 = vmatpush1.msra.mxu0 0.0
    %5173 = vmatprep.subr.mxu0 0.0
    %5174 = vmatpush1.msra.mxu0 0.0
    %5175 = vmatprep.subr.mxu0 0.0
    %5176 = vmatpush1.msra.mxu0 0.0
    %5177 = vmatprep.subr.mxu0 0.0
    %5178 = vmatpush1.msra.mxu0 0.0
    %5179 = vmatprep.subr.mxu0 0.0
    %5180 = vmatpush1.msra.mxu0 0.0
    %5181 = vmatprep.subr.mxu0 0.0
    %5182 = vmatpush1.msra.mxu0 0.0
    %5183 = vmatprep.subr.mxu0 0.0
    %5184 = vmatpush1.msra.mxu0 0.0
    %5185 = vmatprep.subr.mxu0 0.0
    %5186 = vmatpush1.msra.mxu0 0.0
    %5187 = vmatprep.subr.mxu0 0.0
    %5188 = vmatpush1.msra.mxu0 0.0
    %5189 = vmatprep.subr.mxu0 0.0
    %5190 = vmatpush1.msra.mxu0 0.0
    %5191 = vmatprep.subr.mxu0 0.0
    %5192 = vmatpush1.msra.mxu0 0.0
    %5193 = vmatprep.subr.mxu0 0.0
    %5194 = vmatpush1.msra.mxu0 0.0
    %5195 = vmatprep.subr.mxu0 0.0
    %5196 = vmatpush1.msra.mxu0 0.0
    %5197 = vmatprep.subr.mxu0 0.0
    %5198 = vmatpush1.msra.mxu0 0.0
    %5199 = vmatprep.subr.mxu0 0.0
    %5200 = vmatpush1.msra.mxu0 0.0
    %5201 = vmatprep.subr.mxu0 0.0
    %5202 = vmatpush1.msra.mxu0 0.0
    %5203 = vmatprep.subr.mxu0 0.0
    %5204 = vmatpush1.msra.mxu0 0.0
    %5205 = vmatprep.subr.mxu0 0.0
    %5206 = vmatpush1.msra.mxu0 0.0
    %5207 = vmatprep.subr.mxu0 0.0
    %5208 = vmatpush1.msra.mxu0 0.0
    %5209 = vmatprep.subr.mxu0 0.0
    %5210 = vmatpush1.msra.mxu0 0.0
    %5211 = vmatprep.subr.mxu0 0.0
    %5212 = vmatpush1.msra.mxu0 0.0
    %5213 = vmatprep.mubr.f32.mxu0 0.0
    %5214 = vmatmul.mubr.f32.gmra.mrb[0].mxu0 %v5147
    %v5215 = vpop.f32.mrb[0].mxu0
    %v5216 = vadd.f32 0.0, %v5215
    %v5217 = vpop.f32.mrb[0].mxu0
    %5218 = vdwg.mxu0
    %5219 = vrot.lane.b32.xlu0 %v4134, 48
    %v5220 = vpop.permute.xlu0 %5219
    %v5223 = vsel %vm2104, %v5142, 0
    %5225 = vmatprep.subr.mxu0 0.0
    %5226 = vmatpush1.msra.mxu0 %v5220
    %5227 = vmatprep.subr.mxu0 0.0
    %5228 = vmatpush1.msra.mxu0 0.0
    %5229 = vmatprep.subr.mxu0 0.0
    %5230 = vmatpush1.msra.mxu0 0.0
    %5231 = vmatprep.subr.mxu0 0.0
    %5232 = vmatpush1.msra.mxu0 0.0
    %5233 = vmatprep.subr.mxu0 0.0
    %5234 = vmatpush1.msra.mxu0 0.0
    %5235 = vmatprep.subr.mxu0 0.0
    %5236 = vmatpush1.msra.mxu0 0.0
    %5237 = vmatprep.subr.mxu0 0.0
    %5238 = vmatpush1.msra.mxu0 0.0
    %5239 = vmatprep.subr.mxu0 0.0
    %5240 = vmatpush1.msra.mxu0 0.0
    %5241 = vmatprep.subr.mxu0 0.0
    %5242 = vmatpush1.msra.mxu0 0.0
    %5243 = vmatprep.subr.mxu0 0.0
    %5244 = vmatpush1.msra.mxu0 0.0
    %5245 = vmatprep.subr.mxu0 0.0
    %5246 = vmatpush1.msra.mxu0 0.0
    %5247 = vmatprep.subr.mxu0 0.0
    %5248 = vmatpush1.msra.mxu0 0.0
    %5249 = vmatprep.subr.mxu0 0.0
    %5250 = vmatpush1.msra.mxu0 0.0
    %5251 = vmatprep.subr.mxu0 0.0
    %5252 = vmatpush1.msra.mxu0 0.0
    %5253 = vmatprep.subr.mxu0 0.0
    %5254 = vmatpush1.msra.mxu0 0.0
    %5255 = vmatprep.subr.mxu0 0.0
    %5256 = vmatpush1.msra.mxu0 0.0
    %5257 = vmatprep.subr.mxu0 0.0
    %5258 = vmatpush1.msra.mxu0 0.0
    %5259 = vmatprep.subr.mxu0 0.0
    %5260 = vmatpush1.msra.mxu0 0.0
    %5261 = vmatprep.subr.mxu0 0.0
    %5262 = vmatpush1.msra.mxu0 0.0
    %5263 = vmatprep.subr.mxu0 0.0
    %5264 = vmatpush1.msra.mxu0 0.0
    %5265 = vmatprep.subr.mxu0 0.0
    %5266 = vmatpush1.msra.mxu0 0.0
    %5267 = vmatprep.subr.mxu0 0.0
    %5268 = vmatpush1.msra.mxu0 0.0
    %5269 = vmatprep.subr.mxu0 0.0
    %5270 = vmatpush1.msra.mxu0 0.0
    %5271 = vmatprep.subr.mxu0 0.0
    %5272 = vmatpush1.msra.mxu0 0.0
    %5273 = vmatprep.subr.mxu0 0.0
    %5274 = vmatpush1.msra.mxu0 0.0
    %5275 = vmatprep.subr.mxu0 0.0
    %5276 = vmatpush1.msra.mxu0 0.0
    %5277 = vmatprep.subr.mxu0 0.0
    %5278 = vmatpush1.msra.mxu0 0.0
    %5279 = vmatprep.subr.mxu0 0.0
    %5280 = vmatpush1.msra.mxu0 0.0
    %5281 = vmatprep.subr.mxu0 0.0
    %5282 = vmatpush1.msra.mxu0 0.0
    %5283 = vmatprep.subr.mxu0 0.0
    %5284 = vmatpush1.msra.mxu0 0.0
    %5285 = vmatprep.subr.mxu0 0.0
    %5286 = vmatpush1.msra.mxu0 0.0
    %5287 = vmatprep.subr.mxu0 0.0
    %5288 = vmatpush1.msra.mxu0 0.0
    %5289 = vmatprep.mubr.f32.mxu0 0.0
    %5290 = vmatmul.mubr.f32.gmra.mrb[0].mxu0 %v5223
    %v5291 = vpop.f32.mrb[0].mxu0
    %v5292 = vadd.f32 0.0, %v5291
    %v5293 = vpop.f32.mrb[0].mxu0
    %5294 = vdwg.mxu0
    %5296 = vrot.lane.b32.xlu0 %v3999, 32
    %v5297 = vpop.permute.xlu0 %5296
    %v5300 = vsel %vm2104, %v5216, 0
    %v5303 = vsel %vm2104, %v5292, 0
    %5305 = vmatprep.subr.mxu0 0.0
    %5306 = vmatpush1.msra.mxu0 %v5297
    %5307 = vmatprep.subr.mxu0 0.0
    %5308 = vmatpush1.msra.mxu0 0.0
    %5309 = vmatprep.subr.mxu0 0.0
    %5310 = vmatpush1.msra.mxu0 0.0
    %5311 = vmatprep.subr.mxu0 0.0
    %5312 = vmatpush1.msra.mxu0 0.0
    %5313 = vmatprep.subr.mxu0 0.0
    %5314 = vmatpush1.msra.mxu0 0.0
    %5315 = vmatprep.subr.mxu0 0.0
    %5316 = vmatpush1.msra.mxu0 0.0
    %5317 = vmatprep.subr.mxu0 0.0
    %5318 = vmatpush1.msra.mxu0 0.0
    %5319 = vmatprep.subr.mxu0 0.0
    %5320 = vmatpush1.msra.mxu0 0.0
    %5321 = vmatprep.subr.mxu0 0.0
    %5322 = vmatpush1.msra.mxu0 0.0
    %5323 = vmatprep.subr.mxu0 0.0
    %5324 = vmatpush1.msra.mxu0 0.0
    %5325 = vmatprep.subr.mxu0 0.0
    %5326 = vmatpush1.msra.mxu0 0.0
    %5327 = vmatprep.subr.mxu0 0.0
    %5328 = vmatpush1.msra.mxu0 0.0
    %5329 = vmatprep.subr.mxu0 0.0
    %5330 = vmatpush1.msra.mxu0 0.0
    %5331 = vmatprep.subr.mxu0 0.0
    %5332 = vmatpush1.msra.mxu0 0.0
    %5333 = vmatprep.subr.mxu0 0.0
    %5334 = vmatpush1.msra.mxu0 0.0
    %5335 = vmatprep.subr.mxu0 0.0
    %5336 = vmatpush1.msra.mxu0 0.0
    %5337 = vmatprep.subr.mxu0 0.0
    %5338 = vmatpush1.msra.mxu0 0.0
    %5339 = vmatprep.subr.mxu0 0.0
    %5340 = vmatpush1.msra.mxu0 0.0
    %5341 = vmatprep.subr.mxu0 0.0
    %5342 = vmatpush1.msra.mxu0 0.0
    %5343 = vmatprep.subr.mxu0 0.0
    %5344 = vmatpush1.msra.mxu0 0.0
    %5345 = vmatprep.subr.mxu0 0.0
    %5346 = vmatpush1.msra.mxu0 0.0
    %5347 = vmatprep.subr.mxu0 0.0
    %5348 = vmatpush1.msra.mxu0 0.0
    %5349 = vmatprep.subr.mxu0 0.0
    %5350 = vmatpush1.msra.mxu0 0.0
    %5351 = vmatprep.subr.mxu0 0.0
    %5352 = vmatpush1.msra.mxu0 0.0
    %5353 = vmatprep.subr.mxu0 0.0
    %5354 = vmatpush1.msra.mxu0 0.0
    %5355 = vmatprep.subr.mxu0 0.0
    %5356 = vmatpush1.msra.mxu0 0.0
    %5357 = vmatprep.subr.mxu0 0.0
    %5358 = vmatpush1.msra.mxu0 0.0
    %5359 = vmatprep.subr.mxu0 0.0
    %5360 = vmatpush1.msra.mxu0 0.0
    %5361 = vmatprep.subr.mxu0 0.0
    %5362 = vmatpush1.msra.mxu0 0.0
    %5363 = vmatprep.subr.mxu0 0.0
    %5364 = vmatpush1.msra.mxu0 0.0
    %5365 = vmatprep.subr.mxu0 0.0
    %5366 = vmatpush1.msra.mxu0 0.0
    %5367 = vmatprep.subr.mxu0 0.0
    %5368 = vmatpush1.msra.mxu0 0.0
    %5369 = vmatprep.mubr.f32.mxu0 0.0
    %5370 = vmatmul.mubr.f32.gmra.mrb[0].mxu0 %v5300
    %v5371 = vpop.f32.mrb[0].mxu0
    %v5372 = vadd.f32 0.0, %v5371
    %v5373 = vpop.f32.mrb[0].mxu0
    %5374 = vmatprep.mubr.f32.mxu0 0.0
    %5375 = vmatmul.mubr.f32.gmra.mrb[0].mxu0 %v5303
    %v5376 = vpop.f32.mrb[0].mxu0
    %v5377 = vadd.f32 0.0, %v5376
    %v5378 = vpop.f32.mrb[0].mxu0
    %5379 = vdwg.mxu0
    %v5380 = vadd.f32 %v4957, %v5372
    %v5381 = vadd.f32 %v4962, %v5377
    %5382 = vrot.lane.b32.xlu0 %v4129, 104
    %v5383 = vpop.permute.xlu0 %5382
    %5384 = vrot.lane.b32.xlu0 %v4129, 72
    %v5385 = vpop.permute.xlu0 %5384
    %v5386 = vsel %vm2104, %v5383, 0
    %v5388 = vsel %vm2104, %v5385, 0
    %5390 = vmatprep.subr.mxu0 0.0
    %5391 = vmatpush1.xpose.msra.mxu0 %v5388
    %5392 = vmatprep.subr.mxu0 0.0
    %5393 = vmatpush1.xpose.msra.mxu0 0.0
    %5394 = vmatprep.subr.mxu0 0.0
    %5395 = vmatpush1.xpose.msra.mxu0 0.0
    %5396 = vmatprep.subr.mxu0 0.0
    %5397 = vmatpush1.xpose.msra.mxu0 0.0
    %5398 = vmatprep.subr.mxu0 0.0
    %5399 = vmatpush1.xpose.msra.mxu0 0.0
    %5400 = vmatprep.subr.mxu0 0.0
    %5401 = vmatpush1.xpose.msra.mxu0 0.0
    %5402 = vmatprep.subr.mxu0 0.0
    %5403 = vmatpush1.xpose.msra.mxu0 0.0
    %5404 = vmatprep.subr.mxu0 0.0
    %5405 = vmatpush1.xpose.msra.mxu0 0.0
    %5406 = vmatprep.subr.mxu0 0.0
    %5407 = vmatpush1.xpose.msra.mxu0 0.0
    %5408 = vmatprep.subr.mxu0 0.0
    %5409 = vmatpush1.xpose.msra.mxu0 0.0
    %5410 = vmatprep.subr.mxu0 0.0
    %5411 = vmatpush1.xpose.msra.mxu0 0.0
    %5412 = vmatprep.subr.mxu0 0.0
    %5413 = vmatpush1.xpose.msra.mxu0 0.0
    %5414 = vmatprep.subr.mxu0 0.0
    %5415 = vmatpush1.xpose.msra.mxu0 0.0
    %5416 = vmatprep.subr.mxu0 0.0
    %5417 = vmatpush1.xpose.msra.mxu0 0.0
    %5418 = vmatprep.subr.mxu0 0.0
    %5419 = vmatpush1.xpose.msra.mxu0 0.0
    %5420 = vmatprep.subr.mxu0 0.0
    %5421 = vmatpush1.xpose.msra.mxu0 0.0
    %5422 = vmatprep.subr.mxu0 0.0
    %5423 = vmatpush1.xpose.msra.mxu0 0.0
    %5424 = vmatprep.subr.mxu0 0.0
    %5425 = vmatpush1.xpose.msra.mxu0 0.0
    %5426 = vmatprep.subr.mxu0 0.0
    %5427 = vmatpush1.xpose.msra.mxu0 0.0
    %5428 = vmatprep.subr.mxu0 0.0
    %5429 = vmatpush1.xpose.msra.mxu0 0.0
    %5430 = vmatprep.subr.mxu0 0.0
    %5431 = vmatpush1.xpose.msra.mxu0 0.0
    %5432 = vmatprep.subr.mxu0 0.0
    %5433 = vmatpush1.xpose.msra.mxu0 0.0
    %5434 = vmatprep.subr.mxu0 0.0
    %5435 = vmatpush1.xpose.msra.mxu0 0.0
    %5436 = vmatprep.subr.mxu0 0.0
    %5437 = vmatpush1.xpose.msra.mxu0 0.0
    %5438 = vmatprep.subr.mxu0 0.0
    %5439 = vmatpush1.xpose.msra.mxu0 0.0
    %5440 = vmatprep.subr.mxu0 0.0
    %5441 = vmatpush1.xpose.msra.mxu0 0.0
    %5442 = vmatprep.subr.mxu0 0.0
    %5443 = vmatpush1.xpose.msra.mxu0 0.0
    %5444 = vmatprep.subr.mxu0 0.0
    %5445 = vmatpush1.xpose.msra.mxu0 0.0
    %5446 = vmatprep.subr.mxu0 0.0
    %5447 = vmatpush1.xpose.msra.mxu0 0.0
    %5448 = vmatprep.subr.mxu0 0.0
    %5449 = vmatpush1.xpose.msra.mxu0 0.0
    %5450 = vmatprep.subr.mxu0 0.0
    %5451 = vmatpush1.xpose.msra.mxu0 0.0
    %5452 = vmatprep.subr.mxu0 0.0
    %5453 = vmatpush1.xpose.msra.mxu0 0.0
    %5454 = vmatprep.mubr.f32.mxu0 0.0
    %5455 = vmatmul.mubr.f32.gmra.mrb[0].mxu0 %v5386
    %v5456 = vpop.f32.mrb[0].mxu0
    %v5457 = vadd.f32 %v1958, %v5456
    %v5458 = vpop.f32.mrb[0].mxu0
    %5459 = vdwg.mxu0
    %5460 = vrot.lane.b32.xlu0 %v4134, 104
    %v5461 = vpop.permute.xlu0 %5460
    %5462 = vrot.lane.b32.xlu0 %v4134, 72
    %v5463 = vpop.permute.xlu0 %5462
    %v5464 = vsel %vm2104, %v5461, 0
    %v5466 = vsel %vm2104, %v5463, 0
    %5468 = vmatprep.subr.mxu0 0.0
    %5469 = vmatpush1.xpose.msra.mxu0 %v5466
    %5470 = vmatprep.subr.mxu0 0.0
    %5471 = vmatpush1.xpose.msra.mxu0 0.0
    %5472 = vmatprep.subr.mxu0 0.0
    %5473 = vmatpush1.xpose.msra.mxu0 0.0
    %5474 = vmatprep.subr.mxu0 0.0
    %5475 = vmatpush1.xpose.msra.mxu0 0.0
    %5476 = vmatprep.subr.mxu0 0.0
    %5477 = vmatpush1.xpose.msra.mxu0 0.0
    %5478 = vmatprep.subr.mxu0 0.0
    %5479 = vmatpush1.xpose.msra.mxu0 0.0
    %5480 = vmatprep.subr.mxu0 0.0
    %5481 = vmatpush1.xpose.msra.mxu0 0.0
    %5482 = vmatprep.subr.mxu0 0.0
    %5483 = vmatpush1.xpose.msra.mxu0 0.0
    %5484 = vmatprep.subr.mxu0 0.0
    %5485 = vmatpush1.xpose.msra.mxu0 0.0
    %5486 = vmatprep.subr.mxu0 0.0
    %5487 = vmatpush1.xpose.msra.mxu0 0.0
    %5488 = vmatprep.subr.mxu0 0.0
    %5489 = vmatpush1.xpose.msra.mxu0 0.0
    %5490 = vmatprep.subr.mxu0 0.0
    %5491 = vmatpush1.xpose.msra.mxu0 0.0
    %5492 = vmatprep.subr.mxu0 0.0
    %5493 = vmatpush1.xpose.msra.mxu0 0.0
    %5494 = vmatprep.subr.mxu0 0.0
    %5495 = vmatpush1.xpose.msra.mxu0 0.0
    %5496 = vmatprep.subr.mxu0 0.0
    %5497 = vmatpush1.xpose.msra.mxu0 0.0
    %5498 = vmatprep.subr.mxu0 0.0
    %5499 = vmatpush1.xpose.msra.mxu0 0.0
    %5500 = vmatprep.subr.mxu0 0.0
    %5501 = vmatpush1.xpose.msra.mxu0 0.0
    %5502 = vmatprep.subr.mxu0 0.0
    %5503 = vmatpush1.xpose.msra.mxu0 0.0
    %5504 = vmatprep.subr.mxu0 0.0
    %5505 = vmatpush1.xpose.msra.mxu0 0.0
    %5506 = vmatprep.subr.mxu0 0.0
    %5507 = vmatpush1.xpose.msra.mxu0 0.0
    %5508 = vmatprep.subr.mxu0 0.0
    %5509 = vmatpush1.xpose.msra.mxu0 0.0
    %5510 = vmatprep.subr.mxu0 0.0
    %5511 = vmatpush1.xpose.msra.mxu0 0.0
    %5512 = vmatprep.subr.mxu0 0.0
    %5513 = vmatpush1.xpose.msra.mxu0 0.0
    %5514 = vmatprep.subr.mxu0 0.0
    %5515 = vmatpush1.xpose.msra.mxu0 0.0
    %5516 = vmatprep.subr.mxu0 0.0
    %5517 = vmatpush1.xpose.msra.mxu0 0.0
    %5518 = vmatprep.subr.mxu0 0.0
    %5519 = vmatpush1.xpose.msra.mxu0 0.0
    %5520 = vmatprep.subr.mxu0 0.0
    %5521 = vmatpush1.xpose.msra.mxu0 0.0
    %5522 = vmatprep.subr.mxu0 0.0
    %5523 = vmatpush1.xpose.msra.mxu0 0.0
    %5524 = vmatprep.subr.mxu0 0.0
    %5525 = vmatpush1.xpose.msra.mxu0 0.0
    %5526 = vmatprep.subr.mxu0 0.0
    %5527 = vmatpush1.xpose.msra.mxu0 0.0
    %5528 = vmatprep.subr.mxu0 0.0
    %5529 = vmatpush1.xpose.msra.mxu0 0.0
    %5530 = vmatprep.subr.mxu0 0.0
    %5531 = vmatpush1.xpose.msra.mxu0 0.0
    %5532 = vmatprep.mubr.f32.mxu0 0.0
    %5533 = vmatmul.mubr.f32.gmra.mrb[0].mxu0 %v5464
    %v5534 = vpop.f32.mrb[0].mxu0
    %v5535 = vadd.f32 %v1958, %v5534
    %v5536 = vpop.f32.mrb[0].mxu0
    %5537 = vdwg.mxu0
    %v5538 = vsel %vm2104, %v5457, -inf
    %5539 = vmax.xlane.f32.xlu0 %v5538
    %v5540 = vpop.xlane.xlu0 %5539
    %v5541 = vsel %vm2104, %v5535, -inf
    %5542 = vmax.xlane.f32.xlu0 %v5541
    %v5543 = vpop.xlane.xlu0 %5542
    %v5544 = vsub.f32 %v5457, %v5540
    %v5545 = vsub.f32 %v5535, %v5543
    %v5546 = vmul.f32 %v5544, 1.442695
    %v5547 = vpow.pop %v5546
    %v5548 = vmul.f32 %v5545, 1.442695
    %v5549 = vpow.pop %v5548
    %v5550 = vsel %vm2104, %v5547, 0.0
    %5551 = vadd.xlane.f32.xlu0 %v5550
    %v5552 = vpop.xlane.xlu0 %5551
    %v5553 = vsel %vm2104, %v5549, 0.0
    %5554 = vadd.xlane.f32.xlu0 %v5553
    %v5555 = vpop.xlane.xlu0 %5554
    %v5556 = vrcp.pop %v5552
    %v5557 = vrcp.pop %v5555
    %v5558 = vmul.f32 %v5547, %v5556
    %v5559 = vmul.f32 %v5549, %v5557
    %5560 = vrot.lane.b32.xlu0 %v4129, 40
    %v5561 = vpop.permute.xlu0 %5560
    %v5564 = vsel %vm2104, %v5558, 0
    %5566 = vmatprep.subr.mxu0 0.0
    %5567 = vmatpush1.msra.mxu0 %v5561
    %5568 = vmatprep.subr.mxu0 0.0
    %5569 = vmatpush1.msra.mxu0 0.0
    %5570 = vmatprep.subr.mxu0 0.0
    %5571 = vmatpush1.msra.mxu0 0.0
    %5572 = vmatprep.subr.mxu0 0.0
    %5573 = vmatpush1.msra.mxu0 0.0
    %5574 = vmatprep.subr.mxu0 0.0
    %5575 = vmatpush1.msra.mxu0 0.0
    %5576 = vmatprep.subr.mxu0 0.0
    %5577 = vmatpush1.msra.mxu0 0.0
    %5578 = vmatprep.subr.mxu0 0.0
    %5579 = vmatpush1.msra.mxu0 0.0
    %5580 = vmatprep.subr.mxu0 0.0
    %5581 = vmatpush1.msra.mxu0 0.0
    %5582 = vmatprep.subr.mxu0 0.0
    %5583 = vmatpush1.msra.mxu0 0.0
    %5584 = vmatprep.subr.mxu0 0.0
    %5585 = vmatpush1.msra.mxu0 0.0
    %5586 = vmatprep.subr.mxu0 0.0
    %5587 = vmatpush1.msra.mxu0 0.0
    %5588 = vmatprep.subr.mxu0 0.0
    %5589 = vmatpush1.msra.mxu0 0.0
    %5590 = vmatprep.subr.mxu0 0.0
    %5591 = vmatpush1.msra.mxu0 0.0
    %5592 = vmatprep.subr.mxu0 0.0
    %5593 = vmatpush1.msra.mxu0 0.0
    %5594 = vmatprep.subr.mxu0 0.0
    %5595 = vmatpush1.msra.mxu0 0.0
    %5596 = vmatprep.subr.mxu0 0.0
    %5597 = vmatpush1.msra.mxu0 0.0
    %5598 = vmatprep.subr.mxu0 0.0
    %5599 = vmatpush1.msra.mxu0 0.0
    %5600 = vmatprep.subr.mxu0 0.0
    %5601 = vmatpush1.msra.mxu0 0.0
    %5602 = vmatprep.subr.mxu0 0.0
    %5603 = vmatpush1.msra.mxu0 0.0
    %5604 = vmatprep.subr.mxu0 0.0
    %5605 = vmatpush1.msra.mxu0 0.0
    %5606 = vmatprep.subr.mxu0 0.0
    %5607 = vmatpush1.msra.mxu0 0.0
    %5608 = vmatprep.subr.mxu0 0.0
    %5609 = vmatpush1.msra.mxu0 0.0
    %5610 = vmatprep.subr.mxu0 0.0
    %5611 = vmatpush1.msra.mxu0 0.0
    %5612 = vmatprep.subr.mxu0 0.0
    %5613 = vmatpush1.msra.mxu0 0.0
    %5614 = vmatprep.subr.mxu0 0.0
    %5615 = vmatpush1.msra.mxu0 0.0
    %5616 = vmatprep.subr.mxu0 0.0
    %5617 = vmatpush1.msra.mxu0 0.0
    %5618 = vmatprep.subr.mxu0 0.0
    %5619 = vmatpush1.msra.mxu0 0.0
    %5620 = vmatprep.subr.mxu0 0.0
    %5621 = vmatpush1.msra.mxu0 0.0
    %5622 = vmatprep.subr.mxu0 0.0
    %5623 = vmatpush1.msra.mxu0 0.0
    %5624 = vmatprep.subr.mxu0 0.0
    %5625 = vmatpush1.msra.mxu0 0.0
    %5626 = vmatprep.subr.mxu0 0.0
    %5627 = vmatpush1.msra.mxu0 0.0
    %5628 = vmatprep.subr.mxu0 0.0
    %5629 = vmatpush1.msra.mxu0 0.0
    %5630 = vmatprep.mubr.f32.mxu0 0.0
    %5631 = vmatmul.mubr.f32.gmra.mrb[0].mxu0 %v5564
    %v5632 = vpop.f32.mrb[0].mxu0
    %v5633 = vadd.f32 0.0, %v5632
    %v5634 = vpop.f32.mrb[0].mxu0
    %5635 = vdwg.mxu0
    %5636 = vrot.lane.b32.xlu0 %v4134, 40
    %v5637 = vpop.permute.xlu0 %5636
    %v5640 = vsel %vm2104, %v5559, 0
    %5642 = vmatprep.subr.mxu0 0.0
    %5643 = vmatpush1.msra.mxu0 %v5637
    %5644 = vmatprep.subr.mxu0 0.0
    %5645 = vmatpush1.msra.mxu0 0.0
    %5646 = vmatprep.subr.mxu0 0.0
    %5647 = vmatpush1.msra.mxu0 0.0
    %5648 = vmatprep.subr.mxu0 0.0
    %5649 = vmatpush1.msra.mxu0 0.0
    %5650 = vmatprep.subr.mxu0 0.0
    %5651 = vmatpush1.msra.mxu0 0.0
    %5652 = vmatprep.subr.mxu0 0.0
    %5653 = vmatpush1.msra.mxu0 0.0
    %5654 = vmatprep.subr.mxu0 0.0
    %5655 = vmatpush1.msra.mxu0 0.0
    %5656 = vmatprep.subr.mxu0 0.0
    %5657 = vmatpush1.msra.mxu0 0.0
    %5658 = vmatprep.subr.mxu0 0.0
    %5659 = vmatpush1.msra.mxu0 0.0
    %5660 = vmatprep.subr.mxu0 0.0
    %5661 = vmatpush1.msra.mxu0 0.0
    %5662 = vmatprep.subr.mxu0 0.0
    %5663 = vmatpush1.msra.mxu0 0.0
    %5664 = vmatprep.subr.mxu0 0.0
    %5665 = vmatpush1.msra.mxu0 0.0
    %5666 = vmatprep.subr.mxu0 0.0
    %5667 = vmatpush1.msra.mxu0 0.0
    %5668 = vmatprep.subr.mxu0 0.0
    %5669 = vmatpush1.msra.mxu0 0.0
    %5670 = vmatprep.subr.mxu0 0.0
    %5671 = vmatpush1.msra.mxu0 0.0
    %5672 = vmatprep.subr.mxu0 0.0
    %5673 = vmatpush1.msra.mxu0 0.0
    %5674 = vmatprep.subr.mxu0 0.0
    %5675 = vmatpush1.msra.mxu0 0.0
    %5676 = vmatprep.subr.mxu0 0.0
    %5677 = vmatpush1.msra.mxu0 0.0
    %5678 = vmatprep.subr.mxu0 0.0
    %5679 = vmatpush1.msra.mxu0 0.0
    %5680 = vmatprep.subr.mxu0 0.0
    %5681 = vmatpush1.msra.mxu0 0.0
    %5682 = vmatprep.subr.mxu0 0.0
    %5683 = vmatpush1.msra.mxu0 0.0
    %5684 = vmatprep.subr.mxu0 0.0
    %5685 = vmatpush1.msra.mxu0 0.0
    %5686 = vmatprep.subr.mxu0 0.0
    %5687 = vmatpush1.msra.mxu0 0.0
    %5688 = vmatprep.subr.mxu0 0.0
    %5689 = vmatpush1.msra.mxu0 0.0
    %5690 = vmatprep.subr.mxu0 0.0
    %5691 = vmatpush1.msra.mxu0 0.0
    %5692 = vmatprep.subr.mxu0 0.0
    %5693 = vmatpush1.msra.mxu0 0.0
    %5694 = vmatprep.subr.mxu0 0.0
    %5695 = vmatpush1.msra.mxu0 0.0
    %5696 = vmatprep.subr.mxu0 0.0
    %5697 = vmatpush1.msra.mxu0 0.0
    %5698 = vmatprep.subr.mxu0 0.0
    %5699 = vmatpush1.msra.mxu0 0.0
    %5700 = vmatprep.subr.mxu0 0.0
    %5701 = vmatpush1.msra.mxu0 0.0
    %5702 = vmatprep.subr.mxu0 0.0
    %5703 = vmatpush1.msra.mxu0 0.0
    %5704 = vmatprep.subr.mxu0 0.0
    %5705 = vmatpush1.msra.mxu0 0.0
    %5706 = vmatprep.mubr.f32.mxu0 0.0
    %5707 = vmatmul.mubr.f32.gmra.mrb[0].mxu0 %v5640
    %v5708 = vpop.f32.mrb[0].mxu0
    %v5709 = vadd.f32 0.0, %v5708
    %v5710 = vpop.f32.mrb[0].mxu0
    %5711 = vdwg.mxu0
    %5713 = vrot.lane.b32.xlu0 %v4001, 32
    %v5714 = vpop.permute.xlu0 %5713
    %v5717 = vsel %vm2104, %v5633, 0
    %v5720 = vsel %vm2104, %v5709, 0
    %5722 = vmatprep.subr.mxu0 0.0
    %5723 = vmatpush1.msra.mxu0 %v5714
    %5724 = vmatprep.subr.mxu0 0.0
    %5725 = vmatpush1.msra.mxu0 0.0
    %5726 = vmatprep.subr.mxu0 0.0
    %5727 = vmatpush1.msra.mxu0 0.0
    %5728 = vmatprep.subr.mxu0 0.0
    %5729 = vmatpush1.msra.mxu0 0.0
    %5730 = vmatprep.subr.mxu0 0.0
    %5731 = vmatpush1.msra.mxu0 0.0
    %5732 = vmatprep.subr.mxu0 0.0
    %5733 = vmatpush1.msra.mxu0 0.0
    %5734 = vmatprep.subr.mxu0 0.0
    %5735 = vmatpush1.msra.mxu0 0.0
    %5736 = vmatprep.subr.mxu0 0.0
    %5737 = vmatpush1.msra.mxu0 0.0
    %5738 = vmatprep.subr.mxu0 0.0
    %5739 = vmatpush1.msra.mxu0 0.0
    %5740 = vmatprep.subr.mxu0 0.0
    %5741 = vmatpush1.msra.mxu0 0.0
    %5742 = vmatprep.subr.mxu0 0.0
    %5743 = vmatpush1.msra.mxu0 0.0
    %5744 = vmatprep.subr.mxu0 0.0
    %5745 = vmatpush1.msra.mxu0 0.0
    %5746 = vmatprep.subr.mxu0 0.0
    %5747 = vmatpush1.msra.mxu0 0.0
    %5748 = vmatprep.subr.mxu0 0.0
    %5749 = vmatpush1.msra.mxu0 0.0
    %5750 = vmatprep.subr.mxu0 0.0
    %5751 = vmatpush1.msra.mxu0 0.0
    %5752 = vmatprep.subr.mxu0 0.0
    %5753 = vmatpush1.msra.mxu0 0.0
    %5754 = vmatprep.subr.mxu0 0.0
    %5755 = vmatpush1.msra.mxu0 0.0
    %5756 = vmatprep.subr.mxu0 0.0
    %5757 = vmatpush1.msra.mxu0 0.0
    %5758 = vmatprep.subr.mxu0 0.0
    %5759 = vmatpush1.msra.mxu0 0.0
    %5760 = vmatprep.subr.mxu0 0.0
    %5761 = vmatpush1.msra.mxu0 0.0
    %5762 = vmatprep.subr.mxu0 0.0
    %5763 = vmatpush1.msra.mxu0 0.0
    %5764 = vmatprep.subr.mxu0 0.0
    %5765 = vmatpush1.msra.mxu0 0.0
    %5766 = vmatprep.subr.mxu0 0.0
    %5767 = vmatpush1.msra.mxu0 0.0
    %5768 = vmatprep.subr.mxu0 0.0
    %5769 = vmatpush1.msra.mxu0 0.0
    %5770 = vmatprep.subr.mxu0 0.0
    %5771 = vmatpush1.msra.mxu0 0.0
    %5772 = vmatprep.subr.mxu0 0.0
    %5773 = vmatpush1.msra.mxu0 0.0
    %5774 = vmatprep.subr.mxu0 0.0
    %5775 = vmatpush1.msra.mxu0 0.0
    %5776 = vmatprep.subr.mxu0 0.0
    %5777 = vmatpush1.msra.mxu0 0.0
    %5778 = vmatprep.subr.mxu0 0.0
    %5779 = vmatpush1.msra.mxu0 0.0
    %5780 = vmatprep.subr.mxu0 0.0
    %5781 = vmatpush1.msra.mxu0 0.0
    %5782 = vmatprep.subr.mxu0 0.0
    %5783 = vmatpush1.msra.mxu0 0.0
    %5784 = vmatprep.subr.mxu0 0.0
    %5785 = vmatpush1.msra.mxu0 0.0
    %5786 = vmatprep.mubr.f32.mxu0 0.0
    %5787 = vmatmul.mubr.f32.gmra.mrb[0].mxu0 %v5717
    %v5788 = vpop.f32.mrb[0].mxu0
    %v5789 = vadd.f32 0.0, %v5788
    %v5790 = vpop.f32.mrb[0].mxu0
    %5791 = vmatprep.mubr.f32.mxu0 0.0
    %5792 = vmatmul.mubr.f32.gmra.mrb[0].mxu0 %v5720
    %v5793 = vpop.f32.mrb[0].mxu0
    %v5794 = vadd.f32 0.0, %v5793
    %v5795 = vpop.f32.mrb[0].mxu0
    %5796 = vdwg.mxu0
    %v5797 = vadd.f32 %v5380, %v5789
    %v5798 = vadd.f32 %v5381, %v5794
    %v5799 = vlaneseq
    %v5800 = vshrl.u32 %v5799, 7
    %v5801 = vsub.s32 3, %v5800
    %v5802 = vrot.slane %v4013, %v5801
    %v5803 = vadd.f32 %v5797, %v5802
    %v5804 = vadd.f32 %v5798, %v5802
    %v5805 = vadd.f32 %v5803, %v3992
    %v5806 = vadd.f32 %v5804, %v3993
    %v5807 = vsel %vm1976, %v5805, 0.0
    %5808 = vadd.xlane.f32.xlu0 %v5807
    %v5809 = vpop.xlane.xlu0 %5808
    %v5810 = vsel %vm1976, %v5806, 0.0
    %5811 = vadd.xlane.f32.xlu0 %v5810
    %v5812 = vpop.xlane.xlu0 %5811
    %v5813 = vmul.f32 %v5809, %v1983
    %v5814 = vmul.f32 %v5812, %v1983
    %v5815 = vsub.f32 %v5805, %v5813
    %v5816 = vsub.f32 %v5806, %v5814
    %v5817 = vmul.f32 %v5815, %v5815
    %v5818 = vmul.f32 %v5816, %v5816
    %v5819 = vsel %vm1976, %v5817, 0.0
    %5820 = vadd.xlane.f32.xlu0 %v5819
    %v5821 = vpop.xlane.xlu0 %5820
    %v5822 = vsel %vm1976, %v5818, 0.0
    %5823 = vadd.xlane.f32.xlu0 %v5822
    %v5824 = vpop.xlane.xlu0 %5823
    %v5825 = vmul.f32 %v5821, %v1983
    %v5826 = vmul.f32 %v5824, %v1983
    %v5827 = vadd.f32 %v5825, 1e-06
    %v5828 = vadd.f32 %v5826, 1e-06
    %v5829 = vrsqrt.pop %v5827
    %v5830 = vrsqrt.pop %v5828
    %v5831 = vmul.f32 %v5815, %v5829
    %v5832 = vmul.f32 %v5816, %v5830
    %v5833 = vlaneseq
    %v5834 = vshrl.u32 %v5833, 7
    %v5835 = vsub.s32 4, %v5834
    %v5836 = vrot.slane %v4013, %v5835
    %v5837 = vmul.f32 %v5831, %v5836
    %v5838 = vmul.f32 %v5832, %v5836
    %v5839 = vlaneseq
    %v5840 = vshrl.u32 %v5839, 7
    %v5841 = vsub.s32 5, %v5840
    %v5842 = vrot.slane %v4013, %v5841
    %v5843 = vadd.f32 %v5837, %v5842
    %v5844 = vadd.f32 %v5838, %v5842
    %v5845 = vlaneseq
    %v5846 = vshrl.u32 %v5845, 7
    %v5847 = vsub.s32 6, %v5846
    %v5848 = vrot.slane %v4013, %v5847
    %v5850 = vsel %vm1976, %v5843, 0
    %v5853 = vsel %vm1976, %v5844, 0
    %5855 = vmatprep.subr.mxu0 0.0
    %5856 = vmatpush1.msra.mxu0 %v3996
    %5857 = vmatprep.subr.mxu0 0.0
    %5858 = vmatpush1.msra.mxu0 %v3998
    %5859 = vmatprep.subr.mxu0 0.0
    %5860 = vmatpush1.msra.mxu0 %v4000
    %5861 = vmatprep.subr.mxu0 0.0
    %5862 = vmatpush1.msra.mxu0 %v4002
    %5863 = vmatprep.subr.mxu0 0.0
    %5864 = vmatpush1.msra.mxu0 0.0
    %5865 = vmatprep.subr.mxu0 0.0
    %5866 = vmatpush1.msra.mxu0 0.0
    %5867 = vmatprep.subr.mxu0 0.0
    %5868 = vmatpush1.msra.mxu0 0.0
    %5869 = vmatprep.subr.mxu0 0.0
    %5870 = vmatpush1.msra.mxu0 0.0
    %5871 = vmatprep.subr.mxu0 0.0
    %5872 = vmatpush1.msra.mxu0 0.0
    %5873 = vmatprep.subr.mxu0 0.0
    %5874 = vmatpush1.msra.mxu0 0.0
    %5875 = vmatprep.subr.mxu0 0.0
    %5876 = vmatpush1.msra.mxu0 0.0
    %5877 = vmatprep.subr.mxu0 0.0
    %5878 = vmatpush1.msra.mxu0 0.0
    %5879 = vmatprep.subr.mxu0 0.0
    %5880 = vmatpush1.msra.mxu0 0.0
    %5881 = vmatprep.subr.mxu0 0.0
    %5882 = vmatpush1.msra.mxu0 0.0
    %5883 = vmatprep.subr.mxu0 0.0
    %5884 = vmatpush1.msra.mxu0 0.0
    %5885 = vmatprep.subr.mxu0 0.0
    %5886 = vmatpush1.msra.mxu0 0.0
    %5887 = vmatprep.subr.mxu0 0.0
    %5888 = vmatpush1.msra.mxu0 0.0
    %5889 = vmatprep.subr.mxu0 0.0
    %5890 = vmatpush1.msra.mxu0 0.0
    %5891 = vmatprep.subr.mxu0 0.0
    %5892 = vmatpush1.msra.mxu0 0.0
    %5893 = vmatprep.subr.mxu0 0.0
    %5894 = vmatpush1.msra.mxu0 0.0
    %5895 = vmatprep.subr.mxu0 0.0
    %5896 = vmatpush1.msra.mxu0 0.0
    %5897 = vmatprep.subr.mxu0 0.0
    %5898 = vmatpush1.msra.mxu0 0.0
    %5899 = vmatprep.subr.mxu0 0.0
    %5900 = vmatpush1.msra.mxu0 0.0
    %5901 = vmatprep.subr.mxu0 0.0
    %5902 = vmatpush1.msra.mxu0 0.0
    %5903 = vmatprep.subr.mxu0 0.0
    %5904 = vmatpush1.msra.mxu0 0.0
    %5905 = vmatprep.subr.mxu0 0.0
    %5906 = vmatpush1.msra.mxu0 0.0
    %5907 = vmatprep.subr.mxu0 0.0
    %5908 = vmatpush1.msra.mxu0 0.0
    %5909 = vmatprep.subr.mxu0 0.0
    %5910 = vmatpush1.msra.mxu0 0.0
    %5911 = vmatprep.subr.mxu0 0.0
    %5912 = vmatpush1.msra.mxu0 0.0
    %5913 = vmatprep.subr.mxu0 0.0
    %5914 = vmatpush1.msra.mxu0 0.0
    %5915 = vmatprep.subr.mxu0 0.0
    %5916 = vmatpush1.msra.mxu0 0.0
    %5917 = vmatprep.subr.mxu0 0.0
    %5918 = vmatpush1.msra.mxu0 0.0
    %5919 = vmatprep.mubr.f32.mxu0 0.0
    %5920 = vmatmul.mubr.f32.gmra.mrb[0].mxu0 %v5850
    %v5921 = vpop.f32.mrb[0].mxu0
    %v5922 = vadd.f32 %v5848, %v5921
    %v5923 = vpop.f32.mrb[0].mxu0
    %5924 = vmatprep.mubr.f32.mxu0 0.0
    %5925 = vmatmul.mubr.f32.gmra.mrb[0].mxu0 %v5853
    %v5926 = vpop.f32.mrb[0].mxu0
    %v5927 = vadd.f32 %v5848, %v5926
    %v5928 = vpop.f32.mrb[0].mxu0
    %5929 = vdwg.mxu0
    %v5930 = vmul.f32 %v5922, 0.5
    %v5931 = vmul.f32 %v5927, 0.5
    %v5932 = vmul.f32 %v5922, %v3897
    %v5933 = vmul.f32 %v5927, %v3897
    %v5934 = verf.f32.pop %v5932
    %v5935 = verf.f32.pop %v5933
    %v5936 = vadd.f32 %v5934, 1.0
    %v5937 = vadd.f32 %v5935, 1.0
    %v5938 = vmul.f32 %v5930, %v5936
    %v5939 = vmul.f32 %v5931, %v5937
    %v5940 = vlaneseq
    %v5941 = vshrl.u32 %v5940, 7
    %v5942 = vsub.s32 7, %v5941
    %v5943 = vrot.slane %v4013, %v5942
    %v5945 = vsel %vm3910, %v5938, 0
    %v5948 = vsel %vm3910, %v5939, 0
    %5950 = vmatprep.subr.mxu0 0.0
    %5951 = vmatpush1.msra.mxu0 %v4004
    %5952 = vmatprep.subr.mxu0 0.0
    %5953 = vmatpush1.msra.mxu0 %v4005
    %5954 = vmatprep.subr.mxu0 0.0
    %5955 = vmatpush1.msra.mxu0 %v4006
    %5956 = vmatprep.subr.mxu0 0.0
    %5957 = vmatpush1.msra.mxu0 %v4007
    %5958 = vmatprep.subr.mxu0 0.0
    %5959 = vmatpush1.msra.mxu0 %v4008
    %5960 = vmatprep.subr.mxu0 0.0
    %5961 = vmatpush1.msra.mxu0 %v4009
    %5962 = vmatprep.subr.mxu0 0.0
    %5963 = vmatpush1.msra.mxu0 %v4010
    %5964 = vmatprep.subr.mxu0 0.0
    %5965 = vmatpush1.msra.mxu0 %v4011
    %5966 = vmatprep.subr.mxu0 0.0
    %5967 = vmatpush1.msra.mxu0 0.0
    %5968 = vmatprep.subr.mxu0 0.0
    %5969 = vmatpush1.msra.mxu0 0.0
    %5970 = vmatprep.subr.mxu0 0.0
    %5971 = vmatpush1.msra.mxu0 0.0
    %5972 = vmatprep.subr.mxu0 0.0
    %5973 = vmatpush1.msra.mxu0 0.0
    %5974 = vmatprep.subr.mxu0 0.0
    %5975 = vmatpush1.msra.mxu0 0.0
    %5976 = vmatprep.subr.mxu0 0.0
    %5977 = vmatpush1.msra.mxu0 0.0
    %5978 = vmatprep.subr.mxu0 0.0
    %5979 = vmatpush1.msra.mxu0 0.0
    %5980 = vmatprep.subr.mxu0 0.0
    %5981 = vmatpush1.msra.mxu0 0.0
    %5982 = vmatprep.subr.mxu0 0.0
    %5983 = vmatpush1.msra.mxu0 0.0
    %5984 = vmatprep.subr.mxu0 0.0
    %5985 = vmatpush1.msra.mxu0 0.0
    %5986 = vmatprep.subr.mxu0 0.0
    %5987 = vmatpush1.msra.mxu0 0.0
    %5988 = vmatprep.subr.mxu0 0.0
    %5989 = vmatpush1.msra.mxu0 0.0
    %5990 = vmatprep.subr.mxu0 0.0
    %5991 = vmatpush1.msra.mxu0 0.0
    %5992 = vmatprep.subr.mxu0 0.0
    %5993 = vmatpush1.msra.mxu0 0.0
    %5994 = vmatprep.subr.mxu0 0.0
    %5995 = vmatpush1.msra.mxu0 0.0
    %5996 = vmatprep.subr.mxu0 0.0
    %5997 = vmatpush1.msra.mxu0 0.0
    %5998 = vmatprep.subr.mxu0 0.0
    %5999 = vmatpush1.msra.mxu0 0.0
    %6000 = vmatprep.subr.mxu0 0.0
    %6001 = vmatpush1.msra.mxu0 0.0
    %6002 = vmatprep.subr.mxu0 0.0
    %6003 = vmatpush1.msra.mxu0 0.0
    %6004 = vmatprep.subr.mxu0 0.0
    %6005 = vmatpush1.msra.mxu0 0.0
    %6006 = vmatprep.subr.mxu0 0.0
    %6007 = vmatpush1.msra.mxu0 0.0
    %6008 = vmatprep.subr.mxu0 0.0
    %6009 = vmatpush1.msra.mxu0 0.0
    %6010 = vmatprep.subr.mxu0 0.0
    %6011 = vmatpush1.msra.mxu0 0.0
    %6012 = vmatprep.subr.mxu0 0.0
    %6013 = vmatpush1.msra.mxu0 0.0
    %6014 = vmatprep.mubr.f32.mxu0 0.0
    %6015 = vmatmul.mubr.f32.gmra.mrb[0].mxu0 %v5945
    %v6016 = vpop.f32.mrb[0].mxu0
    %v6017 = vadd.f32 %v5943, %v6016
    %v6018 = vpop.f32.mrb[0].mxu0
    %6019 = vmatprep.mubr.f32.mxu0 0.0
    %6020 = vmatmul.mubr.f32.gmra.mrb[0].mxu0 %v5948
    %v6021 = vpop.f32.mrb[0].mxu0
    %v6022 = vadd.f32 %v5943, %v6021
    %v6023 = vpop.f32.mrb[0].mxu0
    %6024 = vdwg.mxu0
    %v6025 = vadd.f32 %v6017, %v5805
    %v6026 = vadd.f32 %v6022, %v5806
    %v6027 = vld [vmem:[%s6] sm:$0x1]
    %v6028 = vld [vmem:[%s6 + $0x1] sm:$0x1]
    %v6029 = vsel %vm1976, %v6025, 0.0
    %6030 = vadd.xlane.f32.xlu0 %v6029
    %v6031 = vpop.xlane.xlu0 %6030
    %v6032 = vsel %vm1976, %v6026, 0.0
    %6033 = vadd.xlane.f32.xlu0 %v6032
    %v6034 = vpop.xlane.xlu0 %6033
    %v6035 = vmul.f32 %v6031, %v1983
    %v6036 = vmul.f32 %v6034, %v1983
    %v6037 = vsub.f32 %v6025, %v6035
    %v6038 = vsub.f32 %v6026, %v6036
    %v6039 = vmul.f32 %v6037, %v6037
    %v6040 = vmul.f32 %v6038, %v6038
    %v6041 = vsel %vm1976, %v6039, 0.0
    %6042 = vadd.xlane.f32.xlu0 %v6041
    %v6043 = vpop.xlane.xlu0 %6042
    %v6044 = vsel %vm1976, %v6040, 0.0
    %6045 = vadd.xlane.f32.xlu0 %v6044
    %v6046 = vpop.xlane.xlu0 %6045
    %v6047 = vmul.f32 %v6043, %v1983
    %v6048 = vmul.f32 %v6046, %v1983
    %v6049 = vadd.f32 %v6047, 1e-06
    %v6050 = vadd.f32 %v6048, 1e-06
    %v6051 = vrsqrt.pop %v6049
    %v6052 = vrsqrt.pop %v6050
    %v6053 = vmul.f32 %v6037, %v6051
    %v6054 = vmul.f32 %v6038, %v6052
    %v6055 = vlaneseq
    %v6056 = vshrl.u32 %v6055, 7
    %v6057 = vsub.s32 0, %v6056
    %v6058 = vrot.slane %v6027, %v6057
    %v6059 = vmul.f32 %v6053, %v6058
    %v6060 = vmul.f32 %v6054, %v6058
    %v6061 = vlaneseq
    %v6062 = vshrl.u32 %v6061, 7
    %v6063 = vsub.s32 0, %v6062
    %v6064 = vrot.slane %v6028, %v6063
    %v6065 = vadd.f32 %v6059, %v6064
    %v6066 = vadd.f32 %v6060, %v6064
    %6067 = vst.msk [vmem:[#allocation2] sm:$0xff] %vm1976, %v6065
    %6068 = vst.msk [vmem:[#allocation2 + $0x8] sm:$0xff] %vm1976, %v6066
    %v6069 = vld [vmem:[%s6 + $0x2] sm:$0x1]
    %v6070 = vld [vmem:[%s6 + $0x3] sm:$0x1]
    %v6071 = vlaneseq
    %v6072 = vshrl.u32 %v6071, 7
    %v6073 = vsub.s32 0, %v6072
    %v6074 = vrot.slane %v6069, %v6073
    %v6075 = vmul.f32 %v6065, %v6074
    %v6076 = vmul.f32 %v6066, %v6074
    %v6077 = vsel %vm1976, %v6075, 0.0
    %6078 = vadd.xlane.f32.xlu0 %v6077
    %v6079 = vpop.xlane.xlu0 %6078
    %v6080 = vsel %vm1976, %v6076, 0.0
    %6081 = vadd.xlane.f32.xlu0 %v6080
    %v6082 = vpop.xlane.xlu0 %6081
    %v6083 = vlaneseq
    %v6084 = vshrl.u32 %v6083, 7
    %v6085 = vsub.s32 0, %v6084
    %v6086 = vrot.slane %v6070, %v6085
    %v6087 = vadd.f32 %v6079, %v6086
    %v6088 = vadd.f32 %v6082, %v6086
    %vm6089 = vcmask 7168
    %6090 = vst.msk [vmem:[%s8] sm:$0xff] %vm6089, %v6087
    %6091 = vst.msk [vmem:[%s8 + $0x8] sm:$0xff] %vm6089, %v6088
    // Predicated region
    $region30: #{tpu_custom_call.1} parent=1 // pred_check
      _
    $region31: #{tpu_custom_call.1} parent=1 // pred_check_branch
      %6093 = sbr.rel (0) target = $region33
    $region32: #{tpu_custom_call.1} parent=1 // pred_region
      %s6095 = ssub.s32 256, 256
      %6096 = vsyncadd [#allocation3], %s6095
      %s6097 = sshll.u32 [#allocation2], 4
      %s6098 = int_to_ptr.vmem [resolvable:$true] %s6097
      %6103 = dma.vmem_to_hbm [thread:$0]  %s6098, 256, %s7, [#allocation3], 128, 128, 8
    $region33: #{tpu_custom_call.1} parent=1 // pred_fallthru
      _
    // Predicated region
    $region34: #{tpu_custom_call.1} parent=1 // pred_check
      _
    $region35: #{tpu_custom_call.1} parent=1 // pred_check_branch
      %6105 = sbr.rel (0) target = $region37
    $region36: #{tpu_custom_call.1} parent=1 // pred_region
      _
    $region37: #{tpu_custom_call.1} parent=1 // pred_fallthru
      _
    // Predicated region
    $region38: #{tpu_custom_call.1} parent=1 // pred_check
      _
    $region39: #{tpu_custom_call.1} parent=1 // pred_check_branch
      %6107 = sbr.rel (0) target = $region41
    $region40: #{tpu_custom_call.1} parent=1 // pred_region
      %6108 = dma.done [#allocation3], 256
    $region41: #{tpu_custom_call.1} parent=1 // pred_fallthru
      _
    // Predicated region
    $region42: #{tpu_custom_call.1} parent=1 // pred_check
      _
    $region43: #{tpu_custom_call.1} parent=1 // pred_check_branch
      %6110 = sbr.rel (0) target = $region45
    $region44: #{tpu_custom_call.1} parent=1 // pred_region
      _
    $region45: #{tpu_custom_call.1} parent=1 // pred_fallthru
      _
    %6111 = vsyncpa [#allocation3], 1

</llo_original>
